<compile_context>
chip_gen: v6e
topology: v6e:2x2x1
jax: 0.10.0
libtpu: 0.0.40
codegen_flags: <defaults>
</compile_context>

<pallas_src>
import jax
import jax.numpy as jnp
from jax import lax
from jax.experimental import pallas as pl
from jax.experimental.pallas import tpu as pltpu


def _round_up(x, m):
    return (x + m - 1) // m * m


# ----------------------------------------------------------------------------
# Pallas kernels
# ----------------------------------------------------------------------------
def conv_bn_relu_pool_kernel(p_ref, w_ref, s_ref, o_ref):
    """Fused conv (as matmul) + folded-BN shift + ReLU + 2x2 max-pool.

    p_ref: (4, Mp, K) bf16  im2col patches, pool-quadrant-major (the 4 pool
                            partners of output row m are p_ref[0..3][m]).
    w_ref: (K, 128)  bf16   conv weight with BN scale folded in.
    s_ref: (1, 128)  f32    folded conv bias + BN shift.
    o_ref: (Mp, 128) bf16   pooled activation, rows ordered (b, oh, ow).
    """
    w = w_ref[...]
    s = s_ref[...]
    out = None
    for q in range(4):                              # static unroll: 4 quadrants
        y = jnp.dot(p_ref[q], w, preferred_element_type=jnp.float32) + s
        y = jnp.maximum(y, 0.0)                     # ReLU
        out = y if out is None else jnp.maximum(out, y)   # 2x2 max-pool
    o_ref[...] = out.astype(o_ref.dtype)


def fused_mlp_kernel(x_ref, w1_ref, b1_ref, w2_ref, b2_ref, w3_ref, b3_ref, o_ref):
    """fc1 -> relu -> fc2 -> relu -> fc3, fully fused; weights resident in VMEM."""
    h1 = jnp.dot(x_ref[...], w1_ref[...], preferred_element_type=jnp.float32) + b1_ref[...]
    h1 = jnp.maximum(h1, 0.0).astype(w2_ref.dtype)
    # TODO(synk): nn.Dropout is identity in eval mode; training-mode RNG mask not implemented.
    h2 = jnp.dot(h1, w2_ref[...], preferred_element_type=jnp.float32) + b2_ref[...]
    h2 = jnp.maximum(h2, 0.0).astype(w3_ref.dtype)
    o_ref[...] = jnp.dot(h2, w3_ref[...], preferred_element_type=jnp.float32) + b3_ref[...]


# ----------------------------------------------------------------------------
# Pallas wrappers
# ----------------------------------------------------------------------------
def pallas_conv_pool(patches_q, w_p, shift_p):
    """patches_q:(4,Mp,K) bf16, w_p:(K,128) bf16, shift_p:(1,128) f32 -> (Mp,128) bf16."""
    Q, Mp, K = patches_q.shape
    N = w_p.shape[1]
    flops = 2 * Q * Mp * K * N
    bytes_acc = Q * Mp * K * 2 + K * N * 2 + N * 4 + Mp * N * 2
    return pl.pallas_call(
        conv_bn_relu_pool_kernel,
        out_shape=jax.ShapeDtypeStruct((Mp, N), jnp.bfloat16),
        grid=(1,),
        in_specs=[
            pl.BlockSpec((Q, Mp, K), lambda i: (0, 0, 0)),   # patches (full block)
            pl.BlockSpec((K, N), lambda i: (0, 0)),          # folded weights
            pl.BlockSpec((1, N), lambda i: (0, 0)),          # folded bias / BN shift
        ],
        out_specs=pl.BlockSpec((Mp, N), lambda i: (0, 0)),
        compiler_params=pltpu.CompilerParams(dimension_semantics=("arbitrary",)),
        cost_estimate=pl.CostEstimate(flops=flops, transcendentals=0,
                                      bytes_accessed=bytes_acc),
    )(patches_q, w_p, shift_p)


def pallas_fused_mlp(x, fc_prep, num_classes):
    """Fused fc1/fc2/fc3. x:(B,1152) bf16 (HWC-flattened) -> (B, num_classes) f32."""
    w1, b1, w2, b2, w3, b3 = fc_prep
    M, K = x.shape
    N1, N2, N3 = w1.shape[1], w2.shape[1], w3.shape[1]
    assert K % 128 == 0 and N1 % 128 == 0 and N2 % 128 == 0 and N3 % 128 == 0
    m_pad = _round_up(M, 16)                       # bf16 sublane pack only
    x_p = jnp.pad(x, ((0, m_pad - M), (0, 0))) if m_pad != M else x
    flops = 2 * m_pad * (K * N1 + N1 * N2 + N2 * N3)
    bytes_acc = 2 * (m_pad * K + K * N1 + N1 * N2 + N2 * N3) + 4 * (N1 + N2 + N3 + m_pad * N3)
    out = pl.pallas_call(
        fused_mlp_kernel,
        out_shape=jax.ShapeDtypeStruct((m_pad, N3), jnp.float32),
        grid=(1,),
        in_specs=[
            pl.BlockSpec((m_pad, K), lambda i: (0, 0)),
            pl.BlockSpec((K, N1), lambda i: (0, 0)),
            pl.BlockSpec((1, N1), lambda i: (0, 0)),
            pl.BlockSpec((N1, N2), lambda i: (0, 0)),
            pl.BlockSpec((1, N2), lambda i: (0, 0)),
            pl.BlockSpec((N2, N3), lambda i: (0, 0)),
            pl.BlockSpec((1, N3), lambda i: (0, 0)),
        ],
        out_specs=pl.BlockSpec((m_pad, N3), lambda i: (0, 0)),
        compiler_params=pltpu.CompilerParams(dimension_semantics=("arbitrary",)),
        cost_estimate=pl.CostEstimate(flops=flops, transcendentals=0,
                                      bytes_accessed=bytes_acc),
    )(x_p, w1, b1, w2, b2, w3, b3)
    return out[:M, :num_classes]


# ----------------------------------------------------------------------------
# Plain-JAX glue: im2col in pool-quadrant order (K-pad folded into the concat)
# ----------------------------------------------------------------------------
def im2col_pool_quadrants(x_nhwc, k_pad):
    """(B,H,W,C) -> (4, B*(H//2)*(W//2), k_pad) bf16, quadrant-major patch rows.

    Quadrant q = 2*pi + pj holds the patch of conv-output position
    (b, 2*oh+pi, 2*ow+pj); row m = b*Ho*Wo + oh*Wo + ow. Odd trailing row/col is
    dropped (PyTorch MaxPool2d(2,2) semantics). K is zero-padded to k_pad here.
    """
    B, H, W, C = x_nhwc.shape
    Ho, Wo = H // 2, W // 2
    xp = jnp.pad(x_nhwc, ((0, 0), (1, 1), (1, 1), (0, 0)))
    cols = [xp[:, dy:dy + H, dx:dx + W, :] for dy in range(3) for dx in range(3)]
    k = 9 * C
    if k_pad > k:
        cols.append(jnp.zeros((B, H, W, k_pad - k), x_nhwc.dtype))
    patches = jnp.concatenate(cols, axis=-1)                 # (B, H, W, k_pad)
    patches = patches[:, :Ho * 2, :Wo * 2, :]                # drop odd edge (7 -> 6)
    patches = patches.reshape(B, Ho, 2, Wo, 2, k_pad)
    patches = jnp.transpose(patches, (2, 4, 0, 1, 3, 5))     # (pi, pj, b, oh, ow, K)
    return patches.reshape(4, B * Ho * Wo, k_pad)


def conv_bn_relu_pool(x_nhwc, conv_prep):
    """3x3 same-conv + folded BN + ReLU + 2x2 max-pool, all inside one Pallas call."""
    w_p, shift_p = conv_prep
    B, H, W, _ = x_nhwc.shape
    Ho, Wo = H // 2, W // 2
    patches = im2col_pool_quadrants(x_nhwc, w_p.shape[0])    # (4, B*Ho*Wo, K)
    y = pallas_conv_pool(patches, w_p, shift_p)              # (B*Ho*Wo, 128) bf16
    return y.reshape(B, Ho, Wo, w_p.shape[1])                # lane-dense, 128 channels


# ----------------------------------------------------------------------------
# One-time parameter prep: BN fold, cin/K/N padding, fc1 row permute, bf16 cast
# ----------------------------------------------------------------------------
def prepare_params(params, eps=1e-5):
    def prep_conv(w_oihw, bias, gamma, beta, mean, var, cin_pad):
        cout, cin = w_oihw.shape[0], w_oihw.shape[1]
        s = gamma / jnp.sqrt(var + eps)
        # (Cout,Cin,kh,kw) -> (kh,kw,Cin,Cout); fold BN scale; pad Cin inside each tap.
        w = jnp.transpose(w_oihw, (2, 3, 1, 0)) * s[None, None, None, :]
        w = jnp.pad(w, ((0, 0), (0, 0), (0, cin_pad - cin), (0, 0)))
        k = 9 * cin_pad
        kp = _round_up(k, 128)
        np_ = _round_up(cout, 128)
        w_p = jnp.pad(w.reshape(k, cout),
                      ((0, kp - k), (0, np_ - cout))).astype(jnp.bfloat16)
        shift = (bias - mean) * s + beta
        shift_p = jnp.pad(shift, (0, np_ - cout)).reshape(1, np_).astype(jnp.float32)
        return (w_p, shift_p)

    def prep_fc():
        (w1, b1) = params["fc1"]
        (w2, b2) = params["fc2"]
        (w3, b3) = params["fc3"]
        # Permute fc1 rows from PyTorch NCHW-flatten order (c*9 + h*3 + w) to our
        # channel-minor HWC order (h*384 + w*128 + c): no transpose needed on conv3 out.
        w1_hwc = w1.reshape(128, 3, 3, w1.shape[1]).transpose(1, 2, 0, 3).reshape(w1.shape)
        n_out = w3.shape[1]
        np_ = _round_up(n_out, 128)
        w3p = jnp.pad(w3, ((0, 0), (0, np_ - n_out)))
        b3p = jnp.pad(b3, (0, np_ - n_out))
        bf = lambda a: a.astype(jnp.bfloat16)
        row = lambda b: b.reshape(1, -1).astype(jnp.float32)
        return (bf(w1_hwc), row(b1), bf(w2), row(b2), bf(w3p), row(b3p))

    return {
        "conv1": prep_conv(*params["conv1"], cin_pad=1),     # raw input has 1 channel
        "conv2": prep_conv(*params["conv2"], cin_pad=128),   # activations are 128-padded
        "conv3": prep_conv(*params["conv3"], cin_pad=128),
        "fc": prep_fc(),
    }


# ----------------------------------------------------------------------------
# Forward (matches MNISTCNN.forward in eval mode)
# ----------------------------------------------------------------------------
def mnist_cnn_forward(x_nchw, prepped, *, num_classes=10):
    B = x_nchw.shape[0]
    x = jnp.transpose(x_nchw, (0, 2, 3, 1)).astype(jnp.bfloat16)   # NCHW -> NHWC
    x = conv_bn_relu_pool(x, prepped["conv1"])                     # (B,14,14,128)
    x = conv_bn_relu_pool(x, prepped["conv2"])                     # (B, 7, 7,128)
    x = conv_bn_relu_pool(x, prepped["conv3"])                     # (B, 3, 3,128)
    feat = x.reshape(B, -1)                                        # (B,1152) HWC order
    return pallas_fused_mlp(feat, prepped["fc"], num_classes)


# ----------------------------------------------------------------------------
# Pure-JAX reference (f32, HIGHEST precision) for correctness check
# ----------------------------------------------------------------------------
def reference_forward(x_nchw, params, eps=1e-5):
    def conv_block(x, w, b, gamma, beta, mean, var):
        y = lax.conv_general_dilated(
            x, w, window_strides=(1, 1), padding=((1, 1), (1, 1)),
            dimension_numbers=("NCHW", "OIHW", "NCHW"),
            precision=lax.Precision.HIGHEST)
        y = y + b[None, :, None, None]
        s = gamma / jnp.sqrt(var + eps)
        y = (y - mean[None, :, None, None]) * s[None, :, None, None] + beta[None, :, None, None]
        y = jnp.maximum(y, 0.0)
        return lax.reduce_window(y, -jnp.inf, lax.max, (1, 1, 2, 2), (1, 1, 2, 2), "VALID")

    x = x_nchw.astype(jnp.float32)
    x = conv_block(x, *params["conv1"])
    x = conv_block(x, *params["conv2"])
    x = conv_block(x, *params["conv3"])
    x = x.reshape(x.shape[0], -1)
    w1, b1 = params["fc1"]
    w2, b2 = params["fc2"]
    w3, b3 = params["fc3"]
    x = jnp.maximum(jnp.dot(x, w1, precision=lax.Precision.HIGHEST) + b1, 0.0)
    x = jnp.maximum(jnp.dot(x, w2, precision=lax.Precision.HIGHEST) + b2, 0.0)
    x = jnp.dot(x, w3, precision=lax.Precision.HIGHEST) + b3
    return x


# ----------------------------------------------------------------------------
# Deterministic parameter initialization (synthetic, not a checkpoint)
# ----------------------------------------------------------------------------
def init_params(key):
    ks = jax.random.split(key, 32)
    ki = iter(range(32))

    def nrm(shape, fan_in):
        return jax.random.normal(ks[next(ki)], shape, jnp.float32) / jnp.sqrt(float(fan_in))

    def conv_params(cin, cout):
        w = nrm((cout, cin, 3, 3), 9 * cin)
        b = 0.05 * jax.random.normal(ks[next(ki)], (cout,), jnp.float32)
        gamma = 1.0 + 0.1 * jax.random.normal(ks[next(ki)], (cout,), jnp.float32)
        beta = 0.1 * jax.random.normal(ks[next(ki)], (cout,), jnp.float32)
        mean = 0.1 * jax.random.normal(ks[next(ki)], (cout,), jnp.float32)
        var = 0.5 + 0.5 * jnp.abs(jax.random.normal(ks[next(ki)], (cout,), jnp.float32))
        return (w, b, gamma, beta, mean, var)

    def fc_params(din, dout):
        w = nrm((din, dout), din)   # stored as (in, out) == PyTorch fc.weight.T
        b = 0.05 * jax.random.normal(ks[next(ki)], (dout,), jnp.float32)
        return (w, b)

    return {
        "conv1": conv_params(1, 32),
        "conv2": conv_params(32, 64),
        "conv3": conv_params(64, 128),
        "fc1": fc_params(3 * 3 * 128, 512),
        "fc2": fc_params(512, 256),
        "fc3": fc_params(256, 10),
    }


if __name__ == "__main__":
    key = jax.random.PRNGKey(0)
    k_param, k_x = jax.random.split(key)
    params = init_params(k_param)
    x = jax.random.normal(k_x, (2, 1, 28, 28), jnp.float32)   # (batch, 1, 28, 28) NCHW

    prepped = prepare_params(params)          # one-time BN fold / pad / bf16 cast
    fwd = jax.jit(mnist_cnn_forward)
    out = jax.block_until_ready(fwd(x, prepped))

    assert out.shape == (2, 10), out.shape
    assert jnp.all(jnp.isfinite(out))
    ref = jax.block_until_ready(reference_forward(x, params))
    # bf16 matmul inputs (f32 accumulation) vs f32-HIGHEST reference.
    max_err = float(jnp.max(jnp.abs(out - ref)))
    assert jnp.allclose(out, ref, rtol=5e-2, atol=5e-2), max_err

    print("KERNEL_OK")
</pallas_src>

<mosaic_0001>
module attributes {stable_mosaic.version = 11 : i64} {
  func.func @conv_bn_relu_pool_kernel(%arg0: i32, %arg1: memref<4x392x128xbf16, #tpu.memory_space<vmem>>, %arg2: memref<128x128xbf16, #tpu.memory_space<vmem>>, %arg3: memref<1x128xf32, #tpu.memory_space<vmem>>, %arg4: memref<392x128xbf16, #tpu.memory_space<vmem>>) attributes {dimension_semantics = [#tpu.dimension_semantics<arbitrary>], iteration_bounds = array<i64: 1>, scalar_prefetch = 0 : i64, scratch_operands = 0 : i64, tpu.core_type = #tpu.core_type<tc>, window_params = [{pipeline_mode = #tpu.pipeline_mode<synchronous>, transform_indices = @transform_0, window_bounds = array<i64: 4, 392, 128>}, {pipeline_mode = #tpu.pipeline_mode<synchronous>, transform_indices = @transform_1, window_bounds = array<i64: 128, 128>}, {pipeline_mode = #tpu.pipeline_mode<synchronous>, transform_indices = @transform_2, window_bounds = array<i64: 1, 128>}, {pipeline_mode = #tpu.pipeline_mode<synchronous>, transform_indices = @transform_3, window_bounds = array<i64: 392, 128>}]} {
    %c0 = arith.constant 0 : index
    %c0_0 = arith.constant 0 : index
    %0 = vector.load %arg2[%c0, %c0_0] : memref<128x128xbf16, #tpu.memory_space<vmem>>, vector<128x128xbf16>
    %c0_1 = arith.constant 0 : index
    %c0_2 = arith.constant 0 : index
    %1 = vector.load %arg3[%c0_1, %c0_2] : memref<1x128xf32, #tpu.memory_space<vmem>>, vector<1x128xf32>
    %c0_3 = arith.constant 0 : index
    %c0_4 = arith.constant 0 : index
    %c0_5 = arith.constant 0 : index
    %2 = vector.load %arg1[%c0_3, %c0_4, %c0_5] : memref<4x392x128xbf16, #tpu.memory_space<vmem>>, vector<1x392x128xbf16>
    %3 = vector.shape_cast %2 : vector<1x392x128xbf16> to vector<392x128xbf16>
    %cst = arith.constant dense<0.000000e+00> : vector<392x128xf32>
    %4 = tpu.matmul %3, %0, %cst {dimension_numbers = #tpu.dot_dimension_numbers<[1], [0], [0], [1], [0, 0, 1, 1], [], []>} : vector<392x128xbf16>, vector<128x128xbf16>, vector<392x128xf32> -> vector<392x128xf32>
    %5 = vector.broadcast %1 : vector<1x128xf32> to vector<392x128xf32>
    %6 = arith.addf %4, %5 : vector<392x128xf32>
    %cst_6 = arith.constant 0.000000e+00 : f32
    %7 = vector.broadcast %cst_6 : f32 to vector<392x128xf32>
    %8 = arith.maximumf %6, %7 : vector<392x128xf32>
    %c1 = arith.constant 1 : index
    %c0_7 = arith.constant 0 : index
    %c0_8 = arith.constant 0 : index
    %9 = vector.load %arg1[%c1, %c0_7, %c0_8] : memref<4x392x128xbf16, #tpu.memory_space<vmem>>, vector<1x392x128xbf16>
    %10 = vector.shape_cast %9 : vector<1x392x128xbf16> to vector<392x128xbf16>
    %cst_9 = arith.constant dense<0.000000e+00> : vector<392x128xf32>
    %11 = tpu.matmul %10, %0, %cst_9 {dimension_numbers = #tpu.dot_dimension_numbers<[1], [0], [0], [1], [0, 0, 1, 1], [], []>} : vector<392x128xbf16>, vector<128x128xbf16>, vector<392x128xf32> -> vector<392x128xf32>
    %12 = vector.broadcast %1 : vector<1x128xf32> to vector<392x128xf32>
    %13 = arith.addf %11, %12 : vector<392x128xf32>
    %cst_10 = arith.constant 0.000000e+00 : f32
    %14 = vector.broadcast %cst_10 : f32 to vector<392x128xf32>
    %15 = arith.maximumf %13, %14 : vector<392x128xf32>
    %16 = arith.maximumf %8, %15 : vector<392x128xf32>
    %c2 = arith.constant 2 : index
    %c0_11 = arith.constant 0 : index
    %c0_12 = arith.constant 0 : index
    %17 = vector.load %arg1[%c2, %c0_11, %c0_12] : memref<4x392x128xbf16, #tpu.memory_space<vmem>>, vector<1x392x128xbf16>
    %18 = vector.shape_cast %17 : vector<1x392x128xbf16> to vector<392x128xbf16>
    %cst_13 = arith.constant dense<0.000000e+00> : vector<392x128xf32>
    %19 = tpu.matmul %18, %0, %cst_13 {dimension_numbers = #tpu.dot_dimension_numbers<[1], [0], [0], [1], [0, 0, 1, 1], [], []>} : vector<392x128xbf16>, vector<128x128xbf16>, vector<392x128xf32> -> vector<392x128xf32>
    %20 = vector.broadcast %1 : vector<1x128xf32> to vector<392x128xf32>
    %21 = arith.addf %19, %20 : vector<392x128xf32>
    %cst_14 = arith.constant 0.000000e+00 : f32
    %22 = vector.broadcast %cst_14 : f32 to vector<392x128xf32>
    %23 = arith.maximumf %21, %22 : vector<392x128xf32>
    %24 = arith.maximumf %16, %23 : vector<392x128xf32>
    %c3 = arith.constant 3 : index
    %c0_15 = arith.constant 0 : index
    %c0_16 = arith.constant 0 : index
    %25 = vector.load %arg1[%c3, %c0_15, %c0_16] : memref<4x392x128xbf16, #tpu.memory_space<vmem>>, vector<1x392x128xbf16>
    %26 = vector.shape_cast %25 : vector<1x392x128xbf16> to vector<392x128xbf16>
    %cst_17 = arith.constant dense<0.000000e+00> : vector<392x128xf32>
    %27 = tpu.matmul %26, %0, %cst_17 {dimension_numbers = #tpu.dot_dimension_numbers<[1], [0], [0], [1], [0, 0, 1, 1], [], []>} : vector<392x128xbf16>, vector<128x128xbf16>, vector<392x128xf32> -> vector<392x128xf32>
    %28 = vector.broadcast %1 : vector<1x128xf32> to vector<392x128xf32>
    %29 = arith.addf %27, %28 : vector<392x128xf32>
    %cst_18 = arith.constant 0.000000e+00 : f32
    %30 = vector.broadcast %cst_18 : f32 to vector<392x128xf32>
    %31 = arith.maximumf %29, %30 : vector<392x128xf32>
    %32 = arith.maximumf %24, %31 : vector<392x128xf32>
    %33 = arith.truncf %32 : vector<392x128xf32> to vector<392x128xbf16>
    %c0_19 = arith.constant 0 : index
    %c0_20 = arith.constant 0 : index
    %34 = vector.load %arg4[%c0_19, %c0_20] : memref<392x128xbf16, #tpu.memory_space<vmem>>, vector<392x128xbf16>
    tpu.vector_store %arg4[%c0_19, %c0_20], %33 {strides = array<i32>} : memref<392x128xbf16, #tpu.memory_space<vmem>>, vector<392x128xbf16>,
    return
  }
  func.func @transform_0(%arg0: i32) -> (i32, i32, i32) {
    %c0_i32 = arith.constant 0 : i32
    %c0_i32_0 = arith.constant 0 : i32
    %c0_i32_1 = arith.constant 0 : i32
    %c0_i32_2 = arith.constant 0 : i32
    return %c0_i32, %c0_i32_0, %c0_i32_1 : i32, i32, i32
  }
  func.func @transform_1(%arg0: i32) -> (i32, i32) {
    %c0_i32 = arith.constant 0 : i32
    %c0_i32_0 = arith.constant 0 : i32
    %c0_i32_1 = arith.constant 0 : i32
    return %c0_i32, %c0_i32_0 : i32, i32
  }
  func.func @transform_2(%arg0: i32) -> (i32, i32) {
    %c0_i32 = arith.constant 0 : i32
    %c0_i32_0 = arith.constant 0 : i32
    %c0_i32_1 = arith.constant 0 : i32
    return %c0_i32, %c0_i32_0 : i32, i32
  }
  func.func @transform_3(%arg0: i32) -> (i32, i32) {
    %c0_i32 = arith.constant 0 : i32
    %c0_i32_0 = arith.constant 0 : i32
    %c0_i32_1 = arith.constant 0 : i32
    return %c0_i32, %c0_i32_0 : i32, i32
  }
}

module attributes {stable_mosaic.version = 11 : i64} {
  func.func @conv_bn_relu_pool_kernel(%arg0: i32, %arg1: memref<4x98x1152xbf16, #tpu.memory_space<vmem>>, %arg2: memref<1152x128xbf16, #tpu.memory_space<vmem>>, %arg3: memref<1x128xf32, #tpu.memory_space<vmem>>, %arg4: memref<98x128xbf16, #tpu.memory_space<vmem>>) attributes {dimension_semantics = [#tpu.dimension_semantics<arbitrary>], iteration_bounds = array<i64: 1>, scalar_prefetch = 0 : i64, scratch_operands = 0 : i64, tpu.core_type = #tpu.core_type<tc>, window_params = [{pipeline_mode = #tpu.pipeline_mode<synchronous>, transform_indices = @transform_0, window_bounds = array<i64: 4, 98, 1152>}, {pipeline_mode = #tpu.pipeline_mode<synchronous>, transform_indices = @transform_1, window_bounds = array<i64: 1152, 128>}, {pipeline_mode = #tpu.pipeline_mode<synchronous>, transform_indices = @transform_2, window_bounds = array<i64: 1, 128>}, {pipeline_mode = #tpu.pipeline_mode<synchronous>, transform_indices = @transform_3, window_bounds = array<i64: 98, 128>}]} {
    %c0 = arith.constant 0 : index
    %c0_0 = arith.constant 0 : index
    %0 = vector.load %arg2[%c0, %c0_0] : memref<1152x128xbf16, #tpu.memory_space<vmem>>, vector<1152x128xbf16>
    %c0_1 = arith.constant 0 : index
    %c0_2 = arith.constant 0 : index
    %1 = vector.load %arg3[%c0_1, %c0_2] : memref<1x128xf32, #tpu.memory_space<vmem>>, vector<1x128xf32>
    %c0_3 = arith.constant 0 : index
    %c0_4 = arith.constant 0 : index
    %c0_5 = arith.constant 0 : index
    %2 = vector.load %arg1[%c0_3, %c0_4, %c0_5] : memref<4x98x1152xbf16, #tpu.memory_space<vmem>>, vector<1x98x1152xbf16>
    %3 = vector.shape_cast %2 : vector<1x98x1152xbf16> to vector<98x1152xbf16>
    %cst = arith.constant dense<0.000000e+00> : vector<98x128xf32>
    %4 = tpu.matmul %3, %0, %cst {dimension_numbers = #tpu.dot_dimension_numbers<[1], [0], [0], [1], [0, 0, 1, 1], [], []>} : vector<98x1152xbf16>, vector<1152x128xbf16>, vector<98x128xf32> -> vector<98x128xf32>
    %5 = vector.broadcast %1 : vector<1x128xf32> to vector<98x128xf32>
    %6 = arith.addf %4, %5 : vector<98x128xf32>
    %cst_6 = arith.constant 0.000000e+00 : f32
    %7 = vector.broadcast %cst_6 : f32 to vector<98x128xf32>
    %8 = arith.maximumf %6, %7 : vector<98x128xf32>
    %c1 = arith.constant 1 : index
    %c0_7 = arith.constant 0 : index
    %c0_8 = arith.constant 0 : index
    %9 = vector.load %arg1[%c1, %c0_7, %c0_8] : memref<4x98x1152xbf16, #tpu.memory_space<vmem>>, vector<1x98x1152xbf16>
    %10 = vector.shape_cast %9 : vector<1x98x1152xbf16> to vector<98x1152xbf16>
    %cst_9 = arith.constant dense<0.000000e+00> : vector<98x128xf32>
    %11 = tpu.matmul %10, %0, %cst_9 {dimension_numbers = #tpu.dot_dimension_numbers<[1], [0], [0], [1], [0, 0, 1, 1], [], []>} : vector<98x1152xbf16>, vector<1152x128xbf16>, vector<98x128xf32> -> vector<98x128xf32>
    %12 = vector.broadcast %1 : vector<1x128xf32> to vector<98x128xf32>
    %13 = arith.addf %11, %12 : vector<98x128xf32>
    %cst_10 = arith.constant 0.000000e+00 : f32
    %14 = vector.broadcast %cst_10 : f32 to vector<98x128xf32>
    %15 = arith.maximumf %13, %14 : vector<98x128xf32>
    %16 = arith.maximumf %8, %15 : vector<98x128xf32>
    %c2 = arith.constant 2 : index
    %c0_11 = arith.constant 0 : index
    %c0_12 = arith.constant 0 : index
    %17 = vector.load %arg1[%c2, %c0_11, %c0_12] : memref<4x98x1152xbf16, #tpu.memory_space<vmem>>, vector<1x98x1152xbf16>
    %18 = vector.shape_cast %17 : vector<1x98x1152xbf16> to vector<98x1152xbf16>
    %cst_13 = arith.constant dense<0.000000e+00> : vector<98x128xf32>
    %19 = tpu.matmul %18, %0, %cst_13 {dimension_numbers = #tpu.dot_dimension_numbers<[1], [0], [0], [1], [0, 0, 1, 1], [], []>} : vector<98x1152xbf16>, vector<1152x128xbf16>, vector<98x128xf32> -> vector<98x128xf32>
    %20 = vector.broadcast %1 : vector<1x128xf32> to vector<98x128xf32>
    %21 = arith.addf %19, %20 : vector<98x128xf32>
    %cst_14 = arith.constant 0.000000e+00 : f32
    %22 = vector.broadcast %cst_14 : f32 to vector<98x128xf32>
    %23 = arith.maximumf %21, %22 : vector<98x128xf32>
    %24 = arith.maximumf %16, %23 : vector<98x128xf32>
    %c3 = arith.constant 3 : index
    %c0_15 = arith.constant 0 : index
    %c0_16 = arith.constant 0 : index
    %25 = vector.load %arg1[%c3, %c0_15, %c0_16] : memref<4x98x1152xbf16, #tpu.memory_space<vmem>>, vector<1x98x1152xbf16>
    %26 = vector.shape_cast %25 : vector<1x98x1152xbf16> to vector<98x1152xbf16>
    %cst_17 = arith.constant dense<0.000000e+00> : vector<98x128xf32>
    %27 = tpu.matmul %26, %0, %cst_17 {dimension_numbers = #tpu.dot_dimension_numbers<[1], [0], [0], [1], [0, 0, 1, 1], [], []>} : vector<98x1152xbf16>, vector<1152x128xbf16>, vector<98x128xf32> -> vector<98x128xf32>
    %28 = vector.broadcast %1 : vector<1x128xf32> to vector<98x128xf32>
    %29 = arith.addf %27, %28 : vector<98x128xf32>
    %cst_18 = arith.constant 0.000000e+00 : f32
    %30 = vector.broadcast %cst_18 : f32 to vector<98x128xf32>
    %31 = arith.maximumf %29, %30 : vector<98x128xf32>
    %32 = arith.maximumf %24, %31 : vector<98x128xf32>
    %33 = arith.truncf %32 : vector<98x128xf32> to vector<98x128xbf16>
    %c0_19 = arith.constant 0 : index
    %c0_20 = arith.constant 0 : index
    %34 = vector.load %arg4[%c0_19, %c0_20] : memref<98x128xbf16, #tpu.memory_space<vmem>>, vector<98x128xbf16>
    tpu.vector_store %arg4[%c0_19, %c0_20], %33 {strides = array<i32>} : memref<98x128xbf16, #tpu.memory_space<vmem>>, vector<98x128xbf16>,
    return
  }
  func.func @transform_0(%arg0: i32) -> (i32, i32, i32) {
    %c0_i32 = arith.constant 0 : i32
    %c0_i32_0 = arith.constant 0 : i32
    %c0_i32_1 = arith.constant 0 : i32
    %c0_i32_2 = arith.constant 0 : i32
    return %c0_i32, %c0_i32_0, %c0_i32_1 : i32, i32, i32
  }
  func.func @transform_1(%arg0: i32) -> (i32, i32) {
    %c0_i32 = arith.constant 0 : i32
    %c0_i32_0 = arith.constant 0 : i32
    %c0_i32_1 = arith.constant 0 : i32
    return %c0_i32, %c0_i32_0 : i32, i32
  }
  func.func @transform_2(%arg0: i32) -> (i32, i32) {
    %c0_i32 = arith.constant 0 : i32
    %c0_i32_0 = arith.constant 0 : i32
    %c0_i32_1 = arith.constant 0 : i32
    return %c0_i32, %c0_i32_0 : i32, i32
  }
  func.func @transform_3(%arg0: i32) -> (i32, i32) {
    %c0_i32 = arith.constant 0 : i32
    %c0_i32_0 = arith.constant 0 : i32
    %c0_i32_1 = arith.constant 0 : i32
    return %c0_i32, %c0_i32_0 : i32, i32
  }
}

module attributes {stable_mosaic.version = 11 : i64} {
  func.func @conv_bn_relu_pool_kernel(%arg0: i32, %arg1: memref<4x18x1152xbf16, #tpu.memory_space<vmem>>, %arg2: memref<1152x128xbf16, #tpu.memory_space<vmem>>, %arg3: memref<1x128xf32, #tpu.memory_space<vmem>>, %arg4: memref<18x128xbf16, #tpu.memory_space<vmem>>) attributes {dimension_semantics = [#tpu.dimension_semantics<arbitrary>], iteration_bounds = array<i64: 1>, scalar_prefetch = 0 : i64, scratch_operands = 0 : i64, tpu.core_type = #tpu.core_type<tc>, window_params = [{pipeline_mode = #tpu.pipeline_mode<synchronous>, transform_indices = @transform_0, window_bounds = array<i64: 4, 18, 1152>}, {pipeline_mode = #tpu.pipeline_mode<synchronous>, transform_indices = @transform_1, window_bounds = array<i64: 1152, 128>}, {pipeline_mode = #tpu.pipeline_mode<synchronous>, transform_indices = @transform_2, window_bounds = array<i64: 1, 128>}, {pipeline_mode = #tpu.pipeline_mode<synchronous>, transform_indices = @transform_3, window_bounds = array<i64: 18, 128>}]} {
    %c0 = arith.constant 0 : index
    %c0_0 = arith.constant 0 : index
    %0 = vector.load %arg2[%c0, %c0_0] : memref<1152x128xbf16, #tpu.memory_space<vmem>>, vector<1152x128xbf16>
    %c0_1 = arith.constant 0 : index
    %c0_2 = arith.constant 0 : index
    %1 = vector.load %arg3[%c0_1, %c0_2] : memref<1x128xf32, #tpu.memory_space<vmem>>, vector<1x128xf32>
    %c0_3 = arith.constant 0 : index
    %c0_4 = arith.constant 0 : index
    %c0_5 = arith.constant 0 : index
    %2 = vector.load %arg1[%c0_3, %c0_4, %c0_5] : memref<4x18x1152xbf16, #tpu.memory_space<vmem>>, vector<1x18x1152xbf16>
    %3 = vector.shape_cast %2 : vector<1x18x1152xbf16> to vector<18x1152xbf16>
    %cst = arith.constant dense<0.000000e+00> : vector<18x128xf32>
    %4 = tpu.matmul %3, %0, %cst {dimension_numbers = #tpu.dot_dimension_numbers<[1], [0], [0], [1], [0, 0, 1, 1], [], []>} : vector<18x1152xbf16>, vector<1152x128xbf16>, vector<18x128xf32> -> vector<18x128xf32>
    %5 = vector.broadcast %1 : vector<1x128xf32> to vector<18x128xf32>
    %6 = arith.addf %4, %5 : vector<18x128xf32>
    %cst_6 = arith.constant 0.000000e+00 : f32
    %7 = vector.broadcast %cst_6 : f32 to vector<18x128xf32>
    %8 = arith.maximumf %6, %7 : vector<18x128xf32>
    %c1 = arith.constant 1 : index
    %c0_7 = arith.constant 0 : index
    %c0_8 = arith.constant 0 : index
    %9 = vector.load %arg1[%c1, %c0_7, %c0_8] : memref<4x18x1152xbf16, #tpu.memory_space<vmem>>, vector<1x18x1152xbf16>
    %10 = vector.shape_cast %9 : vector<1x18x1152xbf16> to vector<18x1152xbf16>
    %cst_9 = arith.constant dense<0.000000e+00> : vector<18x128xf32>
    %11 = tpu.matmul %10, %0, %cst_9 {dimension_numbers = #tpu.dot_dimension_numbers<[1], [0], [0], [1], [0, 0, 1, 1], [], []>} : vector<18x1152xbf16>, vector<1152x128xbf16>, vector<18x128xf32> -> vector<18x128xf32>
    %12 = vector.broadcast %1 : vector<1x128xf32> to vector<18x128xf32>
    %13 = arith.addf %11, %12 : vector<18x128xf32>
    %cst_10 = arith.constant 0.000000e+00 : f32
    %14 = vector.broadcast %cst_10 : f32 to vector<18x128xf32>
    %15 = arith.maximumf %13, %14 : vector<18x128xf32>
    %16 = arith.maximumf %8, %15 : vector<18x128xf32>
    %c2 = arith.constant 2 : index
    %c0_11 = arith.constant 0 : index
    %c0_12 = arith.constant 0 : index
    %17 = vector.load %arg1[%c2, %c0_11, %c0_12] : memref<4x18x1152xbf16, #tpu.memory_space<vmem>>, vector<1x18x1152xbf16>
    %18 = vector.shape_cast %17 : vector<1x18x1152xbf16> to vector<18x1152xbf16>
    %cst_13 = arith.constant dense<0.000000e+00> : vector<18x128xf32>
    %19 = tpu.matmul %18, %0, %cst_13 {dimension_numbers = #tpu.dot_dimension_numbers<[1], [0], [0], [1], [0, 0, 1, 1], [], []>} : vector<18x1152xbf16>, vector<1152x128xbf16>, vector<18x128xf32> -> vector<18x128xf32>
    %20 = vector.broadcast %1 : vector<1x128xf32> to vector<18x128xf32>
    %21 = arith.addf %19, %20 : vector<18x128xf32>
    %cst_14 = arith.constant 0.000000e+00 : f32
    %22 = vector.broadcast %cst_14 : f32 to vector<18x128xf32>
    %23 = arith.maximumf %21, %22 : vector<18x128xf32>
    %24 = arith.maximumf %16, %23 : vector<18x128xf32>
    %c3 = arith.constant 3 : index
    %c0_15 = arith.constant 0 : index
    %c0_16 = arith.constant 0 : index
    %25 = vector.load %arg1[%c3, %c0_15, %c0_16] : memref<4x18x1152xbf16, #tpu.memory_space<vmem>>, vector<1x18x1152xbf16>
    %26 = vector.shape_cast %25 : vector<1x18x1152xbf16> to vector<18x1152xbf16>
    %cst_17 = arith.constant dense<0.000000e+00> : vector<18x128xf32>
    %27 = tpu.matmul %26, %0, %cst_17 {dimension_numbers = #tpu.dot_dimension_numbers<[1], [0], [0], [1], [0, 0, 1, 1], [], []>} : vector<18x1152xbf16>, vector<1152x128xbf16>, vector<18x128xf32> -> vector<18x128xf32>
    %28 = vector.broadcast %1 : vector<1x128xf32> to vector<18x128xf32>
    %29 = arith.addf %27, %28 : vector<18x128xf32>
    %cst_18 = arith.constant 0.000000e+00 : f32
    %30 = vector.broadcast %cst_18 : f32 to vector<18x128xf32>
    %31 = arith.maximumf %29, %30 : vector<18x128xf32>
    %32 = arith.maximumf %24, %31 : vector<18x128xf32>
    %33 = arith.truncf %32 : vector<18x128xf32> to vector<18x128xbf16>
    %c0_19 = arith.constant 0 : index
    %c0_20 = arith.constant 0 : index
    %34 = vector.load %arg4[%c0_19, %c0_20] : memref<18x128xbf16, #tpu.memory_space<vmem>>, vector<18x128xbf16>
    tpu.vector_store %arg4[%c0_19, %c0_20], %33 {strides = array<i32>} : memref<18x128xbf16, #tpu.memory_space<vmem>>, vector<18x128xbf16>,
    return
  }
  func.func @transform_0(%arg0: i32) -> (i32, i32, i32) {
    %c0_i32 = arith.constant 0 : i32
    %c0_i32_0 = arith.constant 0 : i32
    %c0_i32_1 = arith.constant 0 : i32
    %c0_i32_2 = arith.constant 0 : i32
    return %c0_i32, %c0_i32_0, %c0_i32_1 : i32, i32, i32
  }
  func.func @transform_1(%arg0: i32) -> (i32, i32) {
    %c0_i32 = arith.constant 0 : i32
    %c0_i32_0 = arith.constant 0 : i32
    %c0_i32_1 = arith.constant 0 : i32
    return %c0_i32, %c0_i32_0 : i32, i32
  }
  func.func @transform_2(%arg0: i32) -> (i32, i32) {
    %c0_i32 = arith.constant 0 : i32
    %c0_i32_0 = arith.constant 0 : i32
    %c0_i32_1 = arith.constant 0 : i32
    return %c0_i32, %c0_i32_0 : i32, i32
  }
  func.func @transform_3(%arg0: i32) -> (i32, i32) {
    %c0_i32 = arith.constant 0 : i32
    %c0_i32_0 = arith.constant 0 : i32
    %c0_i32_1 = arith.constant 0 : i32
    return %c0_i32, %c0_i32_0 : i32, i32
  }
}

module attributes {stable_mosaic.version = 11 : i64} {
  func.func @fused_mlp_kernel(%arg0: i32, %arg1: memref<16x1152xbf16, #tpu.memory_space<vmem>>, %arg2: memref<1152x512xbf16, #tpu.memory_space<vmem>>, %arg3: memref<1x512xf32, #tpu.memory_space<vmem>>, %arg4: memref<512x256xbf16, #tpu.memory_space<vmem>>, %arg5: memref<1x256xf32, #tpu.memory_space<vmem>>, %arg6: memref<256x128xbf16, #tpu.memory_space<vmem>>, %arg7: memref<1x128xf32, #tpu.memory_space<vmem>>, %arg8: memref<16x128xf32, #tpu.memory_space<vmem>>) attributes {dimension_semantics = [#tpu.dimension_semantics<arbitrary>], iteration_bounds = array<i64: 1>, scalar_prefetch = 0 : i64, scratch_operands = 0 : i64, tpu.core_type = #tpu.core_type<tc>, window_params = [{pipeline_mode = #tpu.pipeline_mode<synchronous>, transform_indices = @transform_0, window_bounds = array<i64: 16, 1152>}, {pipeline_mode = #tpu.pipeline_mode<synchronous>, transform_indices = @transform_1, window_bounds = array<i64: 1152, 512>}, {pipeline_mode = #tpu.pipeline_mode<synchronous>, transform_indices = @transform_2, window_bounds = array<i64: 1, 512>}, {pipeline_mode = #tpu.pipeline_mode<synchronous>, transform_indices = @transform_3, window_bounds = array<i64: 512, 256>}, {pipeline_mode = #tpu.pipeline_mode<synchronous>, transform_indices = @transform_4, window_bounds = array<i64: 1, 256>}, {pipeline_mode = #tpu.pipeline_mode<synchronous>, transform_indices = @transform_5, window_bounds = array<i64: 256, 128>}, {pipeline_mode = #tpu.pipeline_mode<synchronous>, transform_indices = @transform_6, window_bounds = array<i64: 1, 128>}, {pipeline_mode = #tpu.pipeline_mode<synchronous>, transform_indices = @transform_7, window_bounds = array<i64: 16, 128>}]} {
    %c0 = arith.constant 0 : index
    %c0_0 = arith.constant 0 : index
    %0 = vector.load %arg1[%c0, %c0_0] : memref<16x1152xbf16, #tpu.memory_space<vmem>>, vector<16x1152xbf16>
    %c0_1 = arith.constant 0 : index
    %c0_2 = arith.constant 0 : index
    %1 = vector.load %arg2[%c0_1, %c0_2] : memref<1152x512xbf16, #tpu.memory_space<vmem>>, vector<1152x512xbf16>
    %cst = arith.constant dense<0.000000e+00> : vector<16x512xf32>
    %2 = tpu.matmul %0, %1, %cst {dimension_numbers = #tpu.dot_dimension_numbers<[1], [0], [0], [1], [0, 0, 1, 1], [], []>} : vector<16x1152xbf16>, vector<1152x512xbf16>, vector<16x512xf32> -> vector<16x512xf32>
    %c0_3 = arith.constant 0 : index
    %c0_4 = arith.constant 0 : index
    %3 = vector.load %arg3[%c0_3, %c0_4] : memref<1x512xf32, #tpu.memory_space<vmem>>, vector<1x512xf32>
    %4 = vector.broadcast %3 : vector<1x512xf32> to vector<16x512xf32>
    %5 = arith.addf %2, %4 : vector<16x512xf32>
    %cst_5 = arith.constant 0.000000e+00 : f32
    %6 = vector.broadcast %cst_5 : f32 to vector<16x512xf32>
    %7 = arith.maximumf %5, %6 : vector<16x512xf32>
    %8 = arith.truncf %7 : vector<16x512xf32> to vector<16x512xbf16>
    %c0_6 = arith.constant 0 : index
    %c0_7 = arith.constant 0 : index
    %9 = vector.load %arg4[%c0_6, %c0_7] : memref<512x256xbf16, #tpu.memory_space<vmem>>, vector<512x256xbf16>
    %cst_8 = arith.constant dense<0.000000e+00> : vector<16x256xf32>
    %10 = tpu.matmul %8, %9, %cst_8 {dimension_numbers = #tpu.dot_dimension_numbers<[1], [0], [0], [1], [0, 0, 1, 1], [], []>} : vector<16x512xbf16>, vector<512x256xbf16>, vector<16x256xf32> -> vector<16x256xf32>
    %c0_9 = arith.constant 0 : index
    %c0_10 = arith.constant 0 : index
    %11 = vector.load %arg5[%c0_9, %c0_10] : memref<1x256xf32, #tpu.memory_space<vmem>>, vector<1x256xf32>
    %12 = vector.broadcast %11 : vector<1x256xf32> to vector<16x256xf32>
    %13 = arith.addf %10, %12 : vector<16x256xf32>
    %cst_11 = arith.constant 0.000000e+00 : f32
    %14 = vector.broadcast %cst_11 : f32 to vector<16x256xf32>
    %15 = arith.maximumf %13, %14 : vector<16x256xf32>
    %16 = arith.truncf %15 : vector<16x256xf32> to vector<16x256xbf16>
    %c0_12 = arith.constant 0 : index
    %c0_13 = arith.constant 0 : index
    %17 = vector.load %arg6[%c0_12, %c0_13] : memref<256x128xbf16, #tpu.memory_space<vmem>>, vector<256x128xbf16>
    %cst_14 = arith.constant dense<0.000000e+00> : vector<16x128xf32>
    %18 = tpu.matmul %16, %17, %cst_14 {dimension_numbers = #tpu.dot_dimension_numbers<[1], [0], [0], [1], [0, 0, 1, 1], [], []>} : vector<16x256xbf16>, vector<256x128xbf16>, vector<16x128xf32> -> vector<16x128xf32>
    %c0_15 = arith.constant 0 : index
    %c0_16 = arith.constant 0 : index
    %19 = vector.load %arg7[%c0_15, %c0_16] : memref<1x128xf32, #tpu.memory_space<vmem>>, vector<1x128xf32>
    %20 = vector.broadcast %19 : vector<1x128xf32> to vector<16x128xf32>
    %21 = arith.addf %18, %20 : vector<16x128xf32>
    %c0_17 = arith.constant 0 : index
    %c0_18 = arith.constant 0 : index
    %22 = vector.load %arg8[%c0_17, %c0_18] : memref<16x128xf32, #tpu.memory_space<vmem>>, vector<16x128xf32>
    tpu.vector_store %arg8[%c0_17, %c0_18], %21 {strides = array<i32>} : memref<16x128xf32, #tpu.memory_space<vmem>>, vector<16x128xf32>,
    return
  }
  func.func @transform_0(%arg0: i32) -> (i32, i32) {
    %c0_i32 = arith.constant 0 : i32
    %c0_i32_0 = arith.constant 0 : i32
    %c0_i32_1 = arith.constant 0 : i32
    return %c0_i32, %c0_i32_0 : i32, i32
  }
  func.func @transform_1(%arg0: i32) -> (i32, i32) {
    %c0_i32 = arith.constant 0 : i32
    %c0_i32_0 = arith.constant 0 : i32
    %c0_i32_1 = arith.constant 0 : i32
    return %c0_i32, %c0_i32_0 : i32, i32
  }
  func.func @transform_2(%arg0: i32) -> (i32, i32) {
    %c0_i32 = arith.constant 0 : i32
    %c0_i32_0 = arith.constant 0 : i32
    %c0_i32_1 = arith.constant 0 : i32
    return %c0_i32, %c0_i32_0 : i32, i32
  }
  func.func @transform_3(%arg0: i32) -> (i32, i32) {
    %c0_i32 = arith.constant 0 : i32
    %c0_i32_0 = arith.constant 0 : i32
    %c0_i32_1 = arith.constant 0 : i32
    return %c0_i32, %c0_i32_0 : i32, i32
  }
  func.func @transform_4(%arg0: i32) -> (i32, i32) {
    %c0_i32 = arith.constant 0 : i32
    %c0_i32_0 = arith.constant 0 : i32
    %c0_i32_1 = arith.constant 0 : i32
    return %c0_i32, %c0_i32_0 : i32, i32
  }
  func.func @transform_5(%arg0: i32) -> (i32, i32) {
    %c0_i32 = arith.constant 0 : i32
    %c0_i32_0 = arith.constant 0 : i32
    %c0_i32_1 = arith.constant 0 : i32
    return %c0_i32, %c0_i32_0 : i32, i32
  }
  func.func @transform_6(%arg0: i32) -> (i32, i32) {
    %c0_i32 = arith.constant 0 : i32
    %c0_i32_0 = arith.constant 0 : i32
    %c0_i32_1 = arith.constant 0 : i32
    return %c0_i32, %c0_i32_0 : i32, i32
  }
  func.func @transform_7(%arg0: i32) -> (i32, i32) {
    %c0_i32 = arith.constant 0 : i32
    %c0_i32_0 = arith.constant 0 : i32
    %c0_i32_1 = arith.constant 0 : i32
    return %c0_i32, %c0_i32_0 : i32, i32
  }
}

</mosaic_0001>

<llo_original>
// kernel: mnist_cnn_forward.4
$region0: #{mnist_cnn_forward.4}
  #allocation0 [shape = 'u32[]', space=smem, size = 0x4, offset = 0x4, fixed_abs, tag = 'smem constant byte address 0x4 - core index']
  #allocation1 [shape = 'u32[144,128]{1,0:T(1,128)}', space=vmem, size = 0x12000, scoped, tag = 'internal scratch']
  %s0 = inlined_call_operand.vmem [shape: bf16[4,392,128], index: 0, kind: input, shape index: {}]
  %s1 = inlined_call_operand.vmem [shape: bf16[128,128], index: 1, kind: input, shape index: {}]
  %s2 = inlined_call_operand.vmem [shape: f32[1,128], index: 2, kind: input, shape index: {}]
  %s3 = inlined_call_operand.vmem [shape: bf16[392,128], index: 3, kind: output, shape index: {}]
  %s4 = sld [smem:[#allocation0]]
  $region22: #{mnist_cnn_forward.4} parent=0
    _
  %s6 = ssub.s32 1, %s4
  %s7 = scalar_select 0, %s6, %s4
  // Predicated region
  $region2: #{mnist_cnn_forward.4} parent=0 // pred_check
    _
  $region3: #{mnist_cnn_forward.4} parent=0 // pred_check_branch
    %9 = sbr.rel (0) target = $region5
  $region4: #{mnist_cnn_forward.4} parent=0 // pred_region
    _
  $region5: #{mnist_cnn_forward.4} parent=0 // pred_fallthru
    _
  // Predicated region
  $region6: #{mnist_cnn_forward.4} parent=0 // pred_check
    _
  $region7: #{mnist_cnn_forward.4} parent=0 // pred_check_branch
    %11 = sbr.rel (0) target = $region9
  $region8: #{mnist_cnn_forward.4} parent=0 // pred_region
    _
  $region9: #{mnist_cnn_forward.4} parent=0 // pred_fallthru
    _
  // Predicated region
  $region10: #{mnist_cnn_forward.4} parent=0 // pred_check
    _
  $region11: #{mnist_cnn_forward.4} parent=0 // pred_check_branch
    %13 = sbr.rel (0) target = $region13
  $region12: #{mnist_cnn_forward.4} parent=0 // pred_region
    _
  $region13: #{mnist_cnn_forward.4} parent=0 // pred_fallthru
    _
  %v15 = vld [vmem:[%s1] sm:$0xf]
  %v16 = vld [vmem:[%s1 + $0x4] sm:$0xf]
  %v17 = vld [vmem:[%s1 + $0x8] sm:$0xf]
  %v18 = vld [vmem:[%s1 + $0xc] sm:$0xf]
  %v19 = vld [vmem:[%s1 + $0x10] sm:$0xf]
  %v20 = vld [vmem:[%s1 + $0x14] sm:$0xf]
  %v21 = vld [vmem:[%s1 + $0x18] sm:$0xf]
  %v22 = vld [vmem:[%s1 + $0x1c] sm:$0xf]
  %v23 = vld [vmem:[%s1 + $0x20] sm:$0xf]
  %v24 = vld [vmem:[%s1 + $0x24] sm:$0xf]
  %v25 = vld [vmem:[%s1 + $0x28] sm:$0xf]
  %v26 = vld [vmem:[%s1 + $0x2c] sm:$0xf]
  %v27 = vld [vmem:[%s1 + $0x30] sm:$0xf]
  %v28 = vld [vmem:[%s1 + $0x34] sm:$0xf]
  %v29 = vld [vmem:[%s1 + $0x38] sm:$0xf]
  %v30 = vld [vmem:[%s1 + $0x3c] sm:$0xf]
  %v31 = vld [vmem:[%s2] sm:$0x1]
  %v32 = vld [vmem:[%s0] sm:$0xf]
  %v33 = vld [vmem:[%s0 + $0x4] sm:$0xf]
  %v34 = vld [vmem:[%s0 + $0x8] sm:$0xf]
  %v35 = vld [vmem:[%s0 + $0xc] sm:$0xf]
  %v36 = vld [vmem:[%s0 + $0x10] sm:$0xf]
  %v37 = vld [vmem:[%s0 + $0x14] sm:$0xf]
  %v38 = vld [vmem:[%s0 + $0x18] sm:$0xf]
  %v39 = vld [vmem:[%s0 + $0x1c] sm:$0xf]
  %v40 = vld [vmem:[%s0 + $0x20] sm:$0xf]
  %v41 = vld [vmem:[%s0 + $0x24] sm:$0xf]
  %v42 = vld [vmem:[%s0 + $0x28] sm:$0xf]
  %v43 = vld [vmem:[%s0 + $0x2c] sm:$0xf]
  %v44 = vld [vmem:[%s0 + $0x30] sm:$0xf]
  %v45 = vld [vmem:[%s0 + $0x34] sm:$0xf]
  %v46 = vld [vmem:[%s0 + $0x38] sm:$0xf]
  %v47 = vld [vmem:[%s0 + $0x3c] sm:$0xf]
  %v48 = vld [vmem:[%s0 + $0x40] sm:$0xf]
  %v49 = vld [vmem:[%s0 + $0x44] sm:$0xf]
  %v50 = vld [vmem:[%s0 + $0x48] sm:$0xf]
  %v51 = vld [vmem:[%s0 + $0x4c] sm:$0xf]
  %v52 = vld [vmem:[%s0 + $0x50] sm:$0xf]
  %v53 = vld [vmem:[%s0 + $0x54] sm:$0xf]
  %v54 = vld [vmem:[%s0 + $0x58] sm:$0xf]
  %v55 = vld [vmem:[%s0 + $0x5c] sm:$0xf]
  %v56 = vld [vmem:[%s0 + $0x60] sm:$0xf]
  %v57 = vld [vmem:[%s0 + $0x64] sm:$0xf]
  %v58 = vld [vmem:[%s0 + $0x68] sm:$0xf]
  %v59 = vld [vmem:[%s0 + $0x6c] sm:$0xf]
  %v60 = vld [vmem:[%s0 + $0x70] sm:$0xf]
  %v61 = vld [vmem:[%s0 + $0x74] sm:$0xf]
  %v62 = vld [vmem:[%s0 + $0x78] sm:$0xf]
  %v63 = vld [vmem:[%s0 + $0x7c] sm:$0xf]
  %v64 = vld [vmem:[%s0 + $0x80] sm:$0xf]
  %v65 = vld [vmem:[%s0 + $0x84] sm:$0xf]
  %v66 = vld [vmem:[%s0 + $0x88] sm:$0xf]
  %v67 = vld [vmem:[%s0 + $0x8c] sm:$0xf]
  %v68 = vld [vmem:[%s0 + $0x90] sm:$0xf]
  %v69 = vld [vmem:[%s0 + $0x94] sm:$0xf]
  %v70 = vld [vmem:[%s0 + $0x98] sm:$0xf]
  %v71 = vld [vmem:[%s0 + $0x9c] sm:$0xf]
  %v72 = vld [vmem:[%s0 + $0xa0] sm:$0xf]
  %v73 = vld [vmem:[%s0 + $0xa4] sm:$0xf]
  %v74 = vld [vmem:[%s0 + $0xa8] sm:$0xf]
  %v75 = vld [vmem:[%s0 + $0xac] sm:$0xf]
  %v76 = vld [vmem:[%s0 + $0xb0] sm:$0xf]
  %v77 = vld [vmem:[%s0 + $0xb4] sm:$0xf]
  %v78 = vld [vmem:[%s0 + $0xb8] sm:$0xf]
  %v79 = vld [vmem:[%s0 + $0xbc] sm:$0xf]
  %v80 = vld [vmem:[%s0 + $0xc0] sm:$0xf]
  %v82 = vlaneseq
  %v83 = vshrl.u32 %v82, 7
  %v84 = vsub.s32 0, %v83
  %v85 = vrot.slane %v31, %v84
  %v136 = vunpack.c.l.b16 %v32
  %v137 = vunpack.c.l.b16 %v33
  %v138 = vunpack.c.l.b16 %v34
  %v139 = vunpack.c.l.b16 %v35
  %v140 = vunpack.c.l.b16 %v36
  %v141 = vunpack.c.l.b16 %v37
  %v142 = vunpack.c.l.b16 %v38
  %v143 = vunpack.c.l.b16 %v39
  %v144 = vunpack.c.l.b16 %v40
  %v145 = vunpack.c.l.b16 %v41
  %v146 = vunpack.c.l.b16 %v42
  %v147 = vunpack.c.l.b16 %v43
  %v148 = vunpack.c.l.b16 %v44
  %v149 = vunpack.c.l.b16 %v45
  %v150 = vunpack.c.l.b16 %v46
  %v151 = vunpack.c.l.b16 %v47
  %v152 = vunpack.c.l.b16 %v48
  %v153 = vunpack.c.l.b16 %v49
  %v154 = vunpack.c.l.b16 %v50
  %v155 = vunpack.c.l.b16 %v51
  %v156 = vunpack.c.l.b16 %v52
  %v157 = vunpack.c.l.b16 %v53
  %v158 = vunpack.c.l.b16 %v54
  %v159 = vunpack.c.l.b16 %v55
  %v160 = vunpack.c.l.b16 %v56
  %v161 = vunpack.c.l.b16 %v57
  %v162 = vunpack.c.l.b16 %v58
  %v163 = vunpack.c.l.b16 %v59
  %v164 = vunpack.c.l.b16 %v60
  %v165 = vunpack.c.l.b16 %v61
  %v166 = vunpack.c.l.b16 %v62
  %v167 = vunpack.c.l.b16 %v63
  %v168 = vunpack.c.l.b16 %v64
  %v169 = vunpack.c.l.b16 %v65
  %v170 = vunpack.c.l.b16 %v66
  %v171 = vunpack.c.l.b16 %v67
  %v172 = vunpack.c.l.b16 %v68
  %v173 = vunpack.c.l.b16 %v69
  %v174 = vunpack.c.l.b16 %v70
  %v175 = vunpack.c.l.b16 %v71
  %v176 = vunpack.c.l.b16 %v72
  %v177 = vunpack.c.l.b16 %v73
  %v178 = vunpack.c.l.b16 %v74
  %v179 = vunpack.c.l.b16 %v75
  %v180 = vunpack.c.l.b16 %v76
  %v181 = vunpack.c.l.b16 %v77
  %v182 = vunpack.c.l.b16 %v78
  %v183 = vunpack.c.l.b16 %v79
  %v184 = vunpack.c.l.b16 %v80
  %v185 = vpack.c.b16 %v137, %v136
  %v186 = vpack.c.b16 %v139, %v138
  %v187 = vpack.c.b16 %v141, %v140
  %v188 = vpack.c.b16 %v143, %v142
  %v189 = vpack.c.b16 %v145, %v144
  %v190 = vpack.c.b16 %v147, %v146
  %v191 = vpack.c.b16 %v149, %v148
  %v192 = vpack.c.b16 %v151, %v150
  %v193 = vpack.c.b16 %v153, %v152
  %v194 = vpack.c.b16 %v155, %v154
  %v195 = vpack.c.b16 %v157, %v156
  %v196 = vpack.c.b16 %v159, %v158
  %v197 = vpack.c.b16 %v161, %v160
  %v198 = vpack.c.b16 %v163, %v162
  %v199 = vpack.c.b16 %v165, %v164
  %v200 = vpack.c.b16 %v167, %v166
  %v201 = vpack.c.b16 %v169, %v168
  %v202 = vpack.c.b16 %v171, %v170
  %v203 = vpack.c.b16 %v173, %v172
  %v204 = vpack.c.b16 %v175, %v174
  %v205 = vpack.c.b16 %v177, %v176
  %v206 = vpack.c.b16 %v179, %v178
  %v207 = vpack.c.b16 %v181, %v180
  %v208 = vpack.c.b16 %v183, %v182
  %v209 = vpack.c.b16 %v184, %v184
  %v251 = vunpack.c.l.b16 %v15
  %v252 = vunpack.c.l.b16 %v16
  %v253 = vunpack.c.l.b16 %v17
  %v254 = vunpack.c.l.b16 %v18
  %v255 = vunpack.c.l.b16 %v19
  %v256 = vunpack.c.l.b16 %v20
  %v257 = vunpack.c.l.b16 %v21
  %v258 = vunpack.c.l.b16 %v22
  %v259 = vunpack.c.l.b16 %v23
  %v260 = vunpack.c.l.b16 %v24
  %v261 = vunpack.c.l.b16 %v25
  %v262 = vunpack.c.l.b16 %v26
  %v263 = vunpack.c.l.b16 %v27
  %v264 = vunpack.c.l.b16 %v28
  %v265 = vunpack.c.l.b16 %v29
  %v266 = vunpack.c.l.b16 %v30
  %v267 = vpack.c.b16 %v252, %v251
  %v268 = vpack.c.b16 %v254, %v253
  %v269 = vpack.c.b16 %v256, %v255
  %v270 = vpack.c.b16 %v258, %v257
  %v271 = vpack.c.b16 %v260, %v259
  %v272 = vpack.c.b16 %v262, %v261
  %v273 = vpack.c.b16 %v264, %v263
  %v274 = vpack.c.b16 %v266, %v265
  %283 = vmatprep.subr.bf16.mxu0 0
  %284 = vmatpush1.bf16.msra.mxu0 %v274
  %285 = vmatprep.subr.bf16.mxu0 0
  %286 = vmatpush1.bf16.msra.mxu0 %v273
  %287 = vmatprep.subr.bf16.mxu0 0
  %288 = vmatpush1.bf16.msra.mxu0 %v272
  %289 = vmatprep.subr.bf16.mxu0 0
  %290 = vmatpush1.bf16.msra.mxu0 %v271
  %291 = vmatprep.subr.bf16.mxu0 0
  %292 = vmatpush1.bf16.msra.mxu0 %v270
  %293 = vmatprep.subr.bf16.mxu0 0
  %294 = vmatpush1.bf16.msra.mxu0 %v269
  %295 = vmatprep.subr.bf16.mxu0 0
  %296 = vmatpush1.bf16.msra.mxu0 %v268
  %297 = vmatprep.subr.bf16.mxu0 0
  %298 = vmatpush1.bf16.msra.mxu0 %v267
  %299 = vmatprep.subr.bf16.mxu0 0
  %300 = vmatpush2.bf16.msra.mxu0 0
  %301 = vmatprep.subr.bf16.mxu0 0
  %302 = vmatpush2.bf16.msra.mxu0 0
  %303 = vmatprep.subr.bf16.mxu0 0
  %304 = vmatpush2.bf16.msra.mxu0 0
  %305 = vmatprep.subr.bf16.mxu0 0
  %306 = vmatpush2.bf16.msra.mxu0 0
  %307 = vmatprep.subr.bf16.mxu0 0
  %308 = vmatpush2.bf16.msra.mxu0 0
  %309 = vmatprep.subr.bf16.mxu0 0
  %310 = vmatpush2.bf16.msra.mxu0 0
  %311 = vmatprep.subr.bf16.mxu0 0
  %312 = vmatpush2.bf16.msra.mxu0 0
  %313 = vmatprep.subr.bf16.mxu0 0
  %314 = vmatpush2.bf16.msra.mxu0 0
  %315 = vmatprep.mubr.bf16.mxu0 0
  %316 = vmatmul.mubr.bf16.gmra.mxu0 %v185
  %v317 = vpop.f32.mrf.mxu0
  %v318 = vadd.f32 %v85, %v317
  %v319 = vpop.f32.mrf.mxu0
  %v320 = vpop.f32.mrf.mxu0
  %v321 = vadd.f32 %v85, %v320
  %v322 = vpop.f32.mrf.mxu0
  %323 = vmatprep.mubr.bf16.mxu0 0
  %324 = vmatmul.mubr.bf16.gmra.mxu0 %v186
  %v325 = vpop.f32.mrf.mxu0
  %v326 = vadd.f32 %v85, %v325
  %v327 = vpop.f32.mrf.mxu0
  %v328 = vpop.f32.mrf.mxu0
  %v329 = vadd.f32 %v85, %v328
  %v330 = vpop.f32.mrf.mxu0
  %331 = vmatprep.mubr.bf16.mxu0 0
  %332 = vmatmul.mubr.bf16.gmra.mxu0 %v187
  %v333 = vpop.f32.mrf.mxu0
  %v334 = vadd.f32 %v85, %v333
  %v335 = vpop.f32.mrf.mxu0
  %v336 = vpop.f32.mrf.mxu0
  %v337 = vadd.f32 %v85, %v336
  %v338 = vpop.f32.mrf.mxu0
  %339 = vmatprep.mubr.bf16.mxu0 0
  %340 = vmatmul.mubr.bf16.gmra.mxu0 %v188
  %v341 = vpop.f32.mrf.mxu0
  %v342 = vadd.f32 %v85, %v341
  %v343 = vpop.f32.mrf.mxu0
  %v344 = vpop.f32.mrf.mxu0
  %v345 = vadd.f32 %v85, %v344
  %v346 = vpop.f32.mrf.mxu0
  %347 = vmatprep.mubr.bf16.mxu0 0
  %348 = vmatmul.mubr.bf16.gmra.mxu0 %v189
  %v349 = vpop.f32.mrf.mxu0
  %v350 = vadd.f32 %v85, %v349
  %v351 = vpop.f32.mrf.mxu0
  %v352 = vpop.f32.mrf.mxu0
  %v353 = vadd.f32 %v85, %v352
  %v354 = vpop.f32.mrf.mxu0
  %355 = vmatprep.mubr.bf16.mxu0 0
  %356 = vmatmul.mubr.bf16.gmra.mxu0 %v190
  %v357 = vpop.f32.mrf.mxu0
  %v358 = vadd.f32 %v85, %v357
  %v359 = vpop.f32.mrf.mxu0
  %v360 = vpop.f32.mrf.mxu0
  %v361 = vadd.f32 %v85, %v360
  %v362 = vpop.f32.mrf.mxu0
  %363 = vmatprep.mubr.bf16.mxu0 0
  %364 = vmatmul.mubr.bf16.gmra.mxu0 %v191
  %v365 = vpop.f32.mrf.mxu0
  %v366 = vadd.f32 %v85, %v365
  %v367 = vpop.f32.mrf.mxu0
  %v368 = vpop.f32.mrf.mxu0
  %v369 = vadd.f32 %v85, %v368
  %v370 = vpop.f32.mrf.mxu0
  %371 = vmatprep.mubr.bf16.mxu0 0
  %372 = vmatmul.mubr.bf16.gmra.mxu0 %v192
  %v373 = vpop.f32.mrf.mxu0
  %v374 = vadd.f32 %v85, %v373
  %v375 = vpop.f32.mrf.mxu0
  %v376 = vpop.f32.mrf.mxu0
  %v377 = vadd.f32 %v85, %v376
  %v378 = vpop.f32.mrf.mxu0
  %379 = vmatprep.mubr.bf16.mxu0 0
  %380 = vmatmul.mubr.bf16.gmra.mxu0 %v193
  %v381 = vpop.f32.mrf.mxu0
  %v382 = vadd.f32 %v85, %v381
  %v383 = vpop.f32.mrf.mxu0
  %v384 = vpop.f32.mrf.mxu0
  %v385 = vadd.f32 %v85, %v384
  %v386 = vpop.f32.mrf.mxu0
  %387 = vmatprep.mubr.bf16.mxu0 0
  %388 = vmatmul.mubr.bf16.gmra.mxu0 %v194
  %v389 = vpop.f32.mrf.mxu0
  %v390 = vadd.f32 %v85, %v389
  %v391 = vpop.f32.mrf.mxu0
  %v392 = vpop.f32.mrf.mxu0
  %v393 = vadd.f32 %v85, %v392
  %v394 = vpop.f32.mrf.mxu0
  %395 = vmatprep.mubr.bf16.mxu0 0
  %396 = vmatmul.mubr.bf16.gmra.mxu0 %v195
  %v397 = vpop.f32.mrf.mxu0
  %v398 = vadd.f32 %v85, %v397
  %v399 = vpop.f32.mrf.mxu0
  %v400 = vpop.f32.mrf.mxu0
  %v401 = vadd.f32 %v85, %v400
  %v402 = vpop.f32.mrf.mxu0
  %403 = vmatprep.mubr.bf16.mxu0 0
  %404 = vmatmul.mubr.bf16.gmra.mxu0 %v196
  %v405 = vpop.f32.mrf.mxu0
  %v406 = vadd.f32 %v85, %v405
  %v407 = vpop.f32.mrf.mxu0
  %v408 = vpop.f32.mrf.mxu0
  %v409 = vadd.f32 %v85, %v408
  %v410 = vpop.f32.mrf.mxu0
  %411 = vmatprep.mubr.bf16.mxu0 0
  %412 = vmatmul.mubr.bf16.gmra.mxu0 %v197
  %v413 = vpop.f32.mrf.mxu0
  %v414 = vadd.f32 %v85, %v413
  %v415 = vpop.f32.mrf.mxu0
  %v416 = vpop.f32.mrf.mxu0
  %v417 = vadd.f32 %v85, %v416
  %v418 = vpop.f32.mrf.mxu0
  %419 = vmatprep.mubr.bf16.mxu0 0
  %420 = vmatmul.mubr.bf16.gmra.mxu0 %v198
  %v421 = vpop.f32.mrf.mxu0
  %v422 = vadd.f32 %v85, %v421
  %v423 = vpop.f32.mrf.mxu0
  %v424 = vpop.f32.mrf.mxu0
  %v425 = vadd.f32 %v85, %v424
  %v426 = vpop.f32.mrf.mxu0
  %427 = vmatprep.mubr.bf16.mxu0 0
  %428 = vmatmul.mubr.bf16.gmra.mxu0 %v199
  %v429 = vpop.f32.mrf.mxu0
  %v430 = vadd.f32 %v85, %v429
  %v431 = vpop.f32.mrf.mxu0
  %v432 = vpop.f32.mrf.mxu0
  %v433 = vadd.f32 %v85, %v432
  %v434 = vpop.f32.mrf.mxu0
  %435 = vmatprep.mubr.bf16.mxu0 0
  %436 = vmatmul.mubr.bf16.gmra.mxu0 %v200
  %v437 = vpop.f32.mrf.mxu0
  %v438 = vadd.f32 %v85, %v437
  %v439 = vpop.f32.mrf.mxu0
  %v440 = vpop.f32.mrf.mxu0
  %v441 = vadd.f32 %v85, %v440
  %v442 = vpop.f32.mrf.mxu0
  %443 = vmatprep.mubr.bf16.mxu0 0
  %444 = vmatmul.mubr.bf16.gmra.mxu0 %v201
  %v445 = vpop.f32.mrf.mxu0
  %v446 = vadd.f32 %v85, %v445
  %v447 = vpop.f32.mrf.mxu0
  %v448 = vpop.f32.mrf.mxu0
  %v449 = vadd.f32 %v85, %v448
  %v450 = vpop.f32.mrf.mxu0
  %451 = vmatprep.mubr.bf16.mxu0 0
  %452 = vmatmul.mubr.bf16.gmra.mxu0 %v202
  %v453 = vpop.f32.mrf.mxu0
  %v454 = vadd.f32 %v85, %v453
  %v455 = vpop.f32.mrf.mxu0
  %v456 = vpop.f32.mrf.mxu0
  %v457 = vadd.f32 %v85, %v456
  %v458 = vpop.f32.mrf.mxu0
  %459 = vmatprep.mubr.bf16.mxu0 0
  %460 = vmatmul.mubr.bf16.gmra.mxu0 %v203
  %v461 = vpop.f32.mrf.mxu0
  %v462 = vadd.f32 %v85, %v461
  %v463 = vpop.f32.mrf.mxu0
  %v464 = vpop.f32.mrf.mxu0
  %v465 = vadd.f32 %v85, %v464
  %v466 = vpop.f32.mrf.mxu0
  %467 = vmatprep.mubr.bf16.mxu0 0
  %468 = vmatmul.mubr.bf16.gmra.mxu0 %v204
  %v469 = vpop.f32.mrf.mxu0
  %v470 = vadd.f32 %v85, %v469
  %v471 = vpop.f32.mrf.mxu0
  %v472 = vpop.f32.mrf.mxu0
  %v473 = vadd.f32 %v85, %v472
  %v474 = vpop.f32.mrf.mxu0
  %475 = vmatprep.mubr.bf16.mxu0 0
  %476 = vmatmul.mubr.bf16.gmra.mxu0 %v205
  %v477 = vpop.f32.mrf.mxu0
  %v478 = vadd.f32 %v85, %v477
  %v479 = vpop.f32.mrf.mxu0
  %v480 = vpop.f32.mrf.mxu0
  %v481 = vadd.f32 %v85, %v480
  %v482 = vpop.f32.mrf.mxu0
  %483 = vmatprep.mubr.bf16.mxu0 0
  %484 = vmatmul.mubr.bf16.gmra.mxu0 %v206
  %v485 = vpop.f32.mrf.mxu0
  %v486 = vadd.f32 %v85, %v485
  %v487 = vpop.f32.mrf.mxu0
  %v488 = vpop.f32.mrf.mxu0
  %v489 = vadd.f32 %v85, %v488
  %v490 = vpop.f32.mrf.mxu0
  %491 = vmatprep.mubr.bf16.mxu0 0
  %492 = vmatmul.mubr.bf16.gmra.mxu0 %v207
  %v493 = vpop.f32.mrf.mxu0
  %v494 = vadd.f32 %v85, %v493
  %v495 = vpop.f32.mrf.mxu0
  %v496 = vpop.f32.mrf.mxu0
  %v497 = vadd.f32 %v85, %v496
  %v498 = vpop.f32.mrf.mxu0
  %499 = vmatprep.mubr.bf16.mxu0 0
  %500 = vmatmul.mubr.bf16.gmra.mxu0 %v208
  %v501 = vpop.f32.mrf.mxu0
  %v502 = vadd.f32 %v85, %v501
  %v503 = vpop.f32.mrf.mxu0
  %v504 = vpop.f32.mrf.mxu0
  %v505 = vadd.f32 %v85, %v504
  %v506 = vpop.f32.mrf.mxu0
  %507 = vmatprep.mubr.bf16.mxu0 0
  %508 = vmatmul.mubr.bf16.gmra.mxu0 %v209
  %v509 = vpop.f32.mrf.mxu0
  %v510 = vadd.f32 %v85, %v509
  %v511 = vpop.f32.mrf.mxu0
  %v512 = vpop.f32.mrf.mxu0
  %v513 = vpop.f32.mrf.mxu0
  %514 = vdwg.mxu0
  %v515 = vmax.f32 %v318, 0.0
  %v516 = vmax.f32 %v321, 0.0
  %v517 = vmax.f32 %v326, 0.0
  %v518 = vmax.f32 %v329, 0.0
  %v519 = vmax.f32 %v334, 0.0
  %v520 = vmax.f32 %v337, 0.0
  %v521 = vmax.f32 %v342, 0.0
  %v522 = vmax.f32 %v345, 0.0
  %v523 = vmax.f32 %v350, 0.0
  %v524 = vmax.f32 %v353, 0.0
  %v525 = vmax.f32 %v358, 0.0
  %v526 = vmax.f32 %v361, 0.0
  %v527 = vmax.f32 %v366, 0.0
  %v528 = vmax.f32 %v369, 0.0
  %v529 = vmax.f32 %v374, 0.0
  %v530 = vmax.f32 %v377, 0.0
  %v531 = vmax.f32 %v382, 0.0
  %v532 = vmax.f32 %v385, 0.0
  %v533 = vmax.f32 %v390, 0.0
  %v534 = vmax.f32 %v393, 0.0
  %v535 = vmax.f32 %v398, 0.0
  %v536 = vmax.f32 %v401, 0.0
  %v537 = vmax.f32 %v406, 0.0
  %v538 = vmax.f32 %v409, 0.0
  %v539 = vmax.f32 %v414, 0.0
  %v540 = vmax.f32 %v417, 0.0
  %v541 = vmax.f32 %v422, 0.0
  %v542 = vmax.f32 %v425, 0.0
  %v543 = vmax.f32 %v430, 0.0
  %v544 = vmax.f32 %v433, 0.0
  %v545 = vmax.f32 %v438, 0.0
  %v546 = vmax.f32 %v441, 0.0
  %v547 = vmax.f32 %v446, 0.0
  %v548 = vmax.f32 %v449, 0.0
  %v549 = vmax.f32 %v454, 0.0
  %v550 = vmax.f32 %v457, 0.0
  %v551 = vmax.f32 %v462, 0.0
  %v552 = vmax.f32 %v465, 0.0
  %v553 = vmax.f32 %v470, 0.0
  %v554 = vmax.f32 %v473, 0.0
  %v555 = vmax.f32 %v478, 0.0
  %v556 = vmax.f32 %v481, 0.0
  %v557 = vmax.f32 %v486, 0.0
  %v558 = vmax.f32 %v489, 0.0
  %v559 = vmax.f32 %v494, 0.0
  %v560 = vmax.f32 %v497, 0.0
  %v561 = vmax.f32 %v502, 0.0
  %v562 = vmax.f32 %v505, 0.0
  %v563 = vmax.f32 %v510, 0.0
  %s564 = scalar_lea.vmem %s0, 196
  %v565 = vld [vmem:[%s564] sm:$0xf]
  %v566 = vld [vmem:[%s564 + $0x4] sm:$0xf]
  %v567 = vld [vmem:[%s564 + $0x8] sm:$0xf]
  %v568 = vld [vmem:[%s564 + $0xc] sm:$0xf]
  %v569 = vld [vmem:[%s564 + $0x10] sm:$0xf]
  %v570 = vld [vmem:[%s564 + $0x14] sm:$0xf]
  %v571 = vld [vmem:[%s564 + $0x18] sm:$0xf]
  %v572 = vld [vmem:[%s564 + $0x1c] sm:$0xf]
  %v573 = vld [vmem:[%s564 + $0x20] sm:$0xf]
  %v574 = vld [vmem:[%s564 + $0x24] sm:$0xf]
  %v575 = vld [vmem:[%s564 + $0x28] sm:$0xf]
  %v576 = vld [vmem:[%s564 + $0x2c] sm:$0xf]
  %v577 = vld [vmem:[%s564 + $0x30] sm:$0xf]
  %v578 = vld [vmem:[%s564 + $0x34] sm:$0xf]
  %v579 = vld [vmem:[%s564 + $0x38] sm:$0xf]
  %v580 = vld [vmem:[%s564 + $0x3c] sm:$0xf]
  %v581 = vld [vmem:[%s564 + $0x40] sm:$0xf]
  %v582 = vld [vmem:[%s564 + $0x44] sm:$0xf]
  %v583 = vld [vmem:[%s564 + $0x48] sm:$0xf]
  %v584 = vld [vmem:[%s564 + $0x4c] sm:$0xf]
  %v585 = vld [vmem:[%s564 + $0x50] sm:$0xf]
  %v586 = vld [vmem:[%s564 + $0x54] sm:$0xf]
  %v587 = vld [vmem:[%s564 + $0x58] sm:$0xf]
  %v588 = vld [vmem:[%s564 + $0x5c] sm:$0xf]
  %v589 = vld [vmem:[%s564 + $0x60] sm:$0xf]
  %v590 = vld [vmem:[%s564 + $0x64] sm:$0xf]
  %v591 = vld [vmem:[%s564 + $0x68] sm:$0xf]
  %v592 = vld [vmem:[%s564 + $0x6c] sm:$0xf]
  %v593 = vld [vmem:[%s564 + $0x70] sm:$0xf]
  %v594 = vld [vmem:[%s564 + $0x74] sm:$0xf]
  %v595 = vld [vmem:[%s564 + $0x78] sm:$0xf]
  %v596 = vld [vmem:[%s564 + $0x7c] sm:$0xf]
  %v597 = vld [vmem:[%s564 + $0x80] sm:$0xf]
  %v598 = vld [vmem:[%s564 + $0x84] sm:$0xf]
  %v599 = vld [vmem:[%s564 + $0x88] sm:$0xf]
  %v600 = vld [vmem:[%s564 + $0x8c] sm:$0xf]
  %v601 = vld [vmem:[%s564 + $0x90] sm:$0xf]
  %v602 = vld [vmem:[%s564 + $0x94] sm:$0xf]
  %v603 = vld [vmem:[%s564 + $0x98] sm:$0xf]
  %v604 = vld [vmem:[%s564 + $0x9c] sm:$0xf]
  %v605 = vld [vmem:[%s564 + $0xa0] sm:$0xf]
  %v606 = vld [vmem:[%s564 + $0xa4] sm:$0xf]
  %v607 = vld [vmem:[%s564 + $0xa8] sm:$0xf]
  %v608 = vld [vmem:[%s564 + $0xac] sm:$0xf]
  %v609 = vld [vmem:[%s564 + $0xb0] sm:$0xf]
  %v610 = vld [vmem:[%s564 + $0xb4] sm:$0xf]
  %v611 = vld [vmem:[%s564 + $0xb8] sm:$0xf]
  %v612 = vld [vmem:[%s564 + $0xbc] sm:$0xf]
  %v613 = vld [vmem:[%s564 + $0xc0] sm:$0xf]
  %v663 = vunpack.c.l.b16 %v565
  %v664 = vunpack.c.l.b16 %v566
  %v665 = vunpack.c.l.b16 %v567
  %v666 = vunpack.c.l.b16 %v568
  %v667 = vunpack.c.l.b16 %v569
  %v668 = vunpack.c.l.b16 %v570
  %v669 = vunpack.c.l.b16 %v571
  %v670 = vunpack.c.l.b16 %v572
  %v671 = vunpack.c.l.b16 %v573
  %v672 = vunpack.c.l.b16 %v574
  %v673 = vunpack.c.l.b16 %v575
  %v674 = vunpack.c.l.b16 %v576
  %v675 = vunpack.c.l.b16 %v577
  %v676 = vunpack.c.l.b16 %v578
  %v677 = vunpack.c.l.b16 %v579
  %v678 = vunpack.c.l.b16 %v580
  %v679 = vunpack.c.l.b16 %v581
  %v680 = vunpack.c.l.b16 %v582
  %v681 = vunpack.c.l.b16 %v583
  %v682 = vunpack.c.l.b16 %v584
  %v683 = vunpack.c.l.b16 %v585
  %v684 = vunpack.c.l.b16 %v586
  %v685 = vunpack.c.l.b16 %v587
  %v686 = vunpack.c.l.b16 %v588
  %v687 = vunpack.c.l.b16 %v589
  %v688 = vunpack.c.l.b16 %v590
  %v689 = vunpack.c.l.b16 %v591
  %v690 = vunpack.c.l.b16 %v592
  %v691 = vunpack.c.l.b16 %v593
  %v692 = vunpack.c.l.b16 %v594
  %v693 = vunpack.c.l.b16 %v595
  %v694 = vunpack.c.l.b16 %v596
  %v695 = vunpack.c.l.b16 %v597
  %v696 = vunpack.c.l.b16 %v598
  %v697 = vunpack.c.l.b16 %v599
  %v698 = vunpack.c.l.b16 %v600
  %v699 = vunpack.c.l.b16 %v601
  %v700 = vunpack.c.l.b16 %v602
  %v701 = vunpack.c.l.b16 %v603
  %v702 = vunpack.c.l.b16 %v604
  %v703 = vunpack.c.l.b16 %v605
  %v704 = vunpack.c.l.b16 %v606
  %v705 = vunpack.c.l.b16 %v607
  %v706 = vunpack.c.l.b16 %v608
  %v707 = vunpack.c.l.b16 %v609
  %v708 = vunpack.c.l.b16 %v610
  %v709 = vunpack.c.l.b16 %v611
  %v710 = vunpack.c.l.b16 %v612
  %v711 = vunpack.c.l.b16 %v613
  %v712 = vpack.c.b16 %v664, %v663
  %v713 = vpack.c.b16 %v666, %v665
  %v714 = vpack.c.b16 %v668, %v667
  %v715 = vpack.c.b16 %v670, %v669
  %v716 = vpack.c.b16 %v672, %v671
  %v717 = vpack.c.b16 %v674, %v673
  %v718 = vpack.c.b16 %v676, %v675
  %v719 = vpack.c.b16 %v678, %v677
  %v720 = vpack.c.b16 %v680, %v679
  %v721 = vpack.c.b16 %v682, %v681
  %v722 = vpack.c.b16 %v684, %v683
  %v723 = vpack.c.b16 %v686, %v685
  %v724 = vpack.c.b16 %v688, %v687
  %v725 = vpack.c.b16 %v690, %v689
  %v726 = vpack.c.b16 %v692, %v691
  %v727 = vpack.c.b16 %v694, %v693
  %v728 = vpack.c.b16 %v696, %v695
  %v729 = vpack.c.b16 %v698, %v697
  %v730 = vpack.c.b16 %v700, %v699
  %v731 = vpack.c.b16 %v702, %v701
  %v732 = vpack.c.b16 %v704, %v703
  %v733 = vpack.c.b16 %v706, %v705
  %v734 = vpack.c.b16 %v708, %v707
  %v735 = vpack.c.b16 %v710, %v709
  %v736 = vpack.c.b16 %v711, %v711
  %762 = vmatprep.subr.bf16.mxu0 0
  %763 = vmatpush1.bf16.msra.mxu0 %v274
  %764 = vmatprep.subr.bf16.mxu0 0
  %765 = vmatpush1.bf16.msra.mxu0 %v273
  %766 = vmatprep.subr.bf16.mxu0 0
  %767 = vmatpush1.bf16.msra.mxu0 %v272
  %768 = vmatprep.subr.bf16.mxu0 0
  %769 = vmatpush1.bf16.msra.mxu0 %v271
  %770 = vmatprep.subr.bf16.mxu0 0
  %771 = vmatpush1.bf16.msra.mxu0 %v270
  %772 = vmatprep.subr.bf16.mxu0 0
  %773 = vmatpush1.bf16.msra.mxu0 %v269
  %774 = vmatprep.subr.bf16.mxu0 0
  %775 = vmatpush1.bf16.msra.mxu0 %v268
  %776 = vmatprep.subr.bf16.mxu0 0
  %777 = vmatpush1.bf16.msra.mxu0 %v267
  %778 = vmatprep.subr.bf16.mxu0 0
  %779 = vmatpush2.bf16.msra.mxu0 0
  %780 = vmatprep.subr.bf16.mxu0 0
  %781 = vmatpush2.bf16.msra.mxu0 0
  %782 = vmatprep.subr.bf16.mxu0 0
  %783 = vmatpush2.bf16.msra.mxu0 0
  %784 = vmatprep.subr.bf16.mxu0 0
  %785 = vmatpush2.bf16.msra.mxu0 0
  %786 = vmatprep.subr.bf16.mxu0 0
  %787 = vmatpush2.bf16.msra.mxu0 0
  %788 = vmatprep.subr.bf16.mxu0 0
  %789 = vmatpush2.bf16.msra.mxu0 0
  %790 = vmatprep.subr.bf16.mxu0 0
  %791 = vmatpush2.bf16.msra.mxu0 0
  %792 = vmatprep.subr.bf16.mxu0 0
  %793 = vmatpush2.bf16.msra.mxu0 0
  %794 = vmatprep.mubr.bf16.mxu0 0
  %795 = vmatmul.mubr.bf16.gmra.mxu0 %v712
  %v796 = vpop.f32.mrf.mxu0
  %v797 = vadd.f32 %v85, %v796
  %v798 = vpop.f32.mrf.mxu0
  %v799 = vpop.f32.mrf.mxu0
  %v800 = vadd.f32 %v85, %v799
  %v801 = vpop.f32.mrf.mxu0
  %802 = vmatprep.mubr.bf16.mxu0 0
  %803 = vmatmul.mubr.bf16.gmra.mxu0 %v713
  %v804 = vpop.f32.mrf.mxu0
  %v805 = vadd.f32 %v85, %v804
  %v806 = vpop.f32.mrf.mxu0
  %v807 = vpop.f32.mrf.mxu0
  %v808 = vadd.f32 %v85, %v807
  %v809 = vpop.f32.mrf.mxu0
  %810 = vmatprep.mubr.bf16.mxu0 0
  %811 = vmatmul.mubr.bf16.gmra.mxu0 %v714
  %v812 = vpop.f32.mrf.mxu0
  %v813 = vadd.f32 %v85, %v812
  %v814 = vpop.f32.mrf.mxu0
  %v815 = vpop.f32.mrf.mxu0
  %v816 = vadd.f32 %v85, %v815
  %v817 = vpop.f32.mrf.mxu0
  %818 = vmatprep.mubr.bf16.mxu0 0
  %819 = vmatmul.mubr.bf16.gmra.mxu0 %v715
  %v820 = vpop.f32.mrf.mxu0
  %v821 = vadd.f32 %v85, %v820
  %v822 = vpop.f32.mrf.mxu0
  %v823 = vpop.f32.mrf.mxu0
  %v824 = vadd.f32 %v85, %v823
  %v825 = vpop.f32.mrf.mxu0
  %826 = vmatprep.mubr.bf16.mxu0 0
  %827 = vmatmul.mubr.bf16.gmra.mxu0 %v716
  %v828 = vpop.f32.mrf.mxu0
  %v829 = vadd.f32 %v85, %v828
  %v830 = vpop.f32.mrf.mxu0
  %v831 = vpop.f32.mrf.mxu0
  %v832 = vadd.f32 %v85, %v831
  %v833 = vpop.f32.mrf.mxu0
  %834 = vmatprep.mubr.bf16.mxu0 0
  %835 = vmatmul.mubr.bf16.gmra.mxu0 %v717
  %v836 = vpop.f32.mrf.mxu0
  %v837 = vadd.f32 %v85, %v836
  %v838 = vpop.f32.mrf.mxu0
  %v839 = vpop.f32.mrf.mxu0
  %v840 = vadd.f32 %v85, %v839
  %v841 = vpop.f32.mrf.mxu0
  %842 = vmatprep.mubr.bf16.mxu0 0
  %843 = vmatmul.mubr.bf16.gmra.mxu0 %v718
  %v844 = vpop.f32.mrf.mxu0
  %v845 = vadd.f32 %v85, %v844
  %v846 = vpop.f32.mrf.mxu0
  %v847 = vpop.f32.mrf.mxu0
  %v848 = vadd.f32 %v85, %v847
  %v849 = vpop.f32.mrf.mxu0
  %850 = vmatprep.mubr.bf16.mxu0 0
  %851 = vmatmul.mubr.bf16.gmra.mxu0 %v719
  %v852 = vpop.f32.mrf.mxu0
  %v853 = vadd.f32 %v85, %v852
  %v854 = vpop.f32.mrf.mxu0
  %v855 = vpop.f32.mrf.mxu0
  %v856 = vadd.f32 %v85, %v855
  %v857 = vpop.f32.mrf.mxu0
  %858 = vmatprep.mubr.bf16.mxu0 0
  %859 = vmatmul.mubr.bf16.gmra.mxu0 %v720
  %v860 = vpop.f32.mrf.mxu0
  %v861 = vadd.f32 %v85, %v860
  %v862 = vpop.f32.mrf.mxu0
  %v863 = vpop.f32.mrf.mxu0
  %v864 = vadd.f32 %v85, %v863
  %v865 = vpop.f32.mrf.mxu0
  %866 = vmatprep.mubr.bf16.mxu0 0
  %867 = vmatmul.mubr.bf16.gmra.mxu0 %v721
  %v868 = vpop.f32.mrf.mxu0
  %v869 = vadd.f32 %v85, %v868
  %v870 = vpop.f32.mrf.mxu0
  %v871 = vpop.f32.mrf.mxu0
  %v872 = vadd.f32 %v85, %v871
  %v873 = vpop.f32.mrf.mxu0
  %874 = vmatprep.mubr.bf16.mxu0 0
  %875 = vmatmul.mubr.bf16.gmra.mxu0 %v722
  %v876 = vpop.f32.mrf.mxu0
  %v877 = vadd.f32 %v85, %v876
  %v878 = vpop.f32.mrf.mxu0
  %v879 = vpop.f32.mrf.mxu0
  %v880 = vadd.f32 %v85, %v879
  %v881 = vpop.f32.mrf.mxu0
  %882 = vmatprep.mubr.bf16.mxu0 0
  %883 = vmatmul.mubr.bf16.gmra.mxu0 %v723
  %v884 = vpop.f32.mrf.mxu0
  %v885 = vadd.f32 %v85, %v884
  %v886 = vpop.f32.mrf.mxu0
  %v887 = vpop.f32.mrf.mxu0
  %v888 = vadd.f32 %v85, %v887
  %v889 = vpop.f32.mrf.mxu0
  %890 = vmatprep.mubr.bf16.mxu0 0
  %891 = vmatmul.mubr.bf16.gmra.mxu0 %v724
  %v892 = vpop.f32.mrf.mxu0
  %v893 = vadd.f32 %v85, %v892
  %v894 = vpop.f32.mrf.mxu0
  %v895 = vpop.f32.mrf.mxu0
  %v896 = vadd.f32 %v85, %v895
  %v897 = vpop.f32.mrf.mxu0
  %898 = vmatprep.mubr.bf16.mxu0 0
  %899 = vmatmul.mubr.bf16.gmra.mxu0 %v725
  %v900 = vpop.f32.mrf.mxu0
  %v901 = vadd.f32 %v85, %v900
  %v902 = vpop.f32.mrf.mxu0
  %v903 = vpop.f32.mrf.mxu0
  %v904 = vadd.f32 %v85, %v903
  %v905 = vpop.f32.mrf.mxu0
  %906 = vmatprep.mubr.bf16.mxu0 0
  %907 = vmatmul.mubr.bf16.gmra.mxu0 %v726
  %v908 = vpop.f32.mrf.mxu0
  %v909 = vadd.f32 %v85, %v908
  %v910 = vpop.f32.mrf.mxu0
  %v911 = vpop.f32.mrf.mxu0
  %v912 = vadd.f32 %v85, %v911
  %v913 = vpop.f32.mrf.mxu0
  %914 = vmatprep.mubr.bf16.mxu0 0
  %915 = vmatmul.mubr.bf16.gmra.mxu0 %v727
  %v916 = vpop.f32.mrf.mxu0
  %v917 = vadd.f32 %v85, %v916
  %v918 = vpop.f32.mrf.mxu0
  %v919 = vpop.f32.mrf.mxu0
  %v920 = vadd.f32 %v85, %v919
  %v921 = vpop.f32.mrf.mxu0
  %922 = vmatprep.mubr.bf16.mxu0 0
  %923 = vmatmul.mubr.bf16.gmra.mxu0 %v728
  %v924 = vpop.f32.mrf.mxu0
  %v925 = vadd.f32 %v85, %v924
  %v926 = vpop.f32.mrf.mxu0
  %v927 = vpop.f32.mrf.mxu0
  %v928 = vadd.f32 %v85, %v927
  %v929 = vpop.f32.mrf.mxu0
  %930 = vmatprep.mubr.bf16.mxu0 0
  %931 = vmatmul.mubr.bf16.gmra.mxu0 %v729
  %v932 = vpop.f32.mrf.mxu0
  %v933 = vadd.f32 %v85, %v932
  %v934 = vpop.f32.mrf.mxu0
  %v935 = vpop.f32.mrf.mxu0
  %v936 = vadd.f32 %v85, %v935
  %v937 = vpop.f32.mrf.mxu0
  %938 = vmatprep.mubr.bf16.mxu0 0
  %939 = vmatmul.mubr.bf16.gmra.mxu0 %v730
  %v940 = vpop.f32.mrf.mxu0
  %v941 = vadd.f32 %v85, %v940
  %v942 = vpop.f32.mrf.mxu0
  %v943 = vpop.f32.mrf.mxu0
  %v944 = vadd.f32 %v85, %v943
  %v945 = vpop.f32.mrf.mxu0
  %946 = vmatprep.mubr.bf16.mxu0 0
  %947 = vmatmul.mubr.bf16.gmra.mxu0 %v731
  %v948 = vpop.f32.mrf.mxu0
  %v949 = vadd.f32 %v85, %v948
  %v950 = vpop.f32.mrf.mxu0
  %v951 = vpop.f32.mrf.mxu0
  %v952 = vadd.f32 %v85, %v951
  %v953 = vpop.f32.mrf.mxu0
  %954 = vmatprep.mubr.bf16.mxu0 0
  %955 = vmatmul.mubr.bf16.gmra.mxu0 %v732
  %v956 = vpop.f32.mrf.mxu0
  %v957 = vadd.f32 %v85, %v956
  %v958 = vpop.f32.mrf.mxu0
  %v959 = vpop.f32.mrf.mxu0
  %v960 = vadd.f32 %v85, %v959
  %v961 = vpop.f32.mrf.mxu0
  %962 = vmatprep.mubr.bf16.mxu0 0
  %963 = vmatmul.mubr.bf16.gmra.mxu0 %v733
  %v964 = vpop.f32.mrf.mxu0
  %v965 = vadd.f32 %v85, %v964
  %v966 = vpop.f32.mrf.mxu0
  %v967 = vpop.f32.mrf.mxu0
  %v968 = vadd.f32 %v85, %v967
  %v969 = vpop.f32.mrf.mxu0
  %970 = vmatprep.mubr.bf16.mxu0 0
  %971 = vmatmul.mubr.bf16.gmra.mxu0 %v734
  %v972 = vpop.f32.mrf.mxu0
  %v973 = vadd.f32 %v85, %v972
  %v974 = vpop.f32.mrf.mxu0
  %v975 = vpop.f32.mrf.mxu0
  %v976 = vadd.f32 %v85, %v975
  %v977 = vpop.f32.mrf.mxu0
  %978 = vmatprep.mubr.bf16.mxu0 0
  %979 = vmatmul.mubr.bf16.gmra.mxu0 %v735
  %v980 = vpop.f32.mrf.mxu0
  %v981 = vadd.f32 %v85, %v980
  %v982 = vpop.f32.mrf.mxu0
  %v983 = vpop.f32.mrf.mxu0
  %v984 = vadd.f32 %v85, %v983
  %v985 = vpop.f32.mrf.mxu0
  %986 = vmatprep.mubr.bf16.mxu0 0
  %987 = vmatmul.mubr.bf16.gmra.mxu0 %v736
  %v988 = vpop.f32.mrf.mxu0
  %v989 = vadd.f32 %v85, %v988
  %v990 = vpop.f32.mrf.mxu0
  %v991 = vpop.f32.mrf.mxu0
  %v992 = vpop.f32.mrf.mxu0
  %993 = vdwg.mxu0
  %v994 = vmax.f32 %v797, 0.0
  %v995 = vmax.f32 %v800, 0.0
  %v996 = vmax.f32 %v805, 0.0
  %v997 = vmax.f32 %v808, 0.0
  %v998 = vmax.f32 %v813, 0.0
  %v999 = vmax.f32 %v816, 0.0
  %v1000 = vmax.f32 %v821, 0.0
  %v1001 = vmax.f32 %v824, 0.0
  %v1002 = vmax.f32 %v829, 0.0
  %v1003 = vmax.f32 %v832, 0.0
  %v1004 = vmax.f32 %v837, 0.0
  %v1005 = vmax.f32 %v840, 0.0
  %v1006 = vmax.f32 %v845, 0.0
  %v1007 = vmax.f32 %v848, 0.0
  %v1008 = vmax.f32 %v853, 0.0
  %v1009 = vmax.f32 %v856, 0.0
  %v1010 = vmax.f32 %v861, 0.0
  %v1011 = vmax.f32 %v864, 0.0
  %v1012 = vmax.f32 %v869, 0.0
  %v1013 = vmax.f32 %v872, 0.0
  %v1014 = vmax.f32 %v877, 0.0
  %v1015 = vmax.f32 %v880, 0.0
  %v1016 = vmax.f32 %v885, 0.0
  %v1017 = vmax.f32 %v888, 0.0
  %v1018 = vmax.f32 %v893, 0.0
  %v1019 = vmax.f32 %v896, 0.0
  %v1020 = vmax.f32 %v901, 0.0
  %v1021 = vmax.f32 %v904, 0.0
  %v1022 = vmax.f32 %v909, 0.0
  %v1023 = vmax.f32 %v912, 0.0
  %v1024 = vmax.f32 %v917, 0.0
  %v1025 = vmax.f32 %v920, 0.0
  %v1026 = vmax.f32 %v925, 0.0
  %v1027 = vmax.f32 %v928, 0.0
  %v1028 = vmax.f32 %v933, 0.0
  %v1029 = vmax.f32 %v936, 0.0
  %v1030 = vmax.f32 %v941, 0.0
  %v1031 = vmax.f32 %v944, 0.0
  %v1032 = vmax.f32 %v949, 0.0
  %v1033 = vmax.f32 %v952, 0.0
  %v1034 = vmax.f32 %v957, 0.0
  %v1035 = vmax.f32 %v960, 0.0
  %v1036 = vmax.f32 %v965, 0.0
  %v1037 = vmax.f32 %v968, 0.0
  %v1038 = vmax.f32 %v973, 0.0
  %v1039 = vmax.f32 %v976, 0.0
  %v1040 = vmax.f32 %v981, 0.0
  %v1041 = vmax.f32 %v984, 0.0
  %v1042 = vmax.f32 %v989, 0.0
  %v1043 = vmax.f32 %v515, %v994
  %v1044 = vmax.f32 %v516, %v995
  %v1045 = vmax.f32 %v517, %v996
  %v1046 = vmax.f32 %v518, %v997
  %v1047 = vmax.f32 %v519, %v998
  %v1048 = vmax.f32 %v520, %v999
  %v1049 = vmax.f32 %v521, %v1000
  %v1050 = vmax.f32 %v522, %v1001
  %v1051 = vmax.f32 %v523, %v1002
  %v1052 = vmax.f32 %v524, %v1003
  %v1053 = vmax.f32 %v525, %v1004
  %v1054 = vmax.f32 %v526, %v1005
  %v1055 = vmax.f32 %v527, %v1006
  %v1056 = vmax.f32 %v528, %v1007
  %v1057 = vmax.f32 %v529, %v1008
  %v1058 = vmax.f32 %v530, %v1009
  %v1059 = vmax.f32 %v531, %v1010
  %v1060 = vmax.f32 %v532, %v1011
  %v1061 = vmax.f32 %v533, %v1012
  %v1062 = vmax.f32 %v534, %v1013
  %v1063 = vmax.f32 %v535, %v1014
  %v1064 = vmax.f32 %v536, %v1015
  %v1065 = vmax.f32 %v537, %v1016
  %v1066 = vmax.f32 %v538, %v1017
  %v1067 = vmax.f32 %v539, %v1018
  %v1068 = vmax.f32 %v540, %v1019
  %v1069 = vmax.f32 %v541, %v1020
  %v1070 = vmax.f32 %v542, %v1021
  %v1071 = vmax.f32 %v543, %v1022
  %v1072 = vmax.f32 %v544, %v1023
  %v1073 = vmax.f32 %v545, %v1024
  %v1074 = vmax.f32 %v546, %v1025
  %v1075 = vmax.f32 %v547, %v1026
  %v1076 = vmax.f32 %v548, %v1027
  %v1077 = vmax.f32 %v549, %v1028
  %v1078 = vmax.f32 %v550, %v1029
  %v1079 = vmax.f32 %v551, %v1030
  %v1080 = vmax.f32 %v552, %v1031
  %v1081 = vmax.f32 %v553, %v1032
  %v1082 = vmax.f32 %v554, %v1033
  %v1083 = vmax.f32 %v555, %v1034
  %v1084 = vmax.f32 %v556, %v1035
  %v1085 = vmax.f32 %v557, %v1036
  %v1086 = vmax.f32 %v558, %v1037
  %v1087 = vmax.f32 %v559, %v1038
  %v1088 = vmax.f32 %v560, %v1039
  %v1089 = vmax.f32 %v561, %v1040
  %v1090 = vmax.f32 %v562, %v1041
  %v1091 = vmax.f32 %v563, %v1042
  %s1092 = scalar_lea.vmem %s0, 392
  %v1093 = vld [vmem:[%s1092] sm:$0xf]
  %v1094 = vld [vmem:[%s1092 + $0x4] sm:$0xf]
  %v1095 = vld [vmem:[%s1092 + $0x8] sm:$0xf]
  %v1096 = vld [vmem:[%s1092 + $0xc] sm:$0xf]
  %v1097 = vld [vmem:[%s1092 + $0x10] sm:$0xf]
  %v1098 = vld [vmem:[%s1092 + $0x14] sm:$0xf]
  %v1099 = vld [vmem:[%s1092 + $0x18] sm:$0xf]
  %v1100 = vld [vmem:[%s1092 + $0x1c] sm:$0xf]
  %v1101 = vld [vmem:[%s1092 + $0x20] sm:$0xf]
  %v1102 = vld [vmem:[%s1092 + $0x24] sm:$0xf]
  %v1103 = vld [vmem:[%s1092 + $0x28] sm:$0xf]
  %v1104 = vld [vmem:[%s1092 + $0x2c] sm:$0xf]
  %v1105 = vld [vmem:[%s1092 + $0x30] sm:$0xf]
  %v1106 = vld [vmem:[%s1092 + $0x34] sm:$0xf]
  %v1107 = vld [vmem:[%s1092 + $0x38] sm:$0xf]
  %v1108 = vld [vmem:[%s1092 + $0x3c] sm:$0xf]
  %v1109 = vld [vmem:[%s1092 + $0x40] sm:$0xf]
  %v1110 = vld [vmem:[%s1092 + $0x44] sm:$0xf]
  %v1111 = vld [vmem:[%s1092 + $0x48] sm:$0xf]
  %v1112 = vld [vmem:[%s1092 + $0x4c] sm:$0xf]
  %v1113 = vld [vmem:[%s1092 + $0x50] sm:$0xf]
  %v1114 = vld [vmem:[%s1092 + $0x54] sm:$0xf]
  %v1115 = vld [vmem:[%s1092 + $0x58] sm:$0xf]
  %v1116 = vld [vmem:[%s1092 + $0x5c] sm:$0xf]
  %v1117 = vld [vmem:[%s1092 + $0x60] sm:$0xf]
  %v1118 = vld [vmem:[%s1092 + $0x64] sm:$0xf]
  %v1119 = vld [vmem:[%s1092 + $0x68] sm:$0xf]
  %v1120 = vld [vmem:[%s1092 + $0x6c] sm:$0xf]
  %v1121 = vld [vmem:[%s1092 + $0x70] sm:$0xf]
  %v1122 = vld [vmem:[%s1092 + $0x74] sm:$0xf]
  %v1123 = vld [vmem:[%s1092 + $0x78] sm:$0xf]
  %v1124 = vld [vmem:[%s1092 + $0x7c] sm:$0xf]
  %v1125 = vld [vmem:[%s1092 + $0x80] sm:$0xf]
  %v1126 = vld [vmem:[%s1092 + $0x84] sm:$0xf]
  %v1127 = vld [vmem:[%s1092 + $0x88] sm:$0xf]
  %v1128 = vld [vmem:[%s1092 + $0x8c] sm:$0xf]
  %v1129 = vld [vmem:[%s1092 + $0x90] sm:$0xf]
  %v1130 = vld [vmem:[%s1092 + $0x94] sm:$0xf]
  %v1131 = vld [vmem:[%s1092 + $0x98] sm:$0xf]
  %v1132 = vld [vmem:[%s1092 + $0x9c] sm:$0xf]
  %v1133 = vld [vmem:[%s1092 + $0xa0] sm:$0xf]
  %v1134 = vld [vmem:[%s1092 + $0xa4] sm:$0xf]
  %v1135 = vld [vmem:[%s1092 + $0xa8] sm:$0xf]
  %v1136 = vld [vmem:[%s1092 + $0xac] sm:$0xf]
  %v1137 = vld [vmem:[%s1092 + $0xb0] sm:$0xf]
  %v1138 = vld [vmem:[%s1092 + $0xb4] sm:$0xf]
  %v1139 = vld [vmem:[%s1092 + $0xb8] sm:$0xf]
  %v1140 = vld [vmem:[%s1092 + $0xbc] sm:$0xf]
  %v1141 = vld [vmem:[%s1092 + $0xc0] sm:$0xf]
  %v1191 = vunpack.c.l.b16 %v1093
  %v1192 = vunpack.c.l.b16 %v1094
  %v1193 = vunpack.c.l.b16 %v1095
  %v1194 = vunpack.c.l.b16 %v1096
  %v1195 = vunpack.c.l.b16 %v1097
  %v1196 = vunpack.c.l.b16 %v1098
  %v1197 = vunpack.c.l.b16 %v1099
  %v1198 = vunpack.c.l.b16 %v1100
  %v1199 = vunpack.c.l.b16 %v1101
  %v1200 = vunpack.c.l.b16 %v1102
  %v1201 = vunpack.c.l.b16 %v1103
  %v1202 = vunpack.c.l.b16 %v1104
  %v1203 = vunpack.c.l.b16 %v1105
  %v1204 = vunpack.c.l.b16 %v1106
  %v1205 = vunpack.c.l.b16 %v1107
  %v1206 = vunpack.c.l.b16 %v1108
  %v1207 = vunpack.c.l.b16 %v1109
  %v1208 = vunpack.c.l.b16 %v1110
  %v1209 = vunpack.c.l.b16 %v1111
  %v1210 = vunpack.c.l.b16 %v1112
  %v1211 = vunpack.c.l.b16 %v1113
  %v1212 = vunpack.c.l.b16 %v1114
  %v1213 = vunpack.c.l.b16 %v1115
  %v1214 = vunpack.c.l.b16 %v1116
  %v1215 = vunpack.c.l.b16 %v1117
  %v1216 = vunpack.c.l.b16 %v1118
  %v1217 = vunpack.c.l.b16 %v1119
  %v1218 = vunpack.c.l.b16 %v1120
  %v1219 = vunpack.c.l.b16 %v1121
  %v1220 = vunpack.c.l.b16 %v1122
  %v1221 = vunpack.c.l.b16 %v1123
  %v1222 = vunpack.c.l.b16 %v1124
  %v1223 = vunpack.c.l.b16 %v1125
  %v1224 = vunpack.c.l.b16 %v1126
  %v1225 = vunpack.c.l.b16 %v1127
  %v1226 = vunpack.c.l.b16 %v1128
  %v1227 = vunpack.c.l.b16 %v1129
  %v1228 = vunpack.c.l.b16 %v1130
  %v1229 = vunpack.c.l.b16 %v1131
  %v1230 = vunpack.c.l.b16 %v1132
  %v1231 = vunpack.c.l.b16 %v1133
  %v1232 = vunpack.c.l.b16 %v1134
  %v1233 = vunpack.c.l.b16 %v1135
  %v1234 = vunpack.c.l.b16 %v1136
  %v1235 = vunpack.c.l.b16 %v1137
  %v1236 = vunpack.c.l.b16 %v1138
  %v1237 = vunpack.c.l.b16 %v1139
  %v1238 = vunpack.c.l.b16 %v1140
  %v1239 = vunpack.c.l.b16 %v1141
  %v1240 = vpack.c.b16 %v1192, %v1191
  %v1241 = vpack.c.b16 %v1194, %v1193
  %v1242 = vpack.c.b16 %v1196, %v1195
  %v1243 = vpack.c.b16 %v1198, %v1197
  %v1244 = vpack.c.b16 %v1200, %v1199
  %v1245 = vpack.c.b16 %v1202, %v1201
  %v1246 = vpack.c.b16 %v1204, %v1203
  %v1247 = vpack.c.b16 %v1206, %v1205
  %v1248 = vpack.c.b16 %v1208, %v1207
  %v1249 = vpack.c.b16 %v1210, %v1209
  %v1250 = vpack.c.b16 %v1212, %v1211
  %v1251 = vpack.c.b16 %v1214, %v1213
  %v1252 = vpack.c.b16 %v1216, %v1215
  %v1253 = vpack.c.b16 %v1218, %v1217
  %v1254 = vpack.c.b16 %v1220, %v1219
  %v1255 = vpack.c.b16 %v1222, %v1221
  %v1256 = vpack.c.b16 %v1224, %v1223
  %v1257 = vpack.c.b16 %v1226, %v1225
  %v1258 = vpack.c.b16 %v1228, %v1227
  %v1259 = vpack.c.b16 %v1230, %v1229
  %v1260 = vpack.c.b16 %v1232, %v1231
  %v1261 = vpack.c.b16 %v1234, %v1233
  %v1262 = vpack.c.b16 %v1236, %v1235
  %v1263 = vpack.c.b16 %v1238, %v1237
  %v1264 = vpack.c.b16 %v1239, %v1239
  %1290 = vmatprep.subr.bf16.mxu0 0
  %1291 = vmatpush1.bf16.msra.mxu0 %v274
  %1292 = vmatprep.subr.bf16.mxu0 0
  %1293 = vmatpush1.bf16.msra.mxu0 %v273
  %1294 = vmatprep.subr.bf16.mxu0 0
  %1295 = vmatpush1.bf16.msra.mxu0 %v272
  %1296 = vmatprep.subr.bf16.mxu0 0
  %1297 = vmatpush1.bf16.msra.mxu0 %v271
  %1298 = vmatprep.subr.bf16.mxu0 0
  %1299 = vmatpush1.bf16.msra.mxu0 %v270
  %1300 = vmatprep.subr.bf16.mxu0 0
  %1301 = vmatpush1.bf16.msra.mxu0 %v269
  %1302 = vmatprep.subr.bf16.mxu0 0
  %1303 = vmatpush1.bf16.msra.mxu0 %v268
  %1304 = vmatprep.subr.bf16.mxu0 0
  %1305 = vmatpush1.bf16.msra.mxu0 %v267
  %1306 = vmatprep.subr.bf16.mxu0 0
  %1307 = vmatpush2.bf16.msra.mxu0 0
  %1308 = vmatprep.subr.bf16.mxu0 0
  %1309 = vmatpush2.bf16.msra.mxu0 0
  %1310 = vmatprep.subr.bf16.mxu0 0
  %1311 = vmatpush2.bf16.msra.mxu0 0
  %1312 = vmatprep.subr.bf16.mxu0 0
  %1313 = vmatpush2.bf16.msra.mxu0 0
  %1314 = vmatprep.subr.bf16.mxu0 0
  %1315 = vmatpush2.bf16.msra.mxu0 0
  %1316 = vmatprep.subr.bf16.mxu0 0
  %1317 = vmatpush2.bf16.msra.mxu0 0
  %1318 = vmatprep.subr.bf16.mxu0 0
  %1319 = vmatpush2.bf16.msra.mxu0 0
  %1320 = vmatprep.subr.bf16.mxu0 0
  %1321 = vmatpush2.bf16.msra.mxu0 0
  %1322 = vmatprep.mubr.bf16.mxu0 0
  %1323 = vmatmul.mubr.bf16.gmra.mxu0 %v1240
  %v1324 = vpop.f32.mrf.mxu0
  %v1325 = vadd.f32 %v85, %v1324
  %v1326 = vpop.f32.mrf.mxu0
  %v1327 = vpop.f32.mrf.mxu0
  %v1328 = vadd.f32 %v85, %v1327
  %v1329 = vpop.f32.mrf.mxu0
  %1330 = vmatprep.mubr.bf16.mxu0 0
  %1331 = vmatmul.mubr.bf16.gmra.mxu0 %v1241
  %v1332 = vpop.f32.mrf.mxu0
  %v1333 = vadd.f32 %v85, %v1332
  %v1334 = vpop.f32.mrf.mxu0
  %v1335 = vpop.f32.mrf.mxu0
  %v1336 = vadd.f32 %v85, %v1335
  %v1337 = vpop.f32.mrf.mxu0
  %1338 = vmatprep.mubr.bf16.mxu0 0
  %1339 = vmatmul.mubr.bf16.gmra.mxu0 %v1242
  %v1340 = vpop.f32.mrf.mxu0
  %v1341 = vadd.f32 %v85, %v1340
  %v1342 = vpop.f32.mrf.mxu0
  %v1343 = vpop.f32.mrf.mxu0
  %v1344 = vadd.f32 %v85, %v1343
  %v1345 = vpop.f32.mrf.mxu0
  %1346 = vmatprep.mubr.bf16.mxu0 0
  %1347 = vmatmul.mubr.bf16.gmra.mxu0 %v1243
  %v1348 = vpop.f32.mrf.mxu0
  %v1349 = vadd.f32 %v85, %v1348
  %v1350 = vpop.f32.mrf.mxu0
  %v1351 = vpop.f32.mrf.mxu0
  %v1352 = vadd.f32 %v85, %v1351
  %v1353 = vpop.f32.mrf.mxu0
  %1354 = vmatprep.mubr.bf16.mxu0 0
  %1355 = vmatmul.mubr.bf16.gmra.mxu0 %v1244
  %v1356 = vpop.f32.mrf.mxu0
  %v1357 = vadd.f32 %v85, %v1356
  %v1358 = vpop.f32.mrf.mxu0
  %v1359 = vpop.f32.mrf.mxu0
  %v1360 = vadd.f32 %v85, %v1359
  %v1361 = vpop.f32.mrf.mxu0
  %1362 = vmatprep.mubr.bf16.mxu0 0
  %1363 = vmatmul.mubr.bf16.gmra.mxu0 %v1245
  %v1364 = vpop.f32.mrf.mxu0
  %v1365 = vadd.f32 %v85, %v1364
  %v1366 = vpop.f32.mrf.mxu0
  %v1367 = vpop.f32.mrf.mxu0
  %v1368 = vadd.f32 %v85, %v1367
  %v1369 = vpop.f32.mrf.mxu0
  %1370 = vmatprep.mubr.bf16.mxu0 0
  %1371 = vmatmul.mubr.bf16.gmra.mxu0 %v1246
  %v1372 = vpop.f32.mrf.mxu0
  %v1373 = vadd.f32 %v85, %v1372
  %v1374 = vpop.f32.mrf.mxu0
  %v1375 = vpop.f32.mrf.mxu0
  %v1376 = vadd.f32 %v85, %v1375
  %v1377 = vpop.f32.mrf.mxu0
  %1378 = vmatprep.mubr.bf16.mxu0 0
  %1379 = vmatmul.mubr.bf16.gmra.mxu0 %v1247
  %v1380 = vpop.f32.mrf.mxu0
  %v1381 = vadd.f32 %v85, %v1380
  %v1382 = vpop.f32.mrf.mxu0
  %v1383 = vpop.f32.mrf.mxu0
  %v1384 = vadd.f32 %v85, %v1383
  %v1385 = vpop.f32.mrf.mxu0
  %1386 = vmatprep.mubr.bf16.mxu0 0
  %1387 = vmatmul.mubr.bf16.gmra.mxu0 %v1248
  %v1388 = vpop.f32.mrf.mxu0
  %v1389 = vadd.f32 %v85, %v1388
  %v1390 = vpop.f32.mrf.mxu0
  %v1391 = vpop.f32.mrf.mxu0
  %v1392 = vadd.f32 %v85, %v1391
  %v1393 = vpop.f32.mrf.mxu0
  %1394 = vmatprep.mubr.bf16.mxu0 0
  %1395 = vmatmul.mubr.bf16.gmra.mxu0 %v1249
  %v1396 = vpop.f32.mrf.mxu0
  %v1397 = vadd.f32 %v85, %v1396
  %v1398 = vpop.f32.mrf.mxu0
  %v1399 = vpop.f32.mrf.mxu0
  %v1400 = vadd.f32 %v85, %v1399
  %v1401 = vpop.f32.mrf.mxu0
  %1402 = vmatprep.mubr.bf16.mxu0 0
  %1403 = vmatmul.mubr.bf16.gmra.mxu0 %v1250
  %v1404 = vpop.f32.mrf.mxu0
  %v1405 = vadd.f32 %v85, %v1404
  %v1406 = vpop.f32.mrf.mxu0
  %v1407 = vpop.f32.mrf.mxu0
  %v1408 = vadd.f32 %v85, %v1407
  %v1409 = vpop.f32.mrf.mxu0
  %1410 = vmatprep.mubr.bf16.mxu0 0
  %1411 = vmatmul.mubr.bf16.gmra.mxu0 %v1251
  %v1412 = vpop.f32.mrf.mxu0
  %v1413 = vadd.f32 %v85, %v1412
  %v1414 = vpop.f32.mrf.mxu0
  %v1415 = vpop.f32.mrf.mxu0
  %v1416 = vadd.f32 %v85, %v1415
  %v1417 = vpop.f32.mrf.mxu0
  %1418 = vmatprep.mubr.bf16.mxu0 0
  %1419 = vmatmul.mubr.bf16.gmra.mxu0 %v1252
  %v1420 = vpop.f32.mrf.mxu0
  %v1421 = vadd.f32 %v85, %v1420
  %v1422 = vpop.f32.mrf.mxu0
  %v1423 = vpop.f32.mrf.mxu0
  %v1424 = vadd.f32 %v85, %v1423
  %v1425 = vpop.f32.mrf.mxu0
  %1426 = vmatprep.mubr.bf16.mxu0 0
  %1427 = vmatmul.mubr.bf16.gmra.mxu0 %v1253
  %v1428 = vpop.f32.mrf.mxu0
  %v1429 = vadd.f32 %v85, %v1428
  %v1430 = vpop.f32.mrf.mxu0
  %v1431 = vpop.f32.mrf.mxu0
  %v1432 = vadd.f32 %v85, %v1431
  %v1433 = vpop.f32.mrf.mxu0
  %1434 = vmatprep.mubr.bf16.mxu0 0
  %1435 = vmatmul.mubr.bf16.gmra.mxu0 %v1254
  %v1436 = vpop.f32.mrf.mxu0
  %v1437 = vadd.f32 %v85, %v1436
  %v1438 = vpop.f32.mrf.mxu0
  %v1439 = vpop.f32.mrf.mxu0
  %v1440 = vadd.f32 %v85, %v1439
  %v1441 = vpop.f32.mrf.mxu0
  %1442 = vmatprep.mubr.bf16.mxu0 0
  %1443 = vmatmul.mubr.bf16.gmra.mxu0 %v1255
  %v1444 = vpop.f32.mrf.mxu0
  %v1445 = vadd.f32 %v85, %v1444
  %v1446 = vpop.f32.mrf.mxu0
  %v1447 = vpop.f32.mrf.mxu0
  %v1448 = vadd.f32 %v85, %v1447
  %v1449 = vpop.f32.mrf.mxu0
  %1450 = vmatprep.mubr.bf16.mxu0 0
  %1451 = vmatmul.mubr.bf16.gmra.mxu0 %v1256
  %v1452 = vpop.f32.mrf.mxu0
  %v1453 = vadd.f32 %v85, %v1452
  %v1454 = vpop.f32.mrf.mxu0
  %v1455 = vpop.f32.mrf.mxu0
  %v1456 = vadd.f32 %v85, %v1455
  %v1457 = vpop.f32.mrf.mxu0
  %1458 = vmatprep.mubr.bf16.mxu0 0
  %1459 = vmatmul.mubr.bf16.gmra.mxu0 %v1257
  %v1460 = vpop.f32.mrf.mxu0
  %v1461 = vadd.f32 %v85, %v1460
  %v1462 = vpop.f32.mrf.mxu0
  %v1463 = vpop.f32.mrf.mxu0
  %v1464 = vadd.f32 %v85, %v1463
  %v1465 = vpop.f32.mrf.mxu0
  %1466 = vmatprep.mubr.bf16.mxu0 0
  %1467 = vmatmul.mubr.bf16.gmra.mxu0 %v1258
  %v1468 = vpop.f32.mrf.mxu0
  %v1469 = vadd.f32 %v85, %v1468
  %v1470 = vpop.f32.mrf.mxu0
  %v1471 = vpop.f32.mrf.mxu0
  %v1472 = vadd.f32 %v85, %v1471
  %v1473 = vpop.f32.mrf.mxu0
  %1474 = vmatprep.mubr.bf16.mxu0 0
  %1475 = vmatmul.mubr.bf16.gmra.mxu0 %v1259
  %v1476 = vpop.f32.mrf.mxu0
  %v1477 = vadd.f32 %v85, %v1476
  %v1478 = vpop.f32.mrf.mxu0
  %v1479 = vpop.f32.mrf.mxu0
  %v1480 = vadd.f32 %v85, %v1479
  %v1481 = vpop.f32.mrf.mxu0
  %1482 = vmatprep.mubr.bf16.mxu0 0
  %1483 = vmatmul.mubr.bf16.gmra.mxu0 %v1260
  %v1484 = vpop.f32.mrf.mxu0
  %v1485 = vadd.f32 %v85, %v1484
  %v1486 = vpop.f32.mrf.mxu0
  %v1487 = vpop.f32.mrf.mxu0
  %v1488 = vadd.f32 %v85, %v1487
  %v1489 = vpop.f32.mrf.mxu0
  %1490 = vmatprep.mubr.bf16.mxu0 0
  %1491 = vmatmul.mubr.bf16.gmra.mxu0 %v1261
  %v1492 = vpop.f32.mrf.mxu0
  %v1493 = vadd.f32 %v85, %v1492
  %v1494 = vpop.f32.mrf.mxu0
  %v1495 = vpop.f32.mrf.mxu0
  %v1496 = vadd.f32 %v85, %v1495
  %v1497 = vpop.f32.mrf.mxu0
  %1498 = vmatprep.mubr.bf16.mxu0 0
  %1499 = vmatmul.mubr.bf16.gmra.mxu0 %v1262
  %v1500 = vpop.f32.mrf.mxu0
  %v1501 = vadd.f32 %v85, %v1500
  %v1502 = vpop.f32.mrf.mxu0
  %v1503 = vpop.f32.mrf.mxu0
  %v1504 = vadd.f32 %v85, %v1503
  %v1505 = vpop.f32.mrf.mxu0
  %1506 = vmatprep.mubr.bf16.mxu0 0
  %1507 = vmatmul.mubr.bf16.gmra.mxu0 %v1263
  %v1508 = vpop.f32.mrf.mxu0
  %v1509 = vadd.f32 %v85, %v1508
  %v1510 = vpop.f32.mrf.mxu0
  %v1511 = vpop.f32.mrf.mxu0
  %v1512 = vadd.f32 %v85, %v1511
  %v1513 = vpop.f32.mrf.mxu0
  %1514 = vmatprep.mubr.bf16.mxu0 0
  %1515 = vmatmul.mubr.bf16.gmra.mxu0 %v1264
  %v1516 = vpop.f32.mrf.mxu0
  %v1517 = vadd.f32 %v85, %v1516
  %v1518 = vpop.f32.mrf.mxu0
  %v1519 = vpop.f32.mrf.mxu0
  %v1520 = vpop.f32.mrf.mxu0
  %1521 = vdwg.mxu0
  %v1522 = vmax.f32 %v1325, 0.0
  %v1523 = vmax.f32 %v1328, 0.0
  %v1524 = vmax.f32 %v1333, 0.0
  %v1525 = vmax.f32 %v1336, 0.0
  %v1526 = vmax.f32 %v1341, 0.0
  %v1527 = vmax.f32 %v1344, 0.0
  %v1528 = vmax.f32 %v1349, 0.0
  %v1529 = vmax.f32 %v1352, 0.0
  %v1530 = vmax.f32 %v1357, 0.0
  %v1531 = vmax.f32 %v1360, 0.0
  %v1532 = vmax.f32 %v1365, 0.0
  %v1533 = vmax.f32 %v1368, 0.0
  %v1534 = vmax.f32 %v1373, 0.0
  %v1535 = vmax.f32 %v1376, 0.0
  %v1536 = vmax.f32 %v1381, 0.0
  %v1537 = vmax.f32 %v1384, 0.0
  %v1538 = vmax.f32 %v1389, 0.0
  %v1539 = vmax.f32 %v1392, 0.0
  %v1540 = vmax.f32 %v1397, 0.0
  %v1541 = vmax.f32 %v1400, 0.0
  %v1542 = vmax.f32 %v1405, 0.0
  %v1543 = vmax.f32 %v1408, 0.0
  %v1544 = vmax.f32 %v1413, 0.0
  %v1545 = vmax.f32 %v1416, 0.0
  %v1546 = vmax.f32 %v1421, 0.0
  %v1547 = vmax.f32 %v1424, 0.0
  %v1548 = vmax.f32 %v1429, 0.0
  %v1549 = vmax.f32 %v1432, 0.0
  %v1550 = vmax.f32 %v1437, 0.0
  %v1551 = vmax.f32 %v1440, 0.0
  %v1552 = vmax.f32 %v1445, 0.0
  %v1553 = vmax.f32 %v1448, 0.0
  %v1554 = vmax.f32 %v1453, 0.0
  %v1555 = vmax.f32 %v1456, 0.0
  %v1556 = vmax.f32 %v1461, 0.0
  %v1557 = vmax.f32 %v1464, 0.0
  %v1558 = vmax.f32 %v1469, 0.0
  %v1559 = vmax.f32 %v1472, 0.0
  %v1560 = vmax.f32 %v1477, 0.0
  %v1561 = vmax.f32 %v1480, 0.0
  %v1562 = vmax.f32 %v1485, 0.0
  %v1563 = vmax.f32 %v1488, 0.0
  %v1564 = vmax.f32 %v1493, 0.0
  %v1565 = vmax.f32 %v1496, 0.0
  %v1566 = vmax.f32 %v1501, 0.0
  %v1567 = vmax.f32 %v1504, 0.0
  %v1568 = vmax.f32 %v1509, 0.0
  %v1569 = vmax.f32 %v1512, 0.0
  %v1570 = vmax.f32 %v1517, 0.0
  %v1571 = vmax.f32 %v1043, %v1522
  %v1572 = vmax.f32 %v1044, %v1523
  %v1573 = vmax.f32 %v1045, %v1524
  %v1574 = vmax.f32 %v1046, %v1525
  %v1575 = vmax.f32 %v1047, %v1526
  %v1576 = vmax.f32 %v1048, %v1527
  %v1577 = vmax.f32 %v1049, %v1528
  %v1578 = vmax.f32 %v1050, %v1529
  %v1579 = vmax.f32 %v1051, %v1530
  %v1580 = vmax.f32 %v1052, %v1531
  %v1581 = vmax.f32 %v1053, %v1532
  %v1582 = vmax.f32 %v1054, %v1533
  %v1583 = vmax.f32 %v1055, %v1534
  %v1584 = vmax.f32 %v1056, %v1535
  %v1585 = vmax.f32 %v1057, %v1536
  %v1586 = vmax.f32 %v1058, %v1537
  %v1587 = vmax.f32 %v1059, %v1538
  %v1588 = vmax.f32 %v1060, %v1539
  %v1589 = vmax.f32 %v1061, %v1540
  %v1590 = vmax.f32 %v1062, %v1541
  %v1591 = vmax.f32 %v1063, %v1542
  %v1592 = vmax.f32 %v1064, %v1543
  %v1593 = vmax.f32 %v1065, %v1544
  %v1594 = vmax.f32 %v1066, %v1545
  %v1595 = vmax.f32 %v1067, %v1546
  %v1596 = vmax.f32 %v1068, %v1547
  %v1597 = vmax.f32 %v1069, %v1548
  %v1598 = vmax.f32 %v1070, %v1549
  %v1599 = vmax.f32 %v1071, %v1550
  %v1600 = vmax.f32 %v1072, %v1551
  %v1601 = vmax.f32 %v1073, %v1552
  %v1602 = vmax.f32 %v1074, %v1553
  %v1603 = vmax.f32 %v1075, %v1554
  %v1604 = vmax.f32 %v1076, %v1555
  %v1605 = vmax.f32 %v1077, %v1556
  %v1606 = vmax.f32 %v1078, %v1557
  %v1607 = vmax.f32 %v1079, %v1558
  %v1608 = vmax.f32 %v1080, %v1559
  %v1609 = vmax.f32 %v1081, %v1560
  %v1610 = vmax.f32 %v1082, %v1561
  %v1611 = vmax.f32 %v1083, %v1562
  %v1612 = vmax.f32 %v1084, %v1563
  %v1613 = vmax.f32 %v1085, %v1564
  %v1614 = vmax.f32 %v1086, %v1565
  %v1615 = vmax.f32 %v1087, %v1566
  %v1616 = vmax.f32 %v1088, %v1567
  %v1617 = vmax.f32 %v1089, %v1568
  %v1618 = vmax.f32 %v1090, %v1569
  %v1619 = vmax.f32 %v1091, %v1570
  %s1620 = scalar_lea.vmem %s0, 588
  %v1621 = vld [vmem:[%s1620] sm:$0xf]
  %v1622 = vld [vmem:[%s1620 + $0x4] sm:$0xf]
  %v1623 = vld [vmem:[%s1620 + $0x8] sm:$0xf]
  %v1624 = vld [vmem:[%s1620 + $0xc] sm:$0xf]
  %v1625 = vld [vmem:[%s1620 + $0x10] sm:$0xf]
  %v1626 = vld [vmem:[%s1620 + $0x14] sm:$0xf]
  %v1627 = vld [vmem:[%s1620 + $0x18] sm:$0xf]
  %v1628 = vld [vmem:[%s1620 + $0x1c] sm:$0xf]
  %v1629 = vld [vmem:[%s1620 + $0x20] sm:$0xf]
  %v1630 = vld [vmem:[%s1620 + $0x24] sm:$0xf]
  %v1631 = vld [vmem:[%s1620 + $0x28] sm:$0xf]
  %v1632 = vld [vmem:[%s1620 + $0x2c] sm:$0xf]
  %v1633 = vld [vmem:[%s1620 + $0x30] sm:$0xf]
  %v1634 = vld [vmem:[%s1620 + $0x34] sm:$0xf]
  %v1635 = vld [vmem:[%s1620 + $0x38] sm:$0xf]
  %v1636 = vld [vmem:[%s1620 + $0x3c] sm:$0xf]
  %v1637 = vld [vmem:[%s1620 + $0x40] sm:$0xf]
  %v1638 = vld [vmem:[%s1620 + $0x44] sm:$0xf]
  %v1639 = vld [vmem:[%s1620 + $0x48] sm:$0xf]
  %v1640 = vld [vmem:[%s1620 + $0x4c] sm:$0xf]
  %v1641 = vld [vmem:[%s1620 + $0x50] sm:$0xf]
  %v1642 = vld [vmem:[%s1620 + $0x54] sm:$0xf]
  %v1643 = vld [vmem:[%s1620 + $0x58] sm:$0xf]
  %v1644 = vld [vmem:[%s1620 + $0x5c] sm:$0xf]
  %v1645 = vld [vmem:[%s1620 + $0x60] sm:$0xf]
  %v1646 = vld [vmem:[%s1620 + $0x64] sm:$0xf]
  %v1647 = vld [vmem:[%s1620 + $0x68] sm:$0xf]
  %v1648 = vld [vmem:[%s1620 + $0x6c] sm:$0xf]
  %v1649 = vld [vmem:[%s1620 + $0x70] sm:$0xf]
  %v1650 = vld [vmem:[%s1620 + $0x74] sm:$0xf]
  %v1651 = vld [vmem:[%s1620 + $0x78] sm:$0xf]
  %v1652 = vld [vmem:[%s1620 + $0x7c] sm:$0xf]
  %v1653 = vld [vmem:[%s1620 + $0x80] sm:$0xf]
  %v1654 = vld [vmem:[%s1620 + $0x84] sm:$0xf]
  %v1655 = vld [vmem:[%s1620 + $0x88] sm:$0xf]
  %v1656 = vld [vmem:[%s1620 + $0x8c] sm:$0xf]
  %v1657 = vld [vmem:[%s1620 + $0x90] sm:$0xf]
  %v1658 = vld [vmem:[%s1620 + $0x94] sm:$0xf]
  %v1659 = vld [vmem:[%s1620 + $0x98] sm:$0xf]
  %v1660 = vld [vmem:[%s1620 + $0x9c] sm:$0xf]
  %v1661 = vld [vmem:[%s1620 + $0xa0] sm:$0xf]
  %v1662 = vld [vmem:[%s1620 + $0xa4] sm:$0xf]
  %v1663 = vld [vmem:[%s1620 + $0xa8] sm:$0xf]
  %v1664 = vld [vmem:[%s1620 + $0xac] sm:$0xf]
  %v1665 = vld [vmem:[%s1620 + $0xb0] sm:$0xf]
  %v1666 = vld [vmem:[%s1620 + $0xb4] sm:$0xf]
  %v1667 = vld [vmem:[%s1620 + $0xb8] sm:$0xf]
  %v1668 = vld [vmem:[%s1620 + $0xbc] sm:$0xf]
  %v1669 = vld [vmem:[%s1620 + $0xc0] sm:$0xf]
  %v1719 = vunpack.c.l.b16 %v1621
  %v1720 = vunpack.c.l.b16 %v1622
  %v1721 = vunpack.c.l.b16 %v1623
  %v1722 = vunpack.c.l.b16 %v1624
  %v1723 = vunpack.c.l.b16 %v1625
  %v1724 = vunpack.c.l.b16 %v1626
  %v1725 = vunpack.c.l.b16 %v1627
  %v1726 = vunpack.c.l.b16 %v1628
  %v1727 = vunpack.c.l.b16 %v1629
  %v1728 = vunpack.c.l.b16 %v1630
  %v1729 = vunpack.c.l.b16 %v1631
  %v1730 = vunpack.c.l.b16 %v1632
  %v1731 = vunpack.c.l.b16 %v1633
  %v1732 = vunpack.c.l.b16 %v1634
  %v1733 = vunpack.c.l.b16 %v1635
  %v1734 = vunpack.c.l.b16 %v1636
  %v1735 = vunpack.c.l.b16 %v1637
  %v1736 = vunpack.c.l.b16 %v1638
  %v1737 = vunpack.c.l.b16 %v1639
  %v1738 = vunpack.c.l.b16 %v1640
  %v1739 = vunpack.c.l.b16 %v1641
  %v1740 = vunpack.c.l.b16 %v1642
  %v1741 = vunpack.c.l.b16 %v1643
  %v1742 = vunpack.c.l.b16 %v1644
  %v1743 = vunpack.c.l.b16 %v1645
  %v1744 = vunpack.c.l.b16 %v1646
  %v1745 = vunpack.c.l.b16 %v1647
  %v1746 = vunpack.c.l.b16 %v1648
  %v1747 = vunpack.c.l.b16 %v1649
  %v1748 = vunpack.c.l.b16 %v1650
  %v1749 = vunpack.c.l.b16 %v1651
  %v1750 = vunpack.c.l.b16 %v1652
  %v1751 = vunpack.c.l.b16 %v1653
  %v1752 = vunpack.c.l.b16 %v1654
  %v1753 = vunpack.c.l.b16 %v1655
  %v1754 = vunpack.c.l.b16 %v1656
  %v1755 = vunpack.c.l.b16 %v1657
  %v1756 = vunpack.c.l.b16 %v1658
  %v1757 = vunpack.c.l.b16 %v1659
  %v1758 = vunpack.c.l.b16 %v1660
  %v1759 = vunpack.c.l.b16 %v1661
  %v1760 = vunpack.c.l.b16 %v1662
  %v1761 = vunpack.c.l.b16 %v1663
  %v1762 = vunpack.c.l.b16 %v1664
  %v1763 = vunpack.c.l.b16 %v1665
  %v1764 = vunpack.c.l.b16 %v1666
  %v1765 = vunpack.c.l.b16 %v1667
  %v1766 = vunpack.c.l.b16 %v1668
  %v1767 = vunpack.c.l.b16 %v1669
  %v1768 = vpack.c.b16 %v1720, %v1719
  %v1769 = vpack.c.b16 %v1722, %v1721
  %v1770 = vpack.c.b16 %v1724, %v1723
  %v1771 = vpack.c.b16 %v1726, %v1725
  %v1772 = vpack.c.b16 %v1728, %v1727
  %v1773 = vpack.c.b16 %v1730, %v1729
  %v1774 = vpack.c.b16 %v1732, %v1731
  %v1775 = vpack.c.b16 %v1734, %v1733
  %v1776 = vpack.c.b16 %v1736, %v1735
  %v1777 = vpack.c.b16 %v1738, %v1737
  %v1778 = vpack.c.b16 %v1740, %v1739
  %v1779 = vpack.c.b16 %v1742, %v1741
  %v1780 = vpack.c.b16 %v1744, %v1743
  %v1781 = vpack.c.b16 %v1746, %v1745
  %v1782 = vpack.c.b16 %v1748, %v1747
  %v1783 = vpack.c.b16 %v1750, %v1749
  %v1784 = vpack.c.b16 %v1752, %v1751
  %v1785 = vpack.c.b16 %v1754, %v1753
  %v1786 = vpack.c.b16 %v1756, %v1755
  %v1787 = vpack.c.b16 %v1758, %v1757
  %v1788 = vpack.c.b16 %v1760, %v1759
  %v1789 = vpack.c.b16 %v1762, %v1761
  %v1790 = vpack.c.b16 %v1764, %v1763
  %v1791 = vpack.c.b16 %v1766, %v1765
  %v1792 = vpack.c.b16 %v1767, %v1767
  %1818 = vmatprep.subr.bf16.mxu0 0
  %1819 = vmatpush1.bf16.msra.mxu0 %v274
  %1820 = vmatprep.subr.bf16.mxu0 0
  %1821 = vmatpush1.bf16.msra.mxu0 %v273
  %1822 = vmatprep.subr.bf16.mxu0 0
  %1823 = vmatpush1.bf16.msra.mxu0 %v272
  %1824 = vmatprep.subr.bf16.mxu0 0
  %1825 = vmatpush1.bf16.msra.mxu0 %v271
  %1826 = vmatprep.subr.bf16.mxu0 0
  %1827 = vmatpush1.bf16.msra.mxu0 %v270
  %1828 = vmatprep.subr.bf16.mxu0 0
  %1829 = vmatpush1.bf16.msra.mxu0 %v269
  %1830 = vmatprep.subr.bf16.mxu0 0
  %1831 = vmatpush1.bf16.msra.mxu0 %v268
  %1832 = vmatprep.subr.bf16.mxu0 0
  %1833 = vmatpush1.bf16.msra.mxu0 %v267
  %1834 = vmatprep.subr.bf16.mxu0 0
  %1835 = vmatpush2.bf16.msra.mxu0 0
  %1836 = vmatprep.subr.bf16.mxu0 0
  %1837 = vmatpush2.bf16.msra.mxu0 0
  %1838 = vmatprep.subr.bf16.mxu0 0
  %1839 = vmatpush2.bf16.msra.mxu0 0
  %1840 = vmatprep.subr.bf16.mxu0 0
  %1841 = vmatpush2.bf16.msra.mxu0 0
  %1842 = vmatprep.subr.bf16.mxu0 0
  %1843 = vmatpush2.bf16.msra.mxu0 0
  %1844 = vmatprep.subr.bf16.mxu0 0
  %1845 = vmatpush2.bf16.msra.mxu0 0
  %1846 = vmatprep.subr.bf16.mxu0 0
  %1847 = vmatpush2.bf16.msra.mxu0 0
  %1848 = vmatprep.subr.bf16.mxu0 0
  %1849 = vmatpush2.bf16.msra.mxu0 0
  %1850 = vmatprep.mubr.bf16.mxu0 0
  %1851 = vmatmul.mubr.bf16.gmra.mxu0 %v1768
  %v1852 = vpop.f32.mrf.mxu0
  %v1853 = vadd.f32 %v85, %v1852
  %v1854 = vpop.f32.mrf.mxu0
  %v1855 = vpop.f32.mrf.mxu0
  %v1856 = vadd.f32 %v85, %v1855
  %v1857 = vpop.f32.mrf.mxu0
  %1858 = vmatprep.mubr.bf16.mxu0 0
  %1859 = vmatmul.mubr.bf16.gmra.mxu0 %v1769
  %v1860 = vpop.f32.mrf.mxu0
  %v1861 = vadd.f32 %v85, %v1860
  %v1862 = vpop.f32.mrf.mxu0
  %v1863 = vpop.f32.mrf.mxu0
  %v1864 = vadd.f32 %v85, %v1863
  %v1865 = vpop.f32.mrf.mxu0
  %1866 = vmatprep.mubr.bf16.mxu0 0
  %1867 = vmatmul.mubr.bf16.gmra.mxu0 %v1770
  %v1868 = vpop.f32.mrf.mxu0
  %v1869 = vadd.f32 %v85, %v1868
  %v1870 = vpop.f32.mrf.mxu0
  %v1871 = vpop.f32.mrf.mxu0
  %v1872 = vadd.f32 %v85, %v1871
  %v1873 = vpop.f32.mrf.mxu0
  %1874 = vmatprep.mubr.bf16.mxu0 0
  %1875 = vmatmul.mubr.bf16.gmra.mxu0 %v1771
  %v1876 = vpop.f32.mrf.mxu0
  %v1877 = vadd.f32 %v85, %v1876
  %v1878 = vpop.f32.mrf.mxu0
  %v1879 = vpop.f32.mrf.mxu0
  %v1880 = vadd.f32 %v85, %v1879
  %v1881 = vpop.f32.mrf.mxu0
  %1882 = vmatprep.mubr.bf16.mxu0 0
  %1883 = vmatmul.mubr.bf16.gmra.mxu0 %v1772
  %v1884 = vpop.f32.mrf.mxu0
  %v1885 = vadd.f32 %v85, %v1884
  %v1886 = vpop.f32.mrf.mxu0
  %v1887 = vpop.f32.mrf.mxu0
  %v1888 = vadd.f32 %v85, %v1887
  %v1889 = vpop.f32.mrf.mxu0
  %1890 = vmatprep.mubr.bf16.mxu0 0
  %1891 = vmatmul.mubr.bf16.gmra.mxu0 %v1773
  %v1892 = vpop.f32.mrf.mxu0
  %v1893 = vadd.f32 %v85, %v1892
  %v1894 = vpop.f32.mrf.mxu0
  %v1895 = vpop.f32.mrf.mxu0
  %v1896 = vadd.f32 %v85, %v1895
  %v1897 = vpop.f32.mrf.mxu0
  %1898 = vmatprep.mubr.bf16.mxu0 0
  %1899 = vmatmul.mubr.bf16.gmra.mxu0 %v1774
  %v1900 = vpop.f32.mrf.mxu0
  %v1901 = vadd.f32 %v85, %v1900
  %v1902 = vpop.f32.mrf.mxu0
  %v1903 = vpop.f32.mrf.mxu0
  %v1904 = vadd.f32 %v85, %v1903
  %v1905 = vpop.f32.mrf.mxu0
  %1906 = vmatprep.mubr.bf16.mxu0 0
  %1907 = vmatmul.mubr.bf16.gmra.mxu0 %v1775
  %v1908 = vpop.f32.mrf.mxu0
  %v1909 = vadd.f32 %v85, %v1908
  %v1910 = vpop.f32.mrf.mxu0
  %v1911 = vpop.f32.mrf.mxu0
  %v1912 = vadd.f32 %v85, %v1911
  %v1913 = vpop.f32.mrf.mxu0
  %1914 = vmatprep.mubr.bf16.mxu0 0
  %1915 = vmatmul.mubr.bf16.gmra.mxu0 %v1776
  %v1916 = vpop.f32.mrf.mxu0
  %v1917 = vadd.f32 %v85, %v1916
  %v1918 = vpop.f32.mrf.mxu0
  %v1919 = vpop.f32.mrf.mxu0
  %v1920 = vadd.f32 %v85, %v1919
  %v1921 = vpop.f32.mrf.mxu0
  %1922 = vmatprep.mubr.bf16.mxu0 0
  %1923 = vmatmul.mubr.bf16.gmra.mxu0 %v1777
  %v1924 = vpop.f32.mrf.mxu0
  %v1925 = vadd.f32 %v85, %v1924
  %v1926 = vpop.f32.mrf.mxu0
  %v1927 = vpop.f32.mrf.mxu0
  %v1928 = vadd.f32 %v85, %v1927
  %v1929 = vpop.f32.mrf.mxu0
  %1930 = vmatprep.mubr.bf16.mxu0 0
  %1931 = vmatmul.mubr.bf16.gmra.mxu0 %v1778
  %v1932 = vpop.f32.mrf.mxu0
  %v1933 = vadd.f32 %v85, %v1932
  %v1934 = vpop.f32.mrf.mxu0
  %v1935 = vpop.f32.mrf.mxu0
  %v1936 = vadd.f32 %v85, %v1935
  %v1937 = vpop.f32.mrf.mxu0
  %1938 = vmatprep.mubr.bf16.mxu0 0
  %1939 = vmatmul.mubr.bf16.gmra.mxu0 %v1779
  %v1940 = vpop.f32.mrf.mxu0
  %v1941 = vadd.f32 %v85, %v1940
  %v1942 = vpop.f32.mrf.mxu0
  %v1943 = vpop.f32.mrf.mxu0
  %v1944 = vadd.f32 %v85, %v1943
  %v1945 = vpop.f32.mrf.mxu0
  %1946 = vmatprep.mubr.bf16.mxu0 0
  %1947 = vmatmul.mubr.bf16.gmra.mxu0 %v1780
  %v1948 = vpop.f32.mrf.mxu0
  %v1949 = vadd.f32 %v85, %v1948
  %v1950 = vpop.f32.mrf.mxu0
  %v1951 = vpop.f32.mrf.mxu0
  %v1952 = vadd.f32 %v85, %v1951
  %v1953 = vpop.f32.mrf.mxu0
  %1954 = vmatprep.mubr.bf16.mxu0 0
  %1955 = vmatmul.mubr.bf16.gmra.mxu0 %v1781
  %v1956 = vpop.f32.mrf.mxu0
  %v1957 = vadd.f32 %v85, %v1956
  %v1958 = vpop.f32.mrf.mxu0
  %v1959 = vpop.f32.mrf.mxu0
  %v1960 = vadd.f32 %v85, %v1959
  %v1961 = vpop.f32.mrf.mxu0
  %1962 = vmatprep.mubr.bf16.mxu0 0
  %1963 = vmatmul.mubr.bf16.gmra.mxu0 %v1782
  %v1964 = vpop.f32.mrf.mxu0
  %v1965 = vadd.f32 %v85, %v1964
  %v1966 = vpop.f32.mrf.mxu0
  %v1967 = vpop.f32.mrf.mxu0
  %v1968 = vadd.f32 %v85, %v1967
  %v1969 = vpop.f32.mrf.mxu0
  %1970 = vmatprep.mubr.bf16.mxu0 0
  %1971 = vmatmul.mubr.bf16.gmra.mxu0 %v1783
  %v1972 = vpop.f32.mrf.mxu0
  %v1973 = vadd.f32 %v85, %v1972
  %v1974 = vpop.f32.mrf.mxu0
  %v1975 = vpop.f32.mrf.mxu0
  %v1976 = vadd.f32 %v85, %v1975
  %v1977 = vpop.f32.mrf.mxu0
  %1978 = vmatprep.mubr.bf16.mxu0 0
  %1979 = vmatmul.mubr.bf16.gmra.mxu0 %v1784
  %v1980 = vpop.f32.mrf.mxu0
  %v1981 = vadd.f32 %v85, %v1980
  %v1982 = vpop.f32.mrf.mxu0
  %v1983 = vpop.f32.mrf.mxu0
  %v1984 = vadd.f32 %v85, %v1983
  %v1985 = vpop.f32.mrf.mxu0
  %1986 = vmatprep.mubr.bf16.mxu0 0
  %1987 = vmatmul.mubr.bf16.gmra.mxu0 %v1785
  %v1988 = vpop.f32.mrf.mxu0
  %v1989 = vadd.f32 %v85, %v1988
  %v1990 = vpop.f32.mrf.mxu0
  %v1991 = vpop.f32.mrf.mxu0
  %v1992 = vadd.f32 %v85, %v1991
  %v1993 = vpop.f32.mrf.mxu0
  %1994 = vmatprep.mubr.bf16.mxu0 0
  %1995 = vmatmul.mubr.bf16.gmra.mxu0 %v1786
  %v1996 = vpop.f32.mrf.mxu0
  %v1997 = vadd.f32 %v85, %v1996
  %v1998 = vpop.f32.mrf.mxu0
  %v1999 = vpop.f32.mrf.mxu0
  %v2000 = vadd.f32 %v85, %v1999
  %v2001 = vpop.f32.mrf.mxu0
  %2002 = vmatprep.mubr.bf16.mxu0 0
  %2003 = vmatmul.mubr.bf16.gmra.mxu0 %v1787
  %v2004 = vpop.f32.mrf.mxu0
  %v2005 = vadd.f32 %v85, %v2004
  %v2006 = vpop.f32.mrf.mxu0
  %v2007 = vpop.f32.mrf.mxu0
  %v2008 = vadd.f32 %v85, %v2007
  %v2009 = vpop.f32.mrf.mxu0
  %2010 = vmatprep.mubr.bf16.mxu0 0
  %2011 = vmatmul.mubr.bf16.gmra.mxu0 %v1788
  %v2012 = vpop.f32.mrf.mxu0
  %v2013 = vadd.f32 %v85, %v2012
  %v2014 = vpop.f32.mrf.mxu0
  %v2015 = vpop.f32.mrf.mxu0
  %v2016 = vadd.f32 %v85, %v2015
  %v2017 = vpop.f32.mrf.mxu0
  %2018 = vmatprep.mubr.bf16.mxu0 0
  %2019 = vmatmul.mubr.bf16.gmra.mxu0 %v1789
  %v2020 = vpop.f32.mrf.mxu0
  %v2021 = vadd.f32 %v85, %v2020
  %v2022 = vpop.f32.mrf.mxu0
  %v2023 = vpop.f32.mrf.mxu0
  %v2024 = vadd.f32 %v85, %v2023
  %v2025 = vpop.f32.mrf.mxu0
  %2026 = vmatprep.mubr.bf16.mxu0 0
  %2027 = vmatmul.mubr.bf16.gmra.mxu0 %v1790
  %v2028 = vpop.f32.mrf.mxu0
  %v2029 = vadd.f32 %v85, %v2028
  %v2030 = vpop.f32.mrf.mxu0
  %v2031 = vpop.f32.mrf.mxu0
  %v2032 = vadd.f32 %v85, %v2031
  %v2033 = vpop.f32.mrf.mxu0
  %2034 = vmatprep.mubr.bf16.mxu0 0
  %2035 = vmatmul.mubr.bf16.gmra.mxu0 %v1791
  %v2036 = vpop.f32.mrf.mxu0
  %v2037 = vadd.f32 %v85, %v2036
  %v2038 = vpop.f32.mrf.mxu0
  %v2039 = vpop.f32.mrf.mxu0
  %v2040 = vadd.f32 %v85, %v2039
  %v2041 = vpop.f32.mrf.mxu0
  %2042 = vmatprep.mubr.bf16.mxu0 0
  %2043 = vmatmul.mubr.bf16.gmra.mxu0 %v1792
  %v2044 = vpop.f32.mrf.mxu0
  %v2045 = vadd.f32 %v85, %v2044
  %v2046 = vpop.f32.mrf.mxu0
  %v2047 = vpop.f32.mrf.mxu0
  %v2048 = vpop.f32.mrf.mxu0
  %2049 = vdwg.mxu0
  %v2050 = vmax.f32 %v1853, 0.0
  %v2051 = vmax.f32 %v1856, 0.0
  %v2052 = vmax.f32 %v1861, 0.0
  %v2053 = vmax.f32 %v1864, 0.0
  %v2054 = vmax.f32 %v1869, 0.0
  %v2055 = vmax.f32 %v1872, 0.0
  %v2056 = vmax.f32 %v1877, 0.0
  %v2057 = vmax.f32 %v1880, 0.0
  %v2058 = vmax.f32 %v1885, 0.0
  %v2059 = vmax.f32 %v1888, 0.0
  %v2060 = vmax.f32 %v1893, 0.0
  %v2061 = vmax.f32 %v1896, 0.0
  %v2062 = vmax.f32 %v1901, 0.0
  %v2063 = vmax.f32 %v1904, 0.0
  %v2064 = vmax.f32 %v1909, 0.0
  %v2065 = vmax.f32 %v1912, 0.0
  %v2066 = vmax.f32 %v1917, 0.0
  %v2067 = vmax.f32 %v1920, 0.0
  %v2068 = vmax.f32 %v1925, 0.0
  %v2069 = vmax.f32 %v1928, 0.0
  %v2070 = vmax.f32 %v1933, 0.0
  %v2071 = vmax.f32 %v1936, 0.0
  %v2072 = vmax.f32 %v1941, 0.0
  %v2073 = vmax.f32 %v1944, 0.0
  %v2074 = vmax.f32 %v1949, 0.0
  %v2075 = vmax.f32 %v1952, 0.0
  %v2076 = vmax.f32 %v1957, 0.0
  %v2077 = vmax.f32 %v1960, 0.0
  %v2078 = vmax.f32 %v1965, 0.0
  %v2079 = vmax.f32 %v1968, 0.0
  %v2080 = vmax.f32 %v1973, 0.0
  %v2081 = vmax.f32 %v1976, 0.0
  %v2082 = vmax.f32 %v1981, 0.0
  %v2083 = vmax.f32 %v1984, 0.0
  %v2084 = vmax.f32 %v1989, 0.0
  %v2085 = vmax.f32 %v1992, 0.0
  %v2086 = vmax.f32 %v1997, 0.0
  %v2087 = vmax.f32 %v2000, 0.0
  %v2088 = vmax.f32 %v2005, 0.0
  %v2089 = vmax.f32 %v2008, 0.0
  %v2090 = vmax.f32 %v2013, 0.0
  %v2091 = vmax.f32 %v2016, 0.0
  %v2092 = vmax.f32 %v2021, 0.0
  %v2093 = vmax.f32 %v2024, 0.0
  %v2094 = vmax.f32 %v2029, 0.0
  %v2095 = vmax.f32 %v2032, 0.0
  %v2096 = vmax.f32 %v2037, 0.0
  %v2097 = vmax.f32 %v2040, 0.0
  %v2098 = vmax.f32 %v2045, 0.0
  %v2099 = vmax.f32 %v1571, %v2050
  %v2100 = vmax.f32 %v1572, %v2051
  %v2101 = vmax.f32 %v1573, %v2052
  %v2102 = vmax.f32 %v1574, %v2053
  %v2103 = vmax.f32 %v1575, %v2054
  %v2104 = vmax.f32 %v1576, %v2055
  %v2105 = vmax.f32 %v1577, %v2056
  %v2106 = vmax.f32 %v1578, %v2057
  %v2107 = vmax.f32 %v1579, %v2058
  %v2108 = vmax.f32 %v1580, %v2059
  %v2109 = vmax.f32 %v1581, %v2060
  %v2110 = vmax.f32 %v1582, %v2061
  %v2111 = vmax.f32 %v1583, %v2062
  %v2112 = vmax.f32 %v1584, %v2063
  %v2113 = vmax.f32 %v1585, %v2064
  %v2114 = vmax.f32 %v1586, %v2065
  %v2115 = vmax.f32 %v1587, %v2066
  %v2116 = vmax.f32 %v1588, %v2067
  %v2117 = vmax.f32 %v1589, %v2068
  %v2118 = vmax.f32 %v1590, %v2069
  %v2119 = vmax.f32 %v1591, %v2070
  %v2120 = vmax.f32 %v1592, %v2071
  %v2121 = vmax.f32 %v1593, %v2072
  %v2122 = vmax.f32 %v1594, %v2073
  %v2123 = vmax.f32 %v1595, %v2074
  %v2124 = vmax.f32 %v1596, %v2075
  %v2125 = vmax.f32 %v1597, %v2076
  %v2126 = vmax.f32 %v1598, %v2077
  %v2127 = vmax.f32 %v1599, %v2078
  %v2128 = vmax.f32 %v1600, %v2079
  %v2129 = vmax.f32 %v1601, %v2080
  %v2130 = vmax.f32 %v1602, %v2081
  %v2131 = vmax.f32 %v1603, %v2082
  %v2132 = vmax.f32 %v1604, %v2083
  %v2133 = vmax.f32 %v1605, %v2084
  %v2134 = vmax.f32 %v1606, %v2085
  %v2135 = vmax.f32 %v1607, %v2086
  %v2136 = vmax.f32 %v1608, %v2087
  %v2137 = vmax.f32 %v1609, %v2088
  %v2138 = vmax.f32 %v1610, %v2089
  %v2139 = vmax.f32 %v1611, %v2090
  %v2140 = vmax.f32 %v1612, %v2091
  %v2141 = vmax.f32 %v1613, %v2092
  %v2142 = vmax.f32 %v1614, %v2093
  %v2143 = vmax.f32 %v1615, %v2094
  %v2144 = vmax.f32 %v1616, %v2095
  %v2145 = vmax.f32 %v1617, %v2096
  %v2146 = vmax.f32 %v1618, %v2097
  %v2147 = vmax.f32 %v1619, %v2098
  %v2148 = vpack.c.bf16 %v2100, %v2099
  %v2149 = vpack.c.bf16 %v2102, %v2101
  %v2150 = vpack.c.bf16 %v2104, %v2103
  %v2151 = vpack.c.bf16 %v2106, %v2105
  %v2152 = vpack.c.bf16 %v2108, %v2107
  %v2153 = vpack.c.bf16 %v2110, %v2109
  %v2154 = vpack.c.bf16 %v2112, %v2111
  %v2155 = vpack.c.bf16 %v2114, %v2113
  %v2156 = vpack.c.bf16 %v2116, %v2115
  %v2157 = vpack.c.bf16 %v2118, %v2117
  %v2158 = vpack.c.bf16 %v2120, %v2119
  %v2159 = vpack.c.bf16 %v2122, %v2121
  %v2160 = vpack.c.bf16 %v2124, %v2123
  %v2161 = vpack.c.bf16 %v2126, %v2125
  %v2162 = vpack.c.bf16 %v2128, %v2127
  %v2163 = vpack.c.bf16 %v2130, %v2129
  %v2164 = vpack.c.bf16 %v2132, %v2131
  %v2165 = vpack.c.bf16 %v2134, %v2133
  %v2166 = vpack.c.bf16 %v2136, %v2135
  %v2167 = vpack.c.bf16 %v2138, %v2137
  %v2168 = vpack.c.bf16 %v2140, %v2139
  %v2169 = vpack.c.bf16 %v2142, %v2141
  %v2170 = vpack.c.bf16 %v2144, %v2143
  %v2171 = vpack.c.bf16 %v2146, %v2145
  %v2172 = vpack.c.bf16 %v2147, %v2147
  %v2198 = vunpack.c.l.b16 %v2148
  %v2199 = vunpack.c.h.b16 %v2148
  %v2200 = vunpack.c.l.b16 %v2149
  %v2201 = vunpack.c.h.b16 %v2149
  %v2202 = vunpack.c.l.b16 %v2150
  %v2203 = vunpack.c.h.b16 %v2150
  %v2204 = vunpack.c.l.b16 %v2151
  %v2205 = vunpack.c.h.b16 %v2151
  %v2206 = vunpack.c.l.b16 %v2152
  %v2207 = vunpack.c.h.b16 %v2152
  %v2208 = vunpack.c.l.b16 %v2153
  %v2209 = vunpack.c.h.b16 %v2153
  %v2210 = vunpack.c.l.b16 %v2154
  %v2211 = vunpack.c.h.b16 %v2154
  %v2212 = vunpack.c.l.b16 %v2155
  %v2213 = vunpack.c.h.b16 %v2155
  %v2214 = vunpack.c.l.b16 %v2156
  %v2215 = vunpack.c.h.b16 %v2156
  %v2216 = vunpack.c.l.b16 %v2157
  %v2217 = vunpack.c.h.b16 %v2157
  %v2218 = vunpack.c.l.b16 %v2158
  %v2219 = vunpack.c.h.b16 %v2158
  %v2220 = vunpack.c.l.b16 %v2159
  %v2221 = vunpack.c.h.b16 %v2159
  %v2222 = vunpack.c.l.b16 %v2160
  %v2223 = vunpack.c.h.b16 %v2160
  %v2224 = vunpack.c.l.b16 %v2161
  %v2225 = vunpack.c.h.b16 %v2161
  %v2226 = vunpack.c.l.b16 %v2162
  %v2227 = vunpack.c.h.b16 %v2162
  %v2228 = vunpack.c.l.b16 %v2163
  %v2229 = vunpack.c.h.b16 %v2163
  %v2230 = vunpack.c.l.b16 %v2164
  %v2231 = vunpack.c.h.b16 %v2164
  %v2232 = vunpack.c.l.b16 %v2165
  %v2233 = vunpack.c.h.b16 %v2165
  %v2234 = vunpack.c.l.b16 %v2166
  %v2235 = vunpack.c.h.b16 %v2166
  %v2236 = vunpack.c.l.b16 %v2167
  %v2237 = vunpack.c.h.b16 %v2167
  %v2238 = vunpack.c.l.b16 %v2168
  %v2239 = vunpack.c.h.b16 %v2168
  %v2240 = vunpack.c.l.b16 %v2169
  %v2241 = vunpack.c.h.b16 %v2169
  %v2242 = vunpack.c.l.b16 %v2170
  %v2243 = vunpack.c.h.b16 %v2170
  %v2244 = vunpack.c.l.b16 %v2171
  %v2245 = vunpack.c.h.b16 %v2171
  %v2246 = vunpack.c.l.b16 %v2172
  %v2247 = vpack.c.b16 %v2198, %v2198
  %v2248 = vpack.c.b16 %v2199, %v2199
  %v2249 = vpack.c.b16 %v2200, %v2200
  %v2250 = vpack.c.b16 %v2201, %v2201
  %v2251 = vpack.c.b16 %v2202, %v2202
  %v2252 = vpack.c.b16 %v2203, %v2203
  %v2253 = vpack.c.b16 %v2204, %v2204
  %v2254 = vpack.c.b16 %v2205, %v2205
  %v2255 = vpack.c.b16 %v2206, %v2206
  %v2256 = vpack.c.b16 %v2207, %v2207
  %v2257 = vpack.c.b16 %v2208, %v2208
  %v2258 = vpack.c.b16 %v2209, %v2209
  %v2259 = vpack.c.b16 %v2210, %v2210
  %v2260 = vpack.c.b16 %v2211, %v2211
  %v2261 = vpack.c.b16 %v2212, %v2212
  %v2262 = vpack.c.b16 %v2213, %v2213
  %v2263 = vpack.c.b16 %v2214, %v2214
  %v2264 = vpack.c.b16 %v2215, %v2215
  %v2265 = vpack.c.b16 %v2216, %v2216
  %v2266 = vpack.c.b16 %v2217, %v2217
  %v2267 = vpack.c.b16 %v2218, %v2218
  %v2268 = vpack.c.b16 %v2219, %v2219
  %v2269 = vpack.c.b16 %v2220, %v2220
  %v2270 = vpack.c.b16 %v2221, %v2221
  %v2271 = vpack.c.b16 %v2222, %v2222
  %v2272 = vpack.c.b16 %v2223, %v2223
  %v2273 = vpack.c.b16 %v2224, %v2224
  %v2274 = vpack.c.b16 %v2225, %v2225
  %v2275 = vpack.c.b16 %v2226, %v2226
  %v2276 = vpack.c.b16 %v2227, %v2227
  %v2277 = vpack.c.b16 %v2228, %v2228
  %v2278 = vpack.c.b16 %v2229, %v2229
  %v2279 = vpack.c.b16 %v2230, %v2230
  %v2280 = vpack.c.b16 %v2231, %v2231
  %v2281 = vpack.c.b16 %v2232, %v2232
  %v2282 = vpack.c.b16 %v2233, %v2233
  %v2283 = vpack.c.b16 %v2234, %v2234
  %v2284 = vpack.c.b16 %v2235, %v2235
  %v2285 = vpack.c.b16 %v2236, %v2236
  %v2286 = vpack.c.b16 %v2237, %v2237
  %v2287 = vpack.c.b16 %v2238, %v2238
  %v2288 = vpack.c.b16 %v2239, %v2239
  %v2289 = vpack.c.b16 %v2240, %v2240
  %v2290 = vpack.c.b16 %v2241, %v2241
  %v2291 = vpack.c.b16 %v2242, %v2242
  %v2292 = vpack.c.b16 %v2243, %v2243
  %v2293 = vpack.c.b16 %v2244, %v2244
  %v2294 = vpack.c.b16 %v2245, %v2245
  %v2295 = vpack.c.b16 %v2246, %v2246
  %2345 = vst [vmem:[%s3] sm:$0xf] %v2247
  %2346 = vst [vmem:[%s3 + $0x4] sm:$0xf] %v2248
  %2347 = vst [vmem:[%s3 + $0x8] sm:$0xf] %v2249
  %2348 = vst [vmem:[%s3 + $0xc] sm:$0xf] %v2250
  %2349 = vst [vmem:[%s3 + $0x10] sm:$0xf] %v2251
  %2350 = vst [vmem:[%s3 + $0x14] sm:$0xf] %v2252
  %2351 = vst [vmem:[%s3 + $0x18] sm:$0xf] %v2253
  %2352 = vst [vmem:[%s3 + $0x1c] sm:$0xf] %v2254
  %2353 = vst [vmem:[%s3 + $0x20] sm:$0xf] %v2255
  %2354 = vst [vmem:[%s3 + $0x24] sm:$0xf] %v2256
  %2355 = vst [vmem:[%s3 + $0x28] sm:$0xf] %v2257
  %2356 = vst [vmem:[%s3 + $0x2c] sm:$0xf] %v2258
  %2357 = vst [vmem:[%s3 + $0x30] sm:$0xf] %v2259
  %2358 = vst [vmem:[%s3 + $0x34] sm:$0xf] %v2260
  %2359 = vst [vmem:[%s3 + $0x38] sm:$0xf] %v2261
  %2360 = vst [vmem:[%s3 + $0x3c] sm:$0xf] %v2262
  %2361 = vst [vmem:[%s3 + $0x40] sm:$0xf] %v2263
  %2362 = vst [vmem:[%s3 + $0x44] sm:$0xf] %v2264
  %2363 = vst [vmem:[%s3 + $0x48] sm:$0xf] %v2265
  %2364 = vst [vmem:[%s3 + $0x4c] sm:$0xf] %v2266
  %2365 = vst [vmem:[%s3 + $0x50] sm:$0xf] %v2267
  %2366 = vst [vmem:[%s3 + $0x54] sm:$0xf] %v2268
  %2367 = vst [vmem:[%s3 + $0x58] sm:$0xf] %v2269
  %2368 = vst [vmem:[%s3 + $0x5c] sm:$0xf] %v2270
  %2369 = vst [vmem:[%s3 + $0x60] sm:$0xf] %v2271
  %2370 = vst [vmem:[%s3 + $0x64] sm:$0xf] %v2272
  %2371 = vst [vmem:[%s3 + $0x68] sm:$0xf] %v2273
  %2372 = vst [vmem:[%s3 + $0x6c] sm:$0xf] %v2274
  %2373 = vst [vmem:[%s3 + $0x70] sm:$0xf] %v2275
  %2374 = vst [vmem:[%s3 + $0x74] sm:$0xf] %v2276
  %2375 = vst [vmem:[%s3 + $0x78] sm:$0xf] %v2277
  %2376 = vst [vmem:[%s3 + $0x7c] sm:$0xf] %v2278
  %2377 = vst [vmem:[%s3 + $0x80] sm:$0xf] %v2279
  %2378 = vst [vmem:[%s3 + $0x84] sm:$0xf] %v2280
  %2379 = vst [vmem:[%s3 + $0x88] sm:$0xf] %v2281
  %2380 = vst [vmem:[%s3 + $0x8c] sm:$0xf] %v2282
  %2381 = vst [vmem:[%s3 + $0x90] sm:$0xf] %v2283
  %2382 = vst [vmem:[%s3 + $0x94] sm:$0xf] %v2284
  %2383 = vst [vmem:[%s3 + $0x98] sm:$0xf] %v2285
  %2384 = vst [vmem:[%s3 + $0x9c] sm:$0xf] %v2286
  %2385 = vst [vmem:[%s3 + $0xa0] sm:$0xf] %v2287
  %2386 = vst [vmem:[%s3 + $0xa4] sm:$0xf] %v2288
  %2387 = vst [vmem:[%s3 + $0xa8] sm:$0xf] %v2289
  %2388 = vst [vmem:[%s3 + $0xac] sm:$0xf] %v2290
  %2389 = vst [vmem:[%s3 + $0xb0] sm:$0xf] %v2291
  %2390 = vst [vmem:[%s3 + $0xb4] sm:$0xf] %v2292
  %2391 = vst [vmem:[%s3 + $0xb8] sm:$0xf] %v2293
  %2392 = vst [vmem:[%s3 + $0xbc] sm:$0xf] %v2294
  %2393 = vst [vmem:[%s3 + $0xc0] sm:$0xf] %v2295
  // Predicated region
  $region14: #{mnist_cnn_forward.4} parent=0 // pred_check
    _
  $region15: #{mnist_cnn_forward.4} parent=0 // pred_check_branch
    %2395 = sbr.rel (0) target = $region17
  $region16: #{mnist_cnn_forward.4} parent=0 // pred_region
    _
  $region17: #{mnist_cnn_forward.4} parent=0 // pred_fallthru
    _
  // Predicated region
  $region18: #{mnist_cnn_forward.4} parent=0 // pred_check
    _
  $region19: #{mnist_cnn_forward.4} parent=0 // pred_check_branch
    %2397 = sbr.rel (0) target = $region21
  $region20: #{mnist_cnn_forward.4} parent=0 // pred_region
    _
  $region21: #{mnist_cnn_forward.4} parent=0 // pred_fallthru
    _

// kernel: mnist_cnn_forward.5
$region0: #{mnist_cnn_forward.5}
  #allocation0 [shape = 'u32[]', space=smem, size = 0x4, offset = 0x4, fixed_abs, tag = 'smem constant byte address 0x4 - core index']
  #allocation1 [shape = 'u32[144,128]{1,0:T(1,128)}', space=vmem, size = 0x12000, scoped, tag = 'internal scratch']
  %s0 = inlined_call_operand.vmem [shape: bf16[4,98,1152], index: 0, kind: input, shape index: {}]
  %s1 = inlined_call_operand.vmem [shape: bf16[1152,128], index: 1, kind: input, shape index: {}]
  %s2 = inlined_call_operand.vmem [shape: f32[1,128], index: 2, kind: input, shape index: {}]
  %s3 = inlined_call_operand.vmem [shape: bf16[98,128], index: 3, kind: output, shape index: {}]
  %s4 = sld [smem:[#allocation0]]
  $region22: #{mnist_cnn_forward.5} parent=0
    _
  %s6 = ssub.s32 1, %s4
  %s7 = scalar_select 0, %s6, %s4
  // Predicated region
  $region2: #{mnist_cnn_forward.5} parent=0 // pred_check
    _
  $region3: #{mnist_cnn_forward.5} parent=0 // pred_check_branch
    %9 = sbr.rel (0) target = $region5
  $region4: #{mnist_cnn_forward.5} parent=0 // pred_region
    _
  $region5: #{mnist_cnn_forward.5} parent=0 // pred_fallthru
    _
  // Predicated region
  $region6: #{mnist_cnn_forward.5} parent=0 // pred_check
    _
  $region7: #{mnist_cnn_forward.5} parent=0 // pred_check_branch
    %11 = sbr.rel (0) target = $region9
  $region8: #{mnist_cnn_forward.5} parent=0 // pred_region
    _
  $region9: #{mnist_cnn_forward.5} parent=0 // pred_fallthru
    _
  // Predicated region
  $region10: #{mnist_cnn_forward.5} parent=0 // pred_check
    _
  $region11: #{mnist_cnn_forward.5} parent=0 // pred_check_branch
    %13 = sbr.rel (0) target = $region13
  $region12: #{mnist_cnn_forward.5} parent=0 // pred_region
    _
  $region13: #{mnist_cnn_forward.5} parent=0 // pred_fallthru
    _
  %v15 = vld [vmem:[%s1] sm:$0xf]
  %v16 = vld [vmem:[%s1 + $0x4] sm:$0xf]
  %v17 = vld [vmem:[%s1 + $0x8] sm:$0xf]
  %v18 = vld [vmem:[%s1 + $0xc] sm:$0xf]
  %v19 = vld [vmem:[%s1 + $0x10] sm:$0xf]
  %v20 = vld [vmem:[%s1 + $0x14] sm:$0xf]
  %v21 = vld [vmem:[%s1 + $0x18] sm:$0xf]
  %v22 = vld [vmem:[%s1 + $0x1c] sm:$0xf]
  %v23 = vld [vmem:[%s1 + $0x20] sm:$0xf]
  %v24 = vld [vmem:[%s1 + $0x24] sm:$0xf]
  %v25 = vld [vmem:[%s1 + $0x28] sm:$0xf]
  %v26 = vld [vmem:[%s1 + $0x2c] sm:$0xf]
  %v27 = vld [vmem:[%s1 + $0x30] sm:$0xf]
  %v28 = vld [vmem:[%s1 + $0x34] sm:$0xf]
  %v29 = vld [vmem:[%s1 + $0x38] sm:$0xf]
  %v30 = vld [vmem:[%s1 + $0x3c] sm:$0xf]
  %v31 = vld [vmem:[%s1 + $0x40] sm:$0xf]
  %v32 = vld [vmem:[%s1 + $0x44] sm:$0xf]
  %v33 = vld [vmem:[%s1 + $0x48] sm:$0xf]
  %v34 = vld [vmem:[%s1 + $0x4c] sm:$0xf]
  %v35 = vld [vmem:[%s1 + $0x50] sm:$0xf]
  %v36 = vld [vmem:[%s1 + $0x54] sm:$0xf]
  %v37 = vld [vmem:[%s1 + $0x58] sm:$0xf]
  %v38 = vld [vmem:[%s1 + $0x5c] sm:$0xf]
  %v39 = vld [vmem:[%s1 + $0x60] sm:$0xf]
  %v40 = vld [vmem:[%s1 + $0x64] sm:$0xf]
  %v41 = vld [vmem:[%s1 + $0x68] sm:$0xf]
  %v42 = vld [vmem:[%s1 + $0x6c] sm:$0xf]
  %v43 = vld [vmem:[%s1 + $0x70] sm:$0xf]
  %v44 = vld [vmem:[%s1 + $0x74] sm:$0xf]
  %v45 = vld [vmem:[%s1 + $0x78] sm:$0xf]
  %v46 = vld [vmem:[%s1 + $0x7c] sm:$0xf]
  %v47 = vld [vmem:[%s1 + $0x80] sm:$0xf]
  %v48 = vld [vmem:[%s1 + $0x84] sm:$0xf]
  %v49 = vld [vmem:[%s1 + $0x88] sm:$0xf]
  %v50 = vld [vmem:[%s1 + $0x8c] sm:$0xf]
  %v51 = vld [vmem:[%s1 + $0x90] sm:$0xf]
  %v52 = vld [vmem:[%s1 + $0x94] sm:$0xf]
  %v53 = vld [vmem:[%s1 + $0x98] sm:$0xf]
  %v54 = vld [vmem:[%s1 + $0x9c] sm:$0xf]
  %v55 = vld [vmem:[%s1 + $0xa0] sm:$0xf]
  %v56 = vld [vmem:[%s1 + $0xa4] sm:$0xf]
  %v57 = vld [vmem:[%s1 + $0xa8] sm:$0xf]
  %v58 = vld [vmem:[%s1 + $0xac] sm:$0xf]
  %v59 = vld [vmem:[%s1 + $0xb0] sm:$0xf]
  %v60 = vld [vmem:[%s1 + $0xb4] sm:$0xf]
  %v61 = vld [vmem:[%s1 + $0xb8] sm:$0xf]
  %v62 = vld [vmem:[%s1 + $0xbc] sm:$0xf]
  %v63 = vld [vmem:[%s1 + $0xc0] sm:$0xf]
  %v64 = vld [vmem:[%s1 + $0xc4] sm:$0xf]
  %v65 = vld [vmem:[%s1 + $0xc8] sm:$0xf]
  %v66 = vld [vmem:[%s1 + $0xcc] sm:$0xf]
  %v67 = vld [vmem:[%s1 + $0xd0] sm:$0xf]
  %v68 = vld [vmem:[%s1 + $0xd4] sm:$0xf]
  %v69 = vld [vmem:[%s1 + $0xd8] sm:$0xf]
  %v70 = vld [vmem:[%s1 + $0xdc] sm:$0xf]
  %v71 = vld [vmem:[%s1 + $0xe0] sm:$0xf]
  %v72 = vld [vmem:[%s1 + $0xe4] sm:$0xf]
  %v73 = vld [vmem:[%s1 + $0xe8] sm:$0xf]
  %v74 = vld [vmem:[%s1 + $0xec] sm:$0xf]
  %v75 = vld [vmem:[%s1 + $0xf0] sm:$0xf]
  %v76 = vld [vmem:[%s1 + $0xf4] sm:$0xf]
  %v77 = vld [vmem:[%s1 + $0xf8] sm:$0xf]
  %v78 = vld [vmem:[%s1 + $0xfc] sm:$0xf]
  %v79 = vld [vmem:[%s1 + $0x100] sm:$0xf]
  %v80 = vld [vmem:[%s1 + $0x104] sm:$0xf]
  %v81 = vld [vmem:[%s1 + $0x108] sm:$0xf]
  %v82 = vld [vmem:[%s1 + $0x10c] sm:$0xf]
  %v83 = vld [vmem:[%s1 + $0x110] sm:$0xf]
  %v84 = vld [vmem:[%s1 + $0x114] sm:$0xf]
  %v85 = vld [vmem:[%s1 + $0x118] sm:$0xf]
  %v86 = vld [vmem:[%s1 + $0x11c] sm:$0xf]
  %v87 = vld [vmem:[%s1 + $0x120] sm:$0xf]
  %v88 = vld [vmem:[%s1 + $0x124] sm:$0xf]
  %v89 = vld [vmem:[%s1 + $0x128] sm:$0xf]
  %v90 = vld [vmem:[%s1 + $0x12c] sm:$0xf]
  %v91 = vld [vmem:[%s1 + $0x130] sm:$0xf]
  %v92 = vld [vmem:[%s1 + $0x134] sm:$0xf]
  %v93 = vld [vmem:[%s1 + $0x138] sm:$0xf]
  %v94 = vld [vmem:[%s1 + $0x13c] sm:$0xf]
  %v95 = vld [vmem:[%s1 + $0x140] sm:$0xf]
  %v96 = vld [vmem:[%s1 + $0x144] sm:$0xf]
  %v97 = vld [vmem:[%s1 + $0x148] sm:$0xf]
  %v98 = vld [vmem:[%s1 + $0x14c] sm:$0xf]
  %v99 = vld [vmem:[%s1 + $0x150] sm:$0xf]
  %v100 = vld [vmem:[%s1 + $0x154] sm:$0xf]
  %v101 = vld [vmem:[%s1 + $0x158] sm:$0xf]
  %v102 = vld [vmem:[%s1 + $0x15c] sm:$0xf]
  %v103 = vld [vmem:[%s1 + $0x160] sm:$0xf]
  %v104 = vld [vmem:[%s1 + $0x164] sm:$0xf]
  %v105 = vld [vmem:[%s1 + $0x168] sm:$0xf]
  %v106 = vld [vmem:[%s1 + $0x16c] sm:$0xf]
  %v107 = vld [vmem:[%s1 + $0x170] sm:$0xf]
  %v108 = vld [vmem:[%s1 + $0x174] sm:$0xf]
  %v109 = vld [vmem:[%s1 + $0x178] sm:$0xf]
  %v110 = vld [vmem:[%s1 + $0x17c] sm:$0xf]
  %v111 = vld [vmem:[%s1 + $0x180] sm:$0xf]
  %v112 = vld [vmem:[%s1 + $0x184] sm:$0xf]
  %v113 = vld [vmem:[%s1 + $0x188] sm:$0xf]
  %v114 = vld [vmem:[%s1 + $0x18c] sm:$0xf]
  %v115 = vld [vmem:[%s1 + $0x190] sm:$0xf]
  %v116 = vld [vmem:[%s1 + $0x194] sm:$0xf]
  %v117 = vld [vmem:[%s1 + $0x198] sm:$0xf]
  %v118 = vld [vmem:[%s1 + $0x19c] sm:$0xf]
  %v119 = vld [vmem:[%s1 + $0x1a0] sm:$0xf]
  %v120 = vld [vmem:[%s1 + $0x1a4] sm:$0xf]
  %v121 = vld [vmem:[%s1 + $0x1a8] sm:$0xf]
  %v122 = vld [vmem:[%s1 + $0x1ac] sm:$0xf]
  %v123 = vld [vmem:[%s1 + $0x1b0] sm:$0xf]
  %v124 = vld [vmem:[%s1 + $0x1b4] sm:$0xf]
  %v125 = vld [vmem:[%s1 + $0x1b8] sm:$0xf]
  %v126 = vld [vmem:[%s1 + $0x1bc] sm:$0xf]
  %v127 = vld [vmem:[%s1 + $0x1c0] sm:$0xf]
  %v128 = vld [vmem:[%s1 + $0x1c4] sm:$0xf]
  %v129 = vld [vmem:[%s1 + $0x1c8] sm:$0xf]
  %v130 = vld [vmem:[%s1 + $0x1cc] sm:$0xf]
  %v131 = vld [vmem:[%s1 + $0x1d0] sm:$0xf]
  %v132 = vld [vmem:[%s1 + $0x1d4] sm:$0xf]
  %v133 = vld [vmem:[%s1 + $0x1d8] sm:$0xf]
  %v134 = vld [vmem:[%s1 + $0x1dc] sm:$0xf]
  %v135 = vld [vmem:[%s1 + $0x1e0] sm:$0xf]
  %v136 = vld [vmem:[%s1 + $0x1e4] sm:$0xf]
  %v137 = vld [vmem:[%s1 + $0x1e8] sm:$0xf]
  %v138 = vld [vmem:[%s1 + $0x1ec] sm:$0xf]
  %v139 = vld [vmem:[%s1 + $0x1f0] sm:$0xf]
  %v140 = vld [vmem:[%s1 + $0x1f4] sm:$0xf]
  %v141 = vld [vmem:[%s1 + $0x1f8] sm:$0xf]
  %v142 = vld [vmem:[%s1 + $0x1fc] sm:$0xf]
  %v143 = vld [vmem:[%s1 + $0x200] sm:$0xf]
  %v144 = vld [vmem:[%s1 + $0x204] sm:$0xf]
  %v145 = vld [vmem:[%s1 + $0x208] sm:$0xf]
  %v146 = vld [vmem:[%s1 + $0x20c] sm:$0xf]
  %v147 = vld [vmem:[%s1 + $0x210] sm:$0xf]
  %v148 = vld [vmem:[%s1 + $0x214] sm:$0xf]
  %v149 = vld [vmem:[%s1 + $0x218] sm:$0xf]
  %v150 = vld [vmem:[%s1 + $0x21c] sm:$0xf]
  %v151 = vld [vmem:[%s1 + $0x220] sm:$0xf]
  %v152 = vld [vmem:[%s1 + $0x224] sm:$0xf]
  %v153 = vld [vmem:[%s1 + $0x228] sm:$0xf]
  %v154 = vld [vmem:[%s1 + $0x22c] sm:$0xf]
  %v155 = vld [vmem:[%s1 + $0x230] sm:$0xf]
  %v156 = vld [vmem:[%s1 + $0x234] sm:$0xf]
  %v157 = vld [vmem:[%s1 + $0x238] sm:$0xf]
  %v158 = vld [vmem:[%s1 + $0x23c] sm:$0xf]
  %v159 = vld [vmem:[%s2] sm:$0x1]
  %v160 = vld [vmem:[%s0] sm:$0xff]
  %v161 = vld [vmem:[%s0 + $0x8] sm:$0xff]
  %v162 = vld [vmem:[%s0 + $0x10] sm:$0xff]
  %v163 = vld [vmem:[%s0 + $0x18] sm:$0xff]
  %v164 = vld [vmem:[%s0 + $0x20] sm:$0xf]
  %v165 = vld [vmem:[%s0 + $0x24] sm:$0xff]
  %v166 = vld [vmem:[%s0 + $0x2c] sm:$0xff]
  %v167 = vld [vmem:[%s0 + $0x34] sm:$0xff]
  %v168 = vld [vmem:[%s0 + $0x3c] sm:$0xff]
  %v169 = vld [vmem:[%s0 + $0x44] sm:$0xf]
  %v170 = vld [vmem:[%s0 + $0x48] sm:$0xff]
  %v171 = vld [vmem:[%s0 + $0x50] sm:$0xff]
  %v172 = vld [vmem:[%s0 + $0x58] sm:$0xff]
  %v173 = vld [vmem:[%s0 + $0x60] sm:$0xff]
  %v174 = vld [vmem:[%s0 + $0x68] sm:$0xf]
  %v175 = vld [vmem:[%s0 + $0x6c] sm:$0xff]
  %v176 = vld [vmem:[%s0 + $0x74] sm:$0xff]
  %v177 = vld [vmem:[%s0 + $0x7c] sm:$0xff]
  %v178 = vld [vmem:[%s0 + $0x84] sm:$0xff]
  %v179 = vld [vmem:[%s0 + $0x8c] sm:$0xf]
  %v180 = vld [vmem:[%s0 + $0x90] sm:$0xff]
  %v181 = vld [vmem:[%s0 + $0x98] sm:$0xff]
  %v182 = vld [vmem:[%s0 + $0xa0] sm:$0xff]
  %v183 = vld [vmem:[%s0 + $0xa8] sm:$0xff]
  %v184 = vld [vmem:[%s0 + $0xb0] sm:$0xf]
  %v185 = vld [vmem:[%s0 + $0xb4] sm:$0xff]
  %v186 = vld [vmem:[%s0 + $0xbc] sm:$0xff]
  %v187 = vld [vmem:[%s0 + $0xc4] sm:$0xff]
  %v188 = vld [vmem:[%s0 + $0xcc] sm:$0xff]
  %v189 = vld [vmem:[%s0 + $0xd4] sm:$0xf]
  %v190 = vld [vmem:[%s0 + $0xd8] sm:$0xff]
  %v191 = vld [vmem:[%s0 + $0xe0] sm:$0xff]
  %v192 = vld [vmem:[%s0 + $0xe8] sm:$0xff]
  %v193 = vld [vmem:[%s0 + $0xf0] sm:$0xff]
  %v194 = vld [vmem:[%s0 + $0xf8] sm:$0xf]
  %v195 = vld [vmem:[%s0 + $0xfc] sm:$0xff]
  %v196 = vld [vmem:[%s0 + $0x104] sm:$0xff]
  %v197 = vld [vmem:[%s0 + $0x10c] sm:$0xff]
  %v198 = vld [vmem:[%s0 + $0x114] sm:$0xff]
  %v199 = vld [vmem:[%s0 + $0x11c] sm:$0xf]
  %v200 = vld [vmem:[%s0 + $0x120] sm:$0xff]
  %v201 = vld [vmem:[%s0 + $0x128] sm:$0xff]
  %v202 = vld [vmem:[%s0 + $0x130] sm:$0xff]
  %v203 = vld [vmem:[%s0 + $0x138] sm:$0xff]
  %v204 = vld [vmem:[%s0 + $0x140] sm:$0xf]
  %v205 = vld [vmem:[%s0 + $0x144] sm:$0xff]
  %v206 = vld [vmem:[%s0 + $0x14c] sm:$0xff]
  %v207 = vld [vmem:[%s0 + $0x154] sm:$0xff]
  %v208 = vld [vmem:[%s0 + $0x15c] sm:$0xff]
  %v209 = vld [vmem:[%s0 + $0x164] sm:$0xf]
  %v210 = vld [vmem:[%s0 + $0x168] sm:$0xff]
  %v211 = vld [vmem:[%s0 + $0x170] sm:$0xff]
  %v212 = vld [vmem:[%s0 + $0x178] sm:$0xff]
  %v213 = vld [vmem:[%s0 + $0x180] sm:$0xff]
  %v214 = vld [vmem:[%s0 + $0x188] sm:$0xf]
  %v215 = vld [vmem:[%s0 + $0x18c] sm:$0xff]
  %v216 = vld [vmem:[%s0 + $0x194] sm:$0xff]
  %v217 = vld [vmem:[%s0 + $0x19c] sm:$0xff]
  %v218 = vld [vmem:[%s0 + $0x1a4] sm:$0xff]
  %v219 = vld [vmem:[%s0 + $0x1ac] sm:$0xf]
  %v220 = vld [vmem:[%s0 + $0x1b0] sm:$0x11]
  %v221 = vld [vmem:[%s0 + $0x1b8] sm:$0x11]
  %v222 = vld [vmem:[%s0 + $0x1c0] sm:$0x11]
  %v223 = vld [vmem:[%s0 + $0x1c8] sm:$0x11]
  %v224 = vld [vmem:[%s0 + $0x1d0] sm:$0x1]
  %v226 = vlaneseq
  %v227 = vshrl.u32 %v226, 7
  %v228 = vsub.s32 0, %v227
  %v229 = vrot.slane %v159, %v228
  %v296 = vunpack.c.l.b16 %v160
  %v297 = vunpack.c.h.b16 %v160
  %v298 = vunpack.c.l.b16 %v161
  %v299 = vunpack.c.h.b16 %v161
  %v300 = vunpack.c.l.b16 %v162
  %v301 = vunpack.c.h.b16 %v162
  %v302 = vunpack.c.l.b16 %v163
  %v303 = vunpack.c.h.b16 %v163
  %v304 = vunpack.c.l.b16 %v164
  %v305 = vunpack.c.l.b16 %v165
  %v306 = vunpack.c.h.b16 %v165
  %v307 = vunpack.c.l.b16 %v166
  %v308 = vunpack.c.h.b16 %v166
  %v309 = vunpack.c.l.b16 %v167
  %v310 = vunpack.c.h.b16 %v167
  %v311 = vunpack.c.l.b16 %v168
  %v312 = vunpack.c.h.b16 %v168
  %v313 = vunpack.c.l.b16 %v169
  %v314 = vunpack.c.l.b16 %v170
  %v315 = vunpack.c.h.b16 %v170
  %v316 = vunpack.c.l.b16 %v171
  %v317 = vunpack.c.h.b16 %v171
  %v318 = vunpack.c.l.b16 %v172
  %v319 = vunpack.c.h.b16 %v172
  %v320 = vunpack.c.l.b16 %v173
  %v321 = vunpack.c.h.b16 %v173
  %v322 = vunpack.c.l.b16 %v174
  %v323 = vunpack.c.l.b16 %v175
  %v324 = vunpack.c.h.b16 %v175
  %v325 = vunpack.c.l.b16 %v176
  %v326 = vunpack.c.h.b16 %v176
  %v327 = vunpack.c.l.b16 %v177
  %v328 = vunpack.c.h.b16 %v177
  %v329 = vunpack.c.l.b16 %v178
  %v330 = vunpack.c.h.b16 %v178
  %v331 = vunpack.c.l.b16 %v179
  %v332 = vunpack.c.l.b16 %v180
  %v333 = vunpack.c.h.b16 %v180
  %v334 = vunpack.c.l.b16 %v181
  %v335 = vunpack.c.h.b16 %v181
  %v336 = vunpack.c.l.b16 %v182
  %v337 = vunpack.c.h.b16 %v182
  %v338 = vunpack.c.l.b16 %v183
  %v339 = vunpack.c.h.b16 %v183
  %v340 = vunpack.c.l.b16 %v184
  %v341 = vunpack.c.l.b16 %v185
  %v342 = vunpack.c.h.b16 %v185
  %v343 = vunpack.c.l.b16 %v186
  %v344 = vunpack.c.h.b16 %v186
  %v345 = vunpack.c.l.b16 %v187
  %v346 = vunpack.c.h.b16 %v187
  %v347 = vunpack.c.l.b16 %v188
  %v348 = vunpack.c.h.b16 %v188
  %v349 = vunpack.c.l.b16 %v189
  %v350 = vunpack.c.l.b16 %v190
  %v351 = vunpack.c.h.b16 %v190
  %v352 = vunpack.c.l.b16 %v191
  %v353 = vunpack.c.h.b16 %v191
  %v354 = vunpack.c.l.b16 %v192
  %v355 = vunpack.c.h.b16 %v192
  %v356 = vunpack.c.l.b16 %v193
  %v357 = vunpack.c.h.b16 %v193
  %v358 = vunpack.c.l.b16 %v194
  %v359 = vunpack.c.l.b16 %v195
  %v360 = vunpack.c.h.b16 %v195
  %v361 = vunpack.c.l.b16 %v196
  %v362 = vunpack.c.h.b16 %v196
  %v363 = vunpack.c.l.b16 %v197
  %v364 = vunpack.c.h.b16 %v197
  %v365 = vunpack.c.l.b16 %v198
  %v366 = vunpack.c.h.b16 %v198
  %v367 = vunpack.c.l.b16 %v199
  %v368 = vunpack.c.l.b16 %v200
  %v369 = vunpack.c.h.b16 %v200
  %v370 = vunpack.c.l.b16 %v201
  %v371 = vunpack.c.h.b16 %v201
  %v372 = vunpack.c.l.b16 %v202
  %v373 = vunpack.c.h.b16 %v202
  %v374 = vunpack.c.l.b16 %v203
  %v375 = vunpack.c.h.b16 %v203
  %v376 = vunpack.c.l.b16 %v204
  %v377 = vunpack.c.l.b16 %v205
  %v378 = vunpack.c.h.b16 %v205
  %v379 = vunpack.c.l.b16 %v206
  %v380 = vunpack.c.h.b16 %v206
  %v381 = vunpack.c.l.b16 %v207
  %v382 = vunpack.c.h.b16 %v207
  %v383 = vunpack.c.l.b16 %v208
  %v384 = vunpack.c.h.b16 %v208
  %v385 = vunpack.c.l.b16 %v209
  %v386 = vunpack.c.l.b16 %v210
  %v387 = vunpack.c.h.b16 %v210
  %v388 = vunpack.c.l.b16 %v211
  %v389 = vunpack.c.h.b16 %v211
  %v390 = vunpack.c.l.b16 %v212
  %v391 = vunpack.c.h.b16 %v212
  %v392 = vunpack.c.l.b16 %v213
  %v393 = vunpack.c.h.b16 %v213
  %v394 = vunpack.c.l.b16 %v214
  %v395 = vunpack.c.l.b16 %v215
  %v396 = vunpack.c.h.b16 %v215
  %v397 = vunpack.c.l.b16 %v216
  %v398 = vunpack.c.h.b16 %v216
  %v399 = vunpack.c.l.b16 %v217
  %v400 = vunpack.c.h.b16 %v217
  %v401 = vunpack.c.l.b16 %v218
  %v402 = vunpack.c.h.b16 %v218
  %v403 = vunpack.c.l.b16 %v219
  %v404 = vunpack.c.l.b16 %v220
  %v405 = vunpack.c.h.b16 %v220
  %v406 = vunpack.c.l.b16 %v221
  %v407 = vunpack.c.h.b16 %v221
  %v408 = vunpack.c.l.b16 %v222
  %v409 = vunpack.c.h.b16 %v222
  %v410 = vunpack.c.l.b16 %v223
  %v411 = vunpack.c.h.b16 %v223
  %v412 = vunpack.c.l.b16 %v224
  %v413 = vpack.c.b16 %v305, %v296
  %v414 = vpack.c.b16 %v306, %v297
  %v415 = vpack.c.b16 %v307, %v298
  %v416 = vpack.c.b16 %v308, %v299
  %v417 = vpack.c.b16 %v309, %v300
  %v418 = vpack.c.b16 %v310, %v301
  %v419 = vpack.c.b16 %v311, %v302
  %v420 = vpack.c.b16 %v312, %v303
  %v421 = vpack.c.b16 %v313, %v304
  %v422 = vpack.c.b16 %v323, %v314
  %v423 = vpack.c.b16 %v324, %v315
  %v424 = vpack.c.b16 %v325, %v316
  %v425 = vpack.c.b16 %v326, %v317
  %v426 = vpack.c.b16 %v327, %v318
  %v427 = vpack.c.b16 %v328, %v319
  %v428 = vpack.c.b16 %v329, %v320
  %v429 = vpack.c.b16 %v330, %v321
  %v430 = vpack.c.b16 %v331, %v322
  %v431 = vpack.c.b16 %v341, %v332
  %v432 = vpack.c.b16 %v342, %v333
  %v433 = vpack.c.b16 %v343, %v334
  %v434 = vpack.c.b16 %v344, %v335
  %v435 = vpack.c.b16 %v345, %v336
  %v436 = vpack.c.b16 %v346, %v337
  %v437 = vpack.c.b16 %v347, %v338
  %v438 = vpack.c.b16 %v348, %v339
  %v439 = vpack.c.b16 %v349, %v340
  %v440 = vpack.c.b16 %v359, %v350
  %v441 = vpack.c.b16 %v360, %v351
  %v442 = vpack.c.b16 %v361, %v352
  %v443 = vpack.c.b16 %v362, %v353
  %v444 = vpack.c.b16 %v363, %v354
  %v445 = vpack.c.b16 %v364, %v355
  %v446 = vpack.c.b16 %v365, %v356
  %v447 = vpack.c.b16 %v366, %v357
  %v448 = vpack.c.b16 %v367, %v358
  %v449 = vpack.c.b16 %v377, %v368
  %v450 = vpack.c.b16 %v378, %v369
  %v451 = vpack.c.b16 %v379, %v370
  %v452 = vpack.c.b16 %v380, %v371
  %v453 = vpack.c.b16 %v381, %v372
  %v454 = vpack.c.b16 %v382, %v373
  %v455 = vpack.c.b16 %v383, %v374
  %v456 = vpack.c.b16 %v384, %v375
  %v457 = vpack.c.b16 %v385, %v376
  %v458 = vpack.c.b16 %v395, %v386
  %v459 = vpack.c.b16 %v396, %v387
  %v460 = vpack.c.b16 %v397, %v388
  %v461 = vpack.c.b16 %v398, %v389
  %v462 = vpack.c.b16 %v399, %v390
  %v463 = vpack.c.b16 %v400, %v391
  %v464 = vpack.c.b16 %v401, %v392
  %v465 = vpack.c.b16 %v402, %v393
  %v466 = vpack.c.b16 %v403, %v394
  %v467 = vpack.c.b16 %v404, %v404
  %v468 = vpack.c.b16 %v405, %v405
  %v469 = vpack.c.b16 %v406, %v406
  %v470 = vpack.c.b16 %v407, %v407
  %v471 = vpack.c.b16 %v408, %v408
  %v472 = vpack.c.b16 %v409, %v409
  %v473 = vpack.c.b16 %v410, %v410
  %v474 = vpack.c.b16 %v411, %v411
  %v475 = vpack.c.b16 %v412, %v412
  %v683 = vunpack.c.l.b16 %v15
  %v684 = vunpack.c.l.b16 %v16
  %v685 = vunpack.c.l.b16 %v17
  %v686 = vunpack.c.l.b16 %v18
  %v687 = vunpack.c.l.b16 %v19
  %v688 = vunpack.c.l.b16 %v20
  %v689 = vunpack.c.l.b16 %v21
  %v690 = vunpack.c.l.b16 %v22
  %v691 = vunpack.c.l.b16 %v23
  %v692 = vunpack.c.l.b16 %v24
  %v693 = vunpack.c.l.b16 %v25
  %v694 = vunpack.c.l.b16 %v26
  %v695 = vunpack.c.l.b16 %v27
  %v696 = vunpack.c.l.b16 %v28
  %v697 = vunpack.c.l.b16 %v29
  %v698 = vunpack.c.l.b16 %v30
  %v699 = vunpack.c.l.b16 %v31
  %v700 = vunpack.c.l.b16 %v32
  %v701 = vunpack.c.l.b16 %v33
  %v702 = vunpack.c.l.b16 %v34
  %v703 = vunpack.c.l.b16 %v35
  %v704 = vunpack.c.l.b16 %v36
  %v705 = vunpack.c.l.b16 %v37
  %v706 = vunpack.c.l.b16 %v38
  %v707 = vunpack.c.l.b16 %v39
  %v708 = vunpack.c.l.b16 %v40
  %v709 = vunpack.c.l.b16 %v41
  %v710 = vunpack.c.l.b16 %v42
  %v711 = vunpack.c.l.b16 %v43
  %v712 = vunpack.c.l.b16 %v44
  %v713 = vunpack.c.l.b16 %v45
  %v714 = vunpack.c.l.b16 %v46
  %v715 = vunpack.c.l.b16 %v47
  %v716 = vunpack.c.l.b16 %v48
  %v717 = vunpack.c.l.b16 %v49
  %v718 = vunpack.c.l.b16 %v50
  %v719 = vunpack.c.l.b16 %v51
  %v720 = vunpack.c.l.b16 %v52
  %v721 = vunpack.c.l.b16 %v53
  %v722 = vunpack.c.l.b16 %v54
  %v723 = vunpack.c.l.b16 %v55
  %v724 = vunpack.c.l.b16 %v56
  %v725 = vunpack.c.l.b16 %v57
  %v726 = vunpack.c.l.b16 %v58
  %v727 = vunpack.c.l.b16 %v59
  %v728 = vunpack.c.l.b16 %v60
  %v729 = vunpack.c.l.b16 %v61
  %v730 = vunpack.c.l.b16 %v62
  %v731 = vunpack.c.l.b16 %v63
  %v732 = vunpack.c.l.b16 %v64
  %v733 = vunpack.c.l.b16 %v65
  %v734 = vunpack.c.l.b16 %v66
  %v735 = vunpack.c.l.b16 %v67
  %v736 = vunpack.c.l.b16 %v68
  %v737 = vunpack.c.l.b16 %v69
  %v738 = vunpack.c.l.b16 %v70
  %v739 = vunpack.c.l.b16 %v71
  %v740 = vunpack.c.l.b16 %v72
  %v741 = vunpack.c.l.b16 %v73
  %v742 = vunpack.c.l.b16 %v74
  %v743 = vunpack.c.l.b16 %v75
  %v744 = vunpack.c.l.b16 %v76
  %v745 = vunpack.c.l.b16 %v77
  %v746 = vunpack.c.l.b16 %v78
  %v747 = vunpack.c.l.b16 %v79
  %v748 = vunpack.c.l.b16 %v80
  %v749 = vunpack.c.l.b16 %v81
  %v750 = vunpack.c.l.b16 %v82
  %v751 = vunpack.c.l.b16 %v83
  %v752 = vunpack.c.l.b16 %v84
  %v753 = vunpack.c.l.b16 %v85
  %v754 = vunpack.c.l.b16 %v86
  %v755 = vunpack.c.l.b16 %v87
  %v756 = vunpack.c.l.b16 %v88
  %v757 = vunpack.c.l.b16 %v89
  %v758 = vunpack.c.l.b16 %v90
  %v759 = vunpack.c.l.b16 %v91
  %v760 = vunpack.c.l.b16 %v92
  %v761 = vunpack.c.l.b16 %v93
  %v762 = vunpack.c.l.b16 %v94
  %v763 = vunpack.c.l.b16 %v95
  %v764 = vunpack.c.l.b16 %v96
  %v765 = vunpack.c.l.b16 %v97
  %v766 = vunpack.c.l.b16 %v98
  %v767 = vunpack.c.l.b16 %v99
  %v768 = vunpack.c.l.b16 %v100
  %v769 = vunpack.c.l.b16 %v101
  %v770 = vunpack.c.l.b16 %v102
  %v771 = vunpack.c.l.b16 %v103
  %v772 = vunpack.c.l.b16 %v104
  %v773 = vunpack.c.l.b16 %v105
  %v774 = vunpack.c.l.b16 %v106
  %v775 = vunpack.c.l.b16 %v107
  %v776 = vunpack.c.l.b16 %v108
  %v777 = vunpack.c.l.b16 %v109
  %v778 = vunpack.c.l.b16 %v110
  %v779 = vunpack.c.l.b16 %v111
  %v780 = vunpack.c.l.b16 %v112
  %v781 = vunpack.c.l.b16 %v113
  %v782 = vunpack.c.l.b16 %v114
  %v783 = vunpack.c.l.b16 %v115
  %v784 = vunpack.c.l.b16 %v116
  %v785 = vunpack.c.l.b16 %v117
  %v786 = vunpack.c.l.b16 %v118
  %v787 = vunpack.c.l.b16 %v119
  %v788 = vunpack.c.l.b16 %v120
  %v789 = vunpack.c.l.b16 %v121
  %v790 = vunpack.c.l.b16 %v122
  %v791 = vunpack.c.l.b16 %v123
  %v792 = vunpack.c.l.b16 %v124
  %v793 = vunpack.c.l.b16 %v125
  %v794 = vunpack.c.l.b16 %v126
  %v795 = vunpack.c.l.b16 %v127
  %v796 = vunpack.c.l.b16 %v128
  %v797 = vunpack.c.l.b16 %v129
  %v798 = vunpack.c.l.b16 %v130
  %v799 = vunpack.c.l.b16 %v131
  %v800 = vunpack.c.l.b16 %v132
  %v801 = vunpack.c.l.b16 %v133
  %v802 = vunpack.c.l.b16 %v134
  %v803 = vunpack.c.l.b16 %v135
  %v804 = vunpack.c.l.b16 %v136
  %v805 = vunpack.c.l.b16 %v137
  %v806 = vunpack.c.l.b16 %v138
  %v807 = vunpack.c.l.b16 %v139
  %v808 = vunpack.c.l.b16 %v140
  %v809 = vunpack.c.l.b16 %v141
  %v810 = vunpack.c.l.b16 %v142
  %v811 = vunpack.c.l.b16 %v143
  %v812 = vunpack.c.l.b16 %v144
  %v813 = vunpack.c.l.b16 %v145
  %v814 = vunpack.c.l.b16 %v146
  %v815 = vunpack.c.l.b16 %v147
  %v816 = vunpack.c.l.b16 %v148
  %v817 = vunpack.c.l.b16 %v149
  %v818 = vunpack.c.l.b16 %v150
  %v819 = vunpack.c.l.b16 %v151
  %v820 = vunpack.c.l.b16 %v152
  %v821 = vunpack.c.l.b16 %v153
  %v822 = vunpack.c.l.b16 %v154
  %v823 = vunpack.c.l.b16 %v155
  %v824 = vunpack.c.l.b16 %v156
  %v825 = vunpack.c.l.b16 %v157
  %v826 = vunpack.c.l.b16 %v158
  %v827 = vpack.c.b16 %v684, %v683
  %v828 = vpack.c.b16 %v686, %v685
  %v829 = vpack.c.b16 %v688, %v687
  %v830 = vpack.c.b16 %v690, %v689
  %v831 = vpack.c.b16 %v692, %v691
  %v832 = vpack.c.b16 %v694, %v693
  %v833 = vpack.c.b16 %v696, %v695
  %v834 = vpack.c.b16 %v698, %v697
  %v835 = vpack.c.b16 %v700, %v699
  %v836 = vpack.c.b16 %v702, %v701
  %v837 = vpack.c.b16 %v704, %v703
  %v838 = vpack.c.b16 %v706, %v705
  %v839 = vpack.c.b16 %v708, %v707
  %v840 = vpack.c.b16 %v710, %v709
  %v841 = vpack.c.b16 %v712, %v711
  %v842 = vpack.c.b16 %v714, %v713
  %v843 = vpack.c.b16 %v716, %v715
  %v844 = vpack.c.b16 %v718, %v717
  %v845 = vpack.c.b16 %v720, %v719
  %v846 = vpack.c.b16 %v722, %v721
  %v847 = vpack.c.b16 %v724, %v723
  %v848 = vpack.c.b16 %v726, %v725
  %v849 = vpack.c.b16 %v728, %v727
  %v850 = vpack.c.b16 %v730, %v729
  %v851 = vpack.c.b16 %v732, %v731
  %v852 = vpack.c.b16 %v734, %v733
  %v853 = vpack.c.b16 %v736, %v735
  %v854 = vpack.c.b16 %v738, %v737
  %v855 = vpack.c.b16 %v740, %v739
  %v856 = vpack.c.b16 %v742, %v741
  %v857 = vpack.c.b16 %v744, %v743
  %v858 = vpack.c.b16 %v746, %v745
  %v859 = vpack.c.b16 %v748, %v747
  %v860 = vpack.c.b16 %v750, %v749
  %v861 = vpack.c.b16 %v752, %v751
  %v862 = vpack.c.b16 %v754, %v753
  %v863 = vpack.c.b16 %v756, %v755
  %v864 = vpack.c.b16 %v758, %v757
  %v865 = vpack.c.b16 %v760, %v759
  %v866 = vpack.c.b16 %v762, %v761
  %v867 = vpack.c.b16 %v764, %v763
  %v868 = vpack.c.b16 %v766, %v765
  %v869 = vpack.c.b16 %v768, %v767
  %v870 = vpack.c.b16 %v770, %v769
  %v871 = vpack.c.b16 %v772, %v771
  %v872 = vpack.c.b16 %v774, %v773
  %v873 = vpack.c.b16 %v776, %v775
  %v874 = vpack.c.b16 %v778, %v777
  %v875 = vpack.c.b16 %v780, %v779
  %v876 = vpack.c.b16 %v782, %v781
  %v877 = vpack.c.b16 %v784, %v783
  %v878 = vpack.c.b16 %v786, %v785
  %v879 = vpack.c.b16 %v788, %v787
  %v880 = vpack.c.b16 %v790, %v789
  %v881 = vpack.c.b16 %v792, %v791
  %v882 = vpack.c.b16 %v794, %v793
  %v883 = vpack.c.b16 %v796, %v795
  %v884 = vpack.c.b16 %v798, %v797
  %v885 = vpack.c.b16 %v800, %v799
  %v886 = vpack.c.b16 %v802, %v801
  %v887 = vpack.c.b16 %v804, %v803
  %v888 = vpack.c.b16 %v806, %v805
  %v889 = vpack.c.b16 %v808, %v807
  %v890 = vpack.c.b16 %v810, %v809
  %v891 = vpack.c.b16 %v812, %v811
  %v892 = vpack.c.b16 %v814, %v813
  %v893 = vpack.c.b16 %v816, %v815
  %v894 = vpack.c.b16 %v818, %v817
  %v895 = vpack.c.b16 %v820, %v819
  %v896 = vpack.c.b16 %v822, %v821
  %v897 = vpack.c.b16 %v824, %v823
  %v898 = vpack.c.b16 %v826, %v825
  %971 = vmatprep.subr.bf16.mxu0 0
  %972 = vmatpush1.bf16.msra.mxu0 %v834
  %973 = vmatprep.subr.bf16.mxu0 0
  %974 = vmatpush1.bf16.msra.mxu0 %v833
  %975 = vmatprep.subr.bf16.mxu0 0
  %976 = vmatpush1.bf16.msra.mxu0 %v832
  %977 = vmatprep.subr.bf16.mxu0 0
  %978 = vmatpush1.bf16.msra.mxu0 %v831
  %979 = vmatprep.subr.bf16.mxu0 0
  %980 = vmatpush1.bf16.msra.mxu0 %v830
  %981 = vmatprep.subr.bf16.mxu0 0
  %982 = vmatpush1.bf16.msra.mxu0 %v829
  %983 = vmatprep.subr.bf16.mxu0 0
  %984 = vmatpush1.bf16.msra.mxu0 %v828
  %985 = vmatprep.subr.bf16.mxu0 0
  %986 = vmatpush1.bf16.msra.mxu0 %v827
  %987 = vmatprep.subr.bf16.mxu0 0
  %988 = vmatpush2.bf16.msra.mxu0 %v842
  %989 = vmatprep.subr.bf16.mxu0 0
  %990 = vmatpush2.bf16.msra.mxu0 %v841
  %991 = vmatprep.subr.bf16.mxu0 0
  %992 = vmatpush2.bf16.msra.mxu0 %v840
  %993 = vmatprep.subr.bf16.mxu0 0
  %994 = vmatpush2.bf16.msra.mxu0 %v839
  %995 = vmatprep.subr.bf16.mxu0 0
  %996 = vmatpush2.bf16.msra.mxu0 %v838
  %997 = vmatprep.subr.bf16.mxu0 0
  %998 = vmatpush2.bf16.msra.mxu0 %v837
  %999 = vmatprep.subr.bf16.mxu0 0
  %1000 = vmatpush2.bf16.msra.mxu0 %v836
  %1001 = vmatprep.subr.bf16.mxu0 0
  %1002 = vmatpush2.bf16.msra.mxu0 %v835
  %1003 = vmatprep.mubr.bf16.mxu0 %v414
  %1004 = vmatmul.mubr.bf16.gmra.mxu0 %v413
  %v1005 = vpop.f32.mrf.mxu0
  %v1006 = vadd.f32 %v229, %v1005
  %v1007 = vpop.f32.mrf.mxu0
  %v1008 = vpop.f32.mrf.mxu0
  %v1009 = vadd.f32 %v229, %v1008
  %v1010 = vpop.f32.mrf.mxu0
  %1011 = vmatprep.mubr.bf16.mxu0 %v423
  %1012 = vmatmul.mubr.bf16.gmra.mxu0 %v422
  %v1013 = vpop.f32.mrf.mxu0
  %v1014 = vadd.f32 %v229, %v1013
  %v1015 = vpop.f32.mrf.mxu0
  %v1016 = vpop.f32.mrf.mxu0
  %v1017 = vadd.f32 %v229, %v1016
  %v1018 = vpop.f32.mrf.mxu0
  %1019 = vmatprep.mubr.bf16.mxu0 %v432
  %1020 = vmatmul.mubr.bf16.gmra.mxu0 %v431
  %v1021 = vpop.f32.mrf.mxu0
  %v1022 = vadd.f32 %v229, %v1021
  %v1023 = vpop.f32.mrf.mxu0
  %v1024 = vpop.f32.mrf.mxu0
  %v1025 = vadd.f32 %v229, %v1024
  %v1026 = vpop.f32.mrf.mxu0
  %1027 = vmatprep.mubr.bf16.mxu0 %v441
  %1028 = vmatmul.mubr.bf16.gmra.mxu0 %v440
  %v1029 = vpop.f32.mrf.mxu0
  %v1030 = vadd.f32 %v229, %v1029
  %v1031 = vpop.f32.mrf.mxu0
  %v1032 = vpop.f32.mrf.mxu0
  %v1033 = vadd.f32 %v229, %v1032
  %v1034 = vpop.f32.mrf.mxu0
  %1035 = vmatprep.mubr.bf16.mxu0 %v450
  %1036 = vmatmul.mubr.bf16.gmra.mxu0 %v449
  %v1037 = vpop.f32.mrf.mxu0
  %v1038 = vadd.f32 %v229, %v1037
  %v1039 = vpop.f32.mrf.mxu0
  %v1040 = vpop.f32.mrf.mxu0
  %v1041 = vadd.f32 %v229, %v1040
  %v1042 = vpop.f32.mrf.mxu0
  %1043 = vmatprep.mubr.bf16.mxu0 %v459
  %1044 = vmatmul.mubr.bf16.gmra.mxu0 %v458
  %v1045 = vpop.f32.mrf.mxu0
  %v1046 = vadd.f32 %v229, %v1045
  %v1047 = vpop.f32.mrf.mxu0
  %v1048 = vpop.f32.mrf.mxu0
  %v1049 = vadd.f32 %v229, %v1048
  %v1050 = vpop.f32.mrf.mxu0
  %1051 = vmatprep.mubr.bf16.mxu0 %v468
  %1052 = vmatmul.mubr.bf16.gmra.mxu0 %v467
  %v1053 = vpop.f32.mrf.mxu0
  %v1054 = vadd.f32 %v229, %v1053
  %v1055 = vpop.f32.mrf.mxu0
  %v1056 = vpop.f32.mrf.mxu0
  %v1057 = vpop.f32.mrf.mxu0
  %1058 = vdwg.mxu0
  %1059 = vmatprep.subr.bf16.mxu0 0
  %1060 = vmatpush1.bf16.msra.mxu0 %v850
  %1061 = vmatprep.subr.bf16.mxu0 0
  %1062 = vmatpush1.bf16.msra.mxu0 %v849
  %1063 = vmatprep.subr.bf16.mxu0 0
  %1064 = vmatpush1.bf16.msra.mxu0 %v848
  %1065 = vmatprep.subr.bf16.mxu0 0
  %1066 = vmatpush1.bf16.msra.mxu0 %v847
  %1067 = vmatprep.subr.bf16.mxu0 0
  %1068 = vmatpush1.bf16.msra.mxu0 %v846
  %1069 = vmatprep.subr.bf16.mxu0 0
  %1070 = vmatpush1.bf16.msra.mxu0 %v845
  %1071 = vmatprep.subr.bf16.mxu0 0
  %1072 = vmatpush1.bf16.msra.mxu0 %v844
  %1073 = vmatprep.subr.bf16.mxu0 0
  %1074 = vmatpush1.bf16.msra.mxu0 %v843
  %1075 = vmatprep.subr.bf16.mxu0 0
  %1076 = vmatpush2.bf16.msra.mxu0 %v858
  %1077 = vmatprep.subr.bf16.mxu0 0
  %1078 = vmatpush2.bf16.msra.mxu0 %v857
  %1079 = vmatprep.subr.bf16.mxu0 0
  %1080 = vmatpush2.bf16.msra.mxu0 %v856
  %1081 = vmatprep.subr.bf16.mxu0 0
  %1082 = vmatpush2.bf16.msra.mxu0 %v855
  %1083 = vmatprep.subr.bf16.mxu0 0
  %1084 = vmatpush2.bf16.msra.mxu0 %v854
  %1085 = vmatprep.subr.bf16.mxu0 0
  %1086 = vmatpush2.bf16.msra.mxu0 %v853
  %1087 = vmatprep.subr.bf16.mxu0 0
  %1088 = vmatpush2.bf16.msra.mxu0 %v852
  %1089 = vmatprep.subr.bf16.mxu0 0
  %1090 = vmatpush2.bf16.msra.mxu0 %v851
  %1091 = vmatprep.mubr.bf16.mxu0 %v416
  %1092 = vmatmul.mubr.bf16.gmra.mxu0 %v415
  %v1093 = vpop.f32.mrf.mxu0
  %v1094 = vadd.f32 %v1006, %v1093
  %v1095 = vpop.f32.mrf.mxu0
  %v1096 = vpop.f32.mrf.mxu0
  %v1097 = vadd.f32 %v1009, %v1096
  %v1098 = vpop.f32.mrf.mxu0
  %1099 = vmatprep.mubr.bf16.mxu0 %v425
  %1100 = vmatmul.mubr.bf16.gmra.mxu0 %v424
  %v1101 = vpop.f32.mrf.mxu0
  %v1102 = vadd.f32 %v1014, %v1101
  %v1103 = vpop.f32.mrf.mxu0
  %v1104 = vpop.f32.mrf.mxu0
  %v1105 = vadd.f32 %v1017, %v1104
  %v1106 = vpop.f32.mrf.mxu0
  %1107 = vmatprep.mubr.bf16.mxu0 %v434
  %1108 = vmatmul.mubr.bf16.gmra.mxu0 %v433
  %v1109 = vpop.f32.mrf.mxu0
  %v1110 = vadd.f32 %v1022, %v1109
  %v1111 = vpop.f32.mrf.mxu0
  %v1112 = vpop.f32.mrf.mxu0
  %v1113 = vadd.f32 %v1025, %v1112
  %v1114 = vpop.f32.mrf.mxu0
  %1115 = vmatprep.mubr.bf16.mxu0 %v443
  %1116 = vmatmul.mubr.bf16.gmra.mxu0 %v442
  %v1117 = vpop.f32.mrf.mxu0
  %v1118 = vadd.f32 %v1030, %v1117
  %v1119 = vpop.f32.mrf.mxu0
  %v1120 = vpop.f32.mrf.mxu0
  %v1121 = vadd.f32 %v1033, %v1120
  %v1122 = vpop.f32.mrf.mxu0
  %1123 = vmatprep.mubr.bf16.mxu0 %v452
  %1124 = vmatmul.mubr.bf16.gmra.mxu0 %v451
  %v1125 = vpop.f32.mrf.mxu0
  %v1126 = vadd.f32 %v1038, %v1125
  %v1127 = vpop.f32.mrf.mxu0
  %v1128 = vpop.f32.mrf.mxu0
  %v1129 = vadd.f32 %v1041, %v1128
  %v1130 = vpop.f32.mrf.mxu0
  %1131 = vmatprep.mubr.bf16.mxu0 %v461
  %1132 = vmatmul.mubr.bf16.gmra.mxu0 %v460
  %v1133 = vpop.f32.mrf.mxu0
  %v1134 = vadd.f32 %v1046, %v1133
  %v1135 = vpop.f32.mrf.mxu0
  %v1136 = vpop.f32.mrf.mxu0
  %v1137 = vadd.f32 %v1049, %v1136
  %v1138 = vpop.f32.mrf.mxu0
  %1139 = vmatprep.mubr.bf16.mxu0 %v470
  %1140 = vmatmul.mubr.bf16.gmra.mxu0 %v469
  %v1141 = vpop.f32.mrf.mxu0
  %v1142 = vadd.f32 %v1054, %v1141
  %v1143 = vpop.f32.mrf.mxu0
  %v1144 = vpop.f32.mrf.mxu0
  %v1145 = vpop.f32.mrf.mxu0
  %1146 = vdwg.mxu0
  %1147 = vmatprep.subr.bf16.mxu0 0
  %1148 = vmatpush1.bf16.msra.mxu0 %v866
  %1149 = vmatprep.subr.bf16.mxu0 0
  %1150 = vmatpush1.bf16.msra.mxu0 %v865
  %1151 = vmatprep.subr.bf16.mxu0 0
  %1152 = vmatpush1.bf16.msra.mxu0 %v864
  %1153 = vmatprep.subr.bf16.mxu0 0
  %1154 = vmatpush1.bf16.msra.mxu0 %v863
  %1155 = vmatprep.subr.bf16.mxu0 0
  %1156 = vmatpush1.bf16.msra.mxu0 %v862
  %1157 = vmatprep.subr.bf16.mxu0 0
  %1158 = vmatpush1.bf16.msra.mxu0 %v861
  %1159 = vmatprep.subr.bf16.mxu0 0
  %1160 = vmatpush1.bf16.msra.mxu0 %v860
  %1161 = vmatprep.subr.bf16.mxu0 0
  %1162 = vmatpush1.bf16.msra.mxu0 %v859
  %1163 = vmatprep.subr.bf16.mxu0 0
  %1164 = vmatpush2.bf16.msra.mxu0 %v874
  %1165 = vmatprep.subr.bf16.mxu0 0
  %1166 = vmatpush2.bf16.msra.mxu0 %v873
  %1167 = vmatprep.subr.bf16.mxu0 0
  %1168 = vmatpush2.bf16.msra.mxu0 %v872
  %1169 = vmatprep.subr.bf16.mxu0 0
  %1170 = vmatpush2.bf16.msra.mxu0 %v871
  %1171 = vmatprep.subr.bf16.mxu0 0
  %1172 = vmatpush2.bf16.msra.mxu0 %v870
  %1173 = vmatprep.subr.bf16.mxu0 0
  %1174 = vmatpush2.bf16.msra.mxu0 %v869
  %1175 = vmatprep.subr.bf16.mxu0 0
  %1176 = vmatpush2.bf16.msra.mxu0 %v868
  %1177 = vmatprep.subr.bf16.mxu0 0
  %1178 = vmatpush2.bf16.msra.mxu0 %v867
  %1179 = vmatprep.mubr.bf16.mxu0 %v418
  %1180 = vmatmul.mubr.bf16.gmra.mxu0 %v417
  %v1181 = vpop.f32.mrf.mxu0
  %v1182 = vadd.f32 %v1094, %v1181
  %v1183 = vpop.f32.mrf.mxu0
  %v1184 = vpop.f32.mrf.mxu0
  %v1185 = vadd.f32 %v1097, %v1184
  %v1186 = vpop.f32.mrf.mxu0
  %1187 = vmatprep.mubr.bf16.mxu0 %v427
  %1188 = vmatmul.mubr.bf16.gmra.mxu0 %v426
  %v1189 = vpop.f32.mrf.mxu0
  %v1190 = vadd.f32 %v1102, %v1189
  %v1191 = vpop.f32.mrf.mxu0
  %v1192 = vpop.f32.mrf.mxu0
  %v1193 = vadd.f32 %v1105, %v1192
  %v1194 = vpop.f32.mrf.mxu0
  %1195 = vmatprep.mubr.bf16.mxu0 %v436
  %1196 = vmatmul.mubr.bf16.gmra.mxu0 %v435
  %v1197 = vpop.f32.mrf.mxu0
  %v1198 = vadd.f32 %v1110, %v1197
  %v1199 = vpop.f32.mrf.mxu0
  %v1200 = vpop.f32.mrf.mxu0
  %v1201 = vadd.f32 %v1113, %v1200
  %v1202 = vpop.f32.mrf.mxu0
  %1203 = vmatprep.mubr.bf16.mxu0 %v445
  %1204 = vmatmul.mubr.bf16.gmra.mxu0 %v444
  %v1205 = vpop.f32.mrf.mxu0
  %v1206 = vadd.f32 %v1118, %v1205
  %v1207 = vpop.f32.mrf.mxu0
  %v1208 = vpop.f32.mrf.mxu0
  %v1209 = vadd.f32 %v1121, %v1208
  %v1210 = vpop.f32.mrf.mxu0
  %1211 = vmatprep.mubr.bf16.mxu0 %v454
  %1212 = vmatmul.mubr.bf16.gmra.mxu0 %v453
  %v1213 = vpop.f32.mrf.mxu0
  %v1214 = vadd.f32 %v1126, %v1213
  %v1215 = vpop.f32.mrf.mxu0
  %v1216 = vpop.f32.mrf.mxu0
  %v1217 = vadd.f32 %v1129, %v1216
  %v1218 = vpop.f32.mrf.mxu0
  %1219 = vmatprep.mubr.bf16.mxu0 %v463
  %1220 = vmatmul.mubr.bf16.gmra.mxu0 %v462
  %v1221 = vpop.f32.mrf.mxu0
  %v1222 = vadd.f32 %v1134, %v1221
  %v1223 = vpop.f32.mrf.mxu0
  %v1224 = vpop.f32.mrf.mxu0
  %v1225 = vadd.f32 %v1137, %v1224
  %v1226 = vpop.f32.mrf.mxu0
  %1227 = vmatprep.mubr.bf16.mxu0 %v472
  %1228 = vmatmul.mubr.bf16.gmra.mxu0 %v471
  %v1229 = vpop.f32.mrf.mxu0
  %v1230 = vadd.f32 %v1142, %v1229
  %v1231 = vpop.f32.mrf.mxu0
  %v1232 = vpop.f32.mrf.mxu0
  %v1233 = vpop.f32.mrf.mxu0
  %1234 = vdwg.mxu0
  %1235 = vmatprep.subr.bf16.mxu0 0
  %1236 = vmatpush1.bf16.msra.mxu0 %v882
  %1237 = vmatprep.subr.bf16.mxu0 0
  %1238 = vmatpush1.bf16.msra.mxu0 %v881
  %1239 = vmatprep.subr.bf16.mxu0 0
  %1240 = vmatpush1.bf16.msra.mxu0 %v880
  %1241 = vmatprep.subr.bf16.mxu0 0
  %1242 = vmatpush1.bf16.msra.mxu0 %v879
  %1243 = vmatprep.subr.bf16.mxu0 0
  %1244 = vmatpush1.bf16.msra.mxu0 %v878
  %1245 = vmatprep.subr.bf16.mxu0 0
  %1246 = vmatpush1.bf16.msra.mxu0 %v877
  %1247 = vmatprep.subr.bf16.mxu0 0
  %1248 = vmatpush1.bf16.msra.mxu0 %v876
  %1249 = vmatprep.subr.bf16.mxu0 0
  %1250 = vmatpush1.bf16.msra.mxu0 %v875
  %1251 = vmatprep.subr.bf16.mxu0 0
  %1252 = vmatpush2.bf16.msra.mxu0 %v890
  %1253 = vmatprep.subr.bf16.mxu0 0
  %1254 = vmatpush2.bf16.msra.mxu0 %v889
  %1255 = vmatprep.subr.bf16.mxu0 0
  %1256 = vmatpush2.bf16.msra.mxu0 %v888
  %1257 = vmatprep.subr.bf16.mxu0 0
  %1258 = vmatpush2.bf16.msra.mxu0 %v887
  %1259 = vmatprep.subr.bf16.mxu0 0
  %1260 = vmatpush2.bf16.msra.mxu0 %v886
  %1261 = vmatprep.subr.bf16.mxu0 0
  %1262 = vmatpush2.bf16.msra.mxu0 %v885
  %1263 = vmatprep.subr.bf16.mxu0 0
  %1264 = vmatpush2.bf16.msra.mxu0 %v884
  %1265 = vmatprep.subr.bf16.mxu0 0
  %1266 = vmatpush2.bf16.msra.mxu0 %v883
  %1267 = vmatprep.mubr.bf16.mxu0 %v420
  %1268 = vmatmul.mubr.bf16.gmra.mxu0 %v419
  %v1269 = vpop.f32.mrf.mxu0
  %v1270 = vadd.f32 %v1182, %v1269
  %v1271 = vpop.f32.mrf.mxu0
  %v1272 = vpop.f32.mrf.mxu0
  %v1273 = vadd.f32 %v1185, %v1272
  %v1274 = vpop.f32.mrf.mxu0
  %1275 = vmatprep.mubr.bf16.mxu0 %v429
  %1276 = vmatmul.mubr.bf16.gmra.mxu0 %v428
  %v1277 = vpop.f32.mrf.mxu0
  %v1278 = vadd.f32 %v1190, %v1277
  %v1279 = vpop.f32.mrf.mxu0
  %v1280 = vpop.f32.mrf.mxu0
  %v1281 = vadd.f32 %v1193, %v1280
  %v1282 = vpop.f32.mrf.mxu0
  %1283 = vmatprep.mubr.bf16.mxu0 %v438
  %1284 = vmatmul.mubr.bf16.gmra.mxu0 %v437
  %v1285 = vpop.f32.mrf.mxu0
  %v1286 = vadd.f32 %v1198, %v1285
  %v1287 = vpop.f32.mrf.mxu0
  %v1288 = vpop.f32.mrf.mxu0
  %v1289 = vadd.f32 %v1201, %v1288
  %v1290 = vpop.f32.mrf.mxu0
  %1291 = vmatprep.mubr.bf16.mxu0 %v447
  %1292 = vmatmul.mubr.bf16.gmra.mxu0 %v446
  %v1293 = vpop.f32.mrf.mxu0
  %v1294 = vadd.f32 %v1206, %v1293
  %v1295 = vpop.f32.mrf.mxu0
  %v1296 = vpop.f32.mrf.mxu0
  %v1297 = vadd.f32 %v1209, %v1296
  %v1298 = vpop.f32.mrf.mxu0
  %1299 = vmatprep.mubr.bf16.mxu0 %v456
  %1300 = vmatmul.mubr.bf16.gmra.mxu0 %v455
  %v1301 = vpop.f32.mrf.mxu0
  %v1302 = vadd.f32 %v1214, %v1301
  %v1303 = vpop.f32.mrf.mxu0
  %v1304 = vpop.f32.mrf.mxu0
  %v1305 = vadd.f32 %v1217, %v1304
  %v1306 = vpop.f32.mrf.mxu0
  %1307 = vmatprep.mubr.bf16.mxu0 %v465
  %1308 = vmatmul.mubr.bf16.gmra.mxu0 %v464
  %v1309 = vpop.f32.mrf.mxu0
  %v1310 = vadd.f32 %v1222, %v1309
  %v1311 = vpop.f32.mrf.mxu0
  %v1312 = vpop.f32.mrf.mxu0
  %v1313 = vadd.f32 %v1225, %v1312
  %v1314 = vpop.f32.mrf.mxu0
  %1315 = vmatprep.mubr.bf16.mxu0 %v474
  %1316 = vmatmul.mubr.bf16.gmra.mxu0 %v473
  %v1317 = vpop.f32.mrf.mxu0
  %v1318 = vadd.f32 %v1230, %v1317
  %v1319 = vpop.f32.mrf.mxu0
  %v1320 = vpop.f32.mrf.mxu0
  %v1321 = vpop.f32.mrf.mxu0
  %1322 = vdwg.mxu0
  %1323 = vmatprep.subr.bf16.mxu0 0
  %1324 = vmatpush1.bf16.msra.mxu0 %v898
  %1325 = vmatprep.subr.bf16.mxu0 0
  %1326 = vmatpush1.bf16.msra.mxu0 %v897
  %1327 = vmatprep.subr.bf16.mxu0 0
  %1328 = vmatpush1.bf16.msra.mxu0 %v896
  %1329 = vmatprep.subr.bf16.mxu0 0
  %1330 = vmatpush1.bf16.msra.mxu0 %v895
  %1331 = vmatprep.subr.bf16.mxu0 0
  %1332 = vmatpush1.bf16.msra.mxu0 %v894
  %1333 = vmatprep.subr.bf16.mxu0 0
  %1334 = vmatpush1.bf16.msra.mxu0 %v893
  %1335 = vmatprep.subr.bf16.mxu0 0
  %1336 = vmatpush1.bf16.msra.mxu0 %v892
  %1337 = vmatprep.subr.bf16.mxu0 0
  %1338 = vmatpush1.bf16.msra.mxu0 %v891
  %1339 = vmatprep.subr.bf16.mxu0 0
  %1340 = vmatpush2.bf16.msra.mxu0 0
  %1341 = vmatprep.subr.bf16.mxu0 0
  %1342 = vmatpush2.bf16.msra.mxu0 0
  %1343 = vmatprep.subr.bf16.mxu0 0
  %1344 = vmatpush2.bf16.msra.mxu0 0
  %1345 = vmatprep.subr.bf16.mxu0 0
  %1346 = vmatpush2.bf16.msra.mxu0 0
  %1347 = vmatprep.subr.bf16.mxu0 0
  %1348 = vmatpush2.bf16.msra.mxu0 0
  %1349 = vmatprep.subr.bf16.mxu0 0
  %1350 = vmatpush2.bf16.msra.mxu0 0
  %1351 = vmatprep.subr.bf16.mxu0 0
  %1352 = vmatpush2.bf16.msra.mxu0 0
  %1353 = vmatprep.subr.bf16.mxu0 0
  %1354 = vmatpush2.bf16.msra.mxu0 0
  %1355 = vmatprep.mubr.bf16.mxu0 0
  %1356 = vmatmul.mubr.bf16.gmra.mxu0 %v421
  %v1357 = vpop.f32.mrf.mxu0
  %v1358 = vadd.f32 %v1270, %v1357
  %v1359 = vpop.f32.mrf.mxu0
  %v1360 = vpop.f32.mrf.mxu0
  %v1361 = vadd.f32 %v1273, %v1360
  %v1362 = vpop.f32.mrf.mxu0
  %1363 = vmatprep.mubr.bf16.mxu0 0
  %1364 = vmatmul.mubr.bf16.gmra.mxu0 %v430
  %v1365 = vpop.f32.mrf.mxu0
  %v1366 = vadd.f32 %v1278, %v1365
  %v1367 = vpop.f32.mrf.mxu0
  %v1368 = vpop.f32.mrf.mxu0
  %v1369 = vadd.f32 %v1281, %v1368
  %v1370 = vpop.f32.mrf.mxu0
  %1371 = vmatprep.mubr.bf16.mxu0 0
  %1372 = vmatmul.mubr.bf16.gmra.mxu0 %v439
  %v1373 = vpop.f32.mrf.mxu0
  %v1374 = vadd.f32 %v1286, %v1373
  %v1375 = vpop.f32.mrf.mxu0
  %v1376 = vpop.f32.mrf.mxu0
  %v1377 = vadd.f32 %v1289, %v1376
  %v1378 = vpop.f32.mrf.mxu0
  %1379 = vmatprep.mubr.bf16.mxu0 0
  %1380 = vmatmul.mubr.bf16.gmra.mxu0 %v448
  %v1381 = vpop.f32.mrf.mxu0
  %v1382 = vadd.f32 %v1294, %v1381
  %v1383 = vpop.f32.mrf.mxu0
  %v1384 = vpop.f32.mrf.mxu0
  %v1385 = vadd.f32 %v1297, %v1384
  %v1386 = vpop.f32.mrf.mxu0
  %1387 = vmatprep.mubr.bf16.mxu0 0
  %1388 = vmatmul.mubr.bf16.gmra.mxu0 %v457
  %v1389 = vpop.f32.mrf.mxu0
  %v1390 = vadd.f32 %v1302, %v1389
  %v1391 = vpop.f32.mrf.mxu0
  %v1392 = vpop.f32.mrf.mxu0
  %v1393 = vadd.f32 %v1305, %v1392
  %v1394 = vpop.f32.mrf.mxu0
  %1395 = vmatprep.mubr.bf16.mxu0 0
  %1396 = vmatmul.mubr.bf16.gmra.mxu0 %v466
  %v1397 = vpop.f32.mrf.mxu0
  %v1398 = vadd.f32 %v1310, %v1397
  %v1399 = vpop.f32.mrf.mxu0
  %v1400 = vpop.f32.mrf.mxu0
  %v1401 = vadd.f32 %v1313, %v1400
  %v1402 = vpop.f32.mrf.mxu0
  %1403 = vmatprep.mubr.bf16.mxu0 0
  %1404 = vmatmul.mubr.bf16.gmra.mxu0 %v475
  %v1405 = vpop.f32.mrf.mxu0
  %v1406 = vadd.f32 %v1318, %v1405
  %v1407 = vpop.f32.mrf.mxu0
  %v1408 = vpop.f32.mrf.mxu0
  %v1409 = vpop.f32.mrf.mxu0
  %1410 = vdwg.mxu0
  %v1411 = vmax.f32 %v1358, 0.0
  %v1412 = vmax.f32 %v1361, 0.0
  %v1413 = vmax.f32 %v1366, 0.0
  %v1414 = vmax.f32 %v1369, 0.0
  %v1415 = vmax.f32 %v1374, 0.0
  %v1416 = vmax.f32 %v1377, 0.0
  %v1417 = vmax.f32 %v1382, 0.0
  %v1418 = vmax.f32 %v1385, 0.0
  %v1419 = vmax.f32 %v1390, 0.0
  %v1420 = vmax.f32 %v1393, 0.0
  %v1421 = vmax.f32 %v1398, 0.0
  %v1422 = vmax.f32 %v1401, 0.0
  %v1423 = vmax.f32 %v1406, 0.0
  %s1424 = scalar_lea.vmem %s0, 468
  %v1425 = vld [vmem:[%s1424] sm:$0xff]
  %v1426 = vld [vmem:[%s1424 + $0x8] sm:$0xff]
  %v1427 = vld [vmem:[%s1424 + $0x10] sm:$0xff]
  %v1428 = vld [vmem:[%s1424 + $0x18] sm:$0xff]
  %v1429 = vld [vmem:[%s1424 + $0x20] sm:$0xf]
  %v1430 = vld [vmem:[%s1424 + $0x24] sm:$0xff]
  %v1431 = vld [vmem:[%s1424 + $0x2c] sm:$0xff]
  %v1432 = vld [vmem:[%s1424 + $0x34] sm:$0xff]
  %v1433 = vld [vmem:[%s1424 + $0x3c] sm:$0xff]
  %v1434 = vld [vmem:[%s1424 + $0x44] sm:$0xf]
  %v1435 = vld [vmem:[%s1424 + $0x48] sm:$0xff]
  %v1436 = vld [vmem:[%s1424 + $0x50] sm:$0xff]
  %v1437 = vld [vmem:[%s1424 + $0x58] sm:$0xff]
  %v1438 = vld [vmem:[%s1424 + $0x60] sm:$0xff]
  %v1439 = vld [vmem:[%s1424 + $0x68] sm:$0xf]
  %v1440 = vld [vmem:[%s1424 + $0x6c] sm:$0xff]
  %v1441 = vld [vmem:[%s1424 + $0x74] sm:$0xff]
  %v1442 = vld [vmem:[%s1424 + $0x7c] sm:$0xff]
  %v1443 = vld [vmem:[%s1424 + $0x84] sm:$0xff]
  %v1444 = vld [vmem:[%s1424 + $0x8c] sm:$0xf]
  %v1445 = vld [vmem:[%s1424 + $0x90] sm:$0xff]
  %v1446 = vld [vmem:[%s1424 + $0x98] sm:$0xff]
  %v1447 = vld [vmem:[%s1424 + $0xa0] sm:$0xff]
  %v1448 = vld [vmem:[%s1424 + $0xa8] sm:$0xff]
  %v1449 = vld [vmem:[%s1424 + $0xb0] sm:$0xf]
  %v1450 = vld [vmem:[%s1424 + $0xb4] sm:$0xff]
  %v1451 = vld [vmem:[%s1424 + $0xbc] sm:$0xff]
  %v1452 = vld [vmem:[%s1424 + $0xc4] sm:$0xff]
  %v1453 = vld [vmem:[%s1424 + $0xcc] sm:$0xff]
  %v1454 = vld [vmem:[%s1424 + $0xd4] sm:$0xf]
  %v1455 = vld [vmem:[%s1424 + $0xd8] sm:$0xff]
  %v1456 = vld [vmem:[%s1424 + $0xe0] sm:$0xff]
  %v1457 = vld [vmem:[%s1424 + $0xe8] sm:$0xff]
  %v1458 = vld [vmem:[%s1424 + $0xf0] sm:$0xff]
  %v1459 = vld [vmem:[%s1424 + $0xf8] sm:$0xf]
  %v1460 = vld [vmem:[%s1424 + $0xfc] sm:$0xff]
  %v1461 = vld [vmem:[%s1424 + $0x104] sm:$0xff]
  %v1462 = vld [vmem:[%s1424 + $0x10c] sm:$0xff]
  %v1463 = vld [vmem:[%s1424 + $0x114] sm:$0xff]
  %v1464 = vld [vmem:[%s1424 + $0x11c] sm:$0xf]
  %v1465 = vld [vmem:[%s1424 + $0x120] sm:$0xff]
  %v1466 = vld [vmem:[%s1424 + $0x128] sm:$0xff]
  %v1467 = vld [vmem:[%s1424 + $0x130] sm:$0xff]
  %v1468 = vld [vmem:[%s1424 + $0x138] sm:$0xff]
  %v1469 = vld [vmem:[%s1424 + $0x140] sm:$0xf]
  %v1470 = vld [vmem:[%s1424 + $0x144] sm:$0xff]
  %v1471 = vld [vmem:[%s1424 + $0x14c] sm:$0xff]
  %v1472 = vld [vmem:[%s1424 + $0x154] sm:$0xff]
  %v1473 = vld [vmem:[%s1424 + $0x15c] sm:$0xff]
  %v1474 = vld [vmem:[%s1424 + $0x164] sm:$0xf]
  %v1475 = vld [vmem:[%s1424 + $0x168] sm:$0xff]
  %v1476 = vld [vmem:[%s1424 + $0x170] sm:$0xff]
  %v1477 = vld [vmem:[%s1424 + $0x178] sm:$0xff]
  %v1478 = vld [vmem:[%s1424 + $0x180] sm:$0xff]
  %v1479 = vld [vmem:[%s1424 + $0x188] sm:$0xf]
  %v1480 = vld [vmem:[%s1424 + $0x18c] sm:$0xff]
  %v1481 = vld [vmem:[%s1424 + $0x194] sm:$0xff]
  %v1482 = vld [vmem:[%s1424 + $0x19c] sm:$0xff]
  %v1483 = vld [vmem:[%s1424 + $0x1a4] sm:$0xff]
  %v1484 = vld [vmem:[%s1424 + $0x1ac] sm:$0xf]
  %v1485 = vld [vmem:[%s1424 + $0x1b0] sm:$0x11]
  %v1486 = vld [vmem:[%s1424 + $0x1b8] sm:$0x11]
  %v1487 = vld [vmem:[%s1424 + $0x1c0] sm:$0x11]
  %v1488 = vld [vmem:[%s1424 + $0x1c8] sm:$0x11]
  %v1489 = vld [vmem:[%s1424 + $0x1d0] sm:$0x1]
  %v1555 = vunpack.c.l.b16 %v1425
  %v1556 = vunpack.c.h.b16 %v1425
  %v1557 = vunpack.c.l.b16 %v1426
  %v1558 = vunpack.c.h.b16 %v1426
  %v1559 = vunpack.c.l.b16 %v1427
  %v1560 = vunpack.c.h.b16 %v1427
  %v1561 = vunpack.c.l.b16 %v1428
  %v1562 = vunpack.c.h.b16 %v1428
  %v1563 = vunpack.c.l.b16 %v1429
  %v1564 = vunpack.c.l.b16 %v1430
  %v1565 = vunpack.c.h.b16 %v1430
  %v1566 = vunpack.c.l.b16 %v1431
  %v1567 = vunpack.c.h.b16 %v1431
  %v1568 = vunpack.c.l.b16 %v1432
  %v1569 = vunpack.c.h.b16 %v1432
  %v1570 = vunpack.c.l.b16 %v1433
  %v1571 = vunpack.c.h.b16 %v1433
  %v1572 = vunpack.c.l.b16 %v1434
  %v1573 = vunpack.c.l.b16 %v1435
  %v1574 = vunpack.c.h.b16 %v1435
  %v1575 = vunpack.c.l.b16 %v1436
  %v1576 = vunpack.c.h.b16 %v1436
  %v1577 = vunpack.c.l.b16 %v1437
  %v1578 = vunpack.c.h.b16 %v1437
  %v1579 = vunpack.c.l.b16 %v1438
  %v1580 = vunpack.c.h.b16 %v1438
  %v1581 = vunpack.c.l.b16 %v1439
  %v1582 = vunpack.c.l.b16 %v1440
  %v1583 = vunpack.c.h.b16 %v1440
  %v1584 = vunpack.c.l.b16 %v1441
  %v1585 = vunpack.c.h.b16 %v1441
  %v1586 = vunpack.c.l.b16 %v1442
  %v1587 = vunpack.c.h.b16 %v1442
  %v1588 = vunpack.c.l.b16 %v1443
  %v1589 = vunpack.c.h.b16 %v1443
  %v1590 = vunpack.c.l.b16 %v1444
  %v1591 = vunpack.c.l.b16 %v1445
  %v1592 = vunpack.c.h.b16 %v1445
  %v1593 = vunpack.c.l.b16 %v1446
  %v1594 = vunpack.c.h.b16 %v1446
  %v1595 = vunpack.c.l.b16 %v1447
  %v1596 = vunpack.c.h.b16 %v1447
  %v1597 = vunpack.c.l.b16 %v1448
  %v1598 = vunpack.c.h.b16 %v1448
  %v1599 = vunpack.c.l.b16 %v1449
  %v1600 = vunpack.c.l.b16 %v1450
  %v1601 = vunpack.c.h.b16 %v1450
  %v1602 = vunpack.c.l.b16 %v1451
  %v1603 = vunpack.c.h.b16 %v1451
  %v1604 = vunpack.c.l.b16 %v1452
  %v1605 = vunpack.c.h.b16 %v1452
  %v1606 = vunpack.c.l.b16 %v1453
  %v1607 = vunpack.c.h.b16 %v1453
  %v1608 = vunpack.c.l.b16 %v1454
  %v1609 = vunpack.c.l.b16 %v1455
  %v1610 = vunpack.c.h.b16 %v1455
  %v1611 = vunpack.c.l.b16 %v1456
  %v1612 = vunpack.c.h.b16 %v1456
  %v1613 = vunpack.c.l.b16 %v1457
  %v1614 = vunpack.c.h.b16 %v1457
  %v1615 = vunpack.c.l.b16 %v1458
  %v1616 = vunpack.c.h.b16 %v1458
  %v1617 = vunpack.c.l.b16 %v1459
  %v1618 = vunpack.c.l.b16 %v1460
  %v1619 = vunpack.c.h.b16 %v1460
  %v1620 = vunpack.c.l.b16 %v1461
  %v1621 = vunpack.c.h.b16 %v1461
  %v1622 = vunpack.c.l.b16 %v1462
  %v1623 = vunpack.c.h.b16 %v1462
  %v1624 = vunpack.c.l.b16 %v1463
  %v1625 = vunpack.c.h.b16 %v1463
  %v1626 = vunpack.c.l.b16 %v1464
  %v1627 = vunpack.c.l.b16 %v1465
  %v1628 = vunpack.c.h.b16 %v1465
  %v1629 = vunpack.c.l.b16 %v1466
  %v1630 = vunpack.c.h.b16 %v1466
  %v1631 = vunpack.c.l.b16 %v1467
  %v1632 = vunpack.c.h.b16 %v1467
  %v1633 = vunpack.c.l.b16 %v1468
  %v1634 = vunpack.c.h.b16 %v1468
  %v1635 = vunpack.c.l.b16 %v1469
  %v1636 = vunpack.c.l.b16 %v1470
  %v1637 = vunpack.c.h.b16 %v1470
  %v1638 = vunpack.c.l.b16 %v1471
  %v1639 = vunpack.c.h.b16 %v1471
  %v1640 = vunpack.c.l.b16 %v1472
  %v1641 = vunpack.c.h.b16 %v1472
  %v1642 = vunpack.c.l.b16 %v1473
  %v1643 = vunpack.c.h.b16 %v1473
  %v1644 = vunpack.c.l.b16 %v1474
  %v1645 = vunpack.c.l.b16 %v1475
  %v1646 = vunpack.c.h.b16 %v1475
  %v1647 = vunpack.c.l.b16 %v1476
  %v1648 = vunpack.c.h.b16 %v1476
  %v1649 = vunpack.c.l.b16 %v1477
  %v1650 = vunpack.c.h.b16 %v1477
  %v1651 = vunpack.c.l.b16 %v1478
  %v1652 = vunpack.c.h.b16 %v1478
  %v1653 = vunpack.c.l.b16 %v1479
  %v1654 = vunpack.c.l.b16 %v1480
  %v1655 = vunpack.c.h.b16 %v1480
  %v1656 = vunpack.c.l.b16 %v1481
  %v1657 = vunpack.c.h.b16 %v1481
  %v1658 = vunpack.c.l.b16 %v1482
  %v1659 = vunpack.c.h.b16 %v1482
  %v1660 = vunpack.c.l.b16 %v1483
  %v1661 = vunpack.c.h.b16 %v1483
  %v1662 = vunpack.c.l.b16 %v1484
  %v1663 = vunpack.c.l.b16 %v1485
  %v1664 = vunpack.c.h.b16 %v1485
  %v1665 = vunpack.c.l.b16 %v1486
  %v1666 = vunpack.c.h.b16 %v1486
  %v1667 = vunpack.c.l.b16 %v1487
  %v1668 = vunpack.c.h.b16 %v1487
  %v1669 = vunpack.c.l.b16 %v1488
  %v1670 = vunpack.c.h.b16 %v1488
  %v1671 = vunpack.c.l.b16 %v1489
  %v1672 = vpack.c.b16 %v1564, %v1555
  %v1673 = vpack.c.b16 %v1565, %v1556
  %v1674 = vpack.c.b16 %v1566, %v1557
  %v1675 = vpack.c.b16 %v1567, %v1558
  %v1676 = vpack.c.b16 %v1568, %v1559
  %v1677 = vpack.c.b16 %v1569, %v1560
  %v1678 = vpack.c.b16 %v1570, %v1561
  %v1679 = vpack.c.b16 %v1571, %v1562
  %v1680 = vpack.c.b16 %v1572, %v1563
  %v1681 = vpack.c.b16 %v1582, %v1573
  %v1682 = vpack.c.b16 %v1583, %v1574
  %v1683 = vpack.c.b16 %v1584, %v1575
  %v1684 = vpack.c.b16 %v1585, %v1576
  %v1685 = vpack.c.b16 %v1586, %v1577
  %v1686 = vpack.c.b16 %v1587, %v1578
  %v1687 = vpack.c.b16 %v1588, %v1579
  %v1688 = vpack.c.b16 %v1589, %v1580
  %v1689 = vpack.c.b16 %v1590, %v1581
  %v1690 = vpack.c.b16 %v1600, %v1591
  %v1691 = vpack.c.b16 %v1601, %v1592
  %v1692 = vpack.c.b16 %v1602, %v1593
  %v1693 = vpack.c.b16 %v1603, %v1594
  %v1694 = vpack.c.b16 %v1604, %v1595
  %v1695 = vpack.c.b16 %v1605, %v1596
  %v1696 = vpack.c.b16 %v1606, %v1597
  %v1697 = vpack.c.b16 %v1607, %v1598
  %v1698 = vpack.c.b16 %v1608, %v1599
  %v1699 = vpack.c.b16 %v1618, %v1609
  %v1700 = vpack.c.b16 %v1619, %v1610
  %v1701 = vpack.c.b16 %v1620, %v1611
  %v1702 = vpack.c.b16 %v1621, %v1612
  %v1703 = vpack.c.b16 %v1622, %v1613
  %v1704 = vpack.c.b16 %v1623, %v1614
  %v1705 = vpack.c.b16 %v1624, %v1615
  %v1706 = vpack.c.b16 %v1625, %v1616
  %v1707 = vpack.c.b16 %v1626, %v1617
  %v1708 = vpack.c.b16 %v1636, %v1627
  %v1709 = vpack.c.b16 %v1637, %v1628
  %v1710 = vpack.c.b16 %v1638, %v1629
  %v1711 = vpack.c.b16 %v1639, %v1630
  %v1712 = vpack.c.b16 %v1640, %v1631
  %v1713 = vpack.c.b16 %v1641, %v1632
  %v1714 = vpack.c.b16 %v1642, %v1633
  %v1715 = vpack.c.b16 %v1643, %v1634
  %v1716 = vpack.c.b16 %v1644, %v1635
  %v1717 = vpack.c.b16 %v1654, %v1645
  %v1718 = vpack.c.b16 %v1655, %v1646
  %v1719 = vpack.c.b16 %v1656, %v1647
  %v1720 = vpack.c.b16 %v1657, %v1648
  %v1721 = vpack.c.b16 %v1658, %v1649
  %v1722 = vpack.c.b16 %v1659, %v1650
  %v1723 = vpack.c.b16 %v1660, %v1651
  %v1724 = vpack.c.b16 %v1661, %v1652
  %v1725 = vpack.c.b16 %v1662, %v1653
  %v1726 = vpack.c.b16 %v1663, %v1663
  %v1727 = vpack.c.b16 %v1664, %v1664
  %v1728 = vpack.c.b16 %v1665, %v1665
  %v1729 = vpack.c.b16 %v1666, %v1666
  %v1730 = vpack.c.b16 %v1667, %v1667
  %v1731 = vpack.c.b16 %v1668, %v1668
  %v1732 = vpack.c.b16 %v1669, %v1669
  %v1733 = vpack.c.b16 %v1670, %v1670
  %v1734 = vpack.c.b16 %v1671, %v1671
  %1798 = vmatprep.subr.bf16.mxu0 0
  %1799 = vmatpush1.bf16.msra.mxu0 %v834
  %1800 = vmatprep.subr.bf16.mxu0 0
  %1801 = vmatpush1.bf16.msra.mxu0 %v833
  %1802 = vmatprep.subr.bf16.mxu0 0
  %1803 = vmatpush1.bf16.msra.mxu0 %v832
  %1804 = vmatprep.subr.bf16.mxu0 0
  %1805 = vmatpush1.bf16.msra.mxu0 %v831
  %1806 = vmatprep.subr.bf16.mxu0 0
  %1807 = vmatpush1.bf16.msra.mxu0 %v830
  %1808 = vmatprep.subr.bf16.mxu0 0
  %1809 = vmatpush1.bf16.msra.mxu0 %v829
  %1810 = vmatprep.subr.bf16.mxu0 0
  %1811 = vmatpush1.bf16.msra.mxu0 %v828
  %1812 = vmatprep.subr.bf16.mxu0 0
  %1813 = vmatpush1.bf16.msra.mxu0 %v827
  %1814 = vmatprep.subr.bf16.mxu0 0
  %1815 = vmatpush2.bf16.msra.mxu0 %v842
  %1816 = vmatprep.subr.bf16.mxu0 0
  %1817 = vmatpush2.bf16.msra.mxu0 %v841
  %1818 = vmatprep.subr.bf16.mxu0 0
  %1819 = vmatpush2.bf16.msra.mxu0 %v840
  %1820 = vmatprep.subr.bf16.mxu0 0
  %1821 = vmatpush2.bf16.msra.mxu0 %v839
  %1822 = vmatprep.subr.bf16.mxu0 0
  %1823 = vmatpush2.bf16.msra.mxu0 %v838
  %1824 = vmatprep.subr.bf16.mxu0 0
  %1825 = vmatpush2.bf16.msra.mxu0 %v837
  %1826 = vmatprep.subr.bf16.mxu0 0
  %1827 = vmatpush2.bf16.msra.mxu0 %v836
  %1828 = vmatprep.subr.bf16.mxu0 0
  %1829 = vmatpush2.bf16.msra.mxu0 %v835
  %1830 = vmatprep.mubr.bf16.mxu0 %v1673
  %1831 = vmatmul.mubr.bf16.gmra.mxu0 %v1672
  %v1832 = vpop.f32.mrf.mxu0
  %v1833 = vadd.f32 %v229, %v1832
  %v1834 = vpop.f32.mrf.mxu0
  %v1835 = vpop.f32.mrf.mxu0
  %v1836 = vadd.f32 %v229, %v1835
  %v1837 = vpop.f32.mrf.mxu0
  %1838 = vmatprep.mubr.bf16.mxu0 %v1682
  %1839 = vmatmul.mubr.bf16.gmra.mxu0 %v1681
  %v1840 = vpop.f32.mrf.mxu0
  %v1841 = vadd.f32 %v229, %v1840
  %v1842 = vpop.f32.mrf.mxu0
  %v1843 = vpop.f32.mrf.mxu0
  %v1844 = vadd.f32 %v229, %v1843
  %v1845 = vpop.f32.mrf.mxu0
  %1846 = vmatprep.mubr.bf16.mxu0 %v1691
  %1847 = vmatmul.mubr.bf16.gmra.mxu0 %v1690
  %v1848 = vpop.f32.mrf.mxu0
  %v1849 = vadd.f32 %v229, %v1848
  %v1850 = vpop.f32.mrf.mxu0
  %v1851 = vpop.f32.mrf.mxu0
  %v1852 = vadd.f32 %v229, %v1851
  %v1853 = vpop.f32.mrf.mxu0
  %1854 = vmatprep.mubr.bf16.mxu0 %v1700
  %1855 = vmatmul.mubr.bf16.gmra.mxu0 %v1699
  %v1856 = vpop.f32.mrf.mxu0
  %v1857 = vadd.f32 %v229, %v1856
  %v1858 = vpop.f32.mrf.mxu0
  %v1859 = vpop.f32.mrf.mxu0
  %v1860 = vadd.f32 %v229, %v1859
  %v1861 = vpop.f32.mrf.mxu0
  %1862 = vmatprep.mubr.bf16.mxu0 %v1709
  %1863 = vmatmul.mubr.bf16.gmra.mxu0 %v1708
  %v1864 = vpop.f32.mrf.mxu0
  %v1865 = vadd.f32 %v229, %v1864
  %v1866 = vpop.f32.mrf.mxu0
  %v1867 = vpop.f32.mrf.mxu0
  %v1868 = vadd.f32 %v229, %v1867
  %v1869 = vpop.f32.mrf.mxu0
  %1870 = vmatprep.mubr.bf16.mxu0 %v1718
  %1871 = vmatmul.mubr.bf16.gmra.mxu0 %v1717
  %v1872 = vpop.f32.mrf.mxu0
  %v1873 = vadd.f32 %v229, %v1872
  %v1874 = vpop.f32.mrf.mxu0
  %v1875 = vpop.f32.mrf.mxu0
  %v1876 = vadd.f32 %v229, %v1875
  %v1877 = vpop.f32.mrf.mxu0
  %1878 = vmatprep.mubr.bf16.mxu0 %v1727
  %1879 = vmatmul.mubr.bf16.gmra.mxu0 %v1726
  %v1880 = vpop.f32.mrf.mxu0
  %v1881 = vadd.f32 %v229, %v1880
  %v1882 = vpop.f32.mrf.mxu0
  %v1883 = vpop.f32.mrf.mxu0
  %v1884 = vpop.f32.mrf.mxu0
  %1885 = vdwg.mxu0
  %1886 = vmatprep.subr.bf16.mxu0 0
  %1887 = vmatpush1.bf16.msra.mxu0 %v850
  %1888 = vmatprep.subr.bf16.mxu0 0
  %1889 = vmatpush1.bf16.msra.mxu0 %v849
  %1890 = vmatprep.subr.bf16.mxu0 0
  %1891 = vmatpush1.bf16.msra.mxu0 %v848
  %1892 = vmatprep.subr.bf16.mxu0 0
  %1893 = vmatpush1.bf16.msra.mxu0 %v847
  %1894 = vmatprep.subr.bf16.mxu0 0
  %1895 = vmatpush1.bf16.msra.mxu0 %v846
  %1896 = vmatprep.subr.bf16.mxu0 0
  %1897 = vmatpush1.bf16.msra.mxu0 %v845
  %1898 = vmatprep.subr.bf16.mxu0 0
  %1899 = vmatpush1.bf16.msra.mxu0 %v844
  %1900 = vmatprep.subr.bf16.mxu0 0
  %1901 = vmatpush1.bf16.msra.mxu0 %v843
  %1902 = vmatprep.subr.bf16.mxu0 0
  %1903 = vmatpush2.bf16.msra.mxu0 %v858
  %1904 = vmatprep.subr.bf16.mxu0 0
  %1905 = vmatpush2.bf16.msra.mxu0 %v857
  %1906 = vmatprep.subr.bf16.mxu0 0
  %1907 = vmatpush2.bf16.msra.mxu0 %v856
  %1908 = vmatprep.subr.bf16.mxu0 0
  %1909 = vmatpush2.bf16.msra.mxu0 %v855
  %1910 = vmatprep.subr.bf16.mxu0 0
  %1911 = vmatpush2.bf16.msra.mxu0 %v854
  %1912 = vmatprep.subr.bf16.mxu0 0
  %1913 = vmatpush2.bf16.msra.mxu0 %v853
  %1914 = vmatprep.subr.bf16.mxu0 0
  %1915 = vmatpush2.bf16.msra.mxu0 %v852
  %1916 = vmatprep.subr.bf16.mxu0 0
  %1917 = vmatpush2.bf16.msra.mxu0 %v851
  %1918 = vmatprep.mubr.bf16.mxu0 %v1675
  %1919 = vmatmul.mubr.bf16.gmra.mxu0 %v1674
  %v1920 = vpop.f32.mrf.mxu0
  %v1921 = vadd.f32 %v1833, %v1920
  %v1922 = vpop.f32.mrf.mxu0
  %v1923 = vpop.f32.mrf.mxu0
  %v1924 = vadd.f32 %v1836, %v1923
  %v1925 = vpop.f32.mrf.mxu0
  %1926 = vmatprep.mubr.bf16.mxu0 %v1684
  %1927 = vmatmul.mubr.bf16.gmra.mxu0 %v1683
  %v1928 = vpop.f32.mrf.mxu0
  %v1929 = vadd.f32 %v1841, %v1928
  %v1930 = vpop.f32.mrf.mxu0
  %v1931 = vpop.f32.mrf.mxu0
  %v1932 = vadd.f32 %v1844, %v1931
  %v1933 = vpop.f32.mrf.mxu0
  %1934 = vmatprep.mubr.bf16.mxu0 %v1693
  %1935 = vmatmul.mubr.bf16.gmra.mxu0 %v1692
  %v1936 = vpop.f32.mrf.mxu0
  %v1937 = vadd.f32 %v1849, %v1936
  %v1938 = vpop.f32.mrf.mxu0
  %v1939 = vpop.f32.mrf.mxu0
  %v1940 = vadd.f32 %v1852, %v1939
  %v1941 = vpop.f32.mrf.mxu0
  %1942 = vmatprep.mubr.bf16.mxu0 %v1702
  %1943 = vmatmul.mubr.bf16.gmra.mxu0 %v1701
  %v1944 = vpop.f32.mrf.mxu0
  %v1945 = vadd.f32 %v1857, %v1944
  %v1946 = vpop.f32.mrf.mxu0
  %v1947 = vpop.f32.mrf.mxu0
  %v1948 = vadd.f32 %v1860, %v1947
  %v1949 = vpop.f32.mrf.mxu0
  %1950 = vmatprep.mubr.bf16.mxu0 %v1711
  %1951 = vmatmul.mubr.bf16.gmra.mxu0 %v1710
  %v1952 = vpop.f32.mrf.mxu0
  %v1953 = vadd.f32 %v1865, %v1952
  %v1954 = vpop.f32.mrf.mxu0
  %v1955 = vpop.f32.mrf.mxu0
  %v1956 = vadd.f32 %v1868, %v1955
  %v1957 = vpop.f32.mrf.mxu0
  %1958 = vmatprep.mubr.bf16.mxu0 %v1720
  %1959 = vmatmul.mubr.bf16.gmra.mxu0 %v1719
  %v1960 = vpop.f32.mrf.mxu0
  %v1961 = vadd.f32 %v1873, %v1960
  %v1962 = vpop.f32.mrf.mxu0
  %v1963 = vpop.f32.mrf.mxu0
  %v1964 = vadd.f32 %v1876, %v1963
  %v1965 = vpop.f32.mrf.mxu0
  %1966 = vmatprep.mubr.bf16.mxu0 %v1729
  %1967 = vmatmul.mubr.bf16.gmra.mxu0 %v1728
  %v1968 = vpop.f32.mrf.mxu0
  %v1969 = vadd.f32 %v1881, %v1968
  %v1970 = vpop.f32.mrf.mxu0
  %v1971 = vpop.f32.mrf.mxu0
  %v1972 = vpop.f32.mrf.mxu0
  %1973 = vdwg.mxu0
  %1974 = vmatprep.subr.bf16.mxu0 0
  %1975 = vmatpush1.bf16.msra.mxu0 %v866
  %1976 = vmatprep.subr.bf16.mxu0 0
  %1977 = vmatpush1.bf16.msra.mxu0 %v865
  %1978 = vmatprep.subr.bf16.mxu0 0
  %1979 = vmatpush1.bf16.msra.mxu0 %v864
  %1980 = vmatprep.subr.bf16.mxu0 0
  %1981 = vmatpush1.bf16.msra.mxu0 %v863
  %1982 = vmatprep.subr.bf16.mxu0 0
  %1983 = vmatpush1.bf16.msra.mxu0 %v862
  %1984 = vmatprep.subr.bf16.mxu0 0
  %1985 = vmatpush1.bf16.msra.mxu0 %v861
  %1986 = vmatprep.subr.bf16.mxu0 0
  %1987 = vmatpush1.bf16.msra.mxu0 %v860
  %1988 = vmatprep.subr.bf16.mxu0 0
  %1989 = vmatpush1.bf16.msra.mxu0 %v859
  %1990 = vmatprep.subr.bf16.mxu0 0
  %1991 = vmatpush2.bf16.msra.mxu0 %v874
  %1992 = vmatprep.subr.bf16.mxu0 0
  %1993 = vmatpush2.bf16.msra.mxu0 %v873
  %1994 = vmatprep.subr.bf16.mxu0 0
  %1995 = vmatpush2.bf16.msra.mxu0 %v872
  %1996 = vmatprep.subr.bf16.mxu0 0
  %1997 = vmatpush2.bf16.msra.mxu0 %v871
  %1998 = vmatprep.subr.bf16.mxu0 0
  %1999 = vmatpush2.bf16.msra.mxu0 %v870
  %2000 = vmatprep.subr.bf16.mxu0 0
  %2001 = vmatpush2.bf16.msra.mxu0 %v869
  %2002 = vmatprep.subr.bf16.mxu0 0
  %2003 = vmatpush2.bf16.msra.mxu0 %v868
  %2004 = vmatprep.subr.bf16.mxu0 0
  %2005 = vmatpush2.bf16.msra.mxu0 %v867
  %2006 = vmatprep.mubr.bf16.mxu0 %v1677
  %2007 = vmatmul.mubr.bf16.gmra.mxu0 %v1676
  %v2008 = vpop.f32.mrf.mxu0
  %v2009 = vadd.f32 %v1921, %v2008
  %v2010 = vpop.f32.mrf.mxu0
  %v2011 = vpop.f32.mrf.mxu0
  %v2012 = vadd.f32 %v1924, %v2011
  %v2013 = vpop.f32.mrf.mxu0
  %2014 = vmatprep.mubr.bf16.mxu0 %v1686
  %2015 = vmatmul.mubr.bf16.gmra.mxu0 %v1685
  %v2016 = vpop.f32.mrf.mxu0
  %v2017 = vadd.f32 %v1929, %v2016
  %v2018 = vpop.f32.mrf.mxu0
  %v2019 = vpop.f32.mrf.mxu0
  %v2020 = vadd.f32 %v1932, %v2019
  %v2021 = vpop.f32.mrf.mxu0
  %2022 = vmatprep.mubr.bf16.mxu0 %v1695
  %2023 = vmatmul.mubr.bf16.gmra.mxu0 %v1694
  %v2024 = vpop.f32.mrf.mxu0
  %v2025 = vadd.f32 %v1937, %v2024
  %v2026 = vpop.f32.mrf.mxu0
  %v2027 = vpop.f32.mrf.mxu0
  %v2028 = vadd.f32 %v1940, %v2027
  %v2029 = vpop.f32.mrf.mxu0
  %2030 = vmatprep.mubr.bf16.mxu0 %v1704
  %2031 = vmatmul.mubr.bf16.gmra.mxu0 %v1703
  %v2032 = vpop.f32.mrf.mxu0
  %v2033 = vadd.f32 %v1945, %v2032
  %v2034 = vpop.f32.mrf.mxu0
  %v2035 = vpop.f32.mrf.mxu0
  %v2036 = vadd.f32 %v1948, %v2035
  %v2037 = vpop.f32.mrf.mxu0
  %2038 = vmatprep.mubr.bf16.mxu0 %v1713
  %2039 = vmatmul.mubr.bf16.gmra.mxu0 %v1712
  %v2040 = vpop.f32.mrf.mxu0
  %v2041 = vadd.f32 %v1953, %v2040
  %v2042 = vpop.f32.mrf.mxu0
  %v2043 = vpop.f32.mrf.mxu0
  %v2044 = vadd.f32 %v1956, %v2043
  %v2045 = vpop.f32.mrf.mxu0
  %2046 = vmatprep.mubr.bf16.mxu0 %v1722
  %2047 = vmatmul.mubr.bf16.gmra.mxu0 %v1721
  %v2048 = vpop.f32.mrf.mxu0
  %v2049 = vadd.f32 %v1961, %v2048
  %v2050 = vpop.f32.mrf.mxu0
  %v2051 = vpop.f32.mrf.mxu0
  %v2052 = vadd.f32 %v1964, %v2051
  %v2053 = vpop.f32.mrf.mxu0
  %2054 = vmatprep.mubr.bf16.mxu0 %v1731
  %2055 = vmatmul.mubr.bf16.gmra.mxu0 %v1730
  %v2056 = vpop.f32.mrf.mxu0
  %v2057 = vadd.f32 %v1969, %v2056
  %v2058 = vpop.f32.mrf.mxu0
  %v2059 = vpop.f32.mrf.mxu0
  %v2060 = vpop.f32.mrf.mxu0
  %2061 = vdwg.mxu0
  %2062 = vmatprep.subr.bf16.mxu0 0
  %2063 = vmatpush1.bf16.msra.mxu0 %v882
  %2064 = vmatprep.subr.bf16.mxu0 0
  %2065 = vmatpush1.bf16.msra.mxu0 %v881
  %2066 = vmatprep.subr.bf16.mxu0 0
  %2067 = vmatpush1.bf16.msra.mxu0 %v880
  %2068 = vmatprep.subr.bf16.mxu0 0
  %2069 = vmatpush1.bf16.msra.mxu0 %v879
  %2070 = vmatprep.subr.bf16.mxu0 0
  %2071 = vmatpush1.bf16.msra.mxu0 %v878
  %2072 = vmatprep.subr.bf16.mxu0 0
  %2073 = vmatpush1.bf16.msra.mxu0 %v877
  %2074 = vmatprep.subr.bf16.mxu0 0
  %2075 = vmatpush1.bf16.msra.mxu0 %v876
  %2076 = vmatprep.subr.bf16.mxu0 0
  %2077 = vmatpush1.bf16.msra.mxu0 %v875
  %2078 = vmatprep.subr.bf16.mxu0 0
  %2079 = vmatpush2.bf16.msra.mxu0 %v890
  %2080 = vmatprep.subr.bf16.mxu0 0
  %2081 = vmatpush2.bf16.msra.mxu0 %v889
  %2082 = vmatprep.subr.bf16.mxu0 0
  %2083 = vmatpush2.bf16.msra.mxu0 %v888
  %2084 = vmatprep.subr.bf16.mxu0 0
  %2085 = vmatpush2.bf16.msra.mxu0 %v887
  %2086 = vmatprep.subr.bf16.mxu0 0
  %2087 = vmatpush2.bf16.msra.mxu0 %v886
  %2088 = vmatprep.subr.bf16.mxu0 0
  %2089 = vmatpush2.bf16.msra.mxu0 %v885
  %2090 = vmatprep.subr.bf16.mxu0 0
  %2091 = vmatpush2.bf16.msra.mxu0 %v884
  %2092 = vmatprep.subr.bf16.mxu0 0
  %2093 = vmatpush2.bf16.msra.mxu0 %v883
  %2094 = vmatprep.mubr.bf16.mxu0 %v1679
  %2095 = vmatmul.mubr.bf16.gmra.mxu0 %v1678
  %v2096 = vpop.f32.mrf.mxu0
  %v2097 = vadd.f32 %v2009, %v2096
  %v2098 = vpop.f32.mrf.mxu0
  %v2099 = vpop.f32.mrf.mxu0
  %v2100 = vadd.f32 %v2012, %v2099
  %v2101 = vpop.f32.mrf.mxu0
  %2102 = vmatprep.mubr.bf16.mxu0 %v1688
  %2103 = vmatmul.mubr.bf16.gmra.mxu0 %v1687
  %v2104 = vpop.f32.mrf.mxu0
  %v2105 = vadd.f32 %v2017, %v2104
  %v2106 = vpop.f32.mrf.mxu0
  %v2107 = vpop.f32.mrf.mxu0
  %v2108 = vadd.f32 %v2020, %v2107
  %v2109 = vpop.f32.mrf.mxu0
  %2110 = vmatprep.mubr.bf16.mxu0 %v1697
  %2111 = vmatmul.mubr.bf16.gmra.mxu0 %v1696
  %v2112 = vpop.f32.mrf.mxu0
  %v2113 = vadd.f32 %v2025, %v2112
  %v2114 = vpop.f32.mrf.mxu0
  %v2115 = vpop.f32.mrf.mxu0
  %v2116 = vadd.f32 %v2028, %v2115
  %v2117 = vpop.f32.mrf.mxu0
  %2118 = vmatprep.mubr.bf16.mxu0 %v1706
  %2119 = vmatmul.mubr.bf16.gmra.mxu0 %v1705
  %v2120 = vpop.f32.mrf.mxu0
  %v2121 = vadd.f32 %v2033, %v2120
  %v2122 = vpop.f32.mrf.mxu0
  %v2123 = vpop.f32.mrf.mxu0
  %v2124 = vadd.f32 %v2036, %v2123
  %v2125 = vpop.f32.mrf.mxu0
  %2126 = vmatprep.mubr.bf16.mxu0 %v1715
  %2127 = vmatmul.mubr.bf16.gmra.mxu0 %v1714
  %v2128 = vpop.f32.mrf.mxu0
  %v2129 = vadd.f32 %v2041, %v2128
  %v2130 = vpop.f32.mrf.mxu0
  %v2131 = vpop.f32.mrf.mxu0
  %v2132 = vadd.f32 %v2044, %v2131
  %v2133 = vpop.f32.mrf.mxu0
  %2134 = vmatprep.mubr.bf16.mxu0 %v1724
  %2135 = vmatmul.mubr.bf16.gmra.mxu0 %v1723
  %v2136 = vpop.f32.mrf.mxu0
  %v2137 = vadd.f32 %v2049, %v2136
  %v2138 = vpop.f32.mrf.mxu0
  %v2139 = vpop.f32.mrf.mxu0
  %v2140 = vadd.f32 %v2052, %v2139
  %v2141 = vpop.f32.mrf.mxu0
  %2142 = vmatprep.mubr.bf16.mxu0 %v1733
  %2143 = vmatmul.mubr.bf16.gmra.mxu0 %v1732
  %v2144 = vpop.f32.mrf.mxu0
  %v2145 = vadd.f32 %v2057, %v2144
  %v2146 = vpop.f32.mrf.mxu0
  %v2147 = vpop.f32.mrf.mxu0
  %v2148 = vpop.f32.mrf.mxu0
  %2149 = vdwg.mxu0
  %2150 = vmatprep.subr.bf16.mxu0 0
  %2151 = vmatpush1.bf16.msra.mxu0 %v898
  %2152 = vmatprep.subr.bf16.mxu0 0
  %2153 = vmatpush1.bf16.msra.mxu0 %v897
  %2154 = vmatprep.subr.bf16.mxu0 0
  %2155 = vmatpush1.bf16.msra.mxu0 %v896
  %2156 = vmatprep.subr.bf16.mxu0 0
  %2157 = vmatpush1.bf16.msra.mxu0 %v895
  %2158 = vmatprep.subr.bf16.mxu0 0
  %2159 = vmatpush1.bf16.msra.mxu0 %v894
  %2160 = vmatprep.subr.bf16.mxu0 0
  %2161 = vmatpush1.bf16.msra.mxu0 %v893
  %2162 = vmatprep.subr.bf16.mxu0 0
  %2163 = vmatpush1.bf16.msra.mxu0 %v892
  %2164 = vmatprep.subr.bf16.mxu0 0
  %2165 = vmatpush1.bf16.msra.mxu0 %v891
  %2166 = vmatprep.subr.bf16.mxu0 0
  %2167 = vmatpush2.bf16.msra.mxu0 0
  %2168 = vmatprep.subr.bf16.mxu0 0
  %2169 = vmatpush2.bf16.msra.mxu0 0
  %2170 = vmatprep.subr.bf16.mxu0 0
  %2171 = vmatpush2.bf16.msra.mxu0 0
  %2172 = vmatprep.subr.bf16.mxu0 0
  %2173 = vmatpush2.bf16.msra.mxu0 0
  %2174 = vmatprep.subr.bf16.mxu0 0
  %2175 = vmatpush2.bf16.msra.mxu0 0
  %2176 = vmatprep.subr.bf16.mxu0 0
  %2177 = vmatpush2.bf16.msra.mxu0 0
  %2178 = vmatprep.subr.bf16.mxu0 0
  %2179 = vmatpush2.bf16.msra.mxu0 0
  %2180 = vmatprep.subr.bf16.mxu0 0
  %2181 = vmatpush2.bf16.msra.mxu0 0
  %2182 = vmatprep.mubr.bf16.mxu0 0
  %2183 = vmatmul.mubr.bf16.gmra.mxu0 %v1680
  %v2184 = vpop.f32.mrf.mxu0
  %v2185 = vadd.f32 %v2097, %v2184
  %v2186 = vpop.f32.mrf.mxu0
  %v2187 = vpop.f32.mrf.mxu0
  %v2188 = vadd.f32 %v2100, %v2187
  %v2189 = vpop.f32.mrf.mxu0
  %2190 = vmatprep.mubr.bf16.mxu0 0
  %2191 = vmatmul.mubr.bf16.gmra.mxu0 %v1689
  %v2192 = vpop.f32.mrf.mxu0
  %v2193 = vadd.f32 %v2105, %v2192
  %v2194 = vpop.f32.mrf.mxu0
  %v2195 = vpop.f32.mrf.mxu0
  %v2196 = vadd.f32 %v2108, %v2195
  %v2197 = vpop.f32.mrf.mxu0
  %2198 = vmatprep.mubr.bf16.mxu0 0
  %2199 = vmatmul.mubr.bf16.gmra.mxu0 %v1698
  %v2200 = vpop.f32.mrf.mxu0
  %v2201 = vadd.f32 %v2113, %v2200
  %v2202 = vpop.f32.mrf.mxu0
  %v2203 = vpop.f32.mrf.mxu0
  %v2204 = vadd.f32 %v2116, %v2203
  %v2205 = vpop.f32.mrf.mxu0
  %2206 = vmatprep.mubr.bf16.mxu0 0
  %2207 = vmatmul.mubr.bf16.gmra.mxu0 %v1707
  %v2208 = vpop.f32.mrf.mxu0
  %v2209 = vadd.f32 %v2121, %v2208
  %v2210 = vpop.f32.mrf.mxu0
  %v2211 = vpop.f32.mrf.mxu0
  %v2212 = vadd.f32 %v2124, %v2211
  %v2213 = vpop.f32.mrf.mxu0
  %2214 = vmatprep.mubr.bf16.mxu0 0
  %2215 = vmatmul.mubr.bf16.gmra.mxu0 %v1716
  %v2216 = vpop.f32.mrf.mxu0
  %v2217 = vadd.f32 %v2129, %v2216
  %v2218 = vpop.f32.mrf.mxu0
  %v2219 = vpop.f32.mrf.mxu0
  %v2220 = vadd.f32 %v2132, %v2219
  %v2221 = vpop.f32.mrf.mxu0
  %2222 = vmatprep.mubr.bf16.mxu0 0
  %2223 = vmatmul.mubr.bf16.gmra.mxu0 %v1725
  %v2224 = vpop.f32.mrf.mxu0
  %v2225 = vadd.f32 %v2137, %v2224
  %v2226 = vpop.f32.mrf.mxu0
  %v2227 = vpop.f32.mrf.mxu0
  %v2228 = vadd.f32 %v2140, %v2227
  %v2229 = vpop.f32.mrf.mxu0
  %2230 = vmatprep.mubr.bf16.mxu0 0
  %2231 = vmatmul.mubr.bf16.gmra.mxu0 %v1734
  %v2232 = vpop.f32.mrf.mxu0
  %v2233 = vadd.f32 %v2145, %v2232
  %v2234 = vpop.f32.mrf.mxu0
  %v2235 = vpop.f32.mrf.mxu0
  %v2236 = vpop.f32.mrf.mxu0
  %2237 = vdwg.mxu0
  %v2238 = vmax.f32 %v2185, 0.0
  %v2239 = vmax.f32 %v2188, 0.0
  %v2240 = vmax.f32 %v2193, 0.0
  %v2241 = vmax.f32 %v2196, 0.0
  %v2242 = vmax.f32 %v2201, 0.0
  %v2243 = vmax.f32 %v2204, 0.0
  %v2244 = vmax.f32 %v2209, 0.0
  %v2245 = vmax.f32 %v2212, 0.0
  %v2246 = vmax.f32 %v2217, 0.0
  %v2247 = vmax.f32 %v2220, 0.0
  %v2248 = vmax.f32 %v2225, 0.0
  %v2249 = vmax.f32 %v2228, 0.0
  %v2250 = vmax.f32 %v2233, 0.0
  %v2251 = vmax.f32 %v1411, %v2238
  %v2252 = vmax.f32 %v1412, %v2239
  %v2253 = vmax.f32 %v1413, %v2240
  %v2254 = vmax.f32 %v1414, %v2241
  %v2255 = vmax.f32 %v1415, %v2242
  %v2256 = vmax.f32 %v1416, %v2243
  %v2257 = vmax.f32 %v1417, %v2244
  %v2258 = vmax.f32 %v1418, %v2245
  %v2259 = vmax.f32 %v1419, %v2246
  %v2260 = vmax.f32 %v1420, %v2247
  %v2261 = vmax.f32 %v1421, %v2248
  %v2262 = vmax.f32 %v1422, %v2249
  %v2263 = vmax.f32 %v1423, %v2250
  %s2264 = scalar_lea.vmem %s0, 936
  %v2265 = vld [vmem:[%s2264] sm:$0xff]
  %v2266 = vld [vmem:[%s2264 + $0x8] sm:$0xff]
  %v2267 = vld [vmem:[%s2264 + $0x10] sm:$0xff]
  %v2268 = vld [vmem:[%s2264 + $0x18] sm:$0xff]
  %v2269 = vld [vmem:[%s2264 + $0x20] sm:$0xf]
  %v2270 = vld [vmem:[%s2264 + $0x24] sm:$0xff]
  %v2271 = vld [vmem:[%s2264 + $0x2c] sm:$0xff]
  %v2272 = vld [vmem:[%s2264 + $0x34] sm:$0xff]
  %v2273 = vld [vmem:[%s2264 + $0x3c] sm:$0xff]
  %v2274 = vld [vmem:[%s2264 + $0x44] sm:$0xf]
  %v2275 = vld [vmem:[%s2264 + $0x48] sm:$0xff]
  %v2276 = vld [vmem:[%s2264 + $0x50] sm:$0xff]
  %v2277 = vld [vmem:[%s2264 + $0x58] sm:$0xff]
  %v2278 = vld [vmem:[%s2264 + $0x60] sm:$0xff]
  %v2279 = vld [vmem:[%s2264 + $0x68] sm:$0xf]
  %v2280 = vld [vmem:[%s2264 + $0x6c] sm:$0xff]
  %v2281 = vld [vmem:[%s2264 + $0x74] sm:$0xff]
  %v2282 = vld [vmem:[%s2264 + $0x7c] sm:$0xff]
  %v2283 = vld [vmem:[%s2264 + $0x84] sm:$0xff]
  %v2284 = vld [vmem:[%s2264 + $0x8c] sm:$0xf]
  %v2285 = vld [vmem:[%s2264 + $0x90] sm:$0xff]
  %v2286 = vld [vmem:[%s2264 + $0x98] sm:$0xff]
  %v2287 = vld [vmem:[%s2264 + $0xa0] sm:$0xff]
  %v2288 = vld [vmem:[%s2264 + $0xa8] sm:$0xff]
  %v2289 = vld [vmem:[%s2264 + $0xb0] sm:$0xf]
  %v2290 = vld [vmem:[%s2264 + $0xb4] sm:$0xff]
  %v2291 = vld [vmem:[%s2264 + $0xbc] sm:$0xff]
  %v2292 = vld [vmem:[%s2264 + $0xc4] sm:$0xff]
  %v2293 = vld [vmem:[%s2264 + $0xcc] sm:$0xff]
  %v2294 = vld [vmem:[%s2264 + $0xd4] sm:$0xf]
  %v2295 = vld [vmem:[%s2264 + $0xd8] sm:$0xff]
  %v2296 = vld [vmem:[%s2264 + $0xe0] sm:$0xff]
  %v2297 = vld [vmem:[%s2264 + $0xe8] sm:$0xff]
  %v2298 = vld [vmem:[%s2264 + $0xf0] sm:$0xff]
  %v2299 = vld [vmem:[%s2264 + $0xf8] sm:$0xf]
  %v2300 = vld [vmem:[%s2264 + $0xfc] sm:$0xff]
  %v2301 = vld [vmem:[%s2264 + $0x104] sm:$0xff]
  %v2302 = vld [vmem:[%s2264 + $0x10c] sm:$0xff]
  %v2303 = vld [vmem:[%s2264 + $0x114] sm:$0xff]
  %v2304 = vld [vmem:[%s2264 + $0x11c] sm:$0xf]
  %v2305 = vld [vmem:[%s2264 + $0x120] sm:$0xff]
  %v2306 = vld [vmem:[%s2264 + $0x128] sm:$0xff]
  %v2307 = vld [vmem:[%s2264 + $0x130] sm:$0xff]
  %v2308 = vld [vmem:[%s2264 + $0x138] sm:$0xff]
  %v2309 = vld [vmem:[%s2264 + $0x140] sm:$0xf]
  %v2310 = vld [vmem:[%s2264 + $0x144] sm:$0xff]
  %v2311 = vld [vmem:[%s2264 + $0x14c] sm:$0xff]
  %v2312 = vld [vmem:[%s2264 + $0x154] sm:$0xff]
  %v2313 = vld [vmem:[%s2264 + $0x15c] sm:$0xff]
  %v2314 = vld [vmem:[%s2264 + $0x164] sm:$0xf]
  %v2315 = vld [vmem:[%s2264 + $0x168] sm:$0xff]
  %v2316 = vld [vmem:[%s2264 + $0x170] sm:$0xff]
  %v2317 = vld [vmem:[%s2264 + $0x178] sm:$0xff]
  %v2318 = vld [vmem:[%s2264 + $0x180] sm:$0xff]
  %v2319 = vld [vmem:[%s2264 + $0x188] sm:$0xf]
  %v2320 = vld [vmem:[%s2264 + $0x18c] sm:$0xff]
  %v2321 = vld [vmem:[%s2264 + $0x194] sm:$0xff]
  %v2322 = vld [vmem:[%s2264 + $0x19c] sm:$0xff]
  %v2323 = vld [vmem:[%s2264 + $0x1a4] sm:$0xff]
  %v2324 = vld [vmem:[%s2264 + $0x1ac] sm:$0xf]
  %v2325 = vld [vmem:[%s2264 + $0x1b0] sm:$0x11]
  %v2326 = vld [vmem:[%s2264 + $0x1b8] sm:$0x11]
  %v2327 = vld [vmem:[%s2264 + $0x1c0] sm:$0x11]
  %v2328 = vld [vmem:[%s2264 + $0x1c8] sm:$0x11]
  %v2329 = vld [vmem:[%s2264 + $0x1d0] sm:$0x1]
  %v2395 = vunpack.c.l.b16 %v2265
  %v2396 = vunpack.c.h.b16 %v2265
  %v2397 = vunpack.c.l.b16 %v2266
  %v2398 = vunpack.c.h.b16 %v2266
  %v2399 = vunpack.c.l.b16 %v2267
  %v2400 = vunpack.c.h.b16 %v2267
  %v2401 = vunpack.c.l.b16 %v2268
  %v2402 = vunpack.c.h.b16 %v2268
  %v2403 = vunpack.c.l.b16 %v2269
  %v2404 = vunpack.c.l.b16 %v2270
  %v2405 = vunpack.c.h.b16 %v2270
  %v2406 = vunpack.c.l.b16 %v2271
  %v2407 = vunpack.c.h.b16 %v2271
  %v2408 = vunpack.c.l.b16 %v2272
  %v2409 = vunpack.c.h.b16 %v2272
  %v2410 = vunpack.c.l.b16 %v2273
  %v2411 = vunpack.c.h.b16 %v2273
  %v2412 = vunpack.c.l.b16 %v2274
  %v2413 = vunpack.c.l.b16 %v2275
  %v2414 = vunpack.c.h.b16 %v2275
  %v2415 = vunpack.c.l.b16 %v2276
  %v2416 = vunpack.c.h.b16 %v2276
  %v2417 = vunpack.c.l.b16 %v2277
  %v2418 = vunpack.c.h.b16 %v2277
  %v2419 = vunpack.c.l.b16 %v2278
  %v2420 = vunpack.c.h.b16 %v2278
  %v2421 = vunpack.c.l.b16 %v2279
  %v2422 = vunpack.c.l.b16 %v2280
  %v2423 = vunpack.c.h.b16 %v2280
  %v2424 = vunpack.c.l.b16 %v2281
  %v2425 = vunpack.c.h.b16 %v2281
  %v2426 = vunpack.c.l.b16 %v2282
  %v2427 = vunpack.c.h.b16 %v2282
  %v2428 = vunpack.c.l.b16 %v2283
  %v2429 = vunpack.c.h.b16 %v2283
  %v2430 = vunpack.c.l.b16 %v2284
  %v2431 = vunpack.c.l.b16 %v2285
  %v2432 = vunpack.c.h.b16 %v2285
  %v2433 = vunpack.c.l.b16 %v2286
  %v2434 = vunpack.c.h.b16 %v2286
  %v2435 = vunpack.c.l.b16 %v2287
  %v2436 = vunpack.c.h.b16 %v2287
  %v2437 = vunpack.c.l.b16 %v2288
  %v2438 = vunpack.c.h.b16 %v2288
  %v2439 = vunpack.c.l.b16 %v2289
  %v2440 = vunpack.c.l.b16 %v2290
  %v2441 = vunpack.c.h.b16 %v2290
  %v2442 = vunpack.c.l.b16 %v2291
  %v2443 = vunpack.c.h.b16 %v2291
  %v2444 = vunpack.c.l.b16 %v2292
  %v2445 = vunpack.c.h.b16 %v2292
  %v2446 = vunpack.c.l.b16 %v2293
  %v2447 = vunpack.c.h.b16 %v2293
  %v2448 = vunpack.c.l.b16 %v2294
  %v2449 = vunpack.c.l.b16 %v2295
  %v2450 = vunpack.c.h.b16 %v2295
  %v2451 = vunpack.c.l.b16 %v2296
  %v2452 = vunpack.c.h.b16 %v2296
  %v2453 = vunpack.c.l.b16 %v2297
  %v2454 = vunpack.c.h.b16 %v2297
  %v2455 = vunpack.c.l.b16 %v2298
  %v2456 = vunpack.c.h.b16 %v2298
  %v2457 = vunpack.c.l.b16 %v2299
  %v2458 = vunpack.c.l.b16 %v2300
  %v2459 = vunpack.c.h.b16 %v2300
  %v2460 = vunpack.c.l.b16 %v2301
  %v2461 = vunpack.c.h.b16 %v2301
  %v2462 = vunpack.c.l.b16 %v2302
  %v2463 = vunpack.c.h.b16 %v2302
  %v2464 = vunpack.c.l.b16 %v2303
  %v2465 = vunpack.c.h.b16 %v2303
  %v2466 = vunpack.c.l.b16 %v2304
  %v2467 = vunpack.c.l.b16 %v2305
  %v2468 = vunpack.c.h.b16 %v2305
  %v2469 = vunpack.c.l.b16 %v2306
  %v2470 = vunpack.c.h.b16 %v2306
  %v2471 = vunpack.c.l.b16 %v2307
  %v2472 = vunpack.c.h.b16 %v2307
  %v2473 = vunpack.c.l.b16 %v2308
  %v2474 = vunpack.c.h.b16 %v2308
  %v2475 = vunpack.c.l.b16 %v2309
  %v2476 = vunpack.c.l.b16 %v2310
  %v2477 = vunpack.c.h.b16 %v2310
  %v2478 = vunpack.c.l.b16 %v2311
  %v2479 = vunpack.c.h.b16 %v2311
  %v2480 = vunpack.c.l.b16 %v2312
  %v2481 = vunpack.c.h.b16 %v2312
  %v2482 = vunpack.c.l.b16 %v2313
  %v2483 = vunpack.c.h.b16 %v2313
  %v2484 = vunpack.c.l.b16 %v2314
  %v2485 = vunpack.c.l.b16 %v2315
  %v2486 = vunpack.c.h.b16 %v2315
  %v2487 = vunpack.c.l.b16 %v2316
  %v2488 = vunpack.c.h.b16 %v2316
  %v2489 = vunpack.c.l.b16 %v2317
  %v2490 = vunpack.c.h.b16 %v2317
  %v2491 = vunpack.c.l.b16 %v2318
  %v2492 = vunpack.c.h.b16 %v2318
  %v2493 = vunpack.c.l.b16 %v2319
  %v2494 = vunpack.c.l.b16 %v2320
  %v2495 = vunpack.c.h.b16 %v2320
  %v2496 = vunpack.c.l.b16 %v2321
  %v2497 = vunpack.c.h.b16 %v2321
  %v2498 = vunpack.c.l.b16 %v2322
  %v2499 = vunpack.c.h.b16 %v2322
  %v2500 = vunpack.c.l.b16 %v2323
  %v2501 = vunpack.c.h.b16 %v2323
  %v2502 = vunpack.c.l.b16 %v2324
  %v2503 = vunpack.c.l.b16 %v2325
  %v2504 = vunpack.c.h.b16 %v2325
  %v2505 = vunpack.c.l.b16 %v2326
  %v2506 = vunpack.c.h.b16 %v2326
  %v2507 = vunpack.c.l.b16 %v2327
  %v2508 = vunpack.c.h.b16 %v2327
  %v2509 = vunpack.c.l.b16 %v2328
  %v2510 = vunpack.c.h.b16 %v2328
  %v2511 = vunpack.c.l.b16 %v2329
  %v2512 = vpack.c.b16 %v2404, %v2395
  %v2513 = vpack.c.b16 %v2405, %v2396
  %v2514 = vpack.c.b16 %v2406, %v2397
  %v2515 = vpack.c.b16 %v2407, %v2398
  %v2516 = vpack.c.b16 %v2408, %v2399
  %v2517 = vpack.c.b16 %v2409, %v2400
  %v2518 = vpack.c.b16 %v2410, %v2401
  %v2519 = vpack.c.b16 %v2411, %v2402
  %v2520 = vpack.c.b16 %v2412, %v2403
  %v2521 = vpack.c.b16 %v2422, %v2413
  %v2522 = vpack.c.b16 %v2423, %v2414
  %v2523 = vpack.c.b16 %v2424, %v2415
  %v2524 = vpack.c.b16 %v2425, %v2416
  %v2525 = vpack.c.b16 %v2426, %v2417
  %v2526 = vpack.c.b16 %v2427, %v2418
  %v2527 = vpack.c.b16 %v2428, %v2419
  %v2528 = vpack.c.b16 %v2429, %v2420
  %v2529 = vpack.c.b16 %v2430, %v2421
  %v2530 = vpack.c.b16 %v2440, %v2431
  %v2531 = vpack.c.b16 %v2441, %v2432
  %v2532 = vpack.c.b16 %v2442, %v2433
  %v2533 = vpack.c.b16 %v2443, %v2434
  %v2534 = vpack.c.b16 %v2444, %v2435
  %v2535 = vpack.c.b16 %v2445, %v2436
  %v2536 = vpack.c.b16 %v2446, %v2437
  %v2537 = vpack.c.b16 %v2447, %v2438
  %v2538 = vpack.c.b16 %v2448, %v2439
  %v2539 = vpack.c.b16 %v2458, %v2449
  %v2540 = vpack.c.b16 %v2459, %v2450
  %v2541 = vpack.c.b16 %v2460, %v2451
  %v2542 = vpack.c.b16 %v2461, %v2452
  %v2543 = vpack.c.b16 %v2462, %v2453
  %v2544 = vpack.c.b16 %v2463, %v2454
  %v2545 = vpack.c.b16 %v2464, %v2455
  %v2546 = vpack.c.b16 %v2465, %v2456
  %v2547 = vpack.c.b16 %v2466, %v2457
  %v2548 = vpack.c.b16 %v2476, %v2467
  %v2549 = vpack.c.b16 %v2477, %v2468
  %v2550 = vpack.c.b16 %v2478, %v2469
  %v2551 = vpack.c.b16 %v2479, %v2470
  %v2552 = vpack.c.b16 %v2480, %v2471
  %v2553 = vpack.c.b16 %v2481, %v2472
  %v2554 = vpack.c.b16 %v2482, %v2473
  %v2555 = vpack.c.b16 %v2483, %v2474
  %v2556 = vpack.c.b16 %v2484, %v2475
  %v2557 = vpack.c.b16 %v2494, %v2485
  %v2558 = vpack.c.b16 %v2495, %v2486
  %v2559 = vpack.c.b16 %v2496, %v2487
  %v2560 = vpack.c.b16 %v2497, %v2488
  %v2561 = vpack.c.b16 %v2498, %v2489
  %v2562 = vpack.c.b16 %v2499, %v2490
  %v2563 = vpack.c.b16 %v2500, %v2491
  %v2564 = vpack.c.b16 %v2501, %v2492
  %v2565 = vpack.c.b16 %v2502, %v2493
  %v2566 = vpack.c.b16 %v2503, %v2503
  %v2567 = vpack.c.b16 %v2504, %v2504
  %v2568 = vpack.c.b16 %v2505, %v2505
  %v2569 = vpack.c.b16 %v2506, %v2506
  %v2570 = vpack.c.b16 %v2507, %v2507
  %v2571 = vpack.c.b16 %v2508, %v2508
  %v2572 = vpack.c.b16 %v2509, %v2509
  %v2573 = vpack.c.b16 %v2510, %v2510
  %v2574 = vpack.c.b16 %v2511, %v2511
  %2638 = vmatprep.subr.bf16.mxu0 0
  %2639 = vmatpush1.bf16.msra.mxu0 %v834
  %2640 = vmatprep.subr.bf16.mxu0 0
  %2641 = vmatpush1.bf16.msra.mxu0 %v833
  %2642 = vmatprep.subr.bf16.mxu0 0
  %2643 = vmatpush1.bf16.msra.mxu0 %v832
  %2644 = vmatprep.subr.bf16.mxu0 0
  %2645 = vmatpush1.bf16.msra.mxu0 %v831
  %2646 = vmatprep.subr.bf16.mxu0 0
  %2647 = vmatpush1.bf16.msra.mxu0 %v830
  %2648 = vmatprep.subr.bf16.mxu0 0
  %2649 = vmatpush1.bf16.msra.mxu0 %v829
  %2650 = vmatprep.subr.bf16.mxu0 0
  %2651 = vmatpush1.bf16.msra.mxu0 %v828
  %2652 = vmatprep.subr.bf16.mxu0 0
  %2653 = vmatpush1.bf16.msra.mxu0 %v827
  %2654 = vmatprep.subr.bf16.mxu0 0
  %2655 = vmatpush2.bf16.msra.mxu0 %v842
  %2656 = vmatprep.subr.bf16.mxu0 0
  %2657 = vmatpush2.bf16.msra.mxu0 %v841
  %2658 = vmatprep.subr.bf16.mxu0 0
  %2659 = vmatpush2.bf16.msra.mxu0 %v840
  %2660 = vmatprep.subr.bf16.mxu0 0
  %2661 = vmatpush2.bf16.msra.mxu0 %v839
  %2662 = vmatprep.subr.bf16.mxu0 0
  %2663 = vmatpush2.bf16.msra.mxu0 %v838
  %2664 = vmatprep.subr.bf16.mxu0 0
  %2665 = vmatpush2.bf16.msra.mxu0 %v837
  %2666 = vmatprep.subr.bf16.mxu0 0
  %2667 = vmatpush2.bf16.msra.mxu0 %v836
  %2668 = vmatprep.subr.bf16.mxu0 0
  %2669 = vmatpush2.bf16.msra.mxu0 %v835
  %2670 = vmatprep.mubr.bf16.mxu0 %v2513
  %2671 = vmatmul.mubr.bf16.gmra.mxu0 %v2512
  %v2672 = vpop.f32.mrf.mxu0
  %v2673 = vadd.f32 %v229, %v2672
  %v2674 = vpop.f32.mrf.mxu0
  %v2675 = vpop.f32.mrf.mxu0
  %v2676 = vadd.f32 %v229, %v2675
  %v2677 = vpop.f32.mrf.mxu0
  %2678 = vmatprep.mubr.bf16.mxu0 %v2522
  %2679 = vmatmul.mubr.bf16.gmra.mxu0 %v2521
  %v2680 = vpop.f32.mrf.mxu0
  %v2681 = vadd.f32 %v229, %v2680
  %v2682 = vpop.f32.mrf.mxu0
  %v2683 = vpop.f32.mrf.mxu0
  %v2684 = vadd.f32 %v229, %v2683
  %v2685 = vpop.f32.mrf.mxu0
  %2686 = vmatprep.mubr.bf16.mxu0 %v2531
  %2687 = vmatmul.mubr.bf16.gmra.mxu0 %v2530
  %v2688 = vpop.f32.mrf.mxu0
  %v2689 = vadd.f32 %v229, %v2688
  %v2690 = vpop.f32.mrf.mxu0
  %v2691 = vpop.f32.mrf.mxu0
  %v2692 = vadd.f32 %v229, %v2691
  %v2693 = vpop.f32.mrf.mxu0
  %2694 = vmatprep.mubr.bf16.mxu0 %v2540
  %2695 = vmatmul.mubr.bf16.gmra.mxu0 %v2539
  %v2696 = vpop.f32.mrf.mxu0
  %v2697 = vadd.f32 %v229, %v2696
  %v2698 = vpop.f32.mrf.mxu0
  %v2699 = vpop.f32.mrf.mxu0
  %v2700 = vadd.f32 %v229, %v2699
  %v2701 = vpop.f32.mrf.mxu0
  %2702 = vmatprep.mubr.bf16.mxu0 %v2549
  %2703 = vmatmul.mubr.bf16.gmra.mxu0 %v2548
  %v2704 = vpop.f32.mrf.mxu0
  %v2705 = vadd.f32 %v229, %v2704
  %v2706 = vpop.f32.mrf.mxu0
  %v2707 = vpop.f32.mrf.mxu0
  %v2708 = vadd.f32 %v229, %v2707
  %v2709 = vpop.f32.mrf.mxu0
  %2710 = vmatprep.mubr.bf16.mxu0 %v2558
  %2711 = vmatmul.mubr.bf16.gmra.mxu0 %v2557
  %v2712 = vpop.f32.mrf.mxu0
  %v2713 = vadd.f32 %v229, %v2712
  %v2714 = vpop.f32.mrf.mxu0
  %v2715 = vpop.f32.mrf.mxu0
  %v2716 = vadd.f32 %v229, %v2715
  %v2717 = vpop.f32.mrf.mxu0
  %2718 = vmatprep.mubr.bf16.mxu0 %v2567
  %2719 = vmatmul.mubr.bf16.gmra.mxu0 %v2566
  %v2720 = vpop.f32.mrf.mxu0
  %v2721 = vadd.f32 %v229, %v2720
  %v2722 = vpop.f32.mrf.mxu0
  %v2723 = vpop.f32.mrf.mxu0
  %v2724 = vpop.f32.mrf.mxu0
  %2725 = vdwg.mxu0
  %2726 = vmatprep.subr.bf16.mxu0 0
  %2727 = vmatpush1.bf16.msra.mxu0 %v850
  %2728 = vmatprep.subr.bf16.mxu0 0
  %2729 = vmatpush1.bf16.msra.mxu0 %v849
  %2730 = vmatprep.subr.bf16.mxu0 0
  %2731 = vmatpush1.bf16.msra.mxu0 %v848
  %2732 = vmatprep.subr.bf16.mxu0 0
  %2733 = vmatpush1.bf16.msra.mxu0 %v847
  %2734 = vmatprep.subr.bf16.mxu0 0
  %2735 = vmatpush1.bf16.msra.mxu0 %v846
  %2736 = vmatprep.subr.bf16.mxu0 0
  %2737 = vmatpush1.bf16.msra.mxu0 %v845
  %2738 = vmatprep.subr.bf16.mxu0 0
  %2739 = vmatpush1.bf16.msra.mxu0 %v844
  %2740 = vmatprep.subr.bf16.mxu0 0
  %2741 = vmatpush1.bf16.msra.mxu0 %v843
  %2742 = vmatprep.subr.bf16.mxu0 0
  %2743 = vmatpush2.bf16.msra.mxu0 %v858
  %2744 = vmatprep.subr.bf16.mxu0 0
  %2745 = vmatpush2.bf16.msra.mxu0 %v857
  %2746 = vmatprep.subr.bf16.mxu0 0
  %2747 = vmatpush2.bf16.msra.mxu0 %v856
  %2748 = vmatprep.subr.bf16.mxu0 0
  %2749 = vmatpush2.bf16.msra.mxu0 %v855
  %2750 = vmatprep.subr.bf16.mxu0 0
  %2751 = vmatpush2.bf16.msra.mxu0 %v854
  %2752 = vmatprep.subr.bf16.mxu0 0
  %2753 = vmatpush2.bf16.msra.mxu0 %v853
  %2754 = vmatprep.subr.bf16.mxu0 0
  %2755 = vmatpush2.bf16.msra.mxu0 %v852
  %2756 = vmatprep.subr.bf16.mxu0 0
  %2757 = vmatpush2.bf16.msra.mxu0 %v851
  %2758 = vmatprep.mubr.bf16.mxu0 %v2515
  %2759 = vmatmul.mubr.bf16.gmra.mxu0 %v2514
  %v2760 = vpop.f32.mrf.mxu0
  %v2761 = vadd.f32 %v2673, %v2760
  %v2762 = vpop.f32.mrf.mxu0
  %v2763 = vpop.f32.mrf.mxu0
  %v2764 = vadd.f32 %v2676, %v2763
  %v2765 = vpop.f32.mrf.mxu0
  %2766 = vmatprep.mubr.bf16.mxu0 %v2524
  %2767 = vmatmul.mubr.bf16.gmra.mxu0 %v2523
  %v2768 = vpop.f32.mrf.mxu0
  %v2769 = vadd.f32 %v2681, %v2768
  %v2770 = vpop.f32.mrf.mxu0
  %v2771 = vpop.f32.mrf.mxu0
  %v2772 = vadd.f32 %v2684, %v2771
  %v2773 = vpop.f32.mrf.mxu0
  %2774 = vmatprep.mubr.bf16.mxu0 %v2533
  %2775 = vmatmul.mubr.bf16.gmra.mxu0 %v2532
  %v2776 = vpop.f32.mrf.mxu0
  %v2777 = vadd.f32 %v2689, %v2776
  %v2778 = vpop.f32.mrf.mxu0
  %v2779 = vpop.f32.mrf.mxu0
  %v2780 = vadd.f32 %v2692, %v2779
  %v2781 = vpop.f32.mrf.mxu0
  %2782 = vmatprep.mubr.bf16.mxu0 %v2542
  %2783 = vmatmul.mubr.bf16.gmra.mxu0 %v2541
  %v2784 = vpop.f32.mrf.mxu0
  %v2785 = vadd.f32 %v2697, %v2784
  %v2786 = vpop.f32.mrf.mxu0
  %v2787 = vpop.f32.mrf.mxu0
  %v2788 = vadd.f32 %v2700, %v2787
  %v2789 = vpop.f32.mrf.mxu0
  %2790 = vmatprep.mubr.bf16.mxu0 %v2551
  %2791 = vmatmul.mubr.bf16.gmra.mxu0 %v2550
  %v2792 = vpop.f32.mrf.mxu0
  %v2793 = vadd.f32 %v2705, %v2792
  %v2794 = vpop.f32.mrf.mxu0
  %v2795 = vpop.f32.mrf.mxu0
  %v2796 = vadd.f32 %v2708, %v2795
  %v2797 = vpop.f32.mrf.mxu0
  %2798 = vmatprep.mubr.bf16.mxu0 %v2560
  %2799 = vmatmul.mubr.bf16.gmra.mxu0 %v2559
  %v2800 = vpop.f32.mrf.mxu0
  %v2801 = vadd.f32 %v2713, %v2800
  %v2802 = vpop.f32.mrf.mxu0
  %v2803 = vpop.f32.mrf.mxu0
  %v2804 = vadd.f32 %v2716, %v2803
  %v2805 = vpop.f32.mrf.mxu0
  %2806 = vmatprep.mubr.bf16.mxu0 %v2569
  %2807 = vmatmul.mubr.bf16.gmra.mxu0 %v2568
  %v2808 = vpop.f32.mrf.mxu0
  %v2809 = vadd.f32 %v2721, %v2808
  %v2810 = vpop.f32.mrf.mxu0
  %v2811 = vpop.f32.mrf.mxu0
  %v2812 = vpop.f32.mrf.mxu0
  %2813 = vdwg.mxu0
  %2814 = vmatprep.subr.bf16.mxu0 0
  %2815 = vmatpush1.bf16.msra.mxu0 %v866
  %2816 = vmatprep.subr.bf16.mxu0 0
  %2817 = vmatpush1.bf16.msra.mxu0 %v865
  %2818 = vmatprep.subr.bf16.mxu0 0
  %2819 = vmatpush1.bf16.msra.mxu0 %v864
  %2820 = vmatprep.subr.bf16.mxu0 0
  %2821 = vmatpush1.bf16.msra.mxu0 %v863
  %2822 = vmatprep.subr.bf16.mxu0 0
  %2823 = vmatpush1.bf16.msra.mxu0 %v862
  %2824 = vmatprep.subr.bf16.mxu0 0
  %2825 = vmatpush1.bf16.msra.mxu0 %v861
  %2826 = vmatprep.subr.bf16.mxu0 0
  %2827 = vmatpush1.bf16.msra.mxu0 %v860
  %2828 = vmatprep.subr.bf16.mxu0 0
  %2829 = vmatpush1.bf16.msra.mxu0 %v859
  %2830 = vmatprep.subr.bf16.mxu0 0
  %2831 = vmatpush2.bf16.msra.mxu0 %v874
  %2832 = vmatprep.subr.bf16.mxu0 0
  %2833 = vmatpush2.bf16.msra.mxu0 %v873
  %2834 = vmatprep.subr.bf16.mxu0 0
  %2835 = vmatpush2.bf16.msra.mxu0 %v872
  %2836 = vmatprep.subr.bf16.mxu0 0
  %2837 = vmatpush2.bf16.msra.mxu0 %v871
  %2838 = vmatprep.subr.bf16.mxu0 0
  %2839 = vmatpush2.bf16.msra.mxu0 %v870
  %2840 = vmatprep.subr.bf16.mxu0 0
  %2841 = vmatpush2.bf16.msra.mxu0 %v869
  %2842 = vmatprep.subr.bf16.mxu0 0
  %2843 = vmatpush2.bf16.msra.mxu0 %v868
  %2844 = vmatprep.subr.bf16.mxu0 0
  %2845 = vmatpush2.bf16.msra.mxu0 %v867
  %2846 = vmatprep.mubr.bf16.mxu0 %v2517
  %2847 = vmatmul.mubr.bf16.gmra.mxu0 %v2516
  %v2848 = vpop.f32.mrf.mxu0
  %v2849 = vadd.f32 %v2761, %v2848
  %v2850 = vpop.f32.mrf.mxu0
  %v2851 = vpop.f32.mrf.mxu0
  %v2852 = vadd.f32 %v2764, %v2851
  %v2853 = vpop.f32.mrf.mxu0
  %2854 = vmatprep.mubr.bf16.mxu0 %v2526
  %2855 = vmatmul.mubr.bf16.gmra.mxu0 %v2525
  %v2856 = vpop.f32.mrf.mxu0
  %v2857 = vadd.f32 %v2769, %v2856
  %v2858 = vpop.f32.mrf.mxu0
  %v2859 = vpop.f32.mrf.mxu0
  %v2860 = vadd.f32 %v2772, %v2859
  %v2861 = vpop.f32.mrf.mxu0
  %2862 = vmatprep.mubr.bf16.mxu0 %v2535
  %2863 = vmatmul.mubr.bf16.gmra.mxu0 %v2534
  %v2864 = vpop.f32.mrf.mxu0
  %v2865 = vadd.f32 %v2777, %v2864
  %v2866 = vpop.f32.mrf.mxu0
  %v2867 = vpop.f32.mrf.mxu0
  %v2868 = vadd.f32 %v2780, %v2867
  %v2869 = vpop.f32.mrf.mxu0
  %2870 = vmatprep.mubr.bf16.mxu0 %v2544
  %2871 = vmatmul.mubr.bf16.gmra.mxu0 %v2543
  %v2872 = vpop.f32.mrf.mxu0
  %v2873 = vadd.f32 %v2785, %v2872
  %v2874 = vpop.f32.mrf.mxu0
  %v2875 = vpop.f32.mrf.mxu0
  %v2876 = vadd.f32 %v2788, %v2875
  %v2877 = vpop.f32.mrf.mxu0
  %2878 = vmatprep.mubr.bf16.mxu0 %v2553
  %2879 = vmatmul.mubr.bf16.gmra.mxu0 %v2552
  %v2880 = vpop.f32.mrf.mxu0
  %v2881 = vadd.f32 %v2793, %v2880
  %v2882 = vpop.f32.mrf.mxu0
  %v2883 = vpop.f32.mrf.mxu0
  %v2884 = vadd.f32 %v2796, %v2883
  %v2885 = vpop.f32.mrf.mxu0
  %2886 = vmatprep.mubr.bf16.mxu0 %v2562
  %2887 = vmatmul.mubr.bf16.gmra.mxu0 %v2561
  %v2888 = vpop.f32.mrf.mxu0
  %v2889 = vadd.f32 %v2801, %v2888
  %v2890 = vpop.f32.mrf.mxu0
  %v2891 = vpop.f32.mrf.mxu0
  %v2892 = vadd.f32 %v2804, %v2891
  %v2893 = vpop.f32.mrf.mxu0
  %2894 = vmatprep.mubr.bf16.mxu0 %v2571
  %2895 = vmatmul.mubr.bf16.gmra.mxu0 %v2570
  %v2896 = vpop.f32.mrf.mxu0
  %v2897 = vadd.f32 %v2809, %v2896
  %v2898 = vpop.f32.mrf.mxu0
  %v2899 = vpop.f32.mrf.mxu0
  %v2900 = vpop.f32.mrf.mxu0
  %2901 = vdwg.mxu0
  %2902 = vmatprep.subr.bf16.mxu0 0
  %2903 = vmatpush1.bf16.msra.mxu0 %v882
  %2904 = vmatprep.subr.bf16.mxu0 0
  %2905 = vmatpush1.bf16.msra.mxu0 %v881
  %2906 = vmatprep.subr.bf16.mxu0 0
  %2907 = vmatpush1.bf16.msra.mxu0 %v880
  %2908 = vmatprep.subr.bf16.mxu0 0
  %2909 = vmatpush1.bf16.msra.mxu0 %v879
  %2910 = vmatprep.subr.bf16.mxu0 0
  %2911 = vmatpush1.bf16.msra.mxu0 %v878
  %2912 = vmatprep.subr.bf16.mxu0 0
  %2913 = vmatpush1.bf16.msra.mxu0 %v877
  %2914 = vmatprep.subr.bf16.mxu0 0
  %2915 = vmatpush1.bf16.msra.mxu0 %v876
  %2916 = vmatprep.subr.bf16.mxu0 0
  %2917 = vmatpush1.bf16.msra.mxu0 %v875
  %2918 = vmatprep.subr.bf16.mxu0 0
  %2919 = vmatpush2.bf16.msra.mxu0 %v890
  %2920 = vmatprep.subr.bf16.mxu0 0
  %2921 = vmatpush2.bf16.msra.mxu0 %v889
  %2922 = vmatprep.subr.bf16.mxu0 0
  %2923 = vmatpush2.bf16.msra.mxu0 %v888
  %2924 = vmatprep.subr.bf16.mxu0 0
  %2925 = vmatpush2.bf16.msra.mxu0 %v887
  %2926 = vmatprep.subr.bf16.mxu0 0
  %2927 = vmatpush2.bf16.msra.mxu0 %v886
  %2928 = vmatprep.subr.bf16.mxu0 0
  %2929 = vmatpush2.bf16.msra.mxu0 %v885
  %2930 = vmatprep.subr.bf16.mxu0 0
  %2931 = vmatpush2.bf16.msra.mxu0 %v884
  %2932 = vmatprep.subr.bf16.mxu0 0
  %2933 = vmatpush2.bf16.msra.mxu0 %v883
  %2934 = vmatprep.mubr.bf16.mxu0 %v2519
  %2935 = vmatmul.mubr.bf16.gmra.mxu0 %v2518
  %v2936 = vpop.f32.mrf.mxu0
  %v2937 = vadd.f32 %v2849, %v2936
  %v2938 = vpop.f32.mrf.mxu0
  %v2939 = vpop.f32.mrf.mxu0
  %v2940 = vadd.f32 %v2852, %v2939
  %v2941 = vpop.f32.mrf.mxu0
  %2942 = vmatprep.mubr.bf16.mxu0 %v2528
  %2943 = vmatmul.mubr.bf16.gmra.mxu0 %v2527
  %v2944 = vpop.f32.mrf.mxu0
  %v2945 = vadd.f32 %v2857, %v2944
  %v2946 = vpop.f32.mrf.mxu0
  %v2947 = vpop.f32.mrf.mxu0
  %v2948 = vadd.f32 %v2860, %v2947
  %v2949 = vpop.f32.mrf.mxu0
  %2950 = vmatprep.mubr.bf16.mxu0 %v2537
  %2951 = vmatmul.mubr.bf16.gmra.mxu0 %v2536
  %v2952 = vpop.f32.mrf.mxu0
  %v2953 = vadd.f32 %v2865, %v2952
  %v2954 = vpop.f32.mrf.mxu0
  %v2955 = vpop.f32.mrf.mxu0
  %v2956 = vadd.f32 %v2868, %v2955
  %v2957 = vpop.f32.mrf.mxu0
  %2958 = vmatprep.mubr.bf16.mxu0 %v2546
  %2959 = vmatmul.mubr.bf16.gmra.mxu0 %v2545
  %v2960 = vpop.f32.mrf.mxu0
  %v2961 = vadd.f32 %v2873, %v2960
  %v2962 = vpop.f32.mrf.mxu0
  %v2963 = vpop.f32.mrf.mxu0
  %v2964 = vadd.f32 %v2876, %v2963
  %v2965 = vpop.f32.mrf.mxu0
  %2966 = vmatprep.mubr.bf16.mxu0 %v2555
  %2967 = vmatmul.mubr.bf16.gmra.mxu0 %v2554
  %v2968 = vpop.f32.mrf.mxu0
  %v2969 = vadd.f32 %v2881, %v2968
  %v2970 = vpop.f32.mrf.mxu0
  %v2971 = vpop.f32.mrf.mxu0
  %v2972 = vadd.f32 %v2884, %v2971
  %v2973 = vpop.f32.mrf.mxu0
  %2974 = vmatprep.mubr.bf16.mxu0 %v2564
  %2975 = vmatmul.mubr.bf16.gmra.mxu0 %v2563
  %v2976 = vpop.f32.mrf.mxu0
  %v2977 = vadd.f32 %v2889, %v2976
  %v2978 = vpop.f32.mrf.mxu0
  %v2979 = vpop.f32.mrf.mxu0
  %v2980 = vadd.f32 %v2892, %v2979
  %v2981 = vpop.f32.mrf.mxu0
  %2982 = vmatprep.mubr.bf16.mxu0 %v2573
  %2983 = vmatmul.mubr.bf16.gmra.mxu0 %v2572
  %v2984 = vpop.f32.mrf.mxu0
  %v2985 = vadd.f32 %v2897, %v2984
  %v2986 = vpop.f32.mrf.mxu0
  %v2987 = vpop.f32.mrf.mxu0
  %v2988 = vpop.f32.mrf.mxu0
  %2989 = vdwg.mxu0
  %2990 = vmatprep.subr.bf16.mxu0 0
  %2991 = vmatpush1.bf16.msra.mxu0 %v898
  %2992 = vmatprep.subr.bf16.mxu0 0
  %2993 = vmatpush1.bf16.msra.mxu0 %v897
  %2994 = vmatprep.subr.bf16.mxu0 0
  %2995 = vmatpush1.bf16.msra.mxu0 %v896
  %2996 = vmatprep.subr.bf16.mxu0 0
  %2997 = vmatpush1.bf16.msra.mxu0 %v895
  %2998 = vmatprep.subr.bf16.mxu0 0
  %2999 = vmatpush1.bf16.msra.mxu0 %v894
  %3000 = vmatprep.subr.bf16.mxu0 0
  %3001 = vmatpush1.bf16.msra.mxu0 %v893
  %3002 = vmatprep.subr.bf16.mxu0 0
  %3003 = vmatpush1.bf16.msra.mxu0 %v892
  %3004 = vmatprep.subr.bf16.mxu0 0
  %3005 = vmatpush1.bf16.msra.mxu0 %v891
  %3006 = vmatprep.subr.bf16.mxu0 0
  %3007 = vmatpush2.bf16.msra.mxu0 0
  %3008 = vmatprep.subr.bf16.mxu0 0
  %3009 = vmatpush2.bf16.msra.mxu0 0
  %3010 = vmatprep.subr.bf16.mxu0 0
  %3011 = vmatpush2.bf16.msra.mxu0 0
  %3012 = vmatprep.subr.bf16.mxu0 0
  %3013 = vmatpush2.bf16.msra.mxu0 0
  %3014 = vmatprep.subr.bf16.mxu0 0
  %3015 = vmatpush2.bf16.msra.mxu0 0
  %3016 = vmatprep.subr.bf16.mxu0 0
  %3017 = vmatpush2.bf16.msra.mxu0 0
  %3018 = vmatprep.subr.bf16.mxu0 0
  %3019 = vmatpush2.bf16.msra.mxu0 0
  %3020 = vmatprep.subr.bf16.mxu0 0
  %3021 = vmatpush2.bf16.msra.mxu0 0
  %3022 = vmatprep.mubr.bf16.mxu0 0
  %3023 = vmatmul.mubr.bf16.gmra.mxu0 %v2520
  %v3024 = vpop.f32.mrf.mxu0
  %v3025 = vadd.f32 %v2937, %v3024
  %v3026 = vpop.f32.mrf.mxu0
  %v3027 = vpop.f32.mrf.mxu0
  %v3028 = vadd.f32 %v2940, %v3027
  %v3029 = vpop.f32.mrf.mxu0
  %3030 = vmatprep.mubr.bf16.mxu0 0
  %3031 = vmatmul.mubr.bf16.gmra.mxu0 %v2529
  %v3032 = vpop.f32.mrf.mxu0
  %v3033 = vadd.f32 %v2945, %v3032
  %v3034 = vpop.f32.mrf.mxu0
  %v3035 = vpop.f32.mrf.mxu0
  %v3036 = vadd.f32 %v2948, %v3035
  %v3037 = vpop.f32.mrf.mxu0
  %3038 = vmatprep.mubr.bf16.mxu0 0
  %3039 = vmatmul.mubr.bf16.gmra.mxu0 %v2538
  %v3040 = vpop.f32.mrf.mxu0
  %v3041 = vadd.f32 %v2953, %v3040
  %v3042 = vpop.f32.mrf.mxu0
  %v3043 = vpop.f32.mrf.mxu0
  %v3044 = vadd.f32 %v2956, %v3043
  %v3045 = vpop.f32.mrf.mxu0
  %3046 = vmatprep.mubr.bf16.mxu0 0
  %3047 = vmatmul.mubr.bf16.gmra.mxu0 %v2547
  %v3048 = vpop.f32.mrf.mxu0
  %v3049 = vadd.f32 %v2961, %v3048
  %v3050 = vpop.f32.mrf.mxu0
  %v3051 = vpop.f32.mrf.mxu0
  %v3052 = vadd.f32 %v2964, %v3051
  %v3053 = vpop.f32.mrf.mxu0
  %3054 = vmatprep.mubr.bf16.mxu0 0
  %3055 = vmatmul.mubr.bf16.gmra.mxu0 %v2556
  %v3056 = vpop.f32.mrf.mxu0
  %v3057 = vadd.f32 %v2969, %v3056
  %v3058 = vpop.f32.mrf.mxu0
  %v3059 = vpop.f32.mrf.mxu0
  %v3060 = vadd.f32 %v2972, %v3059
  %v3061 = vpop.f32.mrf.mxu0
  %3062 = vmatprep.mubr.bf16.mxu0 0
  %3063 = vmatmul.mubr.bf16.gmra.mxu0 %v2565
  %v3064 = vpop.f32.mrf.mxu0
  %v3065 = vadd.f32 %v2977, %v3064
  %v3066 = vpop.f32.mrf.mxu0
  %v3067 = vpop.f32.mrf.mxu0
  %v3068 = vadd.f32 %v2980, %v3067
  %v3069 = vpop.f32.mrf.mxu0
  %3070 = vmatprep.mubr.bf16.mxu0 0
  %3071 = vmatmul.mubr.bf16.gmra.mxu0 %v2574
  %v3072 = vpop.f32.mrf.mxu0
  %v3073 = vadd.f32 %v2985, %v3072
  %v3074 = vpop.f32.mrf.mxu0
  %v3075 = vpop.f32.mrf.mxu0
  %v3076 = vpop.f32.mrf.mxu0
  %3077 = vdwg.mxu0
  %v3078 = vmax.f32 %v3025, 0.0
  %v3079 = vmax.f32 %v3028, 0.0
  %v3080 = vmax.f32 %v3033, 0.0
  %v3081 = vmax.f32 %v3036, 0.0
  %v3082 = vmax.f32 %v3041, 0.0
  %v3083 = vmax.f32 %v3044, 0.0
  %v3084 = vmax.f32 %v3049, 0.0
  %v3085 = vmax.f32 %v3052, 0.0
  %v3086 = vmax.f32 %v3057, 0.0
  %v3087 = vmax.f32 %v3060, 0.0
  %v3088 = vmax.f32 %v3065, 0.0
  %v3089 = vmax.f32 %v3068, 0.0
  %v3090 = vmax.f32 %v3073, 0.0
  %v3091 = vmax.f32 %v2251, %v3078
  %v3092 = vmax.f32 %v2252, %v3079
  %v3093 = vmax.f32 %v2253, %v3080
  %v3094 = vmax.f32 %v2254, %v3081
  %v3095 = vmax.f32 %v2255, %v3082
  %v3096 = vmax.f32 %v2256, %v3083
  %v3097 = vmax.f32 %v2257, %v3084
  %v3098 = vmax.f32 %v2258, %v3085
  %v3099 = vmax.f32 %v2259, %v3086
  %v3100 = vmax.f32 %v2260, %v3087
  %v3101 = vmax.f32 %v2261, %v3088
  %v3102 = vmax.f32 %v2262, %v3089
  %v3103 = vmax.f32 %v2263, %v3090
  %s3104 = scalar_lea.vmem %s0, 1404
  %v3105 = vld [vmem:[%s3104] sm:$0xff]
  %v3106 = vld [vmem:[%s3104 + $0x8] sm:$0xff]
  %v3107 = vld [vmem:[%s3104 + $0x10] sm:$0xff]
  %v3108 = vld [vmem:[%s3104 + $0x18] sm:$0xff]
  %v3109 = vld [vmem:[%s3104 + $0x20] sm:$0xf]
  %v3110 = vld [vmem:[%s3104 + $0x24] sm:$0xff]
  %v3111 = vld [vmem:[%s3104 + $0x2c] sm:$0xff]
  %v3112 = vld [vmem:[%s3104 + $0x34] sm:$0xff]
  %v3113 = vld [vmem:[%s3104 + $0x3c] sm:$0xff]
  %v3114 = vld [vmem:[%s3104 + $0x44] sm:$0xf]
  %v3115 = vld [vmem:[%s3104 + $0x48] sm:$0xff]
  %v3116 = vld [vmem:[%s3104 + $0x50] sm:$0xff]
  %v3117 = vld [vmem:[%s3104 + $0x58] sm:$0xff]
  %v3118 = vld [vmem:[%s3104 + $0x60] sm:$0xff]
  %v3119 = vld [vmem:[%s3104 + $0x68] sm:$0xf]
  %v3120 = vld [vmem:[%s3104 + $0x6c] sm:$0xff]
  %v3121 = vld [vmem:[%s3104 + $0x74] sm:$0xff]
  %v3122 = vld [vmem:[%s3104 + $0x7c] sm:$0xff]
  %v3123 = vld [vmem:[%s3104 + $0x84] sm:$0xff]
  %v3124 = vld [vmem:[%s3104 + $0x8c] sm:$0xf]
  %v3125 = vld [vmem:[%s3104 + $0x90] sm:$0xff]
  %v3126 = vld [vmem:[%s3104 + $0x98] sm:$0xff]
  %v3127 = vld [vmem:[%s3104 + $0xa0] sm:$0xff]
  %v3128 = vld [vmem:[%s3104 + $0xa8] sm:$0xff]
  %v3129 = vld [vmem:[%s3104 + $0xb0] sm:$0xf]
  %v3130 = vld [vmem:[%s3104 + $0xb4] sm:$0xff]
  %v3131 = vld [vmem:[%s3104 + $0xbc] sm:$0xff]
  %v3132 = vld [vmem:[%s3104 + $0xc4] sm:$0xff]
  %v3133 = vld [vmem:[%s3104 + $0xcc] sm:$0xff]
  %v3134 = vld [vmem:[%s3104 + $0xd4] sm:$0xf]
  %v3135 = vld [vmem:[%s3104 + $0xd8] sm:$0xff]
  %v3136 = vld [vmem:[%s3104 + $0xe0] sm:$0xff]
  %v3137 = vld [vmem:[%s3104 + $0xe8] sm:$0xff]
  %v3138 = vld [vmem:[%s3104 + $0xf0] sm:$0xff]
  %v3139 = vld [vmem:[%s3104 + $0xf8] sm:$0xf]
  %v3140 = vld [vmem:[%s3104 + $0xfc] sm:$0xff]
  %v3141 = vld [vmem:[%s3104 + $0x104] sm:$0xff]
  %v3142 = vld [vmem:[%s3104 + $0x10c] sm:$0xff]
  %v3143 = vld [vmem:[%s3104 + $0x114] sm:$0xff]
  %v3144 = vld [vmem:[%s3104 + $0x11c] sm:$0xf]
  %v3145 = vld [vmem:[%s3104 + $0x120] sm:$0xff]
  %v3146 = vld [vmem:[%s3104 + $0x128] sm:$0xff]
  %v3147 = vld [vmem:[%s3104 + $0x130] sm:$0xff]
  %v3148 = vld [vmem:[%s3104 + $0x138] sm:$0xff]
  %v3149 = vld [vmem:[%s3104 + $0x140] sm:$0xf]
  %v3150 = vld [vmem:[%s3104 + $0x144] sm:$0xff]
  %v3151 = vld [vmem:[%s3104 + $0x14c] sm:$0xff]
  %v3152 = vld [vmem:[%s3104 + $0x154] sm:$0xff]
  %v3153 = vld [vmem:[%s3104 + $0x15c] sm:$0xff]
  %v3154 = vld [vmem:[%s3104 + $0x164] sm:$0xf]
  %v3155 = vld [vmem:[%s3104 + $0x168] sm:$0xff]
  %v3156 = vld [vmem:[%s3104 + $0x170] sm:$0xff]
  %v3157 = vld [vmem:[%s3104 + $0x178] sm:$0xff]
  %v3158 = vld [vmem:[%s3104 + $0x180] sm:$0xff]
  %v3159 = vld [vmem:[%s3104 + $0x188] sm:$0xf]
  %v3160 = vld [vmem:[%s3104 + $0x18c] sm:$0xff]
  %v3161 = vld [vmem:[%s3104 + $0x194] sm:$0xff]
  %v3162 = vld [vmem:[%s3104 + $0x19c] sm:$0xff]
  %v3163 = vld [vmem:[%s3104 + $0x1a4] sm:$0xff]
  %v3164 = vld [vmem:[%s3104 + $0x1ac] sm:$0xf]
  %v3165 = vld [vmem:[%s3104 + $0x1b0] sm:$0x11]
  %v3166 = vld [vmem:[%s3104 + $0x1b8] sm:$0x11]
  %v3167 = vld [vmem:[%s3104 + $0x1c0] sm:$0x11]
  %v3168 = vld [vmem:[%s3104 + $0x1c8] sm:$0x11]
  %v3169 = vld [vmem:[%s3104 + $0x1d0] sm:$0x1]
  %v3235 = vunpack.c.l.b16 %v3105
  %v3236 = vunpack.c.h.b16 %v3105
  %v3237 = vunpack.c.l.b16 %v3106
  %v3238 = vunpack.c.h.b16 %v3106
  %v3239 = vunpack.c.l.b16 %v3107
  %v3240 = vunpack.c.h.b16 %v3107
  %v3241 = vunpack.c.l.b16 %v3108
  %v3242 = vunpack.c.h.b16 %v3108
  %v3243 = vunpack.c.l.b16 %v3109
  %v3244 = vunpack.c.l.b16 %v3110
  %v3245 = vunpack.c.h.b16 %v3110
  %v3246 = vunpack.c.l.b16 %v3111
  %v3247 = vunpack.c.h.b16 %v3111
  %v3248 = vunpack.c.l.b16 %v3112
  %v3249 = vunpack.c.h.b16 %v3112
  %v3250 = vunpack.c.l.b16 %v3113
  %v3251 = vunpack.c.h.b16 %v3113
  %v3252 = vunpack.c.l.b16 %v3114
  %v3253 = vunpack.c.l.b16 %v3115
  %v3254 = vunpack.c.h.b16 %v3115
  %v3255 = vunpack.c.l.b16 %v3116
  %v3256 = vunpack.c.h.b16 %v3116
  %v3257 = vunpack.c.l.b16 %v3117
  %v3258 = vunpack.c.h.b16 %v3117
  %v3259 = vunpack.c.l.b16 %v3118
  %v3260 = vunpack.c.h.b16 %v3118
  %v3261 = vunpack.c.l.b16 %v3119
  %v3262 = vunpack.c.l.b16 %v3120
  %v3263 = vunpack.c.h.b16 %v3120
  %v3264 = vunpack.c.l.b16 %v3121
  %v3265 = vunpack.c.h.b16 %v3121
  %v3266 = vunpack.c.l.b16 %v3122
  %v3267 = vunpack.c.h.b16 %v3122
  %v3268 = vunpack.c.l.b16 %v3123
  %v3269 = vunpack.c.h.b16 %v3123
  %v3270 = vunpack.c.l.b16 %v3124
  %v3271 = vunpack.c.l.b16 %v3125
  %v3272 = vunpack.c.h.b16 %v3125
  %v3273 = vunpack.c.l.b16 %v3126
  %v3274 = vunpack.c.h.b16 %v3126
  %v3275 = vunpack.c.l.b16 %v3127
  %v3276 = vunpack.c.h.b16 %v3127
  %v3277 = vunpack.c.l.b16 %v3128
  %v3278 = vunpack.c.h.b16 %v3128
  %v3279 = vunpack.c.l.b16 %v3129
  %v3280 = vunpack.c.l.b16 %v3130
  %v3281 = vunpack.c.h.b16 %v3130
  %v3282 = vunpack.c.l.b16 %v3131
  %v3283 = vunpack.c.h.b16 %v3131
  %v3284 = vunpack.c.l.b16 %v3132
  %v3285 = vunpack.c.h.b16 %v3132
  %v3286 = vunpack.c.l.b16 %v3133
  %v3287 = vunpack.c.h.b16 %v3133
  %v3288 = vunpack.c.l.b16 %v3134
  %v3289 = vunpack.c.l.b16 %v3135
  %v3290 = vunpack.c.h.b16 %v3135
  %v3291 = vunpack.c.l.b16 %v3136
  %v3292 = vunpack.c.h.b16 %v3136
  %v3293 = vunpack.c.l.b16 %v3137
  %v3294 = vunpack.c.h.b16 %v3137
  %v3295 = vunpack.c.l.b16 %v3138
  %v3296 = vunpack.c.h.b16 %v3138
  %v3297 = vunpack.c.l.b16 %v3139
  %v3298 = vunpack.c.l.b16 %v3140
  %v3299 = vunpack.c.h.b16 %v3140
  %v3300 = vunpack.c.l.b16 %v3141
  %v3301 = vunpack.c.h.b16 %v3141
  %v3302 = vunpack.c.l.b16 %v3142
  %v3303 = vunpack.c.h.b16 %v3142
  %v3304 = vunpack.c.l.b16 %v3143
  %v3305 = vunpack.c.h.b16 %v3143
  %v3306 = vunpack.c.l.b16 %v3144
  %v3307 = vunpack.c.l.b16 %v3145
  %v3308 = vunpack.c.h.b16 %v3145
  %v3309 = vunpack.c.l.b16 %v3146
  %v3310 = vunpack.c.h.b16 %v3146
  %v3311 = vunpack.c.l.b16 %v3147
  %v3312 = vunpack.c.h.b16 %v3147
  %v3313 = vunpack.c.l.b16 %v3148
  %v3314 = vunpack.c.h.b16 %v3148
  %v3315 = vunpack.c.l.b16 %v3149
  %v3316 = vunpack.c.l.b16 %v3150
  %v3317 = vunpack.c.h.b16 %v3150
  %v3318 = vunpack.c.l.b16 %v3151
  %v3319 = vunpack.c.h.b16 %v3151
  %v3320 = vunpack.c.l.b16 %v3152
  %v3321 = vunpack.c.h.b16 %v3152
  %v3322 = vunpack.c.l.b16 %v3153
  %v3323 = vunpack.c.h.b16 %v3153
  %v3324 = vunpack.c.l.b16 %v3154
  %v3325 = vunpack.c.l.b16 %v3155
  %v3326 = vunpack.c.h.b16 %v3155
  %v3327 = vunpack.c.l.b16 %v3156
  %v3328 = vunpack.c.h.b16 %v3156
  %v3329 = vunpack.c.l.b16 %v3157
  %v3330 = vunpack.c.h.b16 %v3157
  %v3331 = vunpack.c.l.b16 %v3158
  %v3332 = vunpack.c.h.b16 %v3158
  %v3333 = vunpack.c.l.b16 %v3159
  %v3334 = vunpack.c.l.b16 %v3160
  %v3335 = vunpack.c.h.b16 %v3160
  %v3336 = vunpack.c.l.b16 %v3161
  %v3337 = vunpack.c.h.b16 %v3161
  %v3338 = vunpack.c.l.b16 %v3162
  %v3339 = vunpack.c.h.b16 %v3162
  %v3340 = vunpack.c.l.b16 %v3163
  %v3341 = vunpack.c.h.b16 %v3163
  %v3342 = vunpack.c.l.b16 %v3164
  %v3343 = vunpack.c.l.b16 %v3165
  %v3344 = vunpack.c.h.b16 %v3165
  %v3345 = vunpack.c.l.b16 %v3166
  %v3346 = vunpack.c.h.b16 %v3166
  %v3347 = vunpack.c.l.b16 %v3167
  %v3348 = vunpack.c.h.b16 %v3167
  %v3349 = vunpack.c.l.b16 %v3168
  %v3350 = vunpack.c.h.b16 %v3168
  %v3351 = vunpack.c.l.b16 %v3169
  %v3352 = vpack.c.b16 %v3244, %v3235
  %v3353 = vpack.c.b16 %v3245, %v3236
  %v3354 = vpack.c.b16 %v3246, %v3237
  %v3355 = vpack.c.b16 %v3247, %v3238
  %v3356 = vpack.c.b16 %v3248, %v3239
  %v3357 = vpack.c.b16 %v3249, %v3240
  %v3358 = vpack.c.b16 %v3250, %v3241
  %v3359 = vpack.c.b16 %v3251, %v3242
  %v3360 = vpack.c.b16 %v3252, %v3243
  %v3361 = vpack.c.b16 %v3262, %v3253
  %v3362 = vpack.c.b16 %v3263, %v3254
  %v3363 = vpack.c.b16 %v3264, %v3255
  %v3364 = vpack.c.b16 %v3265, %v3256
  %v3365 = vpack.c.b16 %v3266, %v3257
  %v3366 = vpack.c.b16 %v3267, %v3258
  %v3367 = vpack.c.b16 %v3268, %v3259
  %v3368 = vpack.c.b16 %v3269, %v3260
  %v3369 = vpack.c.b16 %v3270, %v3261
  %v3370 = vpack.c.b16 %v3280, %v3271
  %v3371 = vpack.c.b16 %v3281, %v3272
  %v3372 = vpack.c.b16 %v3282, %v3273
  %v3373 = vpack.c.b16 %v3283, %v3274
  %v3374 = vpack.c.b16 %v3284, %v3275
  %v3375 = vpack.c.b16 %v3285, %v3276
  %v3376 = vpack.c.b16 %v3286, %v3277
  %v3377 = vpack.c.b16 %v3287, %v3278
  %v3378 = vpack.c.b16 %v3288, %v3279
  %v3379 = vpack.c.b16 %v3298, %v3289
  %v3380 = vpack.c.b16 %v3299, %v3290
  %v3381 = vpack.c.b16 %v3300, %v3291
  %v3382 = vpack.c.b16 %v3301, %v3292
  %v3383 = vpack.c.b16 %v3302, %v3293
  %v3384 = vpack.c.b16 %v3303, %v3294
  %v3385 = vpack.c.b16 %v3304, %v3295
  %v3386 = vpack.c.b16 %v3305, %v3296
  %v3387 = vpack.c.b16 %v3306, %v3297
  %v3388 = vpack.c.b16 %v3316, %v3307
  %v3389 = vpack.c.b16 %v3317, %v3308
  %v3390 = vpack.c.b16 %v3318, %v3309
  %v3391 = vpack.c.b16 %v3319, %v3310
  %v3392 = vpack.c.b16 %v3320, %v3311
  %v3393 = vpack.c.b16 %v3321, %v3312
  %v3394 = vpack.c.b16 %v3322, %v3313
  %v3395 = vpack.c.b16 %v3323, %v3314
  %v3396 = vpack.c.b16 %v3324, %v3315
  %v3397 = vpack.c.b16 %v3334, %v3325
  %v3398 = vpack.c.b16 %v3335, %v3326
  %v3399 = vpack.c.b16 %v3336, %v3327
  %v3400 = vpack.c.b16 %v3337, %v3328
  %v3401 = vpack.c.b16 %v3338, %v3329
  %v3402 = vpack.c.b16 %v3339, %v3330
  %v3403 = vpack.c.b16 %v3340, %v3331
  %v3404 = vpack.c.b16 %v3341, %v3332
  %v3405 = vpack.c.b16 %v3342, %v3333
  %v3406 = vpack.c.b16 %v3343, %v3343
  %v3407 = vpack.c.b16 %v3344, %v3344
  %v3408 = vpack.c.b16 %v3345, %v3345
  %v3409 = vpack.c.b16 %v3346, %v3346
  %v3410 = vpack.c.b16 %v3347, %v3347
  %v3411 = vpack.c.b16 %v3348, %v3348
  %v3412 = vpack.c.b16 %v3349, %v3349
  %v3413 = vpack.c.b16 %v3350, %v3350
  %v3414 = vpack.c.b16 %v3351, %v3351
  %3478 = vmatprep.subr.bf16.mxu0 0
  %3479 = vmatpush1.bf16.msra.mxu0 %v834
  %3480 = vmatprep.subr.bf16.mxu0 0
  %3481 = vmatpush1.bf16.msra.mxu0 %v833
  %3482 = vmatprep.subr.bf16.mxu0 0
  %3483 = vmatpush1.bf16.msra.mxu0 %v832
  %3484 = vmatprep.subr.bf16.mxu0 0
  %3485 = vmatpush1.bf16.msra.mxu0 %v831
  %3486 = vmatprep.subr.bf16.mxu0 0
  %3487 = vmatpush1.bf16.msra.mxu0 %v830
  %3488 = vmatprep.subr.bf16.mxu0 0
  %3489 = vmatpush1.bf16.msra.mxu0 %v829
  %3490 = vmatprep.subr.bf16.mxu0 0
  %3491 = vmatpush1.bf16.msra.mxu0 %v828
  %3492 = vmatprep.subr.bf16.mxu0 0
  %3493 = vmatpush1.bf16.msra.mxu0 %v827
  %3494 = vmatprep.subr.bf16.mxu0 0
  %3495 = vmatpush2.bf16.msra.mxu0 %v842
  %3496 = vmatprep.subr.bf16.mxu0 0
  %3497 = vmatpush2.bf16.msra.mxu0 %v841
  %3498 = vmatprep.subr.bf16.mxu0 0
  %3499 = vmatpush2.bf16.msra.mxu0 %v840
  %3500 = vmatprep.subr.bf16.mxu0 0
  %3501 = vmatpush2.bf16.msra.mxu0 %v839
  %3502 = vmatprep.subr.bf16.mxu0 0
  %3503 = vmatpush2.bf16.msra.mxu0 %v838
  %3504 = vmatprep.subr.bf16.mxu0 0
  %3505 = vmatpush2.bf16.msra.mxu0 %v837
  %3506 = vmatprep.subr.bf16.mxu0 0
  %3507 = vmatpush2.bf16.msra.mxu0 %v836
  %3508 = vmatprep.subr.bf16.mxu0 0
  %3509 = vmatpush2.bf16.msra.mxu0 %v835
  %3510 = vmatprep.mubr.bf16.mxu0 %v3353
  %3511 = vmatmul.mubr.bf16.gmra.mxu0 %v3352
  %v3512 = vpop.f32.mrf.mxu0
  %v3513 = vadd.f32 %v229, %v3512
  %v3514 = vpop.f32.mrf.mxu0
  %v3515 = vpop.f32.mrf.mxu0
  %v3516 = vadd.f32 %v229, %v3515
  %v3517 = vpop.f32.mrf.mxu0
  %3518 = vmatprep.mubr.bf16.mxu0 %v3362
  %3519 = vmatmul.mubr.bf16.gmra.mxu0 %v3361
  %v3520 = vpop.f32.mrf.mxu0
  %v3521 = vadd.f32 %v229, %v3520
  %v3522 = vpop.f32.mrf.mxu0
  %v3523 = vpop.f32.mrf.mxu0
  %v3524 = vadd.f32 %v229, %v3523
  %v3525 = vpop.f32.mrf.mxu0
  %3526 = vmatprep.mubr.bf16.mxu0 %v3371
  %3527 = vmatmul.mubr.bf16.gmra.mxu0 %v3370
  %v3528 = vpop.f32.mrf.mxu0
  %v3529 = vadd.f32 %v229, %v3528
  %v3530 = vpop.f32.mrf.mxu0
  %v3531 = vpop.f32.mrf.mxu0
  %v3532 = vadd.f32 %v229, %v3531
  %v3533 = vpop.f32.mrf.mxu0
  %3534 = vmatprep.mubr.bf16.mxu0 %v3380
  %3535 = vmatmul.mubr.bf16.gmra.mxu0 %v3379
  %v3536 = vpop.f32.mrf.mxu0
  %v3537 = vadd.f32 %v229, %v3536
  %v3538 = vpop.f32.mrf.mxu0
  %v3539 = vpop.f32.mrf.mxu0
  %v3540 = vadd.f32 %v229, %v3539
  %v3541 = vpop.f32.mrf.mxu0
  %3542 = vmatprep.mubr.bf16.mxu0 %v3389
  %3543 = vmatmul.mubr.bf16.gmra.mxu0 %v3388
  %v3544 = vpop.f32.mrf.mxu0
  %v3545 = vadd.f32 %v229, %v3544
  %v3546 = vpop.f32.mrf.mxu0
  %v3547 = vpop.f32.mrf.mxu0
  %v3548 = vadd.f32 %v229, %v3547
  %v3549 = vpop.f32.mrf.mxu0
  %3550 = vmatprep.mubr.bf16.mxu0 %v3398
  %3551 = vmatmul.mubr.bf16.gmra.mxu0 %v3397
  %v3552 = vpop.f32.mrf.mxu0
  %v3553 = vadd.f32 %v229, %v3552
  %v3554 = vpop.f32.mrf.mxu0
  %v3555 = vpop.f32.mrf.mxu0
  %v3556 = vadd.f32 %v229, %v3555
  %v3557 = vpop.f32.mrf.mxu0
  %3558 = vmatprep.mubr.bf16.mxu0 %v3407
  %3559 = vmatmul.mubr.bf16.gmra.mxu0 %v3406
  %v3560 = vpop.f32.mrf.mxu0
  %v3561 = vadd.f32 %v229, %v3560
  %v3562 = vpop.f32.mrf.mxu0
  %v3563 = vpop.f32.mrf.mxu0
  %v3564 = vpop.f32.mrf.mxu0
  %3565 = vdwg.mxu0
  %3566 = vmatprep.subr.bf16.mxu0 0
  %3567 = vmatpush1.bf16.msra.mxu0 %v850
  %3568 = vmatprep.subr.bf16.mxu0 0
  %3569 = vmatpush1.bf16.msra.mxu0 %v849
  %3570 = vmatprep.subr.bf16.mxu0 0
  %3571 = vmatpush1.bf16.msra.mxu0 %v848
  %3572 = vmatprep.subr.bf16.mxu0 0
  %3573 = vmatpush1.bf16.msra.mxu0 %v847
  %3574 = vmatprep.subr.bf16.mxu0 0
  %3575 = vmatpush1.bf16.msra.mxu0 %v846
  %3576 = vmatprep.subr.bf16.mxu0 0
  %3577 = vmatpush1.bf16.msra.mxu0 %v845
  %3578 = vmatprep.subr.bf16.mxu0 0
  %3579 = vmatpush1.bf16.msra.mxu0 %v844
  %3580 = vmatprep.subr.bf16.mxu0 0
  %3581 = vmatpush1.bf16.msra.mxu0 %v843
  %3582 = vmatprep.subr.bf16.mxu0 0
  %3583 = vmatpush2.bf16.msra.mxu0 %v858
  %3584 = vmatprep.subr.bf16.mxu0 0
  %3585 = vmatpush2.bf16.msra.mxu0 %v857
  %3586 = vmatprep.subr.bf16.mxu0 0
  %3587 = vmatpush2.bf16.msra.mxu0 %v856
  %3588 = vmatprep.subr.bf16.mxu0 0
  %3589 = vmatpush2.bf16.msra.mxu0 %v855
  %3590 = vmatprep.subr.bf16.mxu0 0
  %3591 = vmatpush2.bf16.msra.mxu0 %v854
  %3592 = vmatprep.subr.bf16.mxu0 0
  %3593 = vmatpush2.bf16.msra.mxu0 %v853
  %3594 = vmatprep.subr.bf16.mxu0 0
  %3595 = vmatpush2.bf16.msra.mxu0 %v852
  %3596 = vmatprep.subr.bf16.mxu0 0
  %3597 = vmatpush2.bf16.msra.mxu0 %v851
  %3598 = vmatprep.mubr.bf16.mxu0 %v3355
  %3599 = vmatmul.mubr.bf16.gmra.mxu0 %v3354
  %v3600 = vpop.f32.mrf.mxu0
  %v3601 = vadd.f32 %v3513, %v3600
  %v3602 = vpop.f32.mrf.mxu0
  %v3603 = vpop.f32.mrf.mxu0
  %v3604 = vadd.f32 %v3516, %v3603
  %v3605 = vpop.f32.mrf.mxu0
  %3606 = vmatprep.mubr.bf16.mxu0 %v3364
  %3607 = vmatmul.mubr.bf16.gmra.mxu0 %v3363
  %v3608 = vpop.f32.mrf.mxu0
  %v3609 = vadd.f32 %v3521, %v3608
  %v3610 = vpop.f32.mrf.mxu0
  %v3611 = vpop.f32.mrf.mxu0
  %v3612 = vadd.f32 %v3524, %v3611
  %v3613 = vpop.f32.mrf.mxu0
  %3614 = vmatprep.mubr.bf16.mxu0 %v3373
  %3615 = vmatmul.mubr.bf16.gmra.mxu0 %v3372
  %v3616 = vpop.f32.mrf.mxu0
  %v3617 = vadd.f32 %v3529, %v3616
  %v3618 = vpop.f32.mrf.mxu0
  %v3619 = vpop.f32.mrf.mxu0
  %v3620 = vadd.f32 %v3532, %v3619
  %v3621 = vpop.f32.mrf.mxu0
  %3622 = vmatprep.mubr.bf16.mxu0 %v3382
  %3623 = vmatmul.mubr.bf16.gmra.mxu0 %v3381
  %v3624 = vpop.f32.mrf.mxu0
  %v3625 = vadd.f32 %v3537, %v3624
  %v3626 = vpop.f32.mrf.mxu0
  %v3627 = vpop.f32.mrf.mxu0
  %v3628 = vadd.f32 %v3540, %v3627
  %v3629 = vpop.f32.mrf.mxu0
  %3630 = vmatprep.mubr.bf16.mxu0 %v3391
  %3631 = vmatmul.mubr.bf16.gmra.mxu0 %v3390
  %v3632 = vpop.f32.mrf.mxu0
  %v3633 = vadd.f32 %v3545, %v3632
  %v3634 = vpop.f32.mrf.mxu0
  %v3635 = vpop.f32.mrf.mxu0
  %v3636 = vadd.f32 %v3548, %v3635
  %v3637 = vpop.f32.mrf.mxu0
  %3638 = vmatprep.mubr.bf16.mxu0 %v3400
  %3639 = vmatmul.mubr.bf16.gmra.mxu0 %v3399
  %v3640 = vpop.f32.mrf.mxu0
  %v3641 = vadd.f32 %v3553, %v3640
  %v3642 = vpop.f32.mrf.mxu0
  %v3643 = vpop.f32.mrf.mxu0
  %v3644 = vadd.f32 %v3556, %v3643
  %v3645 = vpop.f32.mrf.mxu0
  %3646 = vmatprep.mubr.bf16.mxu0 %v3409
  %3647 = vmatmul.mubr.bf16.gmra.mxu0 %v3408
  %v3648 = vpop.f32.mrf.mxu0
  %v3649 = vadd.f32 %v3561, %v3648
  %v3650 = vpop.f32.mrf.mxu0
  %v3651 = vpop.f32.mrf.mxu0
  %v3652 = vpop.f32.mrf.mxu0
  %3653 = vdwg.mxu0
  %3654 = vmatprep.subr.bf16.mxu0 0
  %3655 = vmatpush1.bf16.msra.mxu0 %v866
  %3656 = vmatprep.subr.bf16.mxu0 0
  %3657 = vmatpush1.bf16.msra.mxu0 %v865
  %3658 = vmatprep.subr.bf16.mxu0 0
  %3659 = vmatpush1.bf16.msra.mxu0 %v864
  %3660 = vmatprep.subr.bf16.mxu0 0
  %3661 = vmatpush1.bf16.msra.mxu0 %v863
  %3662 = vmatprep.subr.bf16.mxu0 0
  %3663 = vmatpush1.bf16.msra.mxu0 %v862
  %3664 = vmatprep.subr.bf16.mxu0 0
  %3665 = vmatpush1.bf16.msra.mxu0 %v861
  %3666 = vmatprep.subr.bf16.mxu0 0
  %3667 = vmatpush1.bf16.msra.mxu0 %v860
  %3668 = vmatprep.subr.bf16.mxu0 0
  %3669 = vmatpush1.bf16.msra.mxu0 %v859
  %3670 = vmatprep.subr.bf16.mxu0 0
  %3671 = vmatpush2.bf16.msra.mxu0 %v874
  %3672 = vmatprep.subr.bf16.mxu0 0
  %3673 = vmatpush2.bf16.msra.mxu0 %v873
  %3674 = vmatprep.subr.bf16.mxu0 0
  %3675 = vmatpush2.bf16.msra.mxu0 %v872
  %3676 = vmatprep.subr.bf16.mxu0 0
  %3677 = vmatpush2.bf16.msra.mxu0 %v871
  %3678 = vmatprep.subr.bf16.mxu0 0
  %3679 = vmatpush2.bf16.msra.mxu0 %v870
  %3680 = vmatprep.subr.bf16.mxu0 0
  %3681 = vmatpush2.bf16.msra.mxu0 %v869
  %3682 = vmatprep.subr.bf16.mxu0 0
  %3683 = vmatpush2.bf16.msra.mxu0 %v868
  %3684 = vmatprep.subr.bf16.mxu0 0
  %3685 = vmatpush2.bf16.msra.mxu0 %v867
  %3686 = vmatprep.mubr.bf16.mxu0 %v3357
  %3687 = vmatmul.mubr.bf16.gmra.mxu0 %v3356
  %v3688 = vpop.f32.mrf.mxu0
  %v3689 = vadd.f32 %v3601, %v3688
  %v3690 = vpop.f32.mrf.mxu0
  %v3691 = vpop.f32.mrf.mxu0
  %v3692 = vadd.f32 %v3604, %v3691
  %v3693 = vpop.f32.mrf.mxu0
  %3694 = vmatprep.mubr.bf16.mxu0 %v3366
  %3695 = vmatmul.mubr.bf16.gmra.mxu0 %v3365
  %v3696 = vpop.f32.mrf.mxu0
  %v3697 = vadd.f32 %v3609, %v3696
  %v3698 = vpop.f32.mrf.mxu0
  %v3699 = vpop.f32.mrf.mxu0
  %v3700 = vadd.f32 %v3612, %v3699
  %v3701 = vpop.f32.mrf.mxu0
  %3702 = vmatprep.mubr.bf16.mxu0 %v3375
  %3703 = vmatmul.mubr.bf16.gmra.mxu0 %v3374
  %v3704 = vpop.f32.mrf.mxu0
  %v3705 = vadd.f32 %v3617, %v3704
  %v3706 = vpop.f32.mrf.mxu0
  %v3707 = vpop.f32.mrf.mxu0
  %v3708 = vadd.f32 %v3620, %v3707
  %v3709 = vpop.f32.mrf.mxu0
  %3710 = vmatprep.mubr.bf16.mxu0 %v3384
  %3711 = vmatmul.mubr.bf16.gmra.mxu0 %v3383
  %v3712 = vpop.f32.mrf.mxu0
  %v3713 = vadd.f32 %v3625, %v3712
  %v3714 = vpop.f32.mrf.mxu0
  %v3715 = vpop.f32.mrf.mxu0
  %v3716 = vadd.f32 %v3628, %v3715
  %v3717 = vpop.f32.mrf.mxu0
  %3718 = vmatprep.mubr.bf16.mxu0 %v3393
  %3719 = vmatmul.mubr.bf16.gmra.mxu0 %v3392
  %v3720 = vpop.f32.mrf.mxu0
  %v3721 = vadd.f32 %v3633, %v3720
  %v3722 = vpop.f32.mrf.mxu0
  %v3723 = vpop.f32.mrf.mxu0
  %v3724 = vadd.f32 %v3636, %v3723
  %v3725 = vpop.f32.mrf.mxu0
  %3726 = vmatprep.mubr.bf16.mxu0 %v3402
  %3727 = vmatmul.mubr.bf16.gmra.mxu0 %v3401
  %v3728 = vpop.f32.mrf.mxu0
  %v3729 = vadd.f32 %v3641, %v3728
  %v3730 = vpop.f32.mrf.mxu0
  %v3731 = vpop.f32.mrf.mxu0
  %v3732 = vadd.f32 %v3644, %v3731
  %v3733 = vpop.f32.mrf.mxu0
  %3734 = vmatprep.mubr.bf16.mxu0 %v3411
  %3735 = vmatmul.mubr.bf16.gmra.mxu0 %v3410
  %v3736 = vpop.f32.mrf.mxu0
  %v3737 = vadd.f32 %v3649, %v3736
  %v3738 = vpop.f32.mrf.mxu0
  %v3739 = vpop.f32.mrf.mxu0
  %v3740 = vpop.f32.mrf.mxu0
  %3741 = vdwg.mxu0
  %3742 = vmatprep.subr.bf16.mxu0 0
  %3743 = vmatpush1.bf16.msra.mxu0 %v882
  %3744 = vmatprep.subr.bf16.mxu0 0
  %3745 = vmatpush1.bf16.msra.mxu0 %v881
  %3746 = vmatprep.subr.bf16.mxu0 0
  %3747 = vmatpush1.bf16.msra.mxu0 %v880
  %3748 = vmatprep.subr.bf16.mxu0 0
  %3749 = vmatpush1.bf16.msra.mxu0 %v879
  %3750 = vmatprep.subr.bf16.mxu0 0
  %3751 = vmatpush1.bf16.msra.mxu0 %v878
  %3752 = vmatprep.subr.bf16.mxu0 0
  %3753 = vmatpush1.bf16.msra.mxu0 %v877
  %3754 = vmatprep.subr.bf16.mxu0 0
  %3755 = vmatpush1.bf16.msra.mxu0 %v876
  %3756 = vmatprep.subr.bf16.mxu0 0
  %3757 = vmatpush1.bf16.msra.mxu0 %v875
  %3758 = vmatprep.subr.bf16.mxu0 0
  %3759 = vmatpush2.bf16.msra.mxu0 %v890
  %3760 = vmatprep.subr.bf16.mxu0 0
  %3761 = vmatpush2.bf16.msra.mxu0 %v889
  %3762 = vmatprep.subr.bf16.mxu0 0
  %3763 = vmatpush2.bf16.msra.mxu0 %v888
  %3764 = vmatprep.subr.bf16.mxu0 0
  %3765 = vmatpush2.bf16.msra.mxu0 %v887
  %3766 = vmatprep.subr.bf16.mxu0 0
  %3767 = vmatpush2.bf16.msra.mxu0 %v886
  %3768 = vmatprep.subr.bf16.mxu0 0
  %3769 = vmatpush2.bf16.msra.mxu0 %v885
  %3770 = vmatprep.subr.bf16.mxu0 0
  %3771 = vmatpush2.bf16.msra.mxu0 %v884
  %3772 = vmatprep.subr.bf16.mxu0 0
  %3773 = vmatpush2.bf16.msra.mxu0 %v883
  %3774 = vmatprep.mubr.bf16.mxu0 %v3359
  %3775 = vmatmul.mubr.bf16.gmra.mxu0 %v3358
  %v3776 = vpop.f32.mrf.mxu0
  %v3777 = vadd.f32 %v3689, %v3776
  %v3778 = vpop.f32.mrf.mxu0
  %v3779 = vpop.f32.mrf.mxu0
  %v3780 = vadd.f32 %v3692, %v3779
  %v3781 = vpop.f32.mrf.mxu0
  %3782 = vmatprep.mubr.bf16.mxu0 %v3368
  %3783 = vmatmul.mubr.bf16.gmra.mxu0 %v3367
  %v3784 = vpop.f32.mrf.mxu0
  %v3785 = vadd.f32 %v3697, %v3784
  %v3786 = vpop.f32.mrf.mxu0
  %v3787 = vpop.f32.mrf.mxu0
  %v3788 = vadd.f32 %v3700, %v3787
  %v3789 = vpop.f32.mrf.mxu0
  %3790 = vmatprep.mubr.bf16.mxu0 %v3377
  %3791 = vmatmul.mubr.bf16.gmra.mxu0 %v3376
  %v3792 = vpop.f32.mrf.mxu0
  %v3793 = vadd.f32 %v3705, %v3792
  %v3794 = vpop.f32.mrf.mxu0
  %v3795 = vpop.f32.mrf.mxu0
  %v3796 = vadd.f32 %v3708, %v3795
  %v3797 = vpop.f32.mrf.mxu0
  %3798 = vmatprep.mubr.bf16.mxu0 %v3386
  %3799 = vmatmul.mubr.bf16.gmra.mxu0 %v3385
  %v3800 = vpop.f32.mrf.mxu0
  %v3801 = vadd.f32 %v3713, %v3800
  %v3802 = vpop.f32.mrf.mxu0
  %v3803 = vpop.f32.mrf.mxu0
  %v3804 = vadd.f32 %v3716, %v3803
  %v3805 = vpop.f32.mrf.mxu0
  %3806 = vmatprep.mubr.bf16.mxu0 %v3395
  %3807 = vmatmul.mubr.bf16.gmra.mxu0 %v3394
  %v3808 = vpop.f32.mrf.mxu0
  %v3809 = vadd.f32 %v3721, %v3808
  %v3810 = vpop.f32.mrf.mxu0
  %v3811 = vpop.f32.mrf.mxu0
  %v3812 = vadd.f32 %v3724, %v3811
  %v3813 = vpop.f32.mrf.mxu0
  %3814 = vmatprep.mubr.bf16.mxu0 %v3404
  %3815 = vmatmul.mubr.bf16.gmra.mxu0 %v3403
  %v3816 = vpop.f32.mrf.mxu0
  %v3817 = vadd.f32 %v3729, %v3816
  %v3818 = vpop.f32.mrf.mxu0
  %v3819 = vpop.f32.mrf.mxu0
  %v3820 = vadd.f32 %v3732, %v3819
  %v3821 = vpop.f32.mrf.mxu0
  %3822 = vmatprep.mubr.bf16.mxu0 %v3413
  %3823 = vmatmul.mubr.bf16.gmra.mxu0 %v3412
  %v3824 = vpop.f32.mrf.mxu0
  %v3825 = vadd.f32 %v3737, %v3824
  %v3826 = vpop.f32.mrf.mxu0
  %v3827 = vpop.f32.mrf.mxu0
  %v3828 = vpop.f32.mrf.mxu0
  %3829 = vdwg.mxu0
  %3830 = vmatprep.subr.bf16.mxu0 0
  %3831 = vmatpush1.bf16.msra.mxu0 %v898
  %3832 = vmatprep.subr.bf16.mxu0 0
  %3833 = vmatpush1.bf16.msra.mxu0 %v897
  %3834 = vmatprep.subr.bf16.mxu0 0
  %3835 = vmatpush1.bf16.msra.mxu0 %v896
  %3836 = vmatprep.subr.bf16.mxu0 0
  %3837 = vmatpush1.bf16.msra.mxu0 %v895
  %3838 = vmatprep.subr.bf16.mxu0 0
  %3839 = vmatpush1.bf16.msra.mxu0 %v894
  %3840 = vmatprep.subr.bf16.mxu0 0
  %3841 = vmatpush1.bf16.msra.mxu0 %v893
  %3842 = vmatprep.subr.bf16.mxu0 0
  %3843 = vmatpush1.bf16.msra.mxu0 %v892
  %3844 = vmatprep.subr.bf16.mxu0 0
  %3845 = vmatpush1.bf16.msra.mxu0 %v891
  %3846 = vmatprep.subr.bf16.mxu0 0
  %3847 = vmatpush2.bf16.msra.mxu0 0
  %3848 = vmatprep.subr.bf16.mxu0 0
  %3849 = vmatpush2.bf16.msra.mxu0 0
  %3850 = vmatprep.subr.bf16.mxu0 0
  %3851 = vmatpush2.bf16.msra.mxu0 0
  %3852 = vmatprep.subr.bf16.mxu0 0
  %3853 = vmatpush2.bf16.msra.mxu0 0
  %3854 = vmatprep.subr.bf16.mxu0 0
  %3855 = vmatpush2.bf16.msra.mxu0 0
  %3856 = vmatprep.subr.bf16.mxu0 0
  %3857 = vmatpush2.bf16.msra.mxu0 0
  %3858 = vmatprep.subr.bf16.mxu0 0
  %3859 = vmatpush2.bf16.msra.mxu0 0
  %3860 = vmatprep.subr.bf16.mxu0 0
  %3861 = vmatpush2.bf16.msra.mxu0 0
  %3862 = vmatprep.mubr.bf16.mxu0 0
  %3863 = vmatmul.mubr.bf16.gmra.mxu0 %v3360
  %v3864 = vpop.f32.mrf.mxu0
  %v3865 = vadd.f32 %v3777, %v3864
  %v3866 = vpop.f32.mrf.mxu0
  %v3867 = vpop.f32.mrf.mxu0
  %v3868 = vadd.f32 %v3780, %v3867
  %v3869 = vpop.f32.mrf.mxu0
  %3870 = vmatprep.mubr.bf16.mxu0 0
  %3871 = vmatmul.mubr.bf16.gmra.mxu0 %v3369
  %v3872 = vpop.f32.mrf.mxu0
  %v3873 = vadd.f32 %v3785, %v3872
  %v3874 = vpop.f32.mrf.mxu0
  %v3875 = vpop.f32.mrf.mxu0
  %v3876 = vadd.f32 %v3788, %v3875
  %v3877 = vpop.f32.mrf.mxu0
  %3878 = vmatprep.mubr.bf16.mxu0 0
  %3879 = vmatmul.mubr.bf16.gmra.mxu0 %v3378
  %v3880 = vpop.f32.mrf.mxu0
  %v3881 = vadd.f32 %v3793, %v3880
  %v3882 = vpop.f32.mrf.mxu0
  %v3883 = vpop.f32.mrf.mxu0
  %v3884 = vadd.f32 %v3796, %v3883
  %v3885 = vpop.f32.mrf.mxu0
  %3886 = vmatprep.mubr.bf16.mxu0 0
  %3887 = vmatmul.mubr.bf16.gmra.mxu0 %v3387
  %v3888 = vpop.f32.mrf.mxu0
  %v3889 = vadd.f32 %v3801, %v3888
  %v3890 = vpop.f32.mrf.mxu0
  %v3891 = vpop.f32.mrf.mxu0
  %v3892 = vadd.f32 %v3804, %v3891
  %v3893 = vpop.f32.mrf.mxu0
  %3894 = vmatprep.mubr.bf16.mxu0 0
  %3895 = vmatmul.mubr.bf16.gmra.mxu0 %v3396
  %v3896 = vpop.f32.mrf.mxu0
  %v3897 = vadd.f32 %v3809, %v3896
  %v3898 = vpop.f32.mrf.mxu0
  %v3899 = vpop.f32.mrf.mxu0
  %v3900 = vadd.f32 %v3812, %v3899
  %v3901 = vpop.f32.mrf.mxu0
  %3902 = vmatprep.mubr.bf16.mxu0 0
  %3903 = vmatmul.mubr.bf16.gmra.mxu0 %v3405
  %v3904 = vpop.f32.mrf.mxu0
  %v3905 = vadd.f32 %v3817, %v3904
  %v3906 = vpop.f32.mrf.mxu0
  %v3907 = vpop.f32.mrf.mxu0
  %v3908 = vadd.f32 %v3820, %v3907
  %v3909 = vpop.f32.mrf.mxu0
  %3910 = vmatprep.mubr.bf16.mxu0 0
  %3911 = vmatmul.mubr.bf16.gmra.mxu0 %v3414
  %v3912 = vpop.f32.mrf.mxu0
  %v3913 = vadd.f32 %v3825, %v3912
  %v3914 = vpop.f32.mrf.mxu0
  %v3915 = vpop.f32.mrf.mxu0
  %v3916 = vpop.f32.mrf.mxu0
  %3917 = vdwg.mxu0
  %v3918 = vmax.f32 %v3865, 0.0
  %v3919 = vmax.f32 %v3868, 0.0
  %v3920 = vmax.f32 %v3873, 0.0
  %v3921 = vmax.f32 %v3876, 0.0
  %v3922 = vmax.f32 %v3881, 0.0
  %v3923 = vmax.f32 %v3884, 0.0
  %v3924 = vmax.f32 %v3889, 0.0
  %v3925 = vmax.f32 %v3892, 0.0
  %v3926 = vmax.f32 %v3897, 0.0
  %v3927 = vmax.f32 %v3900, 0.0
  %v3928 = vmax.f32 %v3905, 0.0
  %v3929 = vmax.f32 %v3908, 0.0
  %v3930 = vmax.f32 %v3913, 0.0
  %v3931 = vmax.f32 %v3091, %v3918
  %v3932 = vmax.f32 %v3092, %v3919
  %v3933 = vmax.f32 %v3093, %v3920
  %v3934 = vmax.f32 %v3094, %v3921
  %v3935 = vmax.f32 %v3095, %v3922
  %v3936 = vmax.f32 %v3096, %v3923
  %v3937 = vmax.f32 %v3097, %v3924
  %v3938 = vmax.f32 %v3098, %v3925
  %v3939 = vmax.f32 %v3099, %v3926
  %v3940 = vmax.f32 %v3100, %v3927
  %v3941 = vmax.f32 %v3101, %v3928
  %v3942 = vmax.f32 %v3102, %v3929
  %v3943 = vmax.f32 %v3103, %v3930
  %v3944 = vpack.c.bf16 %v3932, %v3931
  %v3945 = vpack.c.bf16 %v3934, %v3933
  %v3946 = vpack.c.bf16 %v3936, %v3935
  %v3947 = vpack.c.bf16 %v3938, %v3937
  %v3948 = vpack.c.bf16 %v3940, %v3939
  %v3949 = vpack.c.bf16 %v3942, %v3941
  %v3950 = vpack.c.bf16 %v3943, %v3943
  %v3958 = vunpack.c.l.b16 %v3944
  %v3959 = vunpack.c.h.b16 %v3944
  %v3960 = vunpack.c.l.b16 %v3945
  %v3961 = vunpack.c.h.b16 %v3945
  %v3962 = vunpack.c.l.b16 %v3946
  %v3963 = vunpack.c.h.b16 %v3946
  %v3964 = vunpack.c.l.b16 %v3947
  %v3965 = vunpack.c.h.b16 %v3947
  %v3966 = vunpack.c.l.b16 %v3948
  %v3967 = vunpack.c.h.b16 %v3948
  %v3968 = vunpack.c.l.b16 %v3949
  %v3969 = vunpack.c.h.b16 %v3949
  %v3970 = vunpack.c.l.b16 %v3950
  %v3971 = vpack.c.b16 %v3958, %v3958
  %v3972 = vpack.c.b16 %v3959, %v3959
  %v3973 = vpack.c.b16 %v3960, %v3960
  %v3974 = vpack.c.b16 %v3961, %v3961
  %v3975 = vpack.c.b16 %v3962, %v3962
  %v3976 = vpack.c.b16 %v3963, %v3963
  %v3977 = vpack.c.b16 %v3964, %v3964
  %v3978 = vpack.c.b16 %v3965, %v3965
  %v3979 = vpack.c.b16 %v3966, %v3966
  %v3980 = vpack.c.b16 %v3967, %v3967
  %v3981 = vpack.c.b16 %v3968, %v3968
  %v3982 = vpack.c.b16 %v3969, %v3969
  %v3983 = vpack.c.b16 %v3970, %v3970
  %3997 = vst [vmem:[%s3] sm:$0xf] %v3971
  %3998 = vst [vmem:[%s3 + $0x4] sm:$0xf] %v3972
  %3999 = vst [vmem:[%s3 + $0x8] sm:$0xf] %v3973
  %4000 = vst [vmem:[%s3 + $0xc] sm:$0xf] %v3974
  %4001 = vst [vmem:[%s3 + $0x10] sm:$0xf] %v3975
  %4002 = vst [vmem:[%s3 + $0x14] sm:$0xf] %v3976
  %4003 = vst [vmem:[%s3 + $0x18] sm:$0xf] %v3977
  %4004 = vst [vmem:[%s3 + $0x1c] sm:$0xf] %v3978
  %4005 = vst [vmem:[%s3 + $0x20] sm:$0xf] %v3979
  %4006 = vst [vmem:[%s3 + $0x24] sm:$0xf] %v3980
  %4007 = vst [vmem:[%s3 + $0x28] sm:$0xf] %v3981
  %4008 = vst [vmem:[%s3 + $0x2c] sm:$0xf] %v3982
  %4009 = vst [vmem:[%s3 + $0x30] sm:$0x1] %v3983
  // Predicated region
  $region14: #{mnist_cnn_forward.5} parent=0 // pred_check
    _
  $region15: #{mnist_cnn_forward.5} parent=0 // pred_check_branch
    %4011 = sbr.rel (0) target = $region17
  $region16: #{mnist_cnn_forward.5} parent=0 // pred_region
    _
  $region17: #{mnist_cnn_forward.5} parent=0 // pred_fallthru
    _
  // Predicated region
  $region18: #{mnist_cnn_forward.5} parent=0 // pred_check
    _
  $region19: #{mnist_cnn_forward.5} parent=0 // pred_check_branch
    %4013 = sbr.rel (0) target = $region21
  $region20: #{mnist_cnn_forward.5} parent=0 // pred_region
    _
  $region21: #{mnist_cnn_forward.5} parent=0 // pred_fallthru
    _

// kernel: mnist_cnn_forward.6
$region0: #{mnist_cnn_forward.6}
  #allocation0 [shape = 'u32[]', space=smem, size = 0x4, offset = 0x4, fixed_abs, tag = 'smem constant byte address 0x4 - core index']
  #allocation1 [shape = 'u32[144,128]{1,0:T(1,128)}', space=vmem, size = 0x12000, scoped, tag = 'internal scratch']
  %s0 = inlined_call_operand.vmem [shape: bf16[4,18,1152], index: 0, kind: input, shape index: {}]
  %s1 = inlined_call_operand.vmem [shape: bf16[1152,128], index: 1, kind: input, shape index: {}]
  %s2 = inlined_call_operand.vmem [shape: f32[1,128], index: 2, kind: input, shape index: {}]
  %s3 = inlined_call_operand.vmem [shape: bf16[18,128], index: 3, kind: output, shape index: {}]
  %s4 = sld [smem:[#allocation0]]
  $region22: #{mnist_cnn_forward.6} parent=0
    _
  %s6 = ssub.s32 1, %s4
  %s7 = scalar_select 0, %s6, %s4
  // Predicated region
  $region2: #{mnist_cnn_forward.6} parent=0 // pred_check
    _
  $region3: #{mnist_cnn_forward.6} parent=0 // pred_check_branch
    %9 = sbr.rel (0) target = $region5
  $region4: #{mnist_cnn_forward.6} parent=0 // pred_region
    _
  $region5: #{mnist_cnn_forward.6} parent=0 // pred_fallthru
    _
  // Predicated region
  $region6: #{mnist_cnn_forward.6} parent=0 // pred_check
    _
  $region7: #{mnist_cnn_forward.6} parent=0 // pred_check_branch
    %11 = sbr.rel (0) target = $region9
  $region8: #{mnist_cnn_forward.6} parent=0 // pred_region
    _
  $region9: #{mnist_cnn_forward.6} parent=0 // pred_fallthru
    _
  // Predicated region
  $region10: #{mnist_cnn_forward.6} parent=0 // pred_check
    _
  $region11: #{mnist_cnn_forward.6} parent=0 // pred_check_branch
    %13 = sbr.rel (0) target = $region13
  $region12: #{mnist_cnn_forward.6} parent=0 // pred_region
    _
  $region13: #{mnist_cnn_forward.6} parent=0 // pred_fallthru
    _
  %v15 = vld [vmem:[%s1] sm:$0xf]
  %v16 = vld [vmem:[%s1 + $0x4] sm:$0xf]
  %v17 = vld [vmem:[%s1 + $0x8] sm:$0xf]
  %v18 = vld [vmem:[%s1 + $0xc] sm:$0xf]
  %v19 = vld [vmem:[%s1 + $0x10] sm:$0xf]
  %v20 = vld [vmem:[%s1 + $0x14] sm:$0xf]
  %v21 = vld [vmem:[%s1 + $0x18] sm:$0xf]
  %v22 = vld [vmem:[%s1 + $0x1c] sm:$0xf]
  %v23 = vld [vmem:[%s1 + $0x20] sm:$0xf]
  %v24 = vld [vmem:[%s1 + $0x24] sm:$0xf]
  %v25 = vld [vmem:[%s1 + $0x28] sm:$0xf]
  %v26 = vld [vmem:[%s1 + $0x2c] sm:$0xf]
  %v27 = vld [vmem:[%s1 + $0x30] sm:$0xf]
  %v28 = vld [vmem:[%s1 + $0x34] sm:$0xf]
  %v29 = vld [vmem:[%s1 + $0x38] sm:$0xf]
  %v30 = vld [vmem:[%s1 + $0x3c] sm:$0xf]
  %v31 = vld [vmem:[%s1 + $0x40] sm:$0xf]
  %v32 = vld [vmem:[%s1 + $0x44] sm:$0xf]
  %v33 = vld [vmem:[%s1 + $0x48] sm:$0xf]
  %v34 = vld [vmem:[%s1 + $0x4c] sm:$0xf]
  %v35 = vld [vmem:[%s1 + $0x50] sm:$0xf]
  %v36 = vld [vmem:[%s1 + $0x54] sm:$0xf]
  %v37 = vld [vmem:[%s1 + $0x58] sm:$0xf]
  %v38 = vld [vmem:[%s1 + $0x5c] sm:$0xf]
  %v39 = vld [vmem:[%s1 + $0x60] sm:$0xf]
  %v40 = vld [vmem:[%s1 + $0x64] sm:$0xf]
  %v41 = vld [vmem:[%s1 + $0x68] sm:$0xf]
  %v42 = vld [vmem:[%s1 + $0x6c] sm:$0xf]
  %v43 = vld [vmem:[%s1 + $0x70] sm:$0xf]
  %v44 = vld [vmem:[%s1 + $0x74] sm:$0xf]
  %v45 = vld [vmem:[%s1 + $0x78] sm:$0xf]
  %v46 = vld [vmem:[%s1 + $0x7c] sm:$0xf]
  %v47 = vld [vmem:[%s1 + $0x80] sm:$0xf]
  %v48 = vld [vmem:[%s1 + $0x84] sm:$0xf]
  %v49 = vld [vmem:[%s1 + $0x88] sm:$0xf]
  %v50 = vld [vmem:[%s1 + $0x8c] sm:$0xf]
  %v51 = vld [vmem:[%s1 + $0x90] sm:$0xf]
  %v52 = vld [vmem:[%s1 + $0x94] sm:$0xf]
  %v53 = vld [vmem:[%s1 + $0x98] sm:$0xf]
  %v54 = vld [vmem:[%s1 + $0x9c] sm:$0xf]
  %v55 = vld [vmem:[%s1 + $0xa0] sm:$0xf]
  %v56 = vld [vmem:[%s1 + $0xa4] sm:$0xf]
  %v57 = vld [vmem:[%s1 + $0xa8] sm:$0xf]
  %v58 = vld [vmem:[%s1 + $0xac] sm:$0xf]
  %v59 = vld [vmem:[%s1 + $0xb0] sm:$0xf]
  %v60 = vld [vmem:[%s1 + $0xb4] sm:$0xf]
  %v61 = vld [vmem:[%s1 + $0xb8] sm:$0xf]
  %v62 = vld [vmem:[%s1 + $0xbc] sm:$0xf]
  %v63 = vld [vmem:[%s1 + $0xc0] sm:$0xf]
  %v64 = vld [vmem:[%s1 + $0xc4] sm:$0xf]
  %v65 = vld [vmem:[%s1 + $0xc8] sm:$0xf]
  %v66 = vld [vmem:[%s1 + $0xcc] sm:$0xf]
  %v67 = vld [vmem:[%s1 + $0xd0] sm:$0xf]
  %v68 = vld [vmem:[%s1 + $0xd4] sm:$0xf]
  %v69 = vld [vmem:[%s1 + $0xd8] sm:$0xf]
  %v70 = vld [vmem:[%s1 + $0xdc] sm:$0xf]
  %v71 = vld [vmem:[%s1 + $0xe0] sm:$0xf]
  %v72 = vld [vmem:[%s1 + $0xe4] sm:$0xf]
  %v73 = vld [vmem:[%s1 + $0xe8] sm:$0xf]
  %v74 = vld [vmem:[%s1 + $0xec] sm:$0xf]
  %v75 = vld [vmem:[%s1 + $0xf0] sm:$0xf]
  %v76 = vld [vmem:[%s1 + $0xf4] sm:$0xf]
  %v77 = vld [vmem:[%s1 + $0xf8] sm:$0xf]
  %v78 = vld [vmem:[%s1 + $0xfc] sm:$0xf]
  %v79 = vld [vmem:[%s1 + $0x100] sm:$0xf]
  %v80 = vld [vmem:[%s1 + $0x104] sm:$0xf]
  %v81 = vld [vmem:[%s1 + $0x108] sm:$0xf]
  %v82 = vld [vmem:[%s1 + $0x10c] sm:$0xf]
  %v83 = vld [vmem:[%s1 + $0x110] sm:$0xf]
  %v84 = vld [vmem:[%s1 + $0x114] sm:$0xf]
  %v85 = vld [vmem:[%s1 + $0x118] sm:$0xf]
  %v86 = vld [vmem:[%s1 + $0x11c] sm:$0xf]
  %v87 = vld [vmem:[%s1 + $0x120] sm:$0xf]
  %v88 = vld [vmem:[%s1 + $0x124] sm:$0xf]
  %v89 = vld [vmem:[%s1 + $0x128] sm:$0xf]
  %v90 = vld [vmem:[%s1 + $0x12c] sm:$0xf]
  %v91 = vld [vmem:[%s1 + $0x130] sm:$0xf]
  %v92 = vld [vmem:[%s1 + $0x134] sm:$0xf]
  %v93 = vld [vmem:[%s1 + $0x138] sm:$0xf]
  %v94 = vld [vmem:[%s1 + $0x13c] sm:$0xf]
  %v95 = vld [vmem:[%s1 + $0x140] sm:$0xf]
  %v96 = vld [vmem:[%s1 + $0x144] sm:$0xf]
  %v97 = vld [vmem:[%s1 + $0x148] sm:$0xf]
  %v98 = vld [vmem:[%s1 + $0x14c] sm:$0xf]
  %v99 = vld [vmem:[%s1 + $0x150] sm:$0xf]
  %v100 = vld [vmem:[%s1 + $0x154] sm:$0xf]
  %v101 = vld [vmem:[%s1 + $0x158] sm:$0xf]
  %v102 = vld [vmem:[%s1 + $0x15c] sm:$0xf]
  %v103 = vld [vmem:[%s1 + $0x160] sm:$0xf]
  %v104 = vld [vmem:[%s1 + $0x164] sm:$0xf]
  %v105 = vld [vmem:[%s1 + $0x168] sm:$0xf]
  %v106 = vld [vmem:[%s1 + $0x16c] sm:$0xf]
  %v107 = vld [vmem:[%s1 + $0x170] sm:$0xf]
  %v108 = vld [vmem:[%s1 + $0x174] sm:$0xf]
  %v109 = vld [vmem:[%s1 + $0x178] sm:$0xf]
  %v110 = vld [vmem:[%s1 + $0x17c] sm:$0xf]
  %v111 = vld [vmem:[%s1 + $0x180] sm:$0xf]
  %v112 = vld [vmem:[%s1 + $0x184] sm:$0xf]
  %v113 = vld [vmem:[%s1 + $0x188] sm:$0xf]
  %v114 = vld [vmem:[%s1 + $0x18c] sm:$0xf]
  %v115 = vld [vmem:[%s1 + $0x190] sm:$0xf]
  %v116 = vld [vmem:[%s1 + $0x194] sm:$0xf]
  %v117 = vld [vmem:[%s1 + $0x198] sm:$0xf]
  %v118 = vld [vmem:[%s1 + $0x19c] sm:$0xf]
  %v119 = vld [vmem:[%s1 + $0x1a0] sm:$0xf]
  %v120 = vld [vmem:[%s1 + $0x1a4] sm:$0xf]
  %v121 = vld [vmem:[%s1 + $0x1a8] sm:$0xf]
  %v122 = vld [vmem:[%s1 + $0x1ac] sm:$0xf]
  %v123 = vld [vmem:[%s1 + $0x1b0] sm:$0xf]
  %v124 = vld [vmem:[%s1 + $0x1b4] sm:$0xf]
  %v125 = vld [vmem:[%s1 + $0x1b8] sm:$0xf]
  %v126 = vld [vmem:[%s1 + $0x1bc] sm:$0xf]
  %v127 = vld [vmem:[%s1 + $0x1c0] sm:$0xf]
  %v128 = vld [vmem:[%s1 + $0x1c4] sm:$0xf]
  %v129 = vld [vmem:[%s1 + $0x1c8] sm:$0xf]
  %v130 = vld [vmem:[%s1 + $0x1cc] sm:$0xf]
  %v131 = vld [vmem:[%s1 + $0x1d0] sm:$0xf]
  %v132 = vld [vmem:[%s1 + $0x1d4] sm:$0xf]
  %v133 = vld [vmem:[%s1 + $0x1d8] sm:$0xf]
  %v134 = vld [vmem:[%s1 + $0x1dc] sm:$0xf]
  %v135 = vld [vmem:[%s1 + $0x1e0] sm:$0xf]
  %v136 = vld [vmem:[%s1 + $0x1e4] sm:$0xf]
  %v137 = vld [vmem:[%s1 + $0x1e8] sm:$0xf]
  %v138 = vld [vmem:[%s1 + $0x1ec] sm:$0xf]
  %v139 = vld [vmem:[%s1 + $0x1f0] sm:$0xf]
  %v140 = vld [vmem:[%s1 + $0x1f4] sm:$0xf]
  %v141 = vld [vmem:[%s1 + $0x1f8] sm:$0xf]
  %v142 = vld [vmem:[%s1 + $0x1fc] sm:$0xf]
  %v143 = vld [vmem:[%s1 + $0x200] sm:$0xf]
  %v144 = vld [vmem:[%s1 + $0x204] sm:$0xf]
  %v145 = vld [vmem:[%s1 + $0x208] sm:$0xf]
  %v146 = vld [vmem:[%s1 + $0x20c] sm:$0xf]
  %v147 = vld [vmem:[%s1 + $0x210] sm:$0xf]
  %v148 = vld [vmem:[%s1 + $0x214] sm:$0xf]
  %v149 = vld [vmem:[%s1 + $0x218] sm:$0xf]
  %v150 = vld [vmem:[%s1 + $0x21c] sm:$0xf]
  %v151 = vld [vmem:[%s1 + $0x220] sm:$0xf]
  %v152 = vld [vmem:[%s1 + $0x224] sm:$0xf]
  %v153 = vld [vmem:[%s1 + $0x228] sm:$0xf]
  %v154 = vld [vmem:[%s1 + $0x22c] sm:$0xf]
  %v155 = vld [vmem:[%s1 + $0x230] sm:$0xf]
  %v156 = vld [vmem:[%s1 + $0x234] sm:$0xf]
  %v157 = vld [vmem:[%s1 + $0x238] sm:$0xf]
  %v158 = vld [vmem:[%s1 + $0x23c] sm:$0xf]
  %v159 = vld [vmem:[%s2] sm:$0x1]
  %v160 = vld [vmem:[%s0] sm:$0xff]
  %v161 = vld [vmem:[%s0 + $0x8] sm:$0xff]
  %v162 = vld [vmem:[%s0 + $0x10] sm:$0xff]
  %v163 = vld [vmem:[%s0 + $0x18] sm:$0xff]
  %v164 = vld [vmem:[%s0 + $0x20] sm:$0xf]
  %v165 = vld [vmem:[%s0 + $0x24] sm:$0xff]
  %v166 = vld [vmem:[%s0 + $0x2c] sm:$0xff]
  %v167 = vld [vmem:[%s0 + $0x34] sm:$0xff]
  %v168 = vld [vmem:[%s0 + $0x3c] sm:$0xff]
  %v169 = vld [vmem:[%s0 + $0x44] sm:$0xf]
  %v170 = vld [vmem:[%s0 + $0x48] sm:$0x11]
  %v171 = vld [vmem:[%s0 + $0x50] sm:$0x11]
  %v172 = vld [vmem:[%s0 + $0x58] sm:$0x11]
  %v173 = vld [vmem:[%s0 + $0x60] sm:$0x11]
  %v174 = vld [vmem:[%s0 + $0x68] sm:$0x1]
  %v176 = vlaneseq
  %v177 = vshrl.u32 %v176, 7
  %v178 = vsub.s32 0, %v177
  %v179 = vrot.slane %v159, %v178
  %v196 = vunpack.c.l.b16 %v160
  %v197 = vunpack.c.h.b16 %v160
  %v198 = vunpack.c.l.b16 %v161
  %v199 = vunpack.c.h.b16 %v161
  %v200 = vunpack.c.l.b16 %v162
  %v201 = vunpack.c.h.b16 %v162
  %v202 = vunpack.c.l.b16 %v163
  %v203 = vunpack.c.h.b16 %v163
  %v204 = vunpack.c.l.b16 %v164
  %v205 = vunpack.c.l.b16 %v165
  %v206 = vunpack.c.h.b16 %v165
  %v207 = vunpack.c.l.b16 %v166
  %v208 = vunpack.c.h.b16 %v166
  %v209 = vunpack.c.l.b16 %v167
  %v210 = vunpack.c.h.b16 %v167
  %v211 = vunpack.c.l.b16 %v168
  %v212 = vunpack.c.h.b16 %v168
  %v213 = vunpack.c.l.b16 %v169
  %v214 = vunpack.c.l.b16 %v170
  %v215 = vunpack.c.h.b16 %v170
  %v216 = vunpack.c.l.b16 %v171
  %v217 = vunpack.c.h.b16 %v171
  %v218 = vunpack.c.l.b16 %v172
  %v219 = vunpack.c.h.b16 %v172
  %v220 = vunpack.c.l.b16 %v173
  %v221 = vunpack.c.h.b16 %v173
  %v222 = vunpack.c.l.b16 %v174
  %v223 = vpack.c.b16 %v205, %v196
  %v224 = vpack.c.b16 %v206, %v197
  %v225 = vpack.c.b16 %v207, %v198
  %v226 = vpack.c.b16 %v208, %v199
  %v227 = vpack.c.b16 %v209, %v200
  %v228 = vpack.c.b16 %v210, %v201
  %v229 = vpack.c.b16 %v211, %v202
  %v230 = vpack.c.b16 %v212, %v203
  %v231 = vpack.c.b16 %v213, %v204
  %v232 = vpack.c.b16 %v214, %v214
  %v233 = vpack.c.b16 %v215, %v215
  %v234 = vpack.c.b16 %v216, %v216
  %v235 = vpack.c.b16 %v217, %v217
  %v236 = vpack.c.b16 %v218, %v218
  %v237 = vpack.c.b16 %v219, %v219
  %v238 = vpack.c.b16 %v220, %v220
  %v239 = vpack.c.b16 %v221, %v221
  %v240 = vpack.c.b16 %v222, %v222
  %v403 = vunpack.c.l.b16 %v15
  %v404 = vunpack.c.l.b16 %v16
  %v405 = vunpack.c.l.b16 %v17
  %v406 = vunpack.c.l.b16 %v18
  %v407 = vunpack.c.l.b16 %v19
  %v408 = vunpack.c.l.b16 %v20
  %v409 = vunpack.c.l.b16 %v21
  %v410 = vunpack.c.l.b16 %v22
  %v411 = vunpack.c.l.b16 %v23
  %v412 = vunpack.c.l.b16 %v24
  %v413 = vunpack.c.l.b16 %v25
  %v414 = vunpack.c.l.b16 %v26
  %v415 = vunpack.c.l.b16 %v27
  %v416 = vunpack.c.l.b16 %v28
  %v417 = vunpack.c.l.b16 %v29
  %v418 = vunpack.c.l.b16 %v30
  %v419 = vunpack.c.l.b16 %v31
  %v420 = vunpack.c.l.b16 %v32
  %v421 = vunpack.c.l.b16 %v33
  %v422 = vunpack.c.l.b16 %v34
  %v423 = vunpack.c.l.b16 %v35
  %v424 = vunpack.c.l.b16 %v36
  %v425 = vunpack.c.l.b16 %v37
  %v426 = vunpack.c.l.b16 %v38
  %v427 = vunpack.c.l.b16 %v39
  %v428 = vunpack.c.l.b16 %v40
  %v429 = vunpack.c.l.b16 %v41
  %v430 = vunpack.c.l.b16 %v42
  %v431 = vunpack.c.l.b16 %v43
  %v432 = vunpack.c.l.b16 %v44
  %v433 = vunpack.c.l.b16 %v45
  %v434 = vunpack.c.l.b16 %v46
  %v435 = vunpack.c.l.b16 %v47
  %v436 = vunpack.c.l.b16 %v48
  %v437 = vunpack.c.l.b16 %v49
  %v438 = vunpack.c.l.b16 %v50
  %v439 = vunpack.c.l.b16 %v51
  %v440 = vunpack.c.l.b16 %v52
  %v441 = vunpack.c.l.b16 %v53
  %v442 = vunpack.c.l.b16 %v54
  %v443 = vunpack.c.l.b16 %v55
  %v444 = vunpack.c.l.b16 %v56
  %v445 = vunpack.c.l.b16 %v57
  %v446 = vunpack.c.l.b16 %v58
  %v447 = vunpack.c.l.b16 %v59
  %v448 = vunpack.c.l.b16 %v60
  %v449 = vunpack.c.l.b16 %v61
  %v450 = vunpack.c.l.b16 %v62
  %v451 = vunpack.c.l.b16 %v63
  %v452 = vunpack.c.l.b16 %v64
  %v453 = vunpack.c.l.b16 %v65
  %v454 = vunpack.c.l.b16 %v66
  %v455 = vunpack.c.l.b16 %v67
  %v456 = vunpack.c.l.b16 %v68
  %v457 = vunpack.c.l.b16 %v69
  %v458 = vunpack.c.l.b16 %v70
  %v459 = vunpack.c.l.b16 %v71
  %v460 = vunpack.c.l.b16 %v72
  %v461 = vunpack.c.l.b16 %v73
  %v462 = vunpack.c.l.b16 %v74
  %v463 = vunpack.c.l.b16 %v75
  %v464 = vunpack.c.l.b16 %v76
  %v465 = vunpack.c.l.b16 %v77
  %v466 = vunpack.c.l.b16 %v78
  %v467 = vunpack.c.l.b16 %v79
  %v468 = vunpack.c.l.b16 %v80
  %v469 = vunpack.c.l.b16 %v81
  %v470 = vunpack.c.l.b16 %v82
  %v471 = vunpack.c.l.b16 %v83
  %v472 = vunpack.c.l.b16 %v84
  %v473 = vunpack.c.l.b16 %v85
  %v474 = vunpack.c.l.b16 %v86
  %v475 = vunpack.c.l.b16 %v87
  %v476 = vunpack.c.l.b16 %v88
  %v477 = vunpack.c.l.b16 %v89
  %v478 = vunpack.c.l.b16 %v90
  %v479 = vunpack.c.l.b16 %v91
  %v480 = vunpack.c.l.b16 %v92
  %v481 = vunpack.c.l.b16 %v93
  %v482 = vunpack.c.l.b16 %v94
  %v483 = vunpack.c.l.b16 %v95
  %v484 = vunpack.c.l.b16 %v96
  %v485 = vunpack.c.l.b16 %v97
  %v486 = vunpack.c.l.b16 %v98
  %v487 = vunpack.c.l.b16 %v99
  %v488 = vunpack.c.l.b16 %v100
  %v489 = vunpack.c.l.b16 %v101
  %v490 = vunpack.c.l.b16 %v102
  %v491 = vunpack.c.l.b16 %v103
  %v492 = vunpack.c.l.b16 %v104
  %v493 = vunpack.c.l.b16 %v105
  %v494 = vunpack.c.l.b16 %v106
  %v495 = vunpack.c.l.b16 %v107
  %v496 = vunpack.c.l.b16 %v108
  %v497 = vunpack.c.l.b16 %v109
  %v498 = vunpack.c.l.b16 %v110
  %v499 = vunpack.c.l.b16 %v111
  %v500 = vunpack.c.l.b16 %v112
  %v501 = vunpack.c.l.b16 %v113
  %v502 = vunpack.c.l.b16 %v114
  %v503 = vunpack.c.l.b16 %v115
  %v504 = vunpack.c.l.b16 %v116
  %v505 = vunpack.c.l.b16 %v117
  %v506 = vunpack.c.l.b16 %v118
  %v507 = vunpack.c.l.b16 %v119
  %v508 = vunpack.c.l.b16 %v120
  %v509 = vunpack.c.l.b16 %v121
  %v510 = vunpack.c.l.b16 %v122
  %v511 = vunpack.c.l.b16 %v123
  %v512 = vunpack.c.l.b16 %v124
  %v513 = vunpack.c.l.b16 %v125
  %v514 = vunpack.c.l.b16 %v126
  %v515 = vunpack.c.l.b16 %v127
  %v516 = vunpack.c.l.b16 %v128
  %v517 = vunpack.c.l.b16 %v129
  %v518 = vunpack.c.l.b16 %v130
  %v519 = vunpack.c.l.b16 %v131
  %v520 = vunpack.c.l.b16 %v132
  %v521 = vunpack.c.l.b16 %v133
  %v522 = vunpack.c.l.b16 %v134
  %v523 = vunpack.c.l.b16 %v135
  %v524 = vunpack.c.l.b16 %v136
  %v525 = vunpack.c.l.b16 %v137
  %v526 = vunpack.c.l.b16 %v138
  %v527 = vunpack.c.l.b16 %v139
  %v528 = vunpack.c.l.b16 %v140
  %v529 = vunpack.c.l.b16 %v141
  %v530 = vunpack.c.l.b16 %v142
  %v531 = vunpack.c.l.b16 %v143
  %v532 = vunpack.c.l.b16 %v144
  %v533 = vunpack.c.l.b16 %v145
  %v534 = vunpack.c.l.b16 %v146
  %v535 = vunpack.c.l.b16 %v147
  %v536 = vunpack.c.l.b16 %v148
  %v537 = vunpack.c.l.b16 %v149
  %v538 = vunpack.c.l.b16 %v150
  %v539 = vunpack.c.l.b16 %v151
  %v540 = vunpack.c.l.b16 %v152
  %v541 = vunpack.c.l.b16 %v153
  %v542 = vunpack.c.l.b16 %v154
  %v543 = vunpack.c.l.b16 %v155
  %v544 = vunpack.c.l.b16 %v156
  %v545 = vunpack.c.l.b16 %v157
  %v546 = vunpack.c.l.b16 %v158
  %v547 = vpack.c.b16 %v404, %v403
  %v548 = vpack.c.b16 %v406, %v405
  %v549 = vpack.c.b16 %v408, %v407
  %v550 = vpack.c.b16 %v410, %v409
  %v551 = vpack.c.b16 %v412, %v411
  %v552 = vpack.c.b16 %v414, %v413
  %v553 = vpack.c.b16 %v416, %v415
  %v554 = vpack.c.b16 %v418, %v417
  %v555 = vpack.c.b16 %v420, %v419
  %v556 = vpack.c.b16 %v422, %v421
  %v557 = vpack.c.b16 %v424, %v423
  %v558 = vpack.c.b16 %v426, %v425
  %v559 = vpack.c.b16 %v428, %v427
  %v560 = vpack.c.b16 %v430, %v429
  %v561 = vpack.c.b16 %v432, %v431
  %v562 = vpack.c.b16 %v434, %v433
  %v563 = vpack.c.b16 %v436, %v435
  %v564 = vpack.c.b16 %v438, %v437
  %v565 = vpack.c.b16 %v440, %v439
  %v566 = vpack.c.b16 %v442, %v441
  %v567 = vpack.c.b16 %v444, %v443
  %v568 = vpack.c.b16 %v446, %v445
  %v569 = vpack.c.b16 %v448, %v447
  %v570 = vpack.c.b16 %v450, %v449
  %v571 = vpack.c.b16 %v452, %v451
  %v572 = vpack.c.b16 %v454, %v453
  %v573 = vpack.c.b16 %v456, %v455
  %v574 = vpack.c.b16 %v458, %v457
  %v575 = vpack.c.b16 %v460, %v459
  %v576 = vpack.c.b16 %v462, %v461
  %v577 = vpack.c.b16 %v464, %v463
  %v578 = vpack.c.b16 %v466, %v465
  %v579 = vpack.c.b16 %v468, %v467
  %v580 = vpack.c.b16 %v470, %v469
  %v581 = vpack.c.b16 %v472, %v471
  %v582 = vpack.c.b16 %v474, %v473
  %v583 = vpack.c.b16 %v476, %v475
  %v584 = vpack.c.b16 %v478, %v477
  %v585 = vpack.c.b16 %v480, %v479
  %v586 = vpack.c.b16 %v482, %v481
  %v587 = vpack.c.b16 %v484, %v483
  %v588 = vpack.c.b16 %v486, %v485
  %v589 = vpack.c.b16 %v488, %v487
  %v590 = vpack.c.b16 %v490, %v489
  %v591 = vpack.c.b16 %v492, %v491
  %v592 = vpack.c.b16 %v494, %v493
  %v593 = vpack.c.b16 %v496, %v495
  %v594 = vpack.c.b16 %v498, %v497
  %v595 = vpack.c.b16 %v500, %v499
  %v596 = vpack.c.b16 %v502, %v501
  %v597 = vpack.c.b16 %v504, %v503
  %v598 = vpack.c.b16 %v506, %v505
  %v599 = vpack.c.b16 %v508, %v507
  %v600 = vpack.c.b16 %v510, %v509
  %v601 = vpack.c.b16 %v512, %v511
  %v602 = vpack.c.b16 %v514, %v513
  %v603 = vpack.c.b16 %v516, %v515
  %v604 = vpack.c.b16 %v518, %v517
  %v605 = vpack.c.b16 %v520, %v519
  %v606 = vpack.c.b16 %v522, %v521
  %v607 = vpack.c.b16 %v524, %v523
  %v608 = vpack.c.b16 %v526, %v525
  %v609 = vpack.c.b16 %v528, %v527
  %v610 = vpack.c.b16 %v530, %v529
  %v611 = vpack.c.b16 %v532, %v531
  %v612 = vpack.c.b16 %v534, %v533
  %v613 = vpack.c.b16 %v536, %v535
  %v614 = vpack.c.b16 %v538, %v537
  %v615 = vpack.c.b16 %v540, %v539
  %v616 = vpack.c.b16 %v542, %v541
  %v617 = vpack.c.b16 %v544, %v543
  %v618 = vpack.c.b16 %v546, %v545
  %691 = vmatprep.subr.bf16.mxu0 0
  %692 = vmatpush1.bf16.msra.mxu0 %v554
  %693 = vmatprep.subr.bf16.mxu0 0
  %694 = vmatpush1.bf16.msra.mxu0 %v553
  %695 = vmatprep.subr.bf16.mxu0 0
  %696 = vmatpush1.bf16.msra.mxu0 %v552
  %697 = vmatprep.subr.bf16.mxu0 0
  %698 = vmatpush1.bf16.msra.mxu0 %v551
  %699 = vmatprep.subr.bf16.mxu0 0
  %700 = vmatpush1.bf16.msra.mxu0 %v550
  %701 = vmatprep.subr.bf16.mxu0 0
  %702 = vmatpush1.bf16.msra.mxu0 %v549
  %703 = vmatprep.subr.bf16.mxu0 0
  %704 = vmatpush1.bf16.msra.mxu0 %v548
  %705 = vmatprep.subr.bf16.mxu0 0
  %706 = vmatpush1.bf16.msra.mxu0 %v547
  %707 = vmatprep.subr.bf16.mxu0 0
  %708 = vmatpush2.bf16.msra.mxu0 %v562
  %709 = vmatprep.subr.bf16.mxu0 0
  %710 = vmatpush2.bf16.msra.mxu0 %v561
  %711 = vmatprep.subr.bf16.mxu0 0
  %712 = vmatpush2.bf16.msra.mxu0 %v560
  %713 = vmatprep.subr.bf16.mxu0 0
  %714 = vmatpush2.bf16.msra.mxu0 %v559
  %715 = vmatprep.subr.bf16.mxu0 0
  %716 = vmatpush2.bf16.msra.mxu0 %v558
  %717 = vmatprep.subr.bf16.mxu0 0
  %718 = vmatpush2.bf16.msra.mxu0 %v557
  %719 = vmatprep.subr.bf16.mxu0 0
  %720 = vmatpush2.bf16.msra.mxu0 %v556
  %721 = vmatprep.subr.bf16.mxu0 0
  %722 = vmatpush2.bf16.msra.mxu0 %v555
  %723 = vmatprep.mubr.bf16.mxu0 %v224
  %724 = vmatmul.mubr.bf16.gmra.mxu0 %v223
  %v725 = vpop.f32.mrf.mxu0
  %v726 = vadd.f32 %v179, %v725
  %v727 = vpop.f32.mrf.mxu0
  %v728 = vpop.f32.mrf.mxu0
  %v729 = vadd.f32 %v179, %v728
  %v730 = vpop.f32.mrf.mxu0
  %731 = vmatprep.mubr.bf16.mxu0 %v233
  %732 = vmatmul.mubr.bf16.gmra.mxu0 %v232
  %v733 = vpop.f32.mrf.mxu0
  %v734 = vadd.f32 %v179, %v733
  %v735 = vpop.f32.mrf.mxu0
  %v736 = vpop.f32.mrf.mxu0
  %v737 = vpop.f32.mrf.mxu0
  %738 = vdwg.mxu0
  %739 = vmatprep.subr.bf16.mxu0 0
  %740 = vmatpush1.bf16.msra.mxu0 %v570
  %741 = vmatprep.subr.bf16.mxu0 0
  %742 = vmatpush1.bf16.msra.mxu0 %v569
  %743 = vmatprep.subr.bf16.mxu0 0
  %744 = vmatpush1.bf16.msra.mxu0 %v568
  %745 = vmatprep.subr.bf16.mxu0 0
  %746 = vmatpush1.bf16.msra.mxu0 %v567
  %747 = vmatprep.subr.bf16.mxu0 0
  %748 = vmatpush1.bf16.msra.mxu0 %v566
  %749 = vmatprep.subr.bf16.mxu0 0
  %750 = vmatpush1.bf16.msra.mxu0 %v565
  %751 = vmatprep.subr.bf16.mxu0 0
  %752 = vmatpush1.bf16.msra.mxu0 %v564
  %753 = vmatprep.subr.bf16.mxu0 0
  %754 = vmatpush1.bf16.msra.mxu0 %v563
  %755 = vmatprep.subr.bf16.mxu0 0
  %756 = vmatpush2.bf16.msra.mxu0 %v578
  %757 = vmatprep.subr.bf16.mxu0 0
  %758 = vmatpush2.bf16.msra.mxu0 %v577
  %759 = vmatprep.subr.bf16.mxu0 0
  %760 = vmatpush2.bf16.msra.mxu0 %v576
  %761 = vmatprep.subr.bf16.mxu0 0
  %762 = vmatpush2.bf16.msra.mxu0 %v575
  %763 = vmatprep.subr.bf16.mxu0 0
  %764 = vmatpush2.bf16.msra.mxu0 %v574
  %765 = vmatprep.subr.bf16.mxu0 0
  %766 = vmatpush2.bf16.msra.mxu0 %v573
  %767 = vmatprep.subr.bf16.mxu0 0
  %768 = vmatpush2.bf16.msra.mxu0 %v572
  %769 = vmatprep.subr.bf16.mxu0 0
  %770 = vmatpush2.bf16.msra.mxu0 %v571
  %771 = vmatprep.mubr.bf16.mxu0 %v226
  %772 = vmatmul.mubr.bf16.gmra.mxu0 %v225
  %v773 = vpop.f32.mrf.mxu0
  %v774 = vadd.f32 %v726, %v773
  %v775 = vpop.f32.mrf.mxu0
  %v776 = vpop.f32.mrf.mxu0
  %v777 = vadd.f32 %v729, %v776
  %v778 = vpop.f32.mrf.mxu0
  %779 = vmatprep.mubr.bf16.mxu0 %v235
  %780 = vmatmul.mubr.bf16.gmra.mxu0 %v234
  %v781 = vpop.f32.mrf.mxu0
  %v782 = vadd.f32 %v734, %v781
  %v783 = vpop.f32.mrf.mxu0
  %v784 = vpop.f32.mrf.mxu0
  %v785 = vpop.f32.mrf.mxu0
  %786 = vdwg.mxu0
  %787 = vmatprep.subr.bf16.mxu0 0
  %788 = vmatpush1.bf16.msra.mxu0 %v586
  %789 = vmatprep.subr.bf16.mxu0 0
  %790 = vmatpush1.bf16.msra.mxu0 %v585
  %791 = vmatprep.subr.bf16.mxu0 0
  %792 = vmatpush1.bf16.msra.mxu0 %v584
  %793 = vmatprep.subr.bf16.mxu0 0
  %794 = vmatpush1.bf16.msra.mxu0 %v583
  %795 = vmatprep.subr.bf16.mxu0 0
  %796 = vmatpush1.bf16.msra.mxu0 %v582
  %797 = vmatprep.subr.bf16.mxu0 0
  %798 = vmatpush1.bf16.msra.mxu0 %v581
  %799 = vmatprep.subr.bf16.mxu0 0
  %800 = vmatpush1.bf16.msra.mxu0 %v580
  %801 = vmatprep.subr.bf16.mxu0 0
  %802 = vmatpush1.bf16.msra.mxu0 %v579
  %803 = vmatprep.subr.bf16.mxu0 0
  %804 = vmatpush2.bf16.msra.mxu0 %v594
  %805 = vmatprep.subr.bf16.mxu0 0
  %806 = vmatpush2.bf16.msra.mxu0 %v593
  %807 = vmatprep.subr.bf16.mxu0 0
  %808 = vmatpush2.bf16.msra.mxu0 %v592
  %809 = vmatprep.subr.bf16.mxu0 0
  %810 = vmatpush2.bf16.msra.mxu0 %v591
  %811 = vmatprep.subr.bf16.mxu0 0
  %812 = vmatpush2.bf16.msra.mxu0 %v590
  %813 = vmatprep.subr.bf16.mxu0 0
  %814 = vmatpush2.bf16.msra.mxu0 %v589
  %815 = vmatprep.subr.bf16.mxu0 0
  %816 = vmatpush2.bf16.msra.mxu0 %v588
  %817 = vmatprep.subr.bf16.mxu0 0
  %818 = vmatpush2.bf16.msra.mxu0 %v587
  %819 = vmatprep.mubr.bf16.mxu0 %v228
  %820 = vmatmul.mubr.bf16.gmra.mxu0 %v227
  %v821 = vpop.f32.mrf.mxu0
  %v822 = vadd.f32 %v774, %v821
  %v823 = vpop.f32.mrf.mxu0
  %v824 = vpop.f32.mrf.mxu0
  %v825 = vadd.f32 %v777, %v824
  %v826 = vpop.f32.mrf.mxu0
  %827 = vmatprep.mubr.bf16.mxu0 %v237
  %828 = vmatmul.mubr.bf16.gmra.mxu0 %v236
  %v829 = vpop.f32.mrf.mxu0
  %v830 = vadd.f32 %v782, %v829
  %v831 = vpop.f32.mrf.mxu0
  %v832 = vpop.f32.mrf.mxu0
  %v833 = vpop.f32.mrf.mxu0
  %834 = vdwg.mxu0
  %835 = vmatprep.subr.bf16.mxu0 0
  %836 = vmatpush1.bf16.msra.mxu0 %v602
  %837 = vmatprep.subr.bf16.mxu0 0
  %838 = vmatpush1.bf16.msra.mxu0 %v601
  %839 = vmatprep.subr.bf16.mxu0 0
  %840 = vmatpush1.bf16.msra.mxu0 %v600
  %841 = vmatprep.subr.bf16.mxu0 0
  %842 = vmatpush1.bf16.msra.mxu0 %v599
  %843 = vmatprep.subr.bf16.mxu0 0
  %844 = vmatpush1.bf16.msra.mxu0 %v598
  %845 = vmatprep.subr.bf16.mxu0 0
  %846 = vmatpush1.bf16.msra.mxu0 %v597
  %847 = vmatprep.subr.bf16.mxu0 0
  %848 = vmatpush1.bf16.msra.mxu0 %v596
  %849 = vmatprep.subr.bf16.mxu0 0
  %850 = vmatpush1.bf16.msra.mxu0 %v595
  %851 = vmatprep.subr.bf16.mxu0 0
  %852 = vmatpush2.bf16.msra.mxu0 %v610
  %853 = vmatprep.subr.bf16.mxu0 0
  %854 = vmatpush2.bf16.msra.mxu0 %v609
  %855 = vmatprep.subr.bf16.mxu0 0
  %856 = vmatpush2.bf16.msra.mxu0 %v608
  %857 = vmatprep.subr.bf16.mxu0 0
  %858 = vmatpush2.bf16.msra.mxu0 %v607
  %859 = vmatprep.subr.bf16.mxu0 0
  %860 = vmatpush2.bf16.msra.mxu0 %v606
  %861 = vmatprep.subr.bf16.mxu0 0
  %862 = vmatpush2.bf16.msra.mxu0 %v605
  %863 = vmatprep.subr.bf16.mxu0 0
  %864 = vmatpush2.bf16.msra.mxu0 %v604
  %865 = vmatprep.subr.bf16.mxu0 0
  %866 = vmatpush2.bf16.msra.mxu0 %v603
  %867 = vmatprep.mubr.bf16.mxu0 %v230
  %868 = vmatmul.mubr.bf16.gmra.mxu0 %v229
  %v869 = vpop.f32.mrf.mxu0
  %v870 = vadd.f32 %v822, %v869
  %v871 = vpop.f32.mrf.mxu0
  %v872 = vpop.f32.mrf.mxu0
  %v873 = vadd.f32 %v825, %v872
  %v874 = vpop.f32.mrf.mxu0
  %875 = vmatprep.mubr.bf16.mxu0 %v239
  %876 = vmatmul.mubr.bf16.gmra.mxu0 %v238
  %v877 = vpop.f32.mrf.mxu0
  %v878 = vadd.f32 %v830, %v877
  %v879 = vpop.f32.mrf.mxu0
  %v880 = vpop.f32.mrf.mxu0
  %v881 = vpop.f32.mrf.mxu0
  %882 = vdwg.mxu0
  %883 = vmatprep.subr.bf16.mxu0 0
  %884 = vmatpush1.bf16.msra.mxu0 %v618
  %885 = vmatprep.subr.bf16.mxu0 0
  %886 = vmatpush1.bf16.msra.mxu0 %v617
  %887 = vmatprep.subr.bf16.mxu0 0
  %888 = vmatpush1.bf16.msra.mxu0 %v616
  %889 = vmatprep.subr.bf16.mxu0 0
  %890 = vmatpush1.bf16.msra.mxu0 %v615
  %891 = vmatprep.subr.bf16.mxu0 0
  %892 = vmatpush1.bf16.msra.mxu0 %v614
  %893 = vmatprep.subr.bf16.mxu0 0
  %894 = vmatpush1.bf16.msra.mxu0 %v613
  %895 = vmatprep.subr.bf16.mxu0 0
  %896 = vmatpush1.bf16.msra.mxu0 %v612
  %897 = vmatprep.subr.bf16.mxu0 0
  %898 = vmatpush1.bf16.msra.mxu0 %v611
  %899 = vmatprep.subr.bf16.mxu0 0
  %900 = vmatpush2.bf16.msra.mxu0 0
  %901 = vmatprep.subr.bf16.mxu0 0
  %902 = vmatpush2.bf16.msra.mxu0 0
  %903 = vmatprep.subr.bf16.mxu0 0
  %904 = vmatpush2.bf16.msra.mxu0 0
  %905 = vmatprep.subr.bf16.mxu0 0
  %906 = vmatpush2.bf16.msra.mxu0 0
  %907 = vmatprep.subr.bf16.mxu0 0
  %908 = vmatpush2.bf16.msra.mxu0 0
  %909 = vmatprep.subr.bf16.mxu0 0
  %910 = vmatpush2.bf16.msra.mxu0 0
  %911 = vmatprep.subr.bf16.mxu0 0
  %912 = vmatpush2.bf16.msra.mxu0 0
  %913 = vmatprep.subr.bf16.mxu0 0
  %914 = vmatpush2.bf16.msra.mxu0 0
  %915 = vmatprep.mubr.bf16.mxu0 0
  %916 = vmatmul.mubr.bf16.gmra.mxu0 %v231
  %v917 = vpop.f32.mrf.mxu0
  %v918 = vadd.f32 %v870, %v917
  %v919 = vpop.f32.mrf.mxu0
  %v920 = vpop.f32.mrf.mxu0
  %v921 = vadd.f32 %v873, %v920
  %v922 = vpop.f32.mrf.mxu0
  %923 = vmatprep.mubr.bf16.mxu0 0
  %924 = vmatmul.mubr.bf16.gmra.mxu0 %v240
  %v925 = vpop.f32.mrf.mxu0
  %v926 = vadd.f32 %v878, %v925
  %v927 = vpop.f32.mrf.mxu0
  %v928 = vpop.f32.mrf.mxu0
  %v929 = vpop.f32.mrf.mxu0
  %930 = vdwg.mxu0
  %v931 = vmax.f32 %v918, 0.0
  %v932 = vmax.f32 %v921, 0.0
  %v933 = vmax.f32 %v926, 0.0
  %s934 = scalar_lea.vmem %s0, 108
  %v935 = vld [vmem:[%s934] sm:$0xff]
  %v936 = vld [vmem:[%s934 + $0x8] sm:$0xff]
  %v937 = vld [vmem:[%s934 + $0x10] sm:$0xff]
  %v938 = vld [vmem:[%s934 + $0x18] sm:$0xff]
  %v939 = vld [vmem:[%s934 + $0x20] sm:$0xf]
  %v940 = vld [vmem:[%s934 + $0x24] sm:$0xff]
  %v941 = vld [vmem:[%s934 + $0x2c] sm:$0xff]
  %v942 = vld [vmem:[%s934 + $0x34] sm:$0xff]
  %v943 = vld [vmem:[%s934 + $0x3c] sm:$0xff]
  %v944 = vld [vmem:[%s934 + $0x44] sm:$0xf]
  %v945 = vld [vmem:[%s934 + $0x48] sm:$0x11]
  %v946 = vld [vmem:[%s934 + $0x50] sm:$0x11]
  %v947 = vld [vmem:[%s934 + $0x58] sm:$0x11]
  %v948 = vld [vmem:[%s934 + $0x60] sm:$0x11]
  %v949 = vld [vmem:[%s934 + $0x68] sm:$0x1]
  %v965 = vunpack.c.l.b16 %v935
  %v966 = vunpack.c.h.b16 %v935
  %v967 = vunpack.c.l.b16 %v936
  %v968 = vunpack.c.h.b16 %v936
  %v969 = vunpack.c.l.b16 %v937
  %v970 = vunpack.c.h.b16 %v937
  %v971 = vunpack.c.l.b16 %v938
  %v972 = vunpack.c.h.b16 %v938
  %v973 = vunpack.c.l.b16 %v939
  %v974 = vunpack.c.l.b16 %v940
  %v975 = vunpack.c.h.b16 %v940
  %v976 = vunpack.c.l.b16 %v941
  %v977 = vunpack.c.h.b16 %v941
  %v978 = vunpack.c.l.b16 %v942
  %v979 = vunpack.c.h.b16 %v942
  %v980 = vunpack.c.l.b16 %v943
  %v981 = vunpack.c.h.b16 %v943
  %v982 = vunpack.c.l.b16 %v944
  %v983 = vunpack.c.l.b16 %v945
  %v984 = vunpack.c.h.b16 %v945
  %v985 = vunpack.c.l.b16 %v946
  %v986 = vunpack.c.h.b16 %v946
  %v987 = vunpack.c.l.b16 %v947
  %v988 = vunpack.c.h.b16 %v947
  %v989 = vunpack.c.l.b16 %v948
  %v990 = vunpack.c.h.b16 %v948
  %v991 = vunpack.c.l.b16 %v949
  %v992 = vpack.c.b16 %v974, %v965
  %v993 = vpack.c.b16 %v975, %v966
  %v994 = vpack.c.b16 %v976, %v967
  %v995 = vpack.c.b16 %v977, %v968
  %v996 = vpack.c.b16 %v978, %v969
  %v997 = vpack.c.b16 %v979, %v970
  %v998 = vpack.c.b16 %v980, %v971
  %v999 = vpack.c.b16 %v981, %v972
  %v1000 = vpack.c.b16 %v982, %v973
  %v1001 = vpack.c.b16 %v983, %v983
  %v1002 = vpack.c.b16 %v984, %v984
  %v1003 = vpack.c.b16 %v985, %v985
  %v1004 = vpack.c.b16 %v986, %v986
  %v1005 = vpack.c.b16 %v987, %v987
  %v1006 = vpack.c.b16 %v988, %v988
  %v1007 = vpack.c.b16 %v989, %v989
  %v1008 = vpack.c.b16 %v990, %v990
  %v1009 = vpack.c.b16 %v991, %v991
  %1028 = vmatprep.subr.bf16.mxu0 0
  %1029 = vmatpush1.bf16.msra.mxu0 %v554
  %1030 = vmatprep.subr.bf16.mxu0 0
  %1031 = vmatpush1.bf16.msra.mxu0 %v553
  %1032 = vmatprep.subr.bf16.mxu0 0
  %1033 = vmatpush1.bf16.msra.mxu0 %v552
  %1034 = vmatprep.subr.bf16.mxu0 0
  %1035 = vmatpush1.bf16.msra.mxu0 %v551
  %1036 = vmatprep.subr.bf16.mxu0 0
  %1037 = vmatpush1.bf16.msra.mxu0 %v550
  %1038 = vmatprep.subr.bf16.mxu0 0
  %1039 = vmatpush1.bf16.msra.mxu0 %v549
  %1040 = vmatprep.subr.bf16.mxu0 0
  %1041 = vmatpush1.bf16.msra.mxu0 %v548
  %1042 = vmatprep.subr.bf16.mxu0 0
  %1043 = vmatpush1.bf16.msra.mxu0 %v547
  %1044 = vmatprep.subr.bf16.mxu0 0
  %1045 = vmatpush2.bf16.msra.mxu0 %v562
  %1046 = vmatprep.subr.bf16.mxu0 0
  %1047 = vmatpush2.bf16.msra.mxu0 %v561
  %1048 = vmatprep.subr.bf16.mxu0 0
  %1049 = vmatpush2.bf16.msra.mxu0 %v560
  %1050 = vmatprep.subr.bf16.mxu0 0
  %1051 = vmatpush2.bf16.msra.mxu0 %v559
  %1052 = vmatprep.subr.bf16.mxu0 0
  %1053 = vmatpush2.bf16.msra.mxu0 %v558
  %1054 = vmatprep.subr.bf16.mxu0 0
  %1055 = vmatpush2.bf16.msra.mxu0 %v557
  %1056 = vmatprep.subr.bf16.mxu0 0
  %1057 = vmatpush2.bf16.msra.mxu0 %v556
  %1058 = vmatprep.subr.bf16.mxu0 0
  %1059 = vmatpush2.bf16.msra.mxu0 %v555
  %1060 = vmatprep.mubr.bf16.mxu0 %v993
  %1061 = vmatmul.mubr.bf16.gmra.mxu0 %v992
  %v1062 = vpop.f32.mrf.mxu0
  %v1063 = vadd.f32 %v179, %v1062
  %v1064 = vpop.f32.mrf.mxu0
  %v1065 = vpop.f32.mrf.mxu0
  %v1066 = vadd.f32 %v179, %v1065
  %v1067 = vpop.f32.mrf.mxu0
  %1068 = vmatprep.mubr.bf16.mxu0 %v1002
  %1069 = vmatmul.mubr.bf16.gmra.mxu0 %v1001
  %v1070 = vpop.f32.mrf.mxu0
  %v1071 = vadd.f32 %v179, %v1070
  %v1072 = vpop.f32.mrf.mxu0
  %v1073 = vpop.f32.mrf.mxu0
  %v1074 = vpop.f32.mrf.mxu0
  %1075 = vdwg.mxu0
  %1076 = vmatprep.subr.bf16.mxu0 0
  %1077 = vmatpush1.bf16.msra.mxu0 %v570
  %1078 = vmatprep.subr.bf16.mxu0 0
  %1079 = vmatpush1.bf16.msra.mxu0 %v569
  %1080 = vmatprep.subr.bf16.mxu0 0
  %1081 = vmatpush1.bf16.msra.mxu0 %v568
  %1082 = vmatprep.subr.bf16.mxu0 0
  %1083 = vmatpush1.bf16.msra.mxu0 %v567
  %1084 = vmatprep.subr.bf16.mxu0 0
  %1085 = vmatpush1.bf16.msra.mxu0 %v566
  %1086 = vmatprep.subr.bf16.mxu0 0
  %1087 = vmatpush1.bf16.msra.mxu0 %v565
  %1088 = vmatprep.subr.bf16.mxu0 0
  %1089 = vmatpush1.bf16.msra.mxu0 %v564
  %1090 = vmatprep.subr.bf16.mxu0 0
  %1091 = vmatpush1.bf16.msra.mxu0 %v563
  %1092 = vmatprep.subr.bf16.mxu0 0
  %1093 = vmatpush2.bf16.msra.mxu0 %v578
  %1094 = vmatprep.subr.bf16.mxu0 0
  %1095 = vmatpush2.bf16.msra.mxu0 %v577
  %1096 = vmatprep.subr.bf16.mxu0 0
  %1097 = vmatpush2.bf16.msra.mxu0 %v576
  %1098 = vmatprep.subr.bf16.mxu0 0
  %1099 = vmatpush2.bf16.msra.mxu0 %v575
  %1100 = vmatprep.subr.bf16.mxu0 0
  %1101 = vmatpush2.bf16.msra.mxu0 %v574
  %1102 = vmatprep.subr.bf16.mxu0 0
  %1103 = vmatpush2.bf16.msra.mxu0 %v573
  %1104 = vmatprep.subr.bf16.mxu0 0
  %1105 = vmatpush2.bf16.msra.mxu0 %v572
  %1106 = vmatprep.subr.bf16.mxu0 0
  %1107 = vmatpush2.bf16.msra.mxu0 %v571
  %1108 = vmatprep.mubr.bf16.mxu0 %v995
  %1109 = vmatmul.mubr.bf16.gmra.mxu0 %v994
  %v1110 = vpop.f32.mrf.mxu0
  %v1111 = vadd.f32 %v1063, %v1110
  %v1112 = vpop.f32.mrf.mxu0
  %v1113 = vpop.f32.mrf.mxu0
  %v1114 = vadd.f32 %v1066, %v1113
  %v1115 = vpop.f32.mrf.mxu0
  %1116 = vmatprep.mubr.bf16.mxu0 %v1004
  %1117 = vmatmul.mubr.bf16.gmra.mxu0 %v1003
  %v1118 = vpop.f32.mrf.mxu0
  %v1119 = vadd.f32 %v1071, %v1118
  %v1120 = vpop.f32.mrf.mxu0
  %v1121 = vpop.f32.mrf.mxu0
  %v1122 = vpop.f32.mrf.mxu0
  %1123 = vdwg.mxu0
  %1124 = vmatprep.subr.bf16.mxu0 0
  %1125 = vmatpush1.bf16.msra.mxu0 %v586
  %1126 = vmatprep.subr.bf16.mxu0 0
  %1127 = vmatpush1.bf16.msra.mxu0 %v585
  %1128 = vmatprep.subr.bf16.mxu0 0
  %1129 = vmatpush1.bf16.msra.mxu0 %v584
  %1130 = vmatprep.subr.bf16.mxu0 0
  %1131 = vmatpush1.bf16.msra.mxu0 %v583
  %1132 = vmatprep.subr.bf16.mxu0 0
  %1133 = vmatpush1.bf16.msra.mxu0 %v582
  %1134 = vmatprep.subr.bf16.mxu0 0
  %1135 = vmatpush1.bf16.msra.mxu0 %v581
  %1136 = vmatprep.subr.bf16.mxu0 0
  %1137 = vmatpush1.bf16.msra.mxu0 %v580
  %1138 = vmatprep.subr.bf16.mxu0 0
  %1139 = vmatpush1.bf16.msra.mxu0 %v579
  %1140 = vmatprep.subr.bf16.mxu0 0
  %1141 = vmatpush2.bf16.msra.mxu0 %v594
  %1142 = vmatprep.subr.bf16.mxu0 0
  %1143 = vmatpush2.bf16.msra.mxu0 %v593
  %1144 = vmatprep.subr.bf16.mxu0 0
  %1145 = vmatpush2.bf16.msra.mxu0 %v592
  %1146 = vmatprep.subr.bf16.mxu0 0
  %1147 = vmatpush2.bf16.msra.mxu0 %v591
  %1148 = vmatprep.subr.bf16.mxu0 0
  %1149 = vmatpush2.bf16.msra.mxu0 %v590
  %1150 = vmatprep.subr.bf16.mxu0 0
  %1151 = vmatpush2.bf16.msra.mxu0 %v589
  %1152 = vmatprep.subr.bf16.mxu0 0
  %1153 = vmatpush2.bf16.msra.mxu0 %v588
  %1154 = vmatprep.subr.bf16.mxu0 0
  %1155 = vmatpush2.bf16.msra.mxu0 %v587
  %1156 = vmatprep.mubr.bf16.mxu0 %v997
  %1157 = vmatmul.mubr.bf16.gmra.mxu0 %v996
  %v1158 = vpop.f32.mrf.mxu0
  %v1159 = vadd.f32 %v1111, %v1158
  %v1160 = vpop.f32.mrf.mxu0
  %v1161 = vpop.f32.mrf.mxu0
  %v1162 = vadd.f32 %v1114, %v1161
  %v1163 = vpop.f32.mrf.mxu0
  %1164 = vmatprep.mubr.bf16.mxu0 %v1006
  %1165 = vmatmul.mubr.bf16.gmra.mxu0 %v1005
  %v1166 = vpop.f32.mrf.mxu0
  %v1167 = vadd.f32 %v1119, %v1166
  %v1168 = vpop.f32.mrf.mxu0
  %v1169 = vpop.f32.mrf.mxu0
  %v1170 = vpop.f32.mrf.mxu0
  %1171 = vdwg.mxu0
  %1172 = vmatprep.subr.bf16.mxu0 0
  %1173 = vmatpush1.bf16.msra.mxu0 %v602
  %1174 = vmatprep.subr.bf16.mxu0 0
  %1175 = vmatpush1.bf16.msra.mxu0 %v601
  %1176 = vmatprep.subr.bf16.mxu0 0
  %1177 = vmatpush1.bf16.msra.mxu0 %v600
  %1178 = vmatprep.subr.bf16.mxu0 0
  %1179 = vmatpush1.bf16.msra.mxu0 %v599
  %1180 = vmatprep.subr.bf16.mxu0 0
  %1181 = vmatpush1.bf16.msra.mxu0 %v598
  %1182 = vmatprep.subr.bf16.mxu0 0
  %1183 = vmatpush1.bf16.msra.mxu0 %v597
  %1184 = vmatprep.subr.bf16.mxu0 0
  %1185 = vmatpush1.bf16.msra.mxu0 %v596
  %1186 = vmatprep.subr.bf16.mxu0 0
  %1187 = vmatpush1.bf16.msra.mxu0 %v595
  %1188 = vmatprep.subr.bf16.mxu0 0
  %1189 = vmatpush2.bf16.msra.mxu0 %v610
  %1190 = vmatprep.subr.bf16.mxu0 0
  %1191 = vmatpush2.bf16.msra.mxu0 %v609
  %1192 = vmatprep.subr.bf16.mxu0 0
  %1193 = vmatpush2.bf16.msra.mxu0 %v608
  %1194 = vmatprep.subr.bf16.mxu0 0
  %1195 = vmatpush2.bf16.msra.mxu0 %v607
  %1196 = vmatprep.subr.bf16.mxu0 0
  %1197 = vmatpush2.bf16.msra.mxu0 %v606
  %1198 = vmatprep.subr.bf16.mxu0 0
  %1199 = vmatpush2.bf16.msra.mxu0 %v605
  %1200 = vmatprep.subr.bf16.mxu0 0
  %1201 = vmatpush2.bf16.msra.mxu0 %v604
  %1202 = vmatprep.subr.bf16.mxu0 0
  %1203 = vmatpush2.bf16.msra.mxu0 %v603
  %1204 = vmatprep.mubr.bf16.mxu0 %v999
  %1205 = vmatmul.mubr.bf16.gmra.mxu0 %v998
  %v1206 = vpop.f32.mrf.mxu0
  %v1207 = vadd.f32 %v1159, %v1206
  %v1208 = vpop.f32.mrf.mxu0
  %v1209 = vpop.f32.mrf.mxu0
  %v1210 = vadd.f32 %v1162, %v1209
  %v1211 = vpop.f32.mrf.mxu0
  %1212 = vmatprep.mubr.bf16.mxu0 %v1008
  %1213 = vmatmul.mubr.bf16.gmra.mxu0 %v1007
  %v1214 = vpop.f32.mrf.mxu0
  %v1215 = vadd.f32 %v1167, %v1214
  %v1216 = vpop.f32.mrf.mxu0
  %v1217 = vpop.f32.mrf.mxu0
  %v1218 = vpop.f32.mrf.mxu0
  %1219 = vdwg.mxu0
  %1220 = vmatprep.subr.bf16.mxu0 0
  %1221 = vmatpush1.bf16.msra.mxu0 %v618
  %1222 = vmatprep.subr.bf16.mxu0 0
  %1223 = vmatpush1.bf16.msra.mxu0 %v617
  %1224 = vmatprep.subr.bf16.mxu0 0
  %1225 = vmatpush1.bf16.msra.mxu0 %v616
  %1226 = vmatprep.subr.bf16.mxu0 0
  %1227 = vmatpush1.bf16.msra.mxu0 %v615
  %1228 = vmatprep.subr.bf16.mxu0 0
  %1229 = vmatpush1.bf16.msra.mxu0 %v614
  %1230 = vmatprep.subr.bf16.mxu0 0
  %1231 = vmatpush1.bf16.msra.mxu0 %v613
  %1232 = vmatprep.subr.bf16.mxu0 0
  %1233 = vmatpush1.bf16.msra.mxu0 %v612
  %1234 = vmatprep.subr.bf16.mxu0 0
  %1235 = vmatpush1.bf16.msra.mxu0 %v611
  %1236 = vmatprep.subr.bf16.mxu0 0
  %1237 = vmatpush2.bf16.msra.mxu0 0
  %1238 = vmatprep.subr.bf16.mxu0 0
  %1239 = vmatpush2.bf16.msra.mxu0 0
  %1240 = vmatprep.subr.bf16.mxu0 0
  %1241 = vmatpush2.bf16.msra.mxu0 0
  %1242 = vmatprep.subr.bf16.mxu0 0
  %1243 = vmatpush2.bf16.msra.mxu0 0
  %1244 = vmatprep.subr.bf16.mxu0 0
  %1245 = vmatpush2.bf16.msra.mxu0 0
  %1246 = vmatprep.subr.bf16.mxu0 0
  %1247 = vmatpush2.bf16.msra.mxu0 0
  %1248 = vmatprep.subr.bf16.mxu0 0
  %1249 = vmatpush2.bf16.msra.mxu0 0
  %1250 = vmatprep.subr.bf16.mxu0 0
  %1251 = vmatpush2.bf16.msra.mxu0 0
  %1252 = vmatprep.mubr.bf16.mxu0 0
  %1253 = vmatmul.mubr.bf16.gmra.mxu0 %v1000
  %v1254 = vpop.f32.mrf.mxu0
  %v1255 = vadd.f32 %v1207, %v1254
  %v1256 = vpop.f32.mrf.mxu0
  %v1257 = vpop.f32.mrf.mxu0
  %v1258 = vadd.f32 %v1210, %v1257
  %v1259 = vpop.f32.mrf.mxu0
  %1260 = vmatprep.mubr.bf16.mxu0 0
  %1261 = vmatmul.mubr.bf16.gmra.mxu0 %v1009
  %v1262 = vpop.f32.mrf.mxu0
  %v1263 = vadd.f32 %v1215, %v1262
  %v1264 = vpop.f32.mrf.mxu0
  %v1265 = vpop.f32.mrf.mxu0
  %v1266 = vpop.f32.mrf.mxu0
  %1267 = vdwg.mxu0
  %v1268 = vmax.f32 %v1255, 0.0
  %v1269 = vmax.f32 %v1258, 0.0
  %v1270 = vmax.f32 %v1263, 0.0
  %v1271 = vmax.f32 %v931, %v1268
  %v1272 = vmax.f32 %v932, %v1269
  %v1273 = vmax.f32 %v933, %v1270
  %s1274 = scalar_lea.vmem %s0, 216
  %v1275 = vld [vmem:[%s1274] sm:$0xff]
  %v1276 = vld [vmem:[%s1274 + $0x8] sm:$0xff]
  %v1277 = vld [vmem:[%s1274 + $0x10] sm:$0xff]
  %v1278 = vld [vmem:[%s1274 + $0x18] sm:$0xff]
  %v1279 = vld [vmem:[%s1274 + $0x20] sm:$0xf]
  %v1280 = vld [vmem:[%s1274 + $0x24] sm:$0xff]
  %v1281 = vld [vmem:[%s1274 + $0x2c] sm:$0xff]
  %v1282 = vld [vmem:[%s1274 + $0x34] sm:$0xff]
  %v1283 = vld [vmem:[%s1274 + $0x3c] sm:$0xff]
  %v1284 = vld [vmem:[%s1274 + $0x44] sm:$0xf]
  %v1285 = vld [vmem:[%s1274 + $0x48] sm:$0x11]
  %v1286 = vld [vmem:[%s1274 + $0x50] sm:$0x11]
  %v1287 = vld [vmem:[%s1274 + $0x58] sm:$0x11]
  %v1288 = vld [vmem:[%s1274 + $0x60] sm:$0x11]
  %v1289 = vld [vmem:[%s1274 + $0x68] sm:$0x1]
  %v1305 = vunpack.c.l.b16 %v1275
  %v1306 = vunpack.c.h.b16 %v1275
  %v1307 = vunpack.c.l.b16 %v1276
  %v1308 = vunpack.c.h.b16 %v1276
  %v1309 = vunpack.c.l.b16 %v1277
  %v1310 = vunpack.c.h.b16 %v1277
  %v1311 = vunpack.c.l.b16 %v1278
  %v1312 = vunpack.c.h.b16 %v1278
  %v1313 = vunpack.c.l.b16 %v1279
  %v1314 = vunpack.c.l.b16 %v1280
  %v1315 = vunpack.c.h.b16 %v1280
  %v1316 = vunpack.c.l.b16 %v1281
  %v1317 = vunpack.c.h.b16 %v1281
  %v1318 = vunpack.c.l.b16 %v1282
  %v1319 = vunpack.c.h.b16 %v1282
  %v1320 = vunpack.c.l.b16 %v1283
  %v1321 = vunpack.c.h.b16 %v1283
  %v1322 = vunpack.c.l.b16 %v1284
  %v1323 = vunpack.c.l.b16 %v1285
  %v1324 = vunpack.c.h.b16 %v1285
  %v1325 = vunpack.c.l.b16 %v1286
  %v1326 = vunpack.c.h.b16 %v1286
  %v1327 = vunpack.c.l.b16 %v1287
  %v1328 = vunpack.c.h.b16 %v1287
  %v1329 = vunpack.c.l.b16 %v1288
  %v1330 = vunpack.c.h.b16 %v1288
  %v1331 = vunpack.c.l.b16 %v1289
  %v1332 = vpack.c.b16 %v1314, %v1305
  %v1333 = vpack.c.b16 %v1315, %v1306
  %v1334 = vpack.c.b16 %v1316, %v1307
  %v1335 = vpack.c.b16 %v1317, %v1308
  %v1336 = vpack.c.b16 %v1318, %v1309
  %v1337 = vpack.c.b16 %v1319, %v1310
  %v1338 = vpack.c.b16 %v1320, %v1311
  %v1339 = vpack.c.b16 %v1321, %v1312
  %v1340 = vpack.c.b16 %v1322, %v1313
  %v1341 = vpack.c.b16 %v1323, %v1323
  %v1342 = vpack.c.b16 %v1324, %v1324
  %v1343 = vpack.c.b16 %v1325, %v1325
  %v1344 = vpack.c.b16 %v1326, %v1326
  %v1345 = vpack.c.b16 %v1327, %v1327
  %v1346 = vpack.c.b16 %v1328, %v1328
  %v1347 = vpack.c.b16 %v1329, %v1329
  %v1348 = vpack.c.b16 %v1330, %v1330
  %v1349 = vpack.c.b16 %v1331, %v1331
  %1368 = vmatprep.subr.bf16.mxu0 0
  %1369 = vmatpush1.bf16.msra.mxu0 %v554
  %1370 = vmatprep.subr.bf16.mxu0 0
  %1371 = vmatpush1.bf16.msra.mxu0 %v553
  %1372 = vmatprep.subr.bf16.mxu0 0
  %1373 = vmatpush1.bf16.msra.mxu0 %v552
  %1374 = vmatprep.subr.bf16.mxu0 0
  %1375 = vmatpush1.bf16.msra.mxu0 %v551
  %1376 = vmatprep.subr.bf16.mxu0 0
  %1377 = vmatpush1.bf16.msra.mxu0 %v550
  %1378 = vmatprep.subr.bf16.mxu0 0
  %1379 = vmatpush1.bf16.msra.mxu0 %v549
  %1380 = vmatprep.subr.bf16.mxu0 0
  %1381 = vmatpush1.bf16.msra.mxu0 %v548
  %1382 = vmatprep.subr.bf16.mxu0 0
  %1383 = vmatpush1.bf16.msra.mxu0 %v547
  %1384 = vmatprep.subr.bf16.mxu0 0
  %1385 = vmatpush2.bf16.msra.mxu0 %v562
  %1386 = vmatprep.subr.bf16.mxu0 0
  %1387 = vmatpush2.bf16.msra.mxu0 %v561
  %1388 = vmatprep.subr.bf16.mxu0 0
  %1389 = vmatpush2.bf16.msra.mxu0 %v560
  %1390 = vmatprep.subr.bf16.mxu0 0
  %1391 = vmatpush2.bf16.msra.mxu0 %v559
  %1392 = vmatprep.subr.bf16.mxu0 0
  %1393 = vmatpush2.bf16.msra.mxu0 %v558
  %1394 = vmatprep.subr.bf16.mxu0 0
  %1395 = vmatpush2.bf16.msra.mxu0 %v557
  %1396 = vmatprep.subr.bf16.mxu0 0
  %1397 = vmatpush2.bf16.msra.mxu0 %v556
  %1398 = vmatprep.subr.bf16.mxu0 0
  %1399 = vmatpush2.bf16.msra.mxu0 %v555
  %1400 = vmatprep.mubr.bf16.mxu0 %v1333
  %1401 = vmatmul.mubr.bf16.gmra.mxu0 %v1332
  %v1402 = vpop.f32.mrf.mxu0
  %v1403 = vadd.f32 %v179, %v1402
  %v1404 = vpop.f32.mrf.mxu0
  %v1405 = vpop.f32.mrf.mxu0
  %v1406 = vadd.f32 %v179, %v1405
  %v1407 = vpop.f32.mrf.mxu0
  %1408 = vmatprep.mubr.bf16.mxu0 %v1342
  %1409 = vmatmul.mubr.bf16.gmra.mxu0 %v1341
  %v1410 = vpop.f32.mrf.mxu0
  %v1411 = vadd.f32 %v179, %v1410
  %v1412 = vpop.f32.mrf.mxu0
  %v1413 = vpop.f32.mrf.mxu0
  %v1414 = vpop.f32.mrf.mxu0
  %1415 = vdwg.mxu0
  %1416 = vmatprep.subr.bf16.mxu0 0
  %1417 = vmatpush1.bf16.msra.mxu0 %v570
  %1418 = vmatprep.subr.bf16.mxu0 0
  %1419 = vmatpush1.bf16.msra.mxu0 %v569
  %1420 = vmatprep.subr.bf16.mxu0 0
  %1421 = vmatpush1.bf16.msra.mxu0 %v568
  %1422 = vmatprep.subr.bf16.mxu0 0
  %1423 = vmatpush1.bf16.msra.mxu0 %v567
  %1424 = vmatprep.subr.bf16.mxu0 0
  %1425 = vmatpush1.bf16.msra.mxu0 %v566
  %1426 = vmatprep.subr.bf16.mxu0 0
  %1427 = vmatpush1.bf16.msra.mxu0 %v565
  %1428 = vmatprep.subr.bf16.mxu0 0
  %1429 = vmatpush1.bf16.msra.mxu0 %v564
  %1430 = vmatprep.subr.bf16.mxu0 0
  %1431 = vmatpush1.bf16.msra.mxu0 %v563
  %1432 = vmatprep.subr.bf16.mxu0 0
  %1433 = vmatpush2.bf16.msra.mxu0 %v578
  %1434 = vmatprep.subr.bf16.mxu0 0
  %1435 = vmatpush2.bf16.msra.mxu0 %v577
  %1436 = vmatprep.subr.bf16.mxu0 0
  %1437 = vmatpush2.bf16.msra.mxu0 %v576
  %1438 = vmatprep.subr.bf16.mxu0 0
  %1439 = vmatpush2.bf16.msra.mxu0 %v575
  %1440 = vmatprep.subr.bf16.mxu0 0
  %1441 = vmatpush2.bf16.msra.mxu0 %v574
  %1442 = vmatprep.subr.bf16.mxu0 0
  %1443 = vmatpush2.bf16.msra.mxu0 %v573
  %1444 = vmatprep.subr.bf16.mxu0 0
  %1445 = vmatpush2.bf16.msra.mxu0 %v572
  %1446 = vmatprep.subr.bf16.mxu0 0
  %1447 = vmatpush2.bf16.msra.mxu0 %v571
  %1448 = vmatprep.mubr.bf16.mxu0 %v1335
  %1449 = vmatmul.mubr.bf16.gmra.mxu0 %v1334
  %v1450 = vpop.f32.mrf.mxu0
  %v1451 = vadd.f32 %v1403, %v1450
  %v1452 = vpop.f32.mrf.mxu0
  %v1453 = vpop.f32.mrf.mxu0
  %v1454 = vadd.f32 %v1406, %v1453
  %v1455 = vpop.f32.mrf.mxu0
  %1456 = vmatprep.mubr.bf16.mxu0 %v1344
  %1457 = vmatmul.mubr.bf16.gmra.mxu0 %v1343
  %v1458 = vpop.f32.mrf.mxu0
  %v1459 = vadd.f32 %v1411, %v1458
  %v1460 = vpop.f32.mrf.mxu0
  %v1461 = vpop.f32.mrf.mxu0
  %v1462 = vpop.f32.mrf.mxu0
  %1463 = vdwg.mxu0
  %1464 = vmatprep.subr.bf16.mxu0 0
  %1465 = vmatpush1.bf16.msra.mxu0 %v586
  %1466 = vmatprep.subr.bf16.mxu0 0
  %1467 = vmatpush1.bf16.msra.mxu0 %v585
  %1468 = vmatprep.subr.bf16.mxu0 0
  %1469 = vmatpush1.bf16.msra.mxu0 %v584
  %1470 = vmatprep.subr.bf16.mxu0 0
  %1471 = vmatpush1.bf16.msra.mxu0 %v583
  %1472 = vmatprep.subr.bf16.mxu0 0
  %1473 = vmatpush1.bf16.msra.mxu0 %v582
  %1474 = vmatprep.subr.bf16.mxu0 0
  %1475 = vmatpush1.bf16.msra.mxu0 %v581
  %1476 = vmatprep.subr.bf16.mxu0 0
  %1477 = vmatpush1.bf16.msra.mxu0 %v580
  %1478 = vmatprep.subr.bf16.mxu0 0
  %1479 = vmatpush1.bf16.msra.mxu0 %v579
  %1480 = vmatprep.subr.bf16.mxu0 0
  %1481 = vmatpush2.bf16.msra.mxu0 %v594
  %1482 = vmatprep.subr.bf16.mxu0 0
  %1483 = vmatpush2.bf16.msra.mxu0 %v593
  %1484 = vmatprep.subr.bf16.mxu0 0
  %1485 = vmatpush2.bf16.msra.mxu0 %v592
  %1486 = vmatprep.subr.bf16.mxu0 0
  %1487 = vmatpush2.bf16.msra.mxu0 %v591
  %1488 = vmatprep.subr.bf16.mxu0 0
  %1489 = vmatpush2.bf16.msra.mxu0 %v590
  %1490 = vmatprep.subr.bf16.mxu0 0
  %1491 = vmatpush2.bf16.msra.mxu0 %v589
  %1492 = vmatprep.subr.bf16.mxu0 0
  %1493 = vmatpush2.bf16.msra.mxu0 %v588
  %1494 = vmatprep.subr.bf16.mxu0 0
  %1495 = vmatpush2.bf16.msra.mxu0 %v587
  %1496 = vmatprep.mubr.bf16.mxu0 %v1337
  %1497 = vmatmul.mubr.bf16.gmra.mxu0 %v1336
  %v1498 = vpop.f32.mrf.mxu0
  %v1499 = vadd.f32 %v1451, %v1498
  %v1500 = vpop.f32.mrf.mxu0
  %v1501 = vpop.f32.mrf.mxu0
  %v1502 = vadd.f32 %v1454, %v1501
  %v1503 = vpop.f32.mrf.mxu0
  %1504 = vmatprep.mubr.bf16.mxu0 %v1346
  %1505 = vmatmul.mubr.bf16.gmra.mxu0 %v1345
  %v1506 = vpop.f32.mrf.mxu0
  %v1507 = vadd.f32 %v1459, %v1506
  %v1508 = vpop.f32.mrf.mxu0
  %v1509 = vpop.f32.mrf.mxu0
  %v1510 = vpop.f32.mrf.mxu0
  %1511 = vdwg.mxu0
  %1512 = vmatprep.subr.bf16.mxu0 0
  %1513 = vmatpush1.bf16.msra.mxu0 %v602
  %1514 = vmatprep.subr.bf16.mxu0 0
  %1515 = vmatpush1.bf16.msra.mxu0 %v601
  %1516 = vmatprep.subr.bf16.mxu0 0
  %1517 = vmatpush1.bf16.msra.mxu0 %v600
  %1518 = vmatprep.subr.bf16.mxu0 0
  %1519 = vmatpush1.bf16.msra.mxu0 %v599
  %1520 = vmatprep.subr.bf16.mxu0 0
  %1521 = vmatpush1.bf16.msra.mxu0 %v598
  %1522 = vmatprep.subr.bf16.mxu0 0
  %1523 = vmatpush1.bf16.msra.mxu0 %v597
  %1524 = vmatprep.subr.bf16.mxu0 0
  %1525 = vmatpush1.bf16.msra.mxu0 %v596
  %1526 = vmatprep.subr.bf16.mxu0 0
  %1527 = vmatpush1.bf16.msra.mxu0 %v595
  %1528 = vmatprep.subr.bf16.mxu0 0
  %1529 = vmatpush2.bf16.msra.mxu0 %v610
  %1530 = vmatprep.subr.bf16.mxu0 0
  %1531 = vmatpush2.bf16.msra.mxu0 %v609
  %1532 = vmatprep.subr.bf16.mxu0 0
  %1533 = vmatpush2.bf16.msra.mxu0 %v608
  %1534 = vmatprep.subr.bf16.mxu0 0
  %1535 = vmatpush2.bf16.msra.mxu0 %v607
  %1536 = vmatprep.subr.bf16.mxu0 0
  %1537 = vmatpush2.bf16.msra.mxu0 %v606
  %1538 = vmatprep.subr.bf16.mxu0 0
  %1539 = vmatpush2.bf16.msra.mxu0 %v605
  %1540 = vmatprep.subr.bf16.mxu0 0
  %1541 = vmatpush2.bf16.msra.mxu0 %v604
  %1542 = vmatprep.subr.bf16.mxu0 0
  %1543 = vmatpush2.bf16.msra.mxu0 %v603
  %1544 = vmatprep.mubr.bf16.mxu0 %v1339
  %1545 = vmatmul.mubr.bf16.gmra.mxu0 %v1338
  %v1546 = vpop.f32.mrf.mxu0
  %v1547 = vadd.f32 %v1499, %v1546
  %v1548 = vpop.f32.mrf.mxu0
  %v1549 = vpop.f32.mrf.mxu0
  %v1550 = vadd.f32 %v1502, %v1549
  %v1551 = vpop.f32.mrf.mxu0
  %1552 = vmatprep.mubr.bf16.mxu0 %v1348
  %1553 = vmatmul.mubr.bf16.gmra.mxu0 %v1347
  %v1554 = vpop.f32.mrf.mxu0
  %v1555 = vadd.f32 %v1507, %v1554
  %v1556 = vpop.f32.mrf.mxu0
  %v1557 = vpop.f32.mrf.mxu0
  %v1558 = vpop.f32.mrf.mxu0
  %1559 = vdwg.mxu0
  %1560 = vmatprep.subr.bf16.mxu0 0
  %1561 = vmatpush1.bf16.msra.mxu0 %v618
  %1562 = vmatprep.subr.bf16.mxu0 0
  %1563 = vmatpush1.bf16.msra.mxu0 %v617
  %1564 = vmatprep.subr.bf16.mxu0 0
  %1565 = vmatpush1.bf16.msra.mxu0 %v616
  %1566 = vmatprep.subr.bf16.mxu0 0
  %1567 = vmatpush1.bf16.msra.mxu0 %v615
  %1568 = vmatprep.subr.bf16.mxu0 0
  %1569 = vmatpush1.bf16.msra.mxu0 %v614
  %1570 = vmatprep.subr.bf16.mxu0 0
  %1571 = vmatpush1.bf16.msra.mxu0 %v613
  %1572 = vmatprep.subr.bf16.mxu0 0
  %1573 = vmatpush1.bf16.msra.mxu0 %v612
  %1574 = vmatprep.subr.bf16.mxu0 0
  %1575 = vmatpush1.bf16.msra.mxu0 %v611
  %1576 = vmatprep.subr.bf16.mxu0 0
  %1577 = vmatpush2.bf16.msra.mxu0 0
  %1578 = vmatprep.subr.bf16.mxu0 0
  %1579 = vmatpush2.bf16.msra.mxu0 0
  %1580 = vmatprep.subr.bf16.mxu0 0
  %1581 = vmatpush2.bf16.msra.mxu0 0
  %1582 = vmatprep.subr.bf16.mxu0 0
  %1583 = vmatpush2.bf16.msra.mxu0 0
  %1584 = vmatprep.subr.bf16.mxu0 0
  %1585 = vmatpush2.bf16.msra.mxu0 0
  %1586 = vmatprep.subr.bf16.mxu0 0
  %1587 = vmatpush2.bf16.msra.mxu0 0
  %1588 = vmatprep.subr.bf16.mxu0 0
  %1589 = vmatpush2.bf16.msra.mxu0 0
  %1590 = vmatprep.subr.bf16.mxu0 0
  %1591 = vmatpush2.bf16.msra.mxu0 0
  %1592 = vmatprep.mubr.bf16.mxu0 0
  %1593 = vmatmul.mubr.bf16.gmra.mxu0 %v1340
  %v1594 = vpop.f32.mrf.mxu0
  %v1595 = vadd.f32 %v1547, %v1594
  %v1596 = vpop.f32.mrf.mxu0
  %v1597 = vpop.f32.mrf.mxu0
  %v1598 = vadd.f32 %v1550, %v1597
  %v1599 = vpop.f32.mrf.mxu0
  %1600 = vmatprep.mubr.bf16.mxu0 0
  %1601 = vmatmul.mubr.bf16.gmra.mxu0 %v1349
  %v1602 = vpop.f32.mrf.mxu0
  %v1603 = vadd.f32 %v1555, %v1602
  %v1604 = vpop.f32.mrf.mxu0
  %v1605 = vpop.f32.mrf.mxu0
  %v1606 = vpop.f32.mrf.mxu0
  %1607 = vdwg.mxu0
  %v1608 = vmax.f32 %v1595, 0.0
  %v1609 = vmax.f32 %v1598, 0.0
  %v1610 = vmax.f32 %v1603, 0.0
  %v1611 = vmax.f32 %v1271, %v1608
  %v1612 = vmax.f32 %v1272, %v1609
  %v1613 = vmax.f32 %v1273, %v1610
  %s1614 = scalar_lea.vmem %s0, 324
  %v1615 = vld [vmem:[%s1614] sm:$0xff]
  %v1616 = vld [vmem:[%s1614 + $0x8] sm:$0xff]
  %v1617 = vld [vmem:[%s1614 + $0x10] sm:$0xff]
  %v1618 = vld [vmem:[%s1614 + $0x18] sm:$0xff]
  %v1619 = vld [vmem:[%s1614 + $0x20] sm:$0xf]
  %v1620 = vld [vmem:[%s1614 + $0x24] sm:$0xff]
  %v1621 = vld [vmem:[%s1614 + $0x2c] sm:$0xff]
  %v1622 = vld [vmem:[%s1614 + $0x34] sm:$0xff]
  %v1623 = vld [vmem:[%s1614 + $0x3c] sm:$0xff]
  %v1624 = vld [vmem:[%s1614 + $0x44] sm:$0xf]
  %v1625 = vld [vmem:[%s1614 + $0x48] sm:$0x11]
  %v1626 = vld [vmem:[%s1614 + $0x50] sm:$0x11]
  %v1627 = vld [vmem:[%s1614 + $0x58] sm:$0x11]
  %v1628 = vld [vmem:[%s1614 + $0x60] sm:$0x11]
  %v1629 = vld [vmem:[%s1614 + $0x68] sm:$0x1]
  %v1645 = vunpack.c.l.b16 %v1615
  %v1646 = vunpack.c.h.b16 %v1615
  %v1647 = vunpack.c.l.b16 %v1616
  %v1648 = vunpack.c.h.b16 %v1616
  %v1649 = vunpack.c.l.b16 %v1617
  %v1650 = vunpack.c.h.b16 %v1617
  %v1651 = vunpack.c.l.b16 %v1618
  %v1652 = vunpack.c.h.b16 %v1618
  %v1653 = vunpack.c.l.b16 %v1619
  %v1654 = vunpack.c.l.b16 %v1620
  %v1655 = vunpack.c.h.b16 %v1620
  %v1656 = vunpack.c.l.b16 %v1621
  %v1657 = vunpack.c.h.b16 %v1621
  %v1658 = vunpack.c.l.b16 %v1622
  %v1659 = vunpack.c.h.b16 %v1622
  %v1660 = vunpack.c.l.b16 %v1623
  %v1661 = vunpack.c.h.b16 %v1623
  %v1662 = vunpack.c.l.b16 %v1624
  %v1663 = vunpack.c.l.b16 %v1625
  %v1664 = vunpack.c.h.b16 %v1625
  %v1665 = vunpack.c.l.b16 %v1626
  %v1666 = vunpack.c.h.b16 %v1626
  %v1667 = vunpack.c.l.b16 %v1627
  %v1668 = vunpack.c.h.b16 %v1627
  %v1669 = vunpack.c.l.b16 %v1628
  %v1670 = vunpack.c.h.b16 %v1628
  %v1671 = vunpack.c.l.b16 %v1629
  %v1672 = vpack.c.b16 %v1654, %v1645
  %v1673 = vpack.c.b16 %v1655, %v1646
  %v1674 = vpack.c.b16 %v1656, %v1647
  %v1675 = vpack.c.b16 %v1657, %v1648
  %v1676 = vpack.c.b16 %v1658, %v1649
  %v1677 = vpack.c.b16 %v1659, %v1650
  %v1678 = vpack.c.b16 %v1660, %v1651
  %v1679 = vpack.c.b16 %v1661, %v1652
  %v1680 = vpack.c.b16 %v1662, %v1653
  %v1681 = vpack.c.b16 %v1663, %v1663
  %v1682 = vpack.c.b16 %v1664, %v1664
  %v1683 = vpack.c.b16 %v1665, %v1665
  %v1684 = vpack.c.b16 %v1666, %v1666
  %v1685 = vpack.c.b16 %v1667, %v1667
  %v1686 = vpack.c.b16 %v1668, %v1668
  %v1687 = vpack.c.b16 %v1669, %v1669
  %v1688 = vpack.c.b16 %v1670, %v1670
  %v1689 = vpack.c.b16 %v1671, %v1671
  %1708 = vmatprep.subr.bf16.mxu0 0
  %1709 = vmatpush1.bf16.msra.mxu0 %v554
  %1710 = vmatprep.subr.bf16.mxu0 0
  %1711 = vmatpush1.bf16.msra.mxu0 %v553
  %1712 = vmatprep.subr.bf16.mxu0 0
  %1713 = vmatpush1.bf16.msra.mxu0 %v552
  %1714 = vmatprep.subr.bf16.mxu0 0
  %1715 = vmatpush1.bf16.msra.mxu0 %v551
  %1716 = vmatprep.subr.bf16.mxu0 0
  %1717 = vmatpush1.bf16.msra.mxu0 %v550
  %1718 = vmatprep.subr.bf16.mxu0 0
  %1719 = vmatpush1.bf16.msra.mxu0 %v549
  %1720 = vmatprep.subr.bf16.mxu0 0
  %1721 = vmatpush1.bf16.msra.mxu0 %v548
  %1722 = vmatprep.subr.bf16.mxu0 0
  %1723 = vmatpush1.bf16.msra.mxu0 %v547
  %1724 = vmatprep.subr.bf16.mxu0 0
  %1725 = vmatpush2.bf16.msra.mxu0 %v562
  %1726 = vmatprep.subr.bf16.mxu0 0
  %1727 = vmatpush2.bf16.msra.mxu0 %v561
  %1728 = vmatprep.subr.bf16.mxu0 0
  %1729 = vmatpush2.bf16.msra.mxu0 %v560
  %1730 = vmatprep.subr.bf16.mxu0 0
  %1731 = vmatpush2.bf16.msra.mxu0 %v559
  %1732 = vmatprep.subr.bf16.mxu0 0
  %1733 = vmatpush2.bf16.msra.mxu0 %v558
  %1734 = vmatprep.subr.bf16.mxu0 0
  %1735 = vmatpush2.bf16.msra.mxu0 %v557
  %1736 = vmatprep.subr.bf16.mxu0 0
  %1737 = vmatpush2.bf16.msra.mxu0 %v556
  %1738 = vmatprep.subr.bf16.mxu0 0
  %1739 = vmatpush2.bf16.msra.mxu0 %v555
  %1740 = vmatprep.mubr.bf16.mxu0 %v1673
  %1741 = vmatmul.mubr.bf16.gmra.mxu0 %v1672
  %v1742 = vpop.f32.mrf.mxu0
  %v1743 = vadd.f32 %v179, %v1742
  %v1744 = vpop.f32.mrf.mxu0
  %v1745 = vpop.f32.mrf.mxu0
  %v1746 = vadd.f32 %v179, %v1745
  %v1747 = vpop.f32.mrf.mxu0
  %1748 = vmatprep.mubr.bf16.mxu0 %v1682
  %1749 = vmatmul.mubr.bf16.gmra.mxu0 %v1681
  %v1750 = vpop.f32.mrf.mxu0
  %v1751 = vadd.f32 %v179, %v1750
  %v1752 = vpop.f32.mrf.mxu0
  %v1753 = vpop.f32.mrf.mxu0
  %v1754 = vpop.f32.mrf.mxu0
  %1755 = vdwg.mxu0
  %1756 = vmatprep.subr.bf16.mxu0 0
  %1757 = vmatpush1.bf16.msra.mxu0 %v570
  %1758 = vmatprep.subr.bf16.mxu0 0
  %1759 = vmatpush1.bf16.msra.mxu0 %v569
  %1760 = vmatprep.subr.bf16.mxu0 0
  %1761 = vmatpush1.bf16.msra.mxu0 %v568
  %1762 = vmatprep.subr.bf16.mxu0 0
  %1763 = vmatpush1.bf16.msra.mxu0 %v567
  %1764 = vmatprep.subr.bf16.mxu0 0
  %1765 = vmatpush1.bf16.msra.mxu0 %v566
  %1766 = vmatprep.subr.bf16.mxu0 0
  %1767 = vmatpush1.bf16.msra.mxu0 %v565
  %1768 = vmatprep.subr.bf16.mxu0 0
  %1769 = vmatpush1.bf16.msra.mxu0 %v564
  %1770 = vmatprep.subr.bf16.mxu0 0
  %1771 = vmatpush1.bf16.msra.mxu0 %v563
  %1772 = vmatprep.subr.bf16.mxu0 0
  %1773 = vmatpush2.bf16.msra.mxu0 %v578
  %1774 = vmatprep.subr.bf16.mxu0 0
  %1775 = vmatpush2.bf16.msra.mxu0 %v577
  %1776 = vmatprep.subr.bf16.mxu0 0
  %1777 = vmatpush2.bf16.msra.mxu0 %v576
  %1778 = vmatprep.subr.bf16.mxu0 0
  %1779 = vmatpush2.bf16.msra.mxu0 %v575
  %1780 = vmatprep.subr.bf16.mxu0 0
  %1781 = vmatpush2.bf16.msra.mxu0 %v574
  %1782 = vmatprep.subr.bf16.mxu0 0
  %1783 = vmatpush2.bf16.msra.mxu0 %v573
  %1784 = vmatprep.subr.bf16.mxu0 0
  %1785 = vmatpush2.bf16.msra.mxu0 %v572
  %1786 = vmatprep.subr.bf16.mxu0 0
  %1787 = vmatpush2.bf16.msra.mxu0 %v571
  %1788 = vmatprep.mubr.bf16.mxu0 %v1675
  %1789 = vmatmul.mubr.bf16.gmra.mxu0 %v1674
  %v1790 = vpop.f32.mrf.mxu0
  %v1791 = vadd.f32 %v1743, %v1790
  %v1792 = vpop.f32.mrf.mxu0
  %v1793 = vpop.f32.mrf.mxu0
  %v1794 = vadd.f32 %v1746, %v1793
  %v1795 = vpop.f32.mrf.mxu0
  %1796 = vmatprep.mubr.bf16.mxu0 %v1684
  %1797 = vmatmul.mubr.bf16.gmra.mxu0 %v1683
  %v1798 = vpop.f32.mrf.mxu0
  %v1799 = vadd.f32 %v1751, %v1798
  %v1800 = vpop.f32.mrf.mxu0
  %v1801 = vpop.f32.mrf.mxu0
  %v1802 = vpop.f32.mrf.mxu0
  %1803 = vdwg.mxu0
  %1804 = vmatprep.subr.bf16.mxu0 0
  %1805 = vmatpush1.bf16.msra.mxu0 %v586
  %1806 = vmatprep.subr.bf16.mxu0 0
  %1807 = vmatpush1.bf16.msra.mxu0 %v585
  %1808 = vmatprep.subr.bf16.mxu0 0
  %1809 = vmatpush1.bf16.msra.mxu0 %v584
  %1810 = vmatprep.subr.bf16.mxu0 0
  %1811 = vmatpush1.bf16.msra.mxu0 %v583
  %1812 = vmatprep.subr.bf16.mxu0 0
  %1813 = vmatpush1.bf16.msra.mxu0 %v582
  %1814 = vmatprep.subr.bf16.mxu0 0
  %1815 = vmatpush1.bf16.msra.mxu0 %v581
  %1816 = vmatprep.subr.bf16.mxu0 0
  %1817 = vmatpush1.bf16.msra.mxu0 %v580
  %1818 = vmatprep.subr.bf16.mxu0 0
  %1819 = vmatpush1.bf16.msra.mxu0 %v579
  %1820 = vmatprep.subr.bf16.mxu0 0
  %1821 = vmatpush2.bf16.msra.mxu0 %v594
  %1822 = vmatprep.subr.bf16.mxu0 0
  %1823 = vmatpush2.bf16.msra.mxu0 %v593
  %1824 = vmatprep.subr.bf16.mxu0 0
  %1825 = vmatpush2.bf16.msra.mxu0 %v592
  %1826 = vmatprep.subr.bf16.mxu0 0
  %1827 = vmatpush2.bf16.msra.mxu0 %v591
  %1828 = vmatprep.subr.bf16.mxu0 0
  %1829 = vmatpush2.bf16.msra.mxu0 %v590
  %1830 = vmatprep.subr.bf16.mxu0 0
  %1831 = vmatpush2.bf16.msra.mxu0 %v589
  %1832 = vmatprep.subr.bf16.mxu0 0
  %1833 = vmatpush2.bf16.msra.mxu0 %v588
  %1834 = vmatprep.subr.bf16.mxu0 0
  %1835 = vmatpush2.bf16.msra.mxu0 %v587
  %1836 = vmatprep.mubr.bf16.mxu0 %v1677
  %1837 = vmatmul.mubr.bf16.gmra.mxu0 %v1676
  %v1838 = vpop.f32.mrf.mxu0
  %v1839 = vadd.f32 %v1791, %v1838
  %v1840 = vpop.f32.mrf.mxu0
  %v1841 = vpop.f32.mrf.mxu0
  %v1842 = vadd.f32 %v1794, %v1841
  %v1843 = vpop.f32.mrf.mxu0
  %1844 = vmatprep.mubr.bf16.mxu0 %v1686
  %1845 = vmatmul.mubr.bf16.gmra.mxu0 %v1685
  %v1846 = vpop.f32.mrf.mxu0
  %v1847 = vadd.f32 %v1799, %v1846
  %v1848 = vpop.f32.mrf.mxu0
  %v1849 = vpop.f32.mrf.mxu0
  %v1850 = vpop.f32.mrf.mxu0
  %1851 = vdwg.mxu0
  %1852 = vmatprep.subr.bf16.mxu0 0
  %1853 = vmatpush1.bf16.msra.mxu0 %v602
  %1854 = vmatprep.subr.bf16.mxu0 0
  %1855 = vmatpush1.bf16.msra.mxu0 %v601
  %1856 = vmatprep.subr.bf16.mxu0 0
  %1857 = vmatpush1.bf16.msra.mxu0 %v600
  %1858 = vmatprep.subr.bf16.mxu0 0
  %1859 = vmatpush1.bf16.msra.mxu0 %v599
  %1860 = vmatprep.subr.bf16.mxu0 0
  %1861 = vmatpush1.bf16.msra.mxu0 %v598
  %1862 = vmatprep.subr.bf16.mxu0 0
  %1863 = vmatpush1.bf16.msra.mxu0 %v597
  %1864 = vmatprep.subr.bf16.mxu0 0
  %1865 = vmatpush1.bf16.msra.mxu0 %v596
  %1866 = vmatprep.subr.bf16.mxu0 0
  %1867 = vmatpush1.bf16.msra.mxu0 %v595
  %1868 = vmatprep.subr.bf16.mxu0 0
  %1869 = vmatpush2.bf16.msra.mxu0 %v610
  %1870 = vmatprep.subr.bf16.mxu0 0
  %1871 = vmatpush2.bf16.msra.mxu0 %v609
  %1872 = vmatprep.subr.bf16.mxu0 0
  %1873 = vmatpush2.bf16.msra.mxu0 %v608
  %1874 = vmatprep.subr.bf16.mxu0 0
  %1875 = vmatpush2.bf16.msra.mxu0 %v607
  %1876 = vmatprep.subr.bf16.mxu0 0
  %1877 = vmatpush2.bf16.msra.mxu0 %v606
  %1878 = vmatprep.subr.bf16.mxu0 0
  %1879 = vmatpush2.bf16.msra.mxu0 %v605
  %1880 = vmatprep.subr.bf16.mxu0 0
  %1881 = vmatpush2.bf16.msra.mxu0 %v604
  %1882 = vmatprep.subr.bf16.mxu0 0
  %1883 = vmatpush2.bf16.msra.mxu0 %v603
  %1884 = vmatprep.mubr.bf16.mxu0 %v1679
  %1885 = vmatmul.mubr.bf16.gmra.mxu0 %v1678
  %v1886 = vpop.f32.mrf.mxu0
  %v1887 = vadd.f32 %v1839, %v1886
  %v1888 = vpop.f32.mrf.mxu0
  %v1889 = vpop.f32.mrf.mxu0
  %v1890 = vadd.f32 %v1842, %v1889
  %v1891 = vpop.f32.mrf.mxu0
  %1892 = vmatprep.mubr.bf16.mxu0 %v1688
  %1893 = vmatmul.mubr.bf16.gmra.mxu0 %v1687
  %v1894 = vpop.f32.mrf.mxu0
  %v1895 = vadd.f32 %v1847, %v1894
  %v1896 = vpop.f32.mrf.mxu0
  %v1897 = vpop.f32.mrf.mxu0
  %v1898 = vpop.f32.mrf.mxu0
  %1899 = vdwg.mxu0
  %1900 = vmatprep.subr.bf16.mxu0 0
  %1901 = vmatpush1.bf16.msra.mxu0 %v618
  %1902 = vmatprep.subr.bf16.mxu0 0
  %1903 = vmatpush1.bf16.msra.mxu0 %v617
  %1904 = vmatprep.subr.bf16.mxu0 0
  %1905 = vmatpush1.bf16.msra.mxu0 %v616
  %1906 = vmatprep.subr.bf16.mxu0 0
  %1907 = vmatpush1.bf16.msra.mxu0 %v615
  %1908 = vmatprep.subr.bf16.mxu0 0
  %1909 = vmatpush1.bf16.msra.mxu0 %v614
  %1910 = vmatprep.subr.bf16.mxu0 0
  %1911 = vmatpush1.bf16.msra.mxu0 %v613
  %1912 = vmatprep.subr.bf16.mxu0 0
  %1913 = vmatpush1.bf16.msra.mxu0 %v612
  %1914 = vmatprep.subr.bf16.mxu0 0
  %1915 = vmatpush1.bf16.msra.mxu0 %v611
  %1916 = vmatprep.subr.bf16.mxu0 0
  %1917 = vmatpush2.bf16.msra.mxu0 0
  %1918 = vmatprep.subr.bf16.mxu0 0
  %1919 = vmatpush2.bf16.msra.mxu0 0
  %1920 = vmatprep.subr.bf16.mxu0 0
  %1921 = vmatpush2.bf16.msra.mxu0 0
  %1922 = vmatprep.subr.bf16.mxu0 0
  %1923 = vmatpush2.bf16.msra.mxu0 0
  %1924 = vmatprep.subr.bf16.mxu0 0
  %1925 = vmatpush2.bf16.msra.mxu0 0
  %1926 = vmatprep.subr.bf16.mxu0 0
  %1927 = vmatpush2.bf16.msra.mxu0 0
  %1928 = vmatprep.subr.bf16.mxu0 0
  %1929 = vmatpush2.bf16.msra.mxu0 0
  %1930 = vmatprep.subr.bf16.mxu0 0
  %1931 = vmatpush2.bf16.msra.mxu0 0
  %1932 = vmatprep.mubr.bf16.mxu0 0
  %1933 = vmatmul.mubr.bf16.gmra.mxu0 %v1680
  %v1934 = vpop.f32.mrf.mxu0
  %v1935 = vadd.f32 %v1887, %v1934
  %v1936 = vpop.f32.mrf.mxu0
  %v1937 = vpop.f32.mrf.mxu0
  %v1938 = vadd.f32 %v1890, %v1937
  %v1939 = vpop.f32.mrf.mxu0
  %1940 = vmatprep.mubr.bf16.mxu0 0
  %1941 = vmatmul.mubr.bf16.gmra.mxu0 %v1689
  %v1942 = vpop.f32.mrf.mxu0
  %v1943 = vadd.f32 %v1895, %v1942
  %v1944 = vpop.f32.mrf.mxu0
  %v1945 = vpop.f32.mrf.mxu0
  %v1946 = vpop.f32.mrf.mxu0
  %1947 = vdwg.mxu0
  %v1948 = vmax.f32 %v1935, 0.0
  %v1949 = vmax.f32 %v1938, 0.0
  %v1950 = vmax.f32 %v1943, 0.0
  %v1951 = vmax.f32 %v1611, %v1948
  %v1952 = vmax.f32 %v1612, %v1949
  %v1953 = vmax.f32 %v1613, %v1950
  %v1954 = vpack.c.bf16 %v1952, %v1951
  %v1955 = vpack.c.bf16 %v1953, %v1953
  %v1958 = vunpack.c.l.b16 %v1954
  %v1959 = vunpack.c.h.b16 %v1954
  %v1960 = vunpack.c.l.b16 %v1955
  %v1961 = vpack.c.b16 %v1958, %v1958
  %v1962 = vpack.c.b16 %v1959, %v1959
  %v1963 = vpack.c.b16 %v1960, %v1960
  %1967 = vst [vmem:[%s3] sm:$0xf] %v1961
  %1968 = vst [vmem:[%s3 + $0x4] sm:$0xf] %v1962
  %1969 = vst [vmem:[%s3 + $0x8] sm:$0x1] %v1963
  // Predicated region
  $region14: #{mnist_cnn_forward.6} parent=0 // pred_check
    _
  $region15: #{mnist_cnn_forward.6} parent=0 // pred_check_branch
    %1971 = sbr.rel (0) target = $region17
  $region16: #{mnist_cnn_forward.6} parent=0 // pred_region
    _
  $region17: #{mnist_cnn_forward.6} parent=0 // pred_fallthru
    _
  // Predicated region
  $region18: #{mnist_cnn_forward.6} parent=0 // pred_check
    _
  $region19: #{mnist_cnn_forward.6} parent=0 // pred_check_branch
    %1973 = sbr.rel (0) target = $region21
  $region20: #{mnist_cnn_forward.6} parent=0 // pred_region
    _
  $region21: #{mnist_cnn_forward.6} parent=0 // pred_fallthru
    _

// kernel: mnist_cnn_forward.7
$region0: #{mnist_cnn_forward.7}
  #allocation0 [shape = 'u32[]', space=smem, size = 0x4, offset = 0x4, fixed_abs, tag = 'smem constant byte address 0x4 - core index']
  #allocation1 [shape = 'u32[144,128]{1,0:T(1,128)}', space=vmem, size = 0x12000, scoped, tag = 'internal scratch']
  %s0 = inlined_call_operand.vmem [shape: bf16[16,1152], index: 0, kind: input, shape index: {}]
  %s1 = inlined_call_operand.vmem [shape: bf16[1152,512], index: 1, kind: input, shape index: {}]
  %s2 = inlined_call_operand.vmem [shape: f32[1,512], index: 2, kind: input, shape index: {}]
  %s3 = inlined_call_operand.vmem [shape: bf16[512,256], index: 3, kind: input, shape index: {}]
  %s4 = inlined_call_operand.vmem [shape: f32[1,256], index: 4, kind: input, shape index: {}]
  %s5 = inlined_call_operand.vmem [shape: bf16[256,128], index: 5, kind: input, shape index: {}]
  %s6 = inlined_call_operand.vmem [shape: f32[1,128], index: 6, kind: input, shape index: {}]
  %s7 = inlined_call_operand.vmem [shape: f32[16,128], index: 7, kind: output, shape index: {}]
  %s8 = sld [smem:[#allocation0]]
  $region38: #{mnist_cnn_forward.7} parent=0
    _
  %s10 = ssub.s32 1, %s8
  %s11 = scalar_select 0, %s10, %s8
  // Predicated region
  $region2: #{mnist_cnn_forward.7} parent=0 // pred_check
    _
  $region3: #{mnist_cnn_forward.7} parent=0 // pred_check_branch
    %13 = sbr.rel (0) target = $region5
  $region4: #{mnist_cnn_forward.7} parent=0 // pred_region
    _
  $region5: #{mnist_cnn_forward.7} parent=0 // pred_fallthru
    _
  // Predicated region
  $region6: #{mnist_cnn_forward.7} parent=0 // pred_check
    _
  $region7: #{mnist_cnn_forward.7} parent=0 // pred_check_branch
    %15 = sbr.rel (0) target = $region9
  $region8: #{mnist_cnn_forward.7} parent=0 // pred_region
    _
  $region9: #{mnist_cnn_forward.7} parent=0 // pred_fallthru
    _
  // Predicated region
  $region10: #{mnist_cnn_forward.7} parent=0 // pred_check
    _
  $region11: #{mnist_cnn_forward.7} parent=0 // pred_check_branch
    %17 = sbr.rel (0) target = $region13
  $region12: #{mnist_cnn_forward.7} parent=0 // pred_region
    _
  $region13: #{mnist_cnn_forward.7} parent=0 // pred_fallthru
    _
  // Predicated region
  $region14: #{mnist_cnn_forward.7} parent=0 // pred_check
    _
  $region15: #{mnist_cnn_forward.7} parent=0 // pred_check_branch
    %19 = sbr.rel (0) target = $region17
  $region16: #{mnist_cnn_forward.7} parent=0 // pred_region
    _
  $region17: #{mnist_cnn_forward.7} parent=0 // pred_fallthru
    _
  // Predicated region
  $region18: #{mnist_cnn_forward.7} parent=0 // pred_check
    _
  $region19: #{mnist_cnn_forward.7} parent=0 // pred_check_branch
    %21 = sbr.rel (0) target = $region21
  $region20: #{mnist_cnn_forward.7} parent=0 // pred_region
    _
  $region21: #{mnist_cnn_forward.7} parent=0 // pred_fallthru
    _
  // Predicated region
  $region22: #{mnist_cnn_forward.7} parent=0 // pred_check
    _
  $region23: #{mnist_cnn_forward.7} parent=0 // pred_check_branch
    %23 = sbr.rel (0) target = $region25
  $region24: #{mnist_cnn_forward.7} parent=0 // pred_region
    _
  $region25: #{mnist_cnn_forward.7} parent=0 // pred_fallthru
    _
  // Predicated region
  $region26: #{mnist_cnn_forward.7} parent=0 // pred_check
    _
  $region27: #{mnist_cnn_forward.7} parent=0 // pred_check_branch
    %25 = sbr.rel (0) target = $region29
  $region28: #{mnist_cnn_forward.7} parent=0 // pred_region
    _
  $region29: #{mnist_cnn_forward.7} parent=0 // pred_fallthru
    _
  %v27 = vld [vmem:[%s0] sm:$0xff]
  %v28 = vld [vmem:[%s0 + $0x8] sm:$0xff]
  %v29 = vld [vmem:[%s0 + $0x10] sm:$0xff]
  %v30 = vld [vmem:[%s0 + $0x18] sm:$0xff]
  %v31 = vld [vmem:[%s0 + $0x20] sm:$0xf]
  %v32 = vld [vmem:[%s0 + $0x24] sm:$0xff]
  %v33 = vld [vmem:[%s0 + $0x2c] sm:$0xff]
  %v34 = vld [vmem:[%s0 + $0x34] sm:$0xff]
  %v35 = vld [vmem:[%s0 + $0x3c] sm:$0xff]
  %v36 = vld [vmem:[%s0 + $0x44] sm:$0xf]
  %v37 = vld [vmem:[%s1] sm:$0xff]
  %v38 = vld [vmem:[%s1 + $0x8] sm:$0xff]
  %v39 = vld [vmem:[%s1 + $0x10] sm:$0xff]
  %v40 = vld [vmem:[%s1 + $0x18] sm:$0xff]
  %v41 = vld [vmem:[%s1 + $0x20] sm:$0xff]
  %v42 = vld [vmem:[%s1 + $0x28] sm:$0xff]
  %v43 = vld [vmem:[%s1 + $0x30] sm:$0xff]
  %v44 = vld [vmem:[%s1 + $0x38] sm:$0xff]
  %v45 = vld [vmem:[%s1 + $0x40] sm:$0xff]
  %v46 = vld [vmem:[%s1 + $0x48] sm:$0xff]
  %v47 = vld [vmem:[%s1 + $0x50] sm:$0xff]
  %v48 = vld [vmem:[%s1 + $0x58] sm:$0xff]
  %v49 = vld [vmem:[%s1 + $0x60] sm:$0xff]
  %v50 = vld [vmem:[%s1 + $0x68] sm:$0xff]
  %v51 = vld [vmem:[%s1 + $0x70] sm:$0xff]
  %v52 = vld [vmem:[%s1 + $0x78] sm:$0xff]
  %v53 = vld [vmem:[%s1 + $0x80] sm:$0xff]
  %v54 = vld [vmem:[%s1 + $0x88] sm:$0xff]
  %v55 = vld [vmem:[%s1 + $0x90] sm:$0xff]
  %v56 = vld [vmem:[%s1 + $0x98] sm:$0xff]
  %v57 = vld [vmem:[%s1 + $0xa0] sm:$0xff]
  %v58 = vld [vmem:[%s1 + $0xa8] sm:$0xff]
  %v59 = vld [vmem:[%s1 + $0xb0] sm:$0xff]
  %v60 = vld [vmem:[%s1 + $0xb8] sm:$0xff]
  %v61 = vld [vmem:[%s1 + $0xc0] sm:$0xff]
  %v62 = vld [vmem:[%s1 + $0xc8] sm:$0xff]
  %v63 = vld [vmem:[%s1 + $0xd0] sm:$0xff]
  %v64 = vld [vmem:[%s1 + $0xd8] sm:$0xff]
  %v65 = vld [vmem:[%s1 + $0xe0] sm:$0xff]
  %v66 = vld [vmem:[%s1 + $0xe8] sm:$0xff]
  %v67 = vld [vmem:[%s1 + $0xf0] sm:$0xff]
  %v68 = vld [vmem:[%s1 + $0xf8] sm:$0xff]
  %v69 = vld [vmem:[%s1 + $0x100] sm:$0xff]
  %v70 = vld [vmem:[%s1 + $0x108] sm:$0xff]
  %v71 = vld [vmem:[%s1 + $0x110] sm:$0xff]
  %v72 = vld [vmem:[%s1 + $0x118] sm:$0xff]
  %v73 = vld [vmem:[%s1 + $0x120] sm:$0xff]
  %v74 = vld [vmem:[%s1 + $0x128] sm:$0xff]
  %v75 = vld [vmem:[%s1 + $0x130] sm:$0xff]
  %v76 = vld [vmem:[%s1 + $0x138] sm:$0xff]
  %v77 = vld [vmem:[%s1 + $0x140] sm:$0xff]
  %v78 = vld [vmem:[%s1 + $0x148] sm:$0xff]
  %v79 = vld [vmem:[%s1 + $0x150] sm:$0xff]
  %v80 = vld [vmem:[%s1 + $0x158] sm:$0xff]
  %v81 = vld [vmem:[%s1 + $0x160] sm:$0xff]
  %v82 = vld [vmem:[%s1 + $0x168] sm:$0xff]
  %v83 = vld [vmem:[%s1 + $0x170] sm:$0xff]
  %v84 = vld [vmem:[%s1 + $0x178] sm:$0xff]
  %v85 = vld [vmem:[%s1 + $0x180] sm:$0xff]
  %v86 = vld [vmem:[%s1 + $0x188] sm:$0xff]
  %v87 = vld [vmem:[%s1 + $0x190] sm:$0xff]
  %v88 = vld [vmem:[%s1 + $0x198] sm:$0xff]
  %v89 = vld [vmem:[%s1 + $0x1a0] sm:$0xff]
  %v90 = vld [vmem:[%s1 + $0x1a8] sm:$0xff]
  %v91 = vld [vmem:[%s1 + $0x1b0] sm:$0xff]
  %v92 = vld [vmem:[%s1 + $0x1b8] sm:$0xff]
  %v93 = vld [vmem:[%s1 + $0x1c0] sm:$0xff]
  %v94 = vld [vmem:[%s1 + $0x1c8] sm:$0xff]
  %v95 = vld [vmem:[%s1 + $0x1d0] sm:$0xff]
  %v96 = vld [vmem:[%s1 + $0x1d8] sm:$0xff]
  %v97 = vld [vmem:[%s1 + $0x1e0] sm:$0xff]
  %v98 = vld [vmem:[%s1 + $0x1e8] sm:$0xff]
  %v99 = vld [vmem:[%s1 + $0x1f0] sm:$0xff]
  %v100 = vld [vmem:[%s1 + $0x1f8] sm:$0xff]
  %v101 = vld [vmem:[%s1 + $0x200] sm:$0xff]
  %v102 = vld [vmem:[%s1 + $0x208] sm:$0xff]
  %v103 = vld [vmem:[%s1 + $0x210] sm:$0xff]
  %v104 = vld [vmem:[%s1 + $0x218] sm:$0xff]
  %v105 = vld [vmem:[%s1 + $0x220] sm:$0xff]
  %v106 = vld [vmem:[%s1 + $0x228] sm:$0xff]
  %v107 = vld [vmem:[%s1 + $0x230] sm:$0xff]
  %v108 = vld [vmem:[%s1 + $0x238] sm:$0xff]
  %v109 = vld [vmem:[%s1 + $0x240] sm:$0xff]
  %v110 = vld [vmem:[%s1 + $0x248] sm:$0xff]
  %v111 = vld [vmem:[%s1 + $0x250] sm:$0xff]
  %v112 = vld [vmem:[%s1 + $0x258] sm:$0xff]
  %v113 = vld [vmem:[%s1 + $0x260] sm:$0xff]
  %v114 = vld [vmem:[%s1 + $0x268] sm:$0xff]
  %v115 = vld [vmem:[%s1 + $0x270] sm:$0xff]
  %v116 = vld [vmem:[%s1 + $0x278] sm:$0xff]
  %v117 = vld [vmem:[%s1 + $0x280] sm:$0xff]
  %v118 = vld [vmem:[%s1 + $0x288] sm:$0xff]
  %v119 = vld [vmem:[%s1 + $0x290] sm:$0xff]
  %v120 = vld [vmem:[%s1 + $0x298] sm:$0xff]
  %v121 = vld [vmem:[%s1 + $0x2a0] sm:$0xff]
  %v122 = vld [vmem:[%s1 + $0x2a8] sm:$0xff]
  %v123 = vld [vmem:[%s1 + $0x2b0] sm:$0xff]
  %v124 = vld [vmem:[%s1 + $0x2b8] sm:$0xff]
  %v125 = vld [vmem:[%s1 + $0x2c0] sm:$0xff]
  %v126 = vld [vmem:[%s1 + $0x2c8] sm:$0xff]
  %v127 = vld [vmem:[%s1 + $0x2d0] sm:$0xff]
  %v128 = vld [vmem:[%s1 + $0x2d8] sm:$0xff]
  %v129 = vld [vmem:[%s1 + $0x2e0] sm:$0xff]
  %v130 = vld [vmem:[%s1 + $0x2e8] sm:$0xff]
  %v131 = vld [vmem:[%s1 + $0x2f0] sm:$0xff]
  %v132 = vld [vmem:[%s1 + $0x2f8] sm:$0xff]
  %v133 = vld [vmem:[%s1 + $0x300] sm:$0xff]
  %v134 = vld [vmem:[%s1 + $0x308] sm:$0xff]
  %v135 = vld [vmem:[%s1 + $0x310] sm:$0xff]
  %v136 = vld [vmem:[%s1 + $0x318] sm:$0xff]
  %v137 = vld [vmem:[%s1 + $0x320] sm:$0xff]
  %v138 = vld [vmem:[%s1 + $0x328] sm:$0xff]
  %v139 = vld [vmem:[%s1 + $0x330] sm:$0xff]
  %v140 = vld [vmem:[%s1 + $0x338] sm:$0xff]
  %v141 = vld [vmem:[%s1 + $0x340] sm:$0xff]
  %v142 = vld [vmem:[%s1 + $0x348] sm:$0xff]
  %v143 = vld [vmem:[%s1 + $0x350] sm:$0xff]
  %v144 = vld [vmem:[%s1 + $0x358] sm:$0xff]
  %v145 = vld [vmem:[%s1 + $0x360] sm:$0xff]
  %v146 = vld [vmem:[%s1 + $0x368] sm:$0xff]
  %v147 = vld [vmem:[%s1 + $0x370] sm:$0xff]
  %v148 = vld [vmem:[%s1 + $0x378] sm:$0xff]
  %v149 = vld [vmem:[%s1 + $0x380] sm:$0xff]
  %v150 = vld [vmem:[%s1 + $0x388] sm:$0xff]
  %v151 = vld [vmem:[%s1 + $0x390] sm:$0xff]
  %v152 = vld [vmem:[%s1 + $0x398] sm:$0xff]
  %v153 = vld [vmem:[%s1 + $0x3a0] sm:$0xff]
  %v154 = vld [vmem:[%s1 + $0x3a8] sm:$0xff]
  %v155 = vld [vmem:[%s1 + $0x3b0] sm:$0xff]
  %v156 = vld [vmem:[%s1 + $0x3b8] sm:$0xff]
  %v157 = vld [vmem:[%s1 + $0x3c0] sm:$0xff]
  %v158 = vld [vmem:[%s1 + $0x3c8] sm:$0xff]
  %v159 = vld [vmem:[%s1 + $0x3d0] sm:$0xff]
  %v160 = vld [vmem:[%s1 + $0x3d8] sm:$0xff]
  %v161 = vld [vmem:[%s1 + $0x3e0] sm:$0xff]
  %v162 = vld [vmem:[%s1 + $0x3e8] sm:$0xff]
  %v163 = vld [vmem:[%s1 + $0x3f0] sm:$0xff]
  %v164 = vld [vmem:[%s1 + $0x3f8] sm:$0xff]
  %v165 = vld [vmem:[%s1 + $0x400] sm:$0xff]
  %v166 = vld [vmem:[%s1 + $0x408] sm:$0xff]
  %v167 = vld [vmem:[%s1 + $0x410] sm:$0xff]
  %v168 = vld [vmem:[%s1 + $0x418] sm:$0xff]
  %v169 = vld [vmem:[%s1 + $0x420] sm:$0xff]
  %v170 = vld [vmem:[%s1 + $0x428] sm:$0xff]
  %v171 = vld [vmem:[%s1 + $0x430] sm:$0xff]
  %v172 = vld [vmem:[%s1 + $0x438] sm:$0xff]
  %v173 = vld [vmem:[%s1 + $0x440] sm:$0xff]
  %v174 = vld [vmem:[%s1 + $0x448] sm:$0xff]
  %v175 = vld [vmem:[%s1 + $0x450] sm:$0xff]
  %v176 = vld [vmem:[%s1 + $0x458] sm:$0xff]
  %v177 = vld [vmem:[%s1 + $0x460] sm:$0xff]
  %v178 = vld [vmem:[%s1 + $0x468] sm:$0xff]
  %v179 = vld [vmem:[%s1 + $0x470] sm:$0xff]
  %v180 = vld [vmem:[%s1 + $0x478] sm:$0xff]
  %v181 = vld [vmem:[%s1 + $0x480] sm:$0xff]
  %v182 = vld [vmem:[%s1 + $0x488] sm:$0xff]
  %v183 = vld [vmem:[%s1 + $0x490] sm:$0xff]
  %v184 = vld [vmem:[%s1 + $0x498] sm:$0xff]
  %v185 = vld [vmem:[%s1 + $0x4a0] sm:$0xff]
  %v186 = vld [vmem:[%s1 + $0x4a8] sm:$0xff]
  %v187 = vld [vmem:[%s1 + $0x4b0] sm:$0xff]
  %v188 = vld [vmem:[%s1 + $0x4b8] sm:$0xff]
  %v189 = vld [vmem:[%s1 + $0x4c0] sm:$0xff]
  %v190 = vld [vmem:[%s1 + $0x4c8] sm:$0xff]
  %v191 = vld [vmem:[%s1 + $0x4d0] sm:$0xff]
  %v192 = vld [vmem:[%s1 + $0x4d8] sm:$0xff]
  %v193 = vld [vmem:[%s1 + $0x4e0] sm:$0xff]
  %v194 = vld [vmem:[%s1 + $0x4e8] sm:$0xff]
  %v195 = vld [vmem:[%s1 + $0x4f0] sm:$0xff]
  %v196 = vld [vmem:[%s1 + $0x4f8] sm:$0xff]
  %v197 = vld [vmem:[%s1 + $0x500] sm:$0xff]
  %v198 = vld [vmem:[%s1 + $0x508] sm:$0xff]
  %v199 = vld [vmem:[%s1 + $0x510] sm:$0xff]
  %v200 = vld [vmem:[%s1 + $0x518] sm:$0xff]
  %v201 = vld [vmem:[%s1 + $0x520] sm:$0xff]
  %v202 = vld [vmem:[%s1 + $0x528] sm:$0xff]
  %v203 = vld [vmem:[%s1 + $0x530] sm:$0xff]
  %v204 = vld [vmem:[%s1 + $0x538] sm:$0xff]
  %v205 = vld [vmem:[%s1 + $0x540] sm:$0xff]
  %v206 = vld [vmem:[%s1 + $0x548] sm:$0xff]
  %v207 = vld [vmem:[%s1 + $0x550] sm:$0xff]
  %v208 = vld [vmem:[%s1 + $0x558] sm:$0xff]
  %v209 = vld [vmem:[%s1 + $0x560] sm:$0xff]
  %v210 = vld [vmem:[%s1 + $0x568] sm:$0xff]
  %v211 = vld [vmem:[%s1 + $0x570] sm:$0xff]
  %v212 = vld [vmem:[%s1 + $0x578] sm:$0xff]
  %v213 = vld [vmem:[%s1 + $0x580] sm:$0xff]
  %v214 = vld [vmem:[%s1 + $0x588] sm:$0xff]
  %v215 = vld [vmem:[%s1 + $0x590] sm:$0xff]
  %v216 = vld [vmem:[%s1 + $0x598] sm:$0xff]
  %v217 = vld [vmem:[%s1 + $0x5a0] sm:$0xff]
  %v218 = vld [vmem:[%s1 + $0x5a8] sm:$0xff]
  %v219 = vld [vmem:[%s1 + $0x5b0] sm:$0xff]
  %v220 = vld [vmem:[%s1 + $0x5b8] sm:$0xff]
  %v221 = vld [vmem:[%s1 + $0x5c0] sm:$0xff]
  %v222 = vld [vmem:[%s1 + $0x5c8] sm:$0xff]
  %v223 = vld [vmem:[%s1 + $0x5d0] sm:$0xff]
  %v224 = vld [vmem:[%s1 + $0x5d8] sm:$0xff]
  %v225 = vld [vmem:[%s1 + $0x5e0] sm:$0xff]
  %v226 = vld [vmem:[%s1 + $0x5e8] sm:$0xff]
  %v227 = vld [vmem:[%s1 + $0x5f0] sm:$0xff]
  %v228 = vld [vmem:[%s1 + $0x5f8] sm:$0xff]
  %v229 = vld [vmem:[%s1 + $0x600] sm:$0xff]
  %v230 = vld [vmem:[%s1 + $0x608] sm:$0xff]
  %v231 = vld [vmem:[%s1 + $0x610] sm:$0xff]
  %v232 = vld [vmem:[%s1 + $0x618] sm:$0xff]
  %v233 = vld [vmem:[%s1 + $0x620] sm:$0xff]
  %v234 = vld [vmem:[%s1 + $0x628] sm:$0xff]
  %v235 = vld [vmem:[%s1 + $0x630] sm:$0xff]
  %v236 = vld [vmem:[%s1 + $0x638] sm:$0xff]
  %v237 = vld [vmem:[%s1 + $0x640] sm:$0xff]
  %v238 = vld [vmem:[%s1 + $0x648] sm:$0xff]
  %v239 = vld [vmem:[%s1 + $0x650] sm:$0xff]
  %v240 = vld [vmem:[%s1 + $0x658] sm:$0xff]
  %v241 = vld [vmem:[%s1 + $0x660] sm:$0xff]
  %v242 = vld [vmem:[%s1 + $0x668] sm:$0xff]
  %v243 = vld [vmem:[%s1 + $0x670] sm:$0xff]
  %v244 = vld [vmem:[%s1 + $0x678] sm:$0xff]
  %v245 = vld [vmem:[%s1 + $0x680] sm:$0xff]
  %v246 = vld [vmem:[%s1 + $0x688] sm:$0xff]
  %v247 = vld [vmem:[%s1 + $0x690] sm:$0xff]
  %v248 = vld [vmem:[%s1 + $0x698] sm:$0xff]
  %v249 = vld [vmem:[%s1 + $0x6a0] sm:$0xff]
  %v250 = vld [vmem:[%s1 + $0x6a8] sm:$0xff]
  %v251 = vld [vmem:[%s1 + $0x6b0] sm:$0xff]
  %v252 = vld [vmem:[%s1 + $0x6b8] sm:$0xff]
  %v253 = vld [vmem:[%s1 + $0x6c0] sm:$0xff]
  %v254 = vld [vmem:[%s1 + $0x6c8] sm:$0xff]
  %v255 = vld [vmem:[%s1 + $0x6d0] sm:$0xff]
  %v256 = vld [vmem:[%s1 + $0x6d8] sm:$0xff]
  %v257 = vld [vmem:[%s1 + $0x6e0] sm:$0xff]
  %v258 = vld [vmem:[%s1 + $0x6e8] sm:$0xff]
  %v259 = vld [vmem:[%s1 + $0x6f0] sm:$0xff]
  %v260 = vld [vmem:[%s1 + $0x6f8] sm:$0xff]
  %v261 = vld [vmem:[%s1 + $0x700] sm:$0xff]
  %v262 = vld [vmem:[%s1 + $0x708] sm:$0xff]
  %v263 = vld [vmem:[%s1 + $0x710] sm:$0xff]
  %v264 = vld [vmem:[%s1 + $0x718] sm:$0xff]
  %v265 = vld [vmem:[%s1 + $0x720] sm:$0xff]
  %v266 = vld [vmem:[%s1 + $0x728] sm:$0xff]
  %v267 = vld [vmem:[%s1 + $0x730] sm:$0xff]
  %v268 = vld [vmem:[%s1 + $0x738] sm:$0xff]
  %v269 = vld [vmem:[%s1 + $0x740] sm:$0xff]
  %v270 = vld [vmem:[%s1 + $0x748] sm:$0xff]
  %v271 = vld [vmem:[%s1 + $0x750] sm:$0xff]
  %v272 = vld [vmem:[%s1 + $0x758] sm:$0xff]
  %v273 = vld [vmem:[%s1 + $0x760] sm:$0xff]
  %v274 = vld [vmem:[%s1 + $0x768] sm:$0xff]
  %v275 = vld [vmem:[%s1 + $0x770] sm:$0xff]
  %v276 = vld [vmem:[%s1 + $0x778] sm:$0xff]
  %v277 = vld [vmem:[%s1 + $0x780] sm:$0xff]
  %v278 = vld [vmem:[%s1 + $0x788] sm:$0xff]
  %v279 = vld [vmem:[%s1 + $0x790] sm:$0xff]
  %v280 = vld [vmem:[%s1 + $0x798] sm:$0xff]
  %v281 = vld [vmem:[%s1 + $0x7a0] sm:$0xff]
  %v282 = vld [vmem:[%s1 + $0x7a8] sm:$0xff]
  %v283 = vld [vmem:[%s1 + $0x7b0] sm:$0xff]
  %v284 = vld [vmem:[%s1 + $0x7b8] sm:$0xff]
  %v285 = vld [vmem:[%s1 + $0x7c0] sm:$0xff]
  %v286 = vld [vmem:[%s1 + $0x7c8] sm:$0xff]
  %v287 = vld [vmem:[%s1 + $0x7d0] sm:$0xff]
  %v288 = vld [vmem:[%s1 + $0x7d8] sm:$0xff]
  %v289 = vld [vmem:[%s1 + $0x7e0] sm:$0xff]
  %v290 = vld [vmem:[%s1 + $0x7e8] sm:$0xff]
  %v291 = vld [vmem:[%s1 + $0x7f0] sm:$0xff]
  %v292 = vld [vmem:[%s1 + $0x7f8] sm:$0xff]
  %v293 = vld [vmem:[%s1 + $0x800] sm:$0xff]
  %v294 = vld [vmem:[%s1 + $0x808] sm:$0xff]
  %v295 = vld [vmem:[%s1 + $0x810] sm:$0xff]
  %v296 = vld [vmem:[%s1 + $0x818] sm:$0xff]
  %v297 = vld [vmem:[%s1 + $0x820] sm:$0xff]
  %v298 = vld [vmem:[%s1 + $0x828] sm:$0xff]
  %v299 = vld [vmem:[%s1 + $0x830] sm:$0xff]
  %v300 = vld [vmem:[%s1 + $0x838] sm:$0xff]
  %v301 = vld [vmem:[%s1 + $0x840] sm:$0xff]
  %v302 = vld [vmem:[%s1 + $0x848] sm:$0xff]
  %v303 = vld [vmem:[%s1 + $0x850] sm:$0xff]
  %v304 = vld [vmem:[%s1 + $0x858] sm:$0xff]
  %v305 = vld [vmem:[%s1 + $0x860] sm:$0xff]
  %v306 = vld [vmem:[%s1 + $0x868] sm:$0xff]
  %v307 = vld [vmem:[%s1 + $0x870] sm:$0xff]
  %v308 = vld [vmem:[%s1 + $0x878] sm:$0xff]
  %v309 = vld [vmem:[%s1 + $0x880] sm:$0xff]
  %v310 = vld [vmem:[%s1 + $0x888] sm:$0xff]
  %v311 = vld [vmem:[%s1 + $0x890] sm:$0xff]
  %v312 = vld [vmem:[%s1 + $0x898] sm:$0xff]
  %v313 = vld [vmem:[%s1 + $0x8a0] sm:$0xff]
  %v314 = vld [vmem:[%s1 + $0x8a8] sm:$0xff]
  %v315 = vld [vmem:[%s1 + $0x8b0] sm:$0xff]
  %v316 = vld [vmem:[%s1 + $0x8b8] sm:$0xff]
  %v317 = vld [vmem:[%s1 + $0x8c0] sm:$0xff]
  %v318 = vld [vmem:[%s1 + $0x8c8] sm:$0xff]
  %v319 = vld [vmem:[%s1 + $0x8d0] sm:$0xff]
  %v320 = vld [vmem:[%s1 + $0x8d8] sm:$0xff]
  %v321 = vld [vmem:[%s1 + $0x8e0] sm:$0xff]
  %v322 = vld [vmem:[%s1 + $0x8e8] sm:$0xff]
  %v323 = vld [vmem:[%s1 + $0x8f0] sm:$0xff]
  %v324 = vld [vmem:[%s1 + $0x8f8] sm:$0xff]
  %v325 = vld [vmem:[%s2] sm:$0xf]
  %v327 = vlaneseq
  %v328 = vshrl.u32 %v327, 7
  %v329 = vsub.s32 0, %v328
  %v330 = vrot.slane %v325, %v329
  %v331 = vlaneseq
  %v332 = vshrl.u32 %v331, 7
  %v333 = vsub.s32 1, %v332
  %v334 = vrot.slane %v325, %v333
  %v335 = vlaneseq
  %v336 = vshrl.u32 %v335, 7
  %v337 = vsub.s32 2, %v336
  %v338 = vrot.slane %v325, %v337
  %v339 = vlaneseq
  %v340 = vshrl.u32 %v339, 7
  %v341 = vsub.s32 3, %v340
  %v342 = vrot.slane %v325, %v341
  %v357 = vunpack.c.l.b16 %v27
  %v358 = vunpack.c.h.b16 %v27
  %v359 = vunpack.c.l.b16 %v28
  %v360 = vunpack.c.h.b16 %v28
  %v361 = vunpack.c.l.b16 %v29
  %v362 = vunpack.c.h.b16 %v29
  %v363 = vunpack.c.l.b16 %v30
  %v364 = vunpack.c.h.b16 %v30
  %v365 = vunpack.c.l.b16 %v31
  %v366 = vunpack.c.l.b16 %v32
  %v367 = vunpack.c.h.b16 %v32
  %v368 = vunpack.c.l.b16 %v33
  %v369 = vunpack.c.h.b16 %v33
  %v370 = vunpack.c.l.b16 %v34
  %v371 = vunpack.c.h.b16 %v34
  %v372 = vunpack.c.l.b16 %v35
  %v373 = vunpack.c.h.b16 %v35
  %v374 = vunpack.c.l.b16 %v36
  %v375 = vpack.c.b16 %v366, %v357
  %v376 = vpack.c.b16 %v367, %v358
  %v377 = vpack.c.b16 %v368, %v359
  %v378 = vpack.c.b16 %v369, %v360
  %v379 = vpack.c.b16 %v370, %v361
  %v380 = vpack.c.b16 %v371, %v362
  %v381 = vpack.c.b16 %v372, %v363
  %v382 = vpack.c.b16 %v373, %v364
  %v383 = vpack.c.b16 %v374, %v365
  %v681 = vunpack.c.l.b16 %v37
  %v682 = vunpack.c.h.b16 %v37
  %v683 = vunpack.c.l.b16 %v38
  %v684 = vunpack.c.h.b16 %v38
  %v685 = vunpack.c.l.b16 %v39
  %v686 = vunpack.c.h.b16 %v39
  %v687 = vunpack.c.l.b16 %v40
  %v688 = vunpack.c.h.b16 %v40
  %v689 = vunpack.c.l.b16 %v41
  %v690 = vunpack.c.h.b16 %v41
  %v691 = vunpack.c.l.b16 %v42
  %v692 = vunpack.c.h.b16 %v42
  %v693 = vunpack.c.l.b16 %v43
  %v694 = vunpack.c.h.b16 %v43
  %v695 = vunpack.c.l.b16 %v44
  %v696 = vunpack.c.h.b16 %v44
  %v697 = vunpack.c.l.b16 %v45
  %v698 = vunpack.c.h.b16 %v45
  %v699 = vunpack.c.l.b16 %v46
  %v700 = vunpack.c.h.b16 %v46
  %v701 = vunpack.c.l.b16 %v47
  %v702 = vunpack.c.h.b16 %v47
  %v703 = vunpack.c.l.b16 %v48
  %v704 = vunpack.c.h.b16 %v48
  %v705 = vunpack.c.l.b16 %v49
  %v706 = vunpack.c.h.b16 %v49
  %v707 = vunpack.c.l.b16 %v50
  %v708 = vunpack.c.h.b16 %v50
  %v709 = vunpack.c.l.b16 %v51
  %v710 = vunpack.c.h.b16 %v51
  %v711 = vunpack.c.l.b16 %v52
  %v712 = vunpack.c.h.b16 %v52
  %v713 = vunpack.c.l.b16 %v53
  %v714 = vunpack.c.h.b16 %v53
  %v715 = vunpack.c.l.b16 %v54
  %v716 = vunpack.c.h.b16 %v54
  %v717 = vunpack.c.l.b16 %v55
  %v718 = vunpack.c.h.b16 %v55
  %v719 = vunpack.c.l.b16 %v56
  %v720 = vunpack.c.h.b16 %v56
  %v721 = vunpack.c.l.b16 %v57
  %v722 = vunpack.c.h.b16 %v57
  %v723 = vunpack.c.l.b16 %v58
  %v724 = vunpack.c.h.b16 %v58
  %v725 = vunpack.c.l.b16 %v59
  %v726 = vunpack.c.h.b16 %v59
  %v727 = vunpack.c.l.b16 %v60
  %v728 = vunpack.c.h.b16 %v60
  %v729 = vunpack.c.l.b16 %v61
  %v730 = vunpack.c.h.b16 %v61
  %v731 = vunpack.c.l.b16 %v62
  %v732 = vunpack.c.h.b16 %v62
  %v733 = vunpack.c.l.b16 %v63
  %v734 = vunpack.c.h.b16 %v63
  %v735 = vunpack.c.l.b16 %v64
  %v736 = vunpack.c.h.b16 %v64
  %v737 = vunpack.c.l.b16 %v65
  %v738 = vunpack.c.h.b16 %v65
  %v739 = vunpack.c.l.b16 %v66
  %v740 = vunpack.c.h.b16 %v66
  %v741 = vunpack.c.l.b16 %v67
  %v742 = vunpack.c.h.b16 %v67
  %v743 = vunpack.c.l.b16 %v68
  %v744 = vunpack.c.h.b16 %v68
  %v745 = vunpack.c.l.b16 %v69
  %v746 = vunpack.c.h.b16 %v69
  %v747 = vunpack.c.l.b16 %v70
  %v748 = vunpack.c.h.b16 %v70
  %v749 = vunpack.c.l.b16 %v71
  %v750 = vunpack.c.h.b16 %v71
  %v751 = vunpack.c.l.b16 %v72
  %v752 = vunpack.c.h.b16 %v72
  %v753 = vunpack.c.l.b16 %v73
  %v754 = vunpack.c.h.b16 %v73
  %v755 = vunpack.c.l.b16 %v74
  %v756 = vunpack.c.h.b16 %v74
  %v757 = vunpack.c.l.b16 %v75
  %v758 = vunpack.c.h.b16 %v75
  %v759 = vunpack.c.l.b16 %v76
  %v760 = vunpack.c.h.b16 %v76
  %v761 = vunpack.c.l.b16 %v77
  %v762 = vunpack.c.h.b16 %v77
  %v763 = vunpack.c.l.b16 %v78
  %v764 = vunpack.c.h.b16 %v78
  %v765 = vunpack.c.l.b16 %v79
  %v766 = vunpack.c.h.b16 %v79
  %v767 = vunpack.c.l.b16 %v80
  %v768 = vunpack.c.h.b16 %v80
  %v769 = vunpack.c.l.b16 %v81
  %v770 = vunpack.c.h.b16 %v81
  %v771 = vunpack.c.l.b16 %v82
  %v772 = vunpack.c.h.b16 %v82
  %v773 = vunpack.c.l.b16 %v83
  %v774 = vunpack.c.h.b16 %v83
  %v775 = vunpack.c.l.b16 %v84
  %v776 = vunpack.c.h.b16 %v84
  %v777 = vunpack.c.l.b16 %v85
  %v778 = vunpack.c.h.b16 %v85
  %v779 = vunpack.c.l.b16 %v86
  %v780 = vunpack.c.h.b16 %v86
  %v781 = vunpack.c.l.b16 %v87
  %v782 = vunpack.c.h.b16 %v87
  %v783 = vunpack.c.l.b16 %v88
  %v784 = vunpack.c.h.b16 %v88
  %v785 = vunpack.c.l.b16 %v89
  %v786 = vunpack.c.h.b16 %v89
  %v787 = vunpack.c.l.b16 %v90
  %v788 = vunpack.c.h.b16 %v90
  %v789 = vunpack.c.l.b16 %v91
  %v790 = vunpack.c.h.b16 %v91
  %v791 = vunpack.c.l.b16 %v92
  %v792 = vunpack.c.h.b16 %v92
  %v793 = vunpack.c.l.b16 %v93
  %v794 = vunpack.c.h.b16 %v93
  %v795 = vunpack.c.l.b16 %v94
  %v796 = vunpack.c.h.b16 %v94
  %v797 = vunpack.c.l.b16 %v95
  %v798 = vunpack.c.h.b16 %v95
  %v799 = vunpack.c.l.b16 %v96
  %v800 = vunpack.c.h.b16 %v96
  %v801 = vunpack.c.l.b16 %v97
  %v802 = vunpack.c.h.b16 %v97
  %v803 = vunpack.c.l.b16 %v98
  %v804 = vunpack.c.h.b16 %v98
  %v805 = vunpack.c.l.b16 %v99
  %v806 = vunpack.c.h.b16 %v99
  %v807 = vunpack.c.l.b16 %v100
  %v808 = vunpack.c.h.b16 %v100
  %v809 = vunpack.c.l.b16 %v101
  %v810 = vunpack.c.h.b16 %v101
  %v811 = vunpack.c.l.b16 %v102
  %v812 = vunpack.c.h.b16 %v102
  %v813 = vunpack.c.l.b16 %v103
  %v814 = vunpack.c.h.b16 %v103
  %v815 = vunpack.c.l.b16 %v104
  %v816 = vunpack.c.h.b16 %v104
  %v817 = vunpack.c.l.b16 %v105
  %v818 = vunpack.c.h.b16 %v105
  %v819 = vunpack.c.l.b16 %v106
  %v820 = vunpack.c.h.b16 %v106
  %v821 = vunpack.c.l.b16 %v107
  %v822 = vunpack.c.h.b16 %v107
  %v823 = vunpack.c.l.b16 %v108
  %v824 = vunpack.c.h.b16 %v108
  %v825 = vunpack.c.l.b16 %v109
  %v826 = vunpack.c.h.b16 %v109
  %v827 = vunpack.c.l.b16 %v110
  %v828 = vunpack.c.h.b16 %v110
  %v829 = vunpack.c.l.b16 %v111
  %v830 = vunpack.c.h.b16 %v111
  %v831 = vunpack.c.l.b16 %v112
  %v832 = vunpack.c.h.b16 %v112
  %v833 = vunpack.c.l.b16 %v113
  %v834 = vunpack.c.h.b16 %v113
  %v835 = vunpack.c.l.b16 %v114
  %v836 = vunpack.c.h.b16 %v114
  %v837 = vunpack.c.l.b16 %v115
  %v838 = vunpack.c.h.b16 %v115
  %v839 = vunpack.c.l.b16 %v116
  %v840 = vunpack.c.h.b16 %v116
  %v841 = vunpack.c.l.b16 %v117
  %v842 = vunpack.c.h.b16 %v117
  %v843 = vunpack.c.l.b16 %v118
  %v844 = vunpack.c.h.b16 %v118
  %v845 = vunpack.c.l.b16 %v119
  %v846 = vunpack.c.h.b16 %v119
  %v847 = vunpack.c.l.b16 %v120
  %v848 = vunpack.c.h.b16 %v120
  %v849 = vunpack.c.l.b16 %v121
  %v850 = vunpack.c.h.b16 %v121
  %v851 = vunpack.c.l.b16 %v122
  %v852 = vunpack.c.h.b16 %v122
  %v853 = vunpack.c.l.b16 %v123
  %v854 = vunpack.c.h.b16 %v123
  %v855 = vunpack.c.l.b16 %v124
  %v856 = vunpack.c.h.b16 %v124
  %v857 = vunpack.c.l.b16 %v125
  %v858 = vunpack.c.h.b16 %v125
  %v859 = vunpack.c.l.b16 %v126
  %v860 = vunpack.c.h.b16 %v126
  %v861 = vunpack.c.l.b16 %v127
  %v862 = vunpack.c.h.b16 %v127
  %v863 = vunpack.c.l.b16 %v128
  %v864 = vunpack.c.h.b16 %v128
  %v865 = vunpack.c.l.b16 %v129
  %v866 = vunpack.c.h.b16 %v129
  %v867 = vunpack.c.l.b16 %v130
  %v868 = vunpack.c.h.b16 %v130
  %v869 = vunpack.c.l.b16 %v131
  %v870 = vunpack.c.h.b16 %v131
  %v871 = vunpack.c.l.b16 %v132
  %v872 = vunpack.c.h.b16 %v132
  %v873 = vunpack.c.l.b16 %v133
  %v874 = vunpack.c.h.b16 %v133
  %v875 = vunpack.c.l.b16 %v134
  %v876 = vunpack.c.h.b16 %v134
  %v877 = vunpack.c.l.b16 %v135
  %v878 = vunpack.c.h.b16 %v135
  %v879 = vunpack.c.l.b16 %v136
  %v880 = vunpack.c.h.b16 %v136
  %v881 = vunpack.c.l.b16 %v137
  %v882 = vunpack.c.h.b16 %v137
  %v883 = vunpack.c.l.b16 %v138
  %v884 = vunpack.c.h.b16 %v138
  %v885 = vunpack.c.l.b16 %v139
  %v886 = vunpack.c.h.b16 %v139
  %v887 = vunpack.c.l.b16 %v140
  %v888 = vunpack.c.h.b16 %v140
  %v889 = vunpack.c.l.b16 %v141
  %v890 = vunpack.c.h.b16 %v141
  %v891 = vunpack.c.l.b16 %v142
  %v892 = vunpack.c.h.b16 %v142
  %v893 = vunpack.c.l.b16 %v143
  %v894 = vunpack.c.h.b16 %v143
  %v895 = vunpack.c.l.b16 %v144
  %v896 = vunpack.c.h.b16 %v144
  %v897 = vunpack.c.l.b16 %v145
  %v898 = vunpack.c.h.b16 %v145
  %v899 = vunpack.c.l.b16 %v146
  %v900 = vunpack.c.h.b16 %v146
  %v901 = vunpack.c.l.b16 %v147
  %v902 = vunpack.c.h.b16 %v147
  %v903 = vunpack.c.l.b16 %v148
  %v904 = vunpack.c.h.b16 %v148
  %v905 = vunpack.c.l.b16 %v149
  %v906 = vunpack.c.h.b16 %v149
  %v907 = vunpack.c.l.b16 %v150
  %v908 = vunpack.c.h.b16 %v150
  %v909 = vunpack.c.l.b16 %v151
  %v910 = vunpack.c.h.b16 %v151
  %v911 = vunpack.c.l.b16 %v152
  %v912 = vunpack.c.h.b16 %v152
  %v913 = vunpack.c.l.b16 %v153
  %v914 = vunpack.c.h.b16 %v153
  %v915 = vunpack.c.l.b16 %v154
  %v916 = vunpack.c.h.b16 %v154
  %v917 = vunpack.c.l.b16 %v155
  %v918 = vunpack.c.h.b16 %v155
  %v919 = vunpack.c.l.b16 %v156
  %v920 = vunpack.c.h.b16 %v156
  %v921 = vunpack.c.l.b16 %v157
  %v922 = vunpack.c.h.b16 %v157
  %v923 = vunpack.c.l.b16 %v158
  %v924 = vunpack.c.h.b16 %v158
  %v925 = vunpack.c.l.b16 %v159
  %v926 = vunpack.c.h.b16 %v159
  %v927 = vunpack.c.l.b16 %v160
  %v928 = vunpack.c.h.b16 %v160
  %v929 = vunpack.c.l.b16 %v161
  %v930 = vunpack.c.h.b16 %v161
  %v931 = vunpack.c.l.b16 %v162
  %v932 = vunpack.c.h.b16 %v162
  %v933 = vunpack.c.l.b16 %v163
  %v934 = vunpack.c.h.b16 %v163
  %v935 = vunpack.c.l.b16 %v164
  %v936 = vunpack.c.h.b16 %v164
  %v937 = vunpack.c.l.b16 %v165
  %v938 = vunpack.c.h.b16 %v165
  %v939 = vunpack.c.l.b16 %v166
  %v940 = vunpack.c.h.b16 %v166
  %v941 = vunpack.c.l.b16 %v167
  %v942 = vunpack.c.h.b16 %v167
  %v943 = vunpack.c.l.b16 %v168
  %v944 = vunpack.c.h.b16 %v168
  %v945 = vunpack.c.l.b16 %v169
  %v946 = vunpack.c.h.b16 %v169
  %v947 = vunpack.c.l.b16 %v170
  %v948 = vunpack.c.h.b16 %v170
  %v949 = vunpack.c.l.b16 %v171
  %v950 = vunpack.c.h.b16 %v171
  %v951 = vunpack.c.l.b16 %v172
  %v952 = vunpack.c.h.b16 %v172
  %v953 = vunpack.c.l.b16 %v173
  %v954 = vunpack.c.h.b16 %v173
  %v955 = vunpack.c.l.b16 %v174
  %v956 = vunpack.c.h.b16 %v174
  %v957 = vunpack.c.l.b16 %v175
  %v958 = vunpack.c.h.b16 %v175
  %v959 = vunpack.c.l.b16 %v176
  %v960 = vunpack.c.h.b16 %v176
  %v961 = vunpack.c.l.b16 %v177
  %v962 = vunpack.c.h.b16 %v177
  %v963 = vunpack.c.l.b16 %v178
  %v964 = vunpack.c.h.b16 %v178
  %v965 = vunpack.c.l.b16 %v179
  %v966 = vunpack.c.h.b16 %v179
  %v967 = vunpack.c.l.b16 %v180
  %v968 = vunpack.c.h.b16 %v180
  %v969 = vunpack.c.l.b16 %v181
  %v970 = vunpack.c.h.b16 %v181
  %v971 = vunpack.c.l.b16 %v182
  %v972 = vunpack.c.h.b16 %v182
  %v973 = vunpack.c.l.b16 %v183
  %v974 = vunpack.c.h.b16 %v183
  %v975 = vunpack.c.l.b16 %v184
  %v976 = vunpack.c.h.b16 %v184
  %v977 = vunpack.c.l.b16 %v185
  %v978 = vunpack.c.h.b16 %v185
  %v979 = vunpack.c.l.b16 %v186
  %v980 = vunpack.c.h.b16 %v186
  %v981 = vunpack.c.l.b16 %v187
  %v982 = vunpack.c.h.b16 %v187
  %v983 = vunpack.c.l.b16 %v188
  %v984 = vunpack.c.h.b16 %v188
  %v985 = vunpack.c.l.b16 %v189
  %v986 = vunpack.c.h.b16 %v189
  %v987 = vunpack.c.l.b16 %v190
  %v988 = vunpack.c.h.b16 %v190
  %v989 = vunpack.c.l.b16 %v191
  %v990 = vunpack.c.h.b16 %v191
  %v991 = vunpack.c.l.b16 %v192
  %v992 = vunpack.c.h.b16 %v192
  %v993 = vunpack.c.l.b16 %v193
  %v994 = vunpack.c.h.b16 %v193
  %v995 = vunpack.c.l.b16 %v194
  %v996 = vunpack.c.h.b16 %v194
  %v997 = vunpack.c.l.b16 %v195
  %v998 = vunpack.c.h.b16 %v195
  %v999 = vunpack.c.l.b16 %v196
  %v1000 = vunpack.c.h.b16 %v196
  %v1001 = vunpack.c.l.b16 %v197
  %v1002 = vunpack.c.h.b16 %v197
  %v1003 = vunpack.c.l.b16 %v198
  %v1004 = vunpack.c.h.b16 %v198
  %v1005 = vunpack.c.l.b16 %v199
  %v1006 = vunpack.c.h.b16 %v199
  %v1007 = vunpack.c.l.b16 %v200
  %v1008 = vunpack.c.h.b16 %v200
  %v1009 = vunpack.c.l.b16 %v201
  %v1010 = vunpack.c.h.b16 %v201
  %v1011 = vunpack.c.l.b16 %v202
  %v1012 = vunpack.c.h.b16 %v202
  %v1013 = vunpack.c.l.b16 %v203
  %v1014 = vunpack.c.h.b16 %v203
  %v1015 = vunpack.c.l.b16 %v204
  %v1016 = vunpack.c.h.b16 %v204
  %v1017 = vunpack.c.l.b16 %v205
  %v1018 = vunpack.c.h.b16 %v205
  %v1019 = vunpack.c.l.b16 %v206
  %v1020 = vunpack.c.h.b16 %v206
  %v1021 = vunpack.c.l.b16 %v207
  %v1022 = vunpack.c.h.b16 %v207
  %v1023 = vunpack.c.l.b16 %v208
  %v1024 = vunpack.c.h.b16 %v208
  %v1025 = vunpack.c.l.b16 %v209
  %v1026 = vunpack.c.h.b16 %v209
  %v1027 = vunpack.c.l.b16 %v210
  %v1028 = vunpack.c.h.b16 %v210
  %v1029 = vunpack.c.l.b16 %v211
  %v1030 = vunpack.c.h.b16 %v211
  %v1031 = vunpack.c.l.b16 %v212
  %v1032 = vunpack.c.h.b16 %v212
  %v1033 = vunpack.c.l.b16 %v213
  %v1034 = vunpack.c.h.b16 %v213
  %v1035 = vunpack.c.l.b16 %v214
  %v1036 = vunpack.c.h.b16 %v214
  %v1037 = vunpack.c.l.b16 %v215
  %v1038 = vunpack.c.h.b16 %v215
  %v1039 = vunpack.c.l.b16 %v216
  %v1040 = vunpack.c.h.b16 %v216
  %v1041 = vunpack.c.l.b16 %v217
  %v1042 = vunpack.c.h.b16 %v217
  %v1043 = vunpack.c.l.b16 %v218
  %v1044 = vunpack.c.h.b16 %v218
  %v1045 = vunpack.c.l.b16 %v219
  %v1046 = vunpack.c.h.b16 %v219
  %v1047 = vunpack.c.l.b16 %v220
  %v1048 = vunpack.c.h.b16 %v220
  %v1049 = vunpack.c.l.b16 %v221
  %v1050 = vunpack.c.h.b16 %v221
  %v1051 = vunpack.c.l.b16 %v222
  %v1052 = vunpack.c.h.b16 %v222
  %v1053 = vunpack.c.l.b16 %v223
  %v1054 = vunpack.c.h.b16 %v223
  %v1055 = vunpack.c.l.b16 %v224
  %v1056 = vunpack.c.h.b16 %v224
  %v1057 = vunpack.c.l.b16 %v225
  %v1058 = vunpack.c.h.b16 %v225
  %v1059 = vunpack.c.l.b16 %v226
  %v1060 = vunpack.c.h.b16 %v226
  %v1061 = vunpack.c.l.b16 %v227
  %v1062 = vunpack.c.h.b16 %v227
  %v1063 = vunpack.c.l.b16 %v228
  %v1064 = vunpack.c.h.b16 %v228
  %v1065 = vunpack.c.l.b16 %v229
  %v1066 = vunpack.c.h.b16 %v229
  %v1067 = vunpack.c.l.b16 %v230
  %v1068 = vunpack.c.h.b16 %v230
  %v1069 = vunpack.c.l.b16 %v231
  %v1070 = vunpack.c.h.b16 %v231
  %v1071 = vunpack.c.l.b16 %v232
  %v1072 = vunpack.c.h.b16 %v232
  %v1073 = vunpack.c.l.b16 %v233
  %v1074 = vunpack.c.h.b16 %v233
  %v1075 = vunpack.c.l.b16 %v234
  %v1076 = vunpack.c.h.b16 %v234
  %v1077 = vunpack.c.l.b16 %v235
  %v1078 = vunpack.c.h.b16 %v235
  %v1079 = vunpack.c.l.b16 %v236
  %v1080 = vunpack.c.h.b16 %v236
  %v1081 = vunpack.c.l.b16 %v237
  %v1082 = vunpack.c.h.b16 %v237
  %v1083 = vunpack.c.l.b16 %v238
  %v1084 = vunpack.c.h.b16 %v238
  %v1085 = vunpack.c.l.b16 %v239
  %v1086 = vunpack.c.h.b16 %v239
  %v1087 = vunpack.c.l.b16 %v240
  %v1088 = vunpack.c.h.b16 %v240
  %v1089 = vunpack.c.l.b16 %v241
  %v1090 = vunpack.c.h.b16 %v241
  %v1091 = vunpack.c.l.b16 %v242
  %v1092 = vunpack.c.h.b16 %v242
  %v1093 = vunpack.c.l.b16 %v243
  %v1094 = vunpack.c.h.b16 %v243
  %v1095 = vunpack.c.l.b16 %v244
  %v1096 = vunpack.c.h.b16 %v244
  %v1097 = vunpack.c.l.b16 %v245
  %v1098 = vunpack.c.h.b16 %v245
  %v1099 = vunpack.c.l.b16 %v246
  %v1100 = vunpack.c.h.b16 %v246
  %v1101 = vunpack.c.l.b16 %v247
  %v1102 = vunpack.c.h.b16 %v247
  %v1103 = vunpack.c.l.b16 %v248
  %v1104 = vunpack.c.h.b16 %v248
  %v1105 = vunpack.c.l.b16 %v249
  %v1106 = vunpack.c.h.b16 %v249
  %v1107 = vunpack.c.l.b16 %v250
  %v1108 = vunpack.c.h.b16 %v250
  %v1109 = vunpack.c.l.b16 %v251
  %v1110 = vunpack.c.h.b16 %v251
  %v1111 = vunpack.c.l.b16 %v252
  %v1112 = vunpack.c.h.b16 %v252
  %v1113 = vunpack.c.l.b16 %v253
  %v1114 = vunpack.c.h.b16 %v253
  %v1115 = vunpack.c.l.b16 %v254
  %v1116 = vunpack.c.h.b16 %v254
  %v1117 = vunpack.c.l.b16 %v255
  %v1118 = vunpack.c.h.b16 %v255
  %v1119 = vunpack.c.l.b16 %v256
  %v1120 = vunpack.c.h.b16 %v256
  %v1121 = vunpack.c.l.b16 %v257
  %v1122 = vunpack.c.h.b16 %v257
  %v1123 = vunpack.c.l.b16 %v258
  %v1124 = vunpack.c.h.b16 %v258
  %v1125 = vunpack.c.l.b16 %v259
  %v1126 = vunpack.c.h.b16 %v259
  %v1127 = vunpack.c.l.b16 %v260
  %v1128 = vunpack.c.h.b16 %v260
  %v1129 = vunpack.c.l.b16 %v261
  %v1130 = vunpack.c.h.b16 %v261
  %v1131 = vunpack.c.l.b16 %v262
  %v1132 = vunpack.c.h.b16 %v262
  %v1133 = vunpack.c.l.b16 %v263
  %v1134 = vunpack.c.h.b16 %v263
  %v1135 = vunpack.c.l.b16 %v264
  %v1136 = vunpack.c.h.b16 %v264
  %v1137 = vunpack.c.l.b16 %v265
  %v1138 = vunpack.c.h.b16 %v265
  %v1139 = vunpack.c.l.b16 %v266
  %v1140 = vunpack.c.h.b16 %v266
  %v1141 = vunpack.c.l.b16 %v267
  %v1142 = vunpack.c.h.b16 %v267
  %v1143 = vunpack.c.l.b16 %v268
  %v1144 = vunpack.c.h.b16 %v268
  %v1145 = vunpack.c.l.b16 %v269
  %v1146 = vunpack.c.h.b16 %v269
  %v1147 = vunpack.c.l.b16 %v270
  %v1148 = vunpack.c.h.b16 %v270
  %v1149 = vunpack.c.l.b16 %v271
  %v1150 = vunpack.c.h.b16 %v271
  %v1151 = vunpack.c.l.b16 %v272
  %v1152 = vunpack.c.h.b16 %v272
  %v1153 = vunpack.c.l.b16 %v273
  %v1154 = vunpack.c.h.b16 %v273
  %v1155 = vunpack.c.l.b16 %v274
  %v1156 = vunpack.c.h.b16 %v274
  %v1157 = vunpack.c.l.b16 %v275
  %v1158 = vunpack.c.h.b16 %v275
  %v1159 = vunpack.c.l.b16 %v276
  %v1160 = vunpack.c.h.b16 %v276
  %v1161 = vunpack.c.l.b16 %v277
  %v1162 = vunpack.c.h.b16 %v277
  %v1163 = vunpack.c.l.b16 %v278
  %v1164 = vunpack.c.h.b16 %v278
  %v1165 = vunpack.c.l.b16 %v279
  %v1166 = vunpack.c.h.b16 %v279
  %v1167 = vunpack.c.l.b16 %v280
  %v1168 = vunpack.c.h.b16 %v280
  %v1169 = vunpack.c.l.b16 %v281
  %v1170 = vunpack.c.h.b16 %v281
  %v1171 = vunpack.c.l.b16 %v282
  %v1172 = vunpack.c.h.b16 %v282
  %v1173 = vunpack.c.l.b16 %v283
  %v1174 = vunpack.c.h.b16 %v283
  %v1175 = vunpack.c.l.b16 %v284
  %v1176 = vunpack.c.h.b16 %v284
  %v1177 = vunpack.c.l.b16 %v285
  %v1178 = vunpack.c.h.b16 %v285
  %v1179 = vunpack.c.l.b16 %v286
  %v1180 = vunpack.c.h.b16 %v286
  %v1181 = vunpack.c.l.b16 %v287
  %v1182 = vunpack.c.h.b16 %v287
  %v1183 = vunpack.c.l.b16 %v288
  %v1184 = vunpack.c.h.b16 %v288
  %v1185 = vunpack.c.l.b16 %v289
  %v1186 = vunpack.c.h.b16 %v289
  %v1187 = vunpack.c.l.b16 %v290
  %v1188 = vunpack.c.h.b16 %v290
  %v1189 = vunpack.c.l.b16 %v291
  %v1190 = vunpack.c.h.b16 %v291
  %v1191 = vunpack.c.l.b16 %v292
  %v1192 = vunpack.c.h.b16 %v292
  %v1193 = vunpack.c.l.b16 %v293
  %v1194 = vunpack.c.h.b16 %v293
  %v1195 = vunpack.c.l.b16 %v294
  %v1196 = vunpack.c.h.b16 %v294
  %v1197 = vunpack.c.l.b16 %v295
  %v1198 = vunpack.c.h.b16 %v295
  %v1199 = vunpack.c.l.b16 %v296
  %v1200 = vunpack.c.h.b16 %v296
  %v1201 = vunpack.c.l.b16 %v297
  %v1202 = vunpack.c.h.b16 %v297
  %v1203 = vunpack.c.l.b16 %v298
  %v1204 = vunpack.c.h.b16 %v298
  %v1205 = vunpack.c.l.b16 %v299
  %v1206 = vunpack.c.h.b16 %v299
  %v1207 = vunpack.c.l.b16 %v300
  %v1208 = vunpack.c.h.b16 %v300
  %v1209 = vunpack.c.l.b16 %v301
  %v1210 = vunpack.c.h.b16 %v301
  %v1211 = vunpack.c.l.b16 %v302
  %v1212 = vunpack.c.h.b16 %v302
  %v1213 = vunpack.c.l.b16 %v303
  %v1214 = vunpack.c.h.b16 %v303
  %v1215 = vunpack.c.l.b16 %v304
  %v1216 = vunpack.c.h.b16 %v304
  %v1217 = vunpack.c.l.b16 %v305
  %v1218 = vunpack.c.h.b16 %v305
  %v1219 = vunpack.c.l.b16 %v306
  %v1220 = vunpack.c.h.b16 %v306
  %v1221 = vunpack.c.l.b16 %v307
  %v1222 = vunpack.c.h.b16 %v307
  %v1223 = vunpack.c.l.b16 %v308
  %v1224 = vunpack.c.h.b16 %v308
  %v1225 = vunpack.c.l.b16 %v309
  %v1226 = vunpack.c.h.b16 %v309
  %v1227 = vunpack.c.l.b16 %v310
  %v1228 = vunpack.c.h.b16 %v310
  %v1229 = vunpack.c.l.b16 %v311
  %v1230 = vunpack.c.h.b16 %v311
  %v1231 = vunpack.c.l.b16 %v312
  %v1232 = vunpack.c.h.b16 %v312
  %v1233 = vunpack.c.l.b16 %v313
  %v1234 = vunpack.c.h.b16 %v313
  %v1235 = vunpack.c.l.b16 %v314
  %v1236 = vunpack.c.h.b16 %v314
  %v1237 = vunpack.c.l.b16 %v315
  %v1238 = vunpack.c.h.b16 %v315
  %v1239 = vunpack.c.l.b16 %v316
  %v1240 = vunpack.c.h.b16 %v316
  %v1241 = vunpack.c.l.b16 %v317
  %v1242 = vunpack.c.h.b16 %v317
  %v1243 = vunpack.c.l.b16 %v318
  %v1244 = vunpack.c.h.b16 %v318
  %v1245 = vunpack.c.l.b16 %v319
  %v1246 = vunpack.c.h.b16 %v319
  %v1247 = vunpack.c.l.b16 %v320
  %v1248 = vunpack.c.h.b16 %v320
  %v1249 = vunpack.c.l.b16 %v321
  %v1250 = vunpack.c.h.b16 %v321
  %v1251 = vunpack.c.l.b16 %v322
  %v1252 = vunpack.c.h.b16 %v322
  %v1253 = vunpack.c.l.b16 %v323
  %v1254 = vunpack.c.h.b16 %v323
  %v1255 = vunpack.c.l.b16 %v324
  %v1256 = vunpack.c.h.b16 %v324
  %v1257 = vpack.c.b16 %v685, %v681
  %v1258 = vpack.c.b16 %v686, %v682
  %v1259 = vpack.c.b16 %v687, %v683
  %v1260 = vpack.c.b16 %v688, %v684
  %v1261 = vpack.c.b16 %v693, %v689
  %v1262 = vpack.c.b16 %v694, %v690
  %v1263 = vpack.c.b16 %v695, %v691
  %v1264 = vpack.c.b16 %v696, %v692
  %v1265 = vpack.c.b16 %v701, %v697
  %v1266 = vpack.c.b16 %v702, %v698
  %v1267 = vpack.c.b16 %v703, %v699
  %v1268 = vpack.c.b16 %v704, %v700
  %v1269 = vpack.c.b16 %v709, %v705
  %v1270 = vpack.c.b16 %v710, %v706
  %v1271 = vpack.c.b16 %v711, %v707
  %v1272 = vpack.c.b16 %v712, %v708
  %v1273 = vpack.c.b16 %v717, %v713
  %v1274 = vpack.c.b16 %v718, %v714
  %v1275 = vpack.c.b16 %v719, %v715
  %v1276 = vpack.c.b16 %v720, %v716
  %v1277 = vpack.c.b16 %v725, %v721
  %v1278 = vpack.c.b16 %v726, %v722
  %v1279 = vpack.c.b16 %v727, %v723
  %v1280 = vpack.c.b16 %v728, %v724
  %v1281 = vpack.c.b16 %v733, %v729
  %v1282 = vpack.c.b16 %v734, %v730
  %v1283 = vpack.c.b16 %v735, %v731
  %v1284 = vpack.c.b16 %v736, %v732
  %v1285 = vpack.c.b16 %v741, %v737
  %v1286 = vpack.c.b16 %v742, %v738
  %v1287 = vpack.c.b16 %v743, %v739
  %v1288 = vpack.c.b16 %v744, %v740
  %v1289 = vpack.c.b16 %v749, %v745
  %v1290 = vpack.c.b16 %v750, %v746
  %v1291 = vpack.c.b16 %v751, %v747
  %v1292 = vpack.c.b16 %v752, %v748
  %v1293 = vpack.c.b16 %v757, %v753
  %v1294 = vpack.c.b16 %v758, %v754
  %v1295 = vpack.c.b16 %v759, %v755
  %v1296 = vpack.c.b16 %v760, %v756
  %v1297 = vpack.c.b16 %v765, %v761
  %v1298 = vpack.c.b16 %v766, %v762
  %v1299 = vpack.c.b16 %v767, %v763
  %v1300 = vpack.c.b16 %v768, %v764
  %v1301 = vpack.c.b16 %v773, %v769
  %v1302 = vpack.c.b16 %v774, %v770
  %v1303 = vpack.c.b16 %v775, %v771
  %v1304 = vpack.c.b16 %v776, %v772
  %v1305 = vpack.c.b16 %v781, %v777
  %v1306 = vpack.c.b16 %v782, %v778
  %v1307 = vpack.c.b16 %v783, %v779
  %v1308 = vpack.c.b16 %v784, %v780
  %v1309 = vpack.c.b16 %v789, %v785
  %v1310 = vpack.c.b16 %v790, %v786
  %v1311 = vpack.c.b16 %v791, %v787
  %v1312 = vpack.c.b16 %v792, %v788
  %v1313 = vpack.c.b16 %v797, %v793
  %v1314 = vpack.c.b16 %v798, %v794
  %v1315 = vpack.c.b16 %v799, %v795
  %v1316 = vpack.c.b16 %v800, %v796
  %v1317 = vpack.c.b16 %v805, %v801
  %v1318 = vpack.c.b16 %v806, %v802
  %v1319 = vpack.c.b16 %v807, %v803
  %v1320 = vpack.c.b16 %v808, %v804
  %v1321 = vpack.c.b16 %v813, %v809
  %v1322 = vpack.c.b16 %v814, %v810
  %v1323 = vpack.c.b16 %v815, %v811
  %v1324 = vpack.c.b16 %v816, %v812
  %v1325 = vpack.c.b16 %v821, %v817
  %v1326 = vpack.c.b16 %v822, %v818
  %v1327 = vpack.c.b16 %v823, %v819
  %v1328 = vpack.c.b16 %v824, %v820
  %v1329 = vpack.c.b16 %v829, %v825
  %v1330 = vpack.c.b16 %v830, %v826
  %v1331 = vpack.c.b16 %v831, %v827
  %v1332 = vpack.c.b16 %v832, %v828
  %v1333 = vpack.c.b16 %v837, %v833
  %v1334 = vpack.c.b16 %v838, %v834
  %v1335 = vpack.c.b16 %v839, %v835
  %v1336 = vpack.c.b16 %v840, %v836
  %v1337 = vpack.c.b16 %v845, %v841
  %v1338 = vpack.c.b16 %v846, %v842
  %v1339 = vpack.c.b16 %v847, %v843
  %v1340 = vpack.c.b16 %v848, %v844
  %v1341 = vpack.c.b16 %v853, %v849
  %v1342 = vpack.c.b16 %v854, %v850
  %v1343 = vpack.c.b16 %v855, %v851
  %v1344 = vpack.c.b16 %v856, %v852
  %v1345 = vpack.c.b16 %v861, %v857
  %v1346 = vpack.c.b16 %v862, %v858
  %v1347 = vpack.c.b16 %v863, %v859
  %v1348 = vpack.c.b16 %v864, %v860
  %v1349 = vpack.c.b16 %v869, %v865
  %v1350 = vpack.c.b16 %v870, %v866
  %v1351 = vpack.c.b16 %v871, %v867
  %v1352 = vpack.c.b16 %v872, %v868
  %v1353 = vpack.c.b16 %v877, %v873
  %v1354 = vpack.c.b16 %v878, %v874
  %v1355 = vpack.c.b16 %v879, %v875
  %v1356 = vpack.c.b16 %v880, %v876
  %v1357 = vpack.c.b16 %v885, %v881
  %v1358 = vpack.c.b16 %v886, %v882
  %v1359 = vpack.c.b16 %v887, %v883
  %v1360 = vpack.c.b16 %v888, %v884
  %v1361 = vpack.c.b16 %v893, %v889
  %v1362 = vpack.c.b16 %v894, %v890
  %v1363 = vpack.c.b16 %v895, %v891
  %v1364 = vpack.c.b16 %v896, %v892
  %v1365 = vpack.c.b16 %v901, %v897
  %v1366 = vpack.c.b16 %v902, %v898
  %v1367 = vpack.c.b16 %v903, %v899
  %v1368 = vpack.c.b16 %v904, %v900
  %v1369 = vpack.c.b16 %v909, %v905
  %v1370 = vpack.c.b16 %v910, %v906
  %v1371 = vpack.c.b16 %v911, %v907
  %v1372 = vpack.c.b16 %v912, %v908
  %v1373 = vpack.c.b16 %v917, %v913
  %v1374 = vpack.c.b16 %v918, %v914
  %v1375 = vpack.c.b16 %v919, %v915
  %v1376 = vpack.c.b16 %v920, %v916
  %v1377 = vpack.c.b16 %v925, %v921
  %v1378 = vpack.c.b16 %v926, %v922
  %v1379 = vpack.c.b16 %v927, %v923
  %v1380 = vpack.c.b16 %v928, %v924
  %v1381 = vpack.c.b16 %v933, %v929
  %v1382 = vpack.c.b16 %v934, %v930
  %v1383 = vpack.c.b16 %v935, %v931
  %v1384 = vpack.c.b16 %v936, %v932
  %v1385 = vpack.c.b16 %v941, %v937
  %v1386 = vpack.c.b16 %v942, %v938
  %v1387 = vpack.c.b16 %v943, %v939
  %v1388 = vpack.c.b16 %v944, %v940
  %v1389 = vpack.c.b16 %v949, %v945
  %v1390 = vpack.c.b16 %v950, %v946
  %v1391 = vpack.c.b16 %v951, %v947
  %v1392 = vpack.c.b16 %v952, %v948
  %v1393 = vpack.c.b16 %v957, %v953
  %v1394 = vpack.c.b16 %v958, %v954
  %v1395 = vpack.c.b16 %v959, %v955
  %v1396 = vpack.c.b16 %v960, %v956
  %v1397 = vpack.c.b16 %v965, %v961
  %v1398 = vpack.c.b16 %v966, %v962
  %v1399 = vpack.c.b16 %v967, %v963
  %v1400 = vpack.c.b16 %v968, %v964
  %v1401 = vpack.c.b16 %v973, %v969
  %v1402 = vpack.c.b16 %v974, %v970
  %v1403 = vpack.c.b16 %v975, %v971
  %v1404 = vpack.c.b16 %v976, %v972
  %v1405 = vpack.c.b16 %v981, %v977
  %v1406 = vpack.c.b16 %v982, %v978
  %v1407 = vpack.c.b16 %v983, %v979
  %v1408 = vpack.c.b16 %v984, %v980
  %v1409 = vpack.c.b16 %v989, %v985
  %v1410 = vpack.c.b16 %v990, %v986
  %v1411 = vpack.c.b16 %v991, %v987
  %v1412 = vpack.c.b16 %v992, %v988
  %v1413 = vpack.c.b16 %v997, %v993
  %v1414 = vpack.c.b16 %v998, %v994
  %v1415 = vpack.c.b16 %v999, %v995
  %v1416 = vpack.c.b16 %v1000, %v996
  %v1417 = vpack.c.b16 %v1005, %v1001
  %v1418 = vpack.c.b16 %v1006, %v1002
  %v1419 = vpack.c.b16 %v1007, %v1003
  %v1420 = vpack.c.b16 %v1008, %v1004
  %v1421 = vpack.c.b16 %v1013, %v1009
  %v1422 = vpack.c.b16 %v1014, %v1010
  %v1423 = vpack.c.b16 %v1015, %v1011
  %v1424 = vpack.c.b16 %v1016, %v1012
  %v1425 = vpack.c.b16 %v1021, %v1017
  %v1426 = vpack.c.b16 %v1022, %v1018
  %v1427 = vpack.c.b16 %v1023, %v1019
  %v1428 = vpack.c.b16 %v1024, %v1020
  %v1429 = vpack.c.b16 %v1029, %v1025
  %v1430 = vpack.c.b16 %v1030, %v1026
  %v1431 = vpack.c.b16 %v1031, %v1027
  %v1432 = vpack.c.b16 %v1032, %v1028
  %v1433 = vpack.c.b16 %v1037, %v1033
  %v1434 = vpack.c.b16 %v1038, %v1034
  %v1435 = vpack.c.b16 %v1039, %v1035
  %v1436 = vpack.c.b16 %v1040, %v1036
  %v1437 = vpack.c.b16 %v1045, %v1041
  %v1438 = vpack.c.b16 %v1046, %v1042
  %v1439 = vpack.c.b16 %v1047, %v1043
  %v1440 = vpack.c.b16 %v1048, %v1044
  %v1441 = vpack.c.b16 %v1053, %v1049
  %v1442 = vpack.c.b16 %v1054, %v1050
  %v1443 = vpack.c.b16 %v1055, %v1051
  %v1444 = vpack.c.b16 %v1056, %v1052
  %v1445 = vpack.c.b16 %v1061, %v1057
  %v1446 = vpack.c.b16 %v1062, %v1058
  %v1447 = vpack.c.b16 %v1063, %v1059
  %v1448 = vpack.c.b16 %v1064, %v1060
  %v1449 = vpack.c.b16 %v1069, %v1065
  %v1450 = vpack.c.b16 %v1070, %v1066
  %v1451 = vpack.c.b16 %v1071, %v1067
  %v1452 = vpack.c.b16 %v1072, %v1068
  %v1453 = vpack.c.b16 %v1077, %v1073
  %v1454 = vpack.c.b16 %v1078, %v1074
  %v1455 = vpack.c.b16 %v1079, %v1075
  %v1456 = vpack.c.b16 %v1080, %v1076
  %v1457 = vpack.c.b16 %v1085, %v1081
  %v1458 = vpack.c.b16 %v1086, %v1082
  %v1459 = vpack.c.b16 %v1087, %v1083
  %v1460 = vpack.c.b16 %v1088, %v1084
  %v1461 = vpack.c.b16 %v1093, %v1089
  %v1462 = vpack.c.b16 %v1094, %v1090
  %v1463 = vpack.c.b16 %v1095, %v1091
  %v1464 = vpack.c.b16 %v1096, %v1092
  %v1465 = vpack.c.b16 %v1101, %v1097
  %v1466 = vpack.c.b16 %v1102, %v1098
  %v1467 = vpack.c.b16 %v1103, %v1099
  %v1468 = vpack.c.b16 %v1104, %v1100
  %v1469 = vpack.c.b16 %v1109, %v1105
  %v1470 = vpack.c.b16 %v1110, %v1106
  %v1471 = vpack.c.b16 %v1111, %v1107
  %v1472 = vpack.c.b16 %v1112, %v1108
  %v1473 = vpack.c.b16 %v1117, %v1113
  %v1474 = vpack.c.b16 %v1118, %v1114
  %v1475 = vpack.c.b16 %v1119, %v1115
  %v1476 = vpack.c.b16 %v1120, %v1116
  %v1477 = vpack.c.b16 %v1125, %v1121
  %v1478 = vpack.c.b16 %v1126, %v1122
  %v1479 = vpack.c.b16 %v1127, %v1123
  %v1480 = vpack.c.b16 %v1128, %v1124
  %v1481 = vpack.c.b16 %v1133, %v1129
  %v1482 = vpack.c.b16 %v1134, %v1130
  %v1483 = vpack.c.b16 %v1135, %v1131
  %v1484 = vpack.c.b16 %v1136, %v1132
  %v1485 = vpack.c.b16 %v1141, %v1137
  %v1486 = vpack.c.b16 %v1142, %v1138
  %v1487 = vpack.c.b16 %v1143, %v1139
  %v1488 = vpack.c.b16 %v1144, %v1140
  %v1489 = vpack.c.b16 %v1149, %v1145
  %v1490 = vpack.c.b16 %v1150, %v1146
  %v1491 = vpack.c.b16 %v1151, %v1147
  %v1492 = vpack.c.b16 %v1152, %v1148
  %v1493 = vpack.c.b16 %v1157, %v1153
  %v1494 = vpack.c.b16 %v1158, %v1154
  %v1495 = vpack.c.b16 %v1159, %v1155
  %v1496 = vpack.c.b16 %v1160, %v1156
  %v1497 = vpack.c.b16 %v1165, %v1161
  %v1498 = vpack.c.b16 %v1166, %v1162
  %v1499 = vpack.c.b16 %v1167, %v1163
  %v1500 = vpack.c.b16 %v1168, %v1164
  %v1501 = vpack.c.b16 %v1173, %v1169
  %v1502 = vpack.c.b16 %v1174, %v1170
  %v1503 = vpack.c.b16 %v1175, %v1171
  %v1504 = vpack.c.b16 %v1176, %v1172
  %v1505 = vpack.c.b16 %v1181, %v1177
  %v1506 = vpack.c.b16 %v1182, %v1178
  %v1507 = vpack.c.b16 %v1183, %v1179
  %v1508 = vpack.c.b16 %v1184, %v1180
  %v1509 = vpack.c.b16 %v1189, %v1185
  %v1510 = vpack.c.b16 %v1190, %v1186
  %v1511 = vpack.c.b16 %v1191, %v1187
  %v1512 = vpack.c.b16 %v1192, %v1188
  %v1513 = vpack.c.b16 %v1197, %v1193
  %v1514 = vpack.c.b16 %v1198, %v1194
  %v1515 = vpack.c.b16 %v1199, %v1195
  %v1516 = vpack.c.b16 %v1200, %v1196
  %v1517 = vpack.c.b16 %v1205, %v1201
  %v1518 = vpack.c.b16 %v1206, %v1202
  %v1519 = vpack.c.b16 %v1207, %v1203
  %v1520 = vpack.c.b16 %v1208, %v1204
  %v1521 = vpack.c.b16 %v1213, %v1209
  %v1522 = vpack.c.b16 %v1214, %v1210
  %v1523 = vpack.c.b16 %v1215, %v1211
  %v1524 = vpack.c.b16 %v1216, %v1212
  %v1525 = vpack.c.b16 %v1221, %v1217
  %v1526 = vpack.c.b16 %v1222, %v1218
  %v1527 = vpack.c.b16 %v1223, %v1219
  %v1528 = vpack.c.b16 %v1224, %v1220
  %v1529 = vpack.c.b16 %v1229, %v1225
  %v1530 = vpack.c.b16 %v1230, %v1226
  %v1531 = vpack.c.b16 %v1231, %v1227
  %v1532 = vpack.c.b16 %v1232, %v1228
  %v1533 = vpack.c.b16 %v1237, %v1233
  %v1534 = vpack.c.b16 %v1238, %v1234
  %v1535 = vpack.c.b16 %v1239, %v1235
  %v1536 = vpack.c.b16 %v1240, %v1236
  %v1537 = vpack.c.b16 %v1245, %v1241
  %v1538 = vpack.c.b16 %v1246, %v1242
  %v1539 = vpack.c.b16 %v1247, %v1243
  %v1540 = vpack.c.b16 %v1248, %v1244
  %v1541 = vpack.c.b16 %v1253, %v1249
  %v1542 = vpack.c.b16 %v1254, %v1250
  %v1543 = vpack.c.b16 %v1255, %v1251
  %v1544 = vpack.c.b16 %v1256, %v1252
  %1833 = vmatprep.subr.bf16.mxu0 %v1286
  %1834 = vmatpush1.bf16.msra.mxu0 %v1285
  %1835 = vmatprep.subr.bf16.mxu0 %v1282
  %1836 = vmatpush1.bf16.msra.mxu0 %v1281
  %1837 = vmatprep.subr.bf16.mxu0 %v1278
  %1838 = vmatpush1.bf16.msra.mxu0 %v1277
  %1839 = vmatprep.subr.bf16.mxu0 %v1274
  %1840 = vmatpush1.bf16.msra.mxu0 %v1273
  %1841 = vmatprep.subr.bf16.mxu0 %v1270
  %1842 = vmatpush1.bf16.msra.mxu0 %v1269
  %1843 = vmatprep.subr.bf16.mxu0 %v1266
  %1844 = vmatpush1.bf16.msra.mxu0 %v1265
  %1845 = vmatprep.subr.bf16.mxu0 %v1262
  %1846 = vmatpush1.bf16.msra.mxu0 %v1261
  %1847 = vmatprep.subr.bf16.mxu0 %v1258
  %1848 = vmatpush1.bf16.msra.mxu0 %v1257
  %1849 = vmatprep.subr.bf16.mxu0 %v1318
  %1850 = vmatpush2.bf16.msra.mxu0 %v1317
  %1851 = vmatprep.subr.bf16.mxu0 %v1314
  %1852 = vmatpush2.bf16.msra.mxu0 %v1313
  %1853 = vmatprep.subr.bf16.mxu0 %v1310
  %1854 = vmatpush2.bf16.msra.mxu0 %v1309
  %1855 = vmatprep.subr.bf16.mxu0 %v1306
  %1856 = vmatpush2.bf16.msra.mxu0 %v1305
  %1857 = vmatprep.subr.bf16.mxu0 %v1302
  %1858 = vmatpush2.bf16.msra.mxu0 %v1301
  %1859 = vmatprep.subr.bf16.mxu0 %v1298
  %1860 = vmatpush2.bf16.msra.mxu0 %v1297
  %1861 = vmatprep.subr.bf16.mxu0 %v1294
  %1862 = vmatpush2.bf16.msra.mxu0 %v1293
  %1863 = vmatprep.subr.bf16.mxu0 %v1290
  %1864 = vmatpush2.bf16.msra.mxu0 %v1289
  %1865 = vmatprep.mubr.bf16.mxu0 %v376
  %1866 = vmatmul.mubr.bf16.gmra.mxu0 %v375
  %v1867 = vpop.f32.mrf.mxu0
  %v1868 = vadd.f32 %v330, %v1867
  %v1869 = vpop.f32.mrf.mxu0
  %v1870 = vadd.f32 %v334, %v1869
  %v1871 = vpop.f32.mrf.mxu0
  %v1872 = vadd.f32 %v330, %v1871
  %v1873 = vpop.f32.mrf.mxu0
  %v1874 = vadd.f32 %v334, %v1873
  %1875 = vdwg.mxu0
  %1876 = vmatprep.subr.bf16.mxu0 %v1350
  %1877 = vmatpush1.bf16.msra.mxu0 %v1349
  %1878 = vmatprep.subr.bf16.mxu0 %v1346
  %1879 = vmatpush1.bf16.msra.mxu0 %v1345
  %1880 = vmatprep.subr.bf16.mxu0 %v1342
  %1881 = vmatpush1.bf16.msra.mxu0 %v1341
  %1882 = vmatprep.subr.bf16.mxu0 %v1338
  %1883 = vmatpush1.bf16.msra.mxu0 %v1337
  %1884 = vmatprep.subr.bf16.mxu0 %v1334
  %1885 = vmatpush1.bf16.msra.mxu0 %v1333
  %1886 = vmatprep.subr.bf16.mxu0 %v1330
  %1887 = vmatpush1.bf16.msra.mxu0 %v1329
  %1888 = vmatprep.subr.bf16.mxu0 %v1326
  %1889 = vmatpush1.bf16.msra.mxu0 %v1325
  %1890 = vmatprep.subr.bf16.mxu0 %v1322
  %1891 = vmatpush1.bf16.msra.mxu0 %v1321
  %1892 = vmatprep.subr.bf16.mxu0 %v1382
  %1893 = vmatpush2.bf16.msra.mxu0 %v1381
  %1894 = vmatprep.subr.bf16.mxu0 %v1378
  %1895 = vmatpush2.bf16.msra.mxu0 %v1377
  %1896 = vmatprep.subr.bf16.mxu0 %v1374
  %1897 = vmatpush2.bf16.msra.mxu0 %v1373
  %1898 = vmatprep.subr.bf16.mxu0 %v1370
  %1899 = vmatpush2.bf16.msra.mxu0 %v1369
  %1900 = vmatprep.subr.bf16.mxu0 %v1366
  %1901 = vmatpush2.bf16.msra.mxu0 %v1365
  %1902 = vmatprep.subr.bf16.mxu0 %v1362
  %1903 = vmatpush2.bf16.msra.mxu0 %v1361
  %1904 = vmatprep.subr.bf16.mxu0 %v1358
  %1905 = vmatpush2.bf16.msra.mxu0 %v1357
  %1906 = vmatprep.subr.bf16.mxu0 %v1354
  %1907 = vmatpush2.bf16.msra.mxu0 %v1353
  %1908 = vmatprep.mubr.bf16.mxu0 %v378
  %1909 = vmatmul.mubr.bf16.gmra.mxu0 %v377
  %v1910 = vpop.f32.mrf.mxu0
  %v1911 = vadd.f32 %v1868, %v1910
  %v1912 = vpop.f32.mrf.mxu0
  %v1913 = vadd.f32 %v1870, %v1912
  %v1914 = vpop.f32.mrf.mxu0
  %v1915 = vadd.f32 %v1872, %v1914
  %v1916 = vpop.f32.mrf.mxu0
  %v1917 = vadd.f32 %v1874, %v1916
  %1918 = vdwg.mxu0
  %1919 = vmatprep.subr.bf16.mxu0 %v1414
  %1920 = vmatpush1.bf16.msra.mxu0 %v1413
  %1921 = vmatprep.subr.bf16.mxu0 %v1410
  %1922 = vmatpush1.bf16.msra.mxu0 %v1409
  %1923 = vmatprep.subr.bf16.mxu0 %v1406
  %1924 = vmatpush1.bf16.msra.mxu0 %v1405
  %1925 = vmatprep.subr.bf16.mxu0 %v1402
  %1926 = vmatpush1.bf16.msra.mxu0 %v1401
  %1927 = vmatprep.subr.bf16.mxu0 %v1398
  %1928 = vmatpush1.bf16.msra.mxu0 %v1397
  %1929 = vmatprep.subr.bf16.mxu0 %v1394
  %1930 = vmatpush1.bf16.msra.mxu0 %v1393
  %1931 = vmatprep.subr.bf16.mxu0 %v1390
  %1932 = vmatpush1.bf16.msra.mxu0 %v1389
  %1933 = vmatprep.subr.bf16.mxu0 %v1386
  %1934 = vmatpush1.bf16.msra.mxu0 %v1385
  %1935 = vmatprep.subr.bf16.mxu0 %v1446
  %1936 = vmatpush2.bf16.msra.mxu0 %v1445
  %1937 = vmatprep.subr.bf16.mxu0 %v1442
  %1938 = vmatpush2.bf16.msra.mxu0 %v1441
  %1939 = vmatprep.subr.bf16.mxu0 %v1438
  %1940 = vmatpush2.bf16.msra.mxu0 %v1437
  %1941 = vmatprep.subr.bf16.mxu0 %v1434
  %1942 = vmatpush2.bf16.msra.mxu0 %v1433
  %1943 = vmatprep.subr.bf16.mxu0 %v1430
  %1944 = vmatpush2.bf16.msra.mxu0 %v1429
  %1945 = vmatprep.subr.bf16.mxu0 %v1426
  %1946 = vmatpush2.bf16.msra.mxu0 %v1425
  %1947 = vmatprep.subr.bf16.mxu0 %v1422
  %1948 = vmatpush2.bf16.msra.mxu0 %v1421
  %1949 = vmatprep.subr.bf16.mxu0 %v1418
  %1950 = vmatpush2.bf16.msra.mxu0 %v1417
  %1951 = vmatprep.mubr.bf16.mxu0 %v380
  %1952 = vmatmul.mubr.bf16.gmra.mxu0 %v379
  %v1953 = vpop.f32.mrf.mxu0
  %v1954 = vadd.f32 %v1911, %v1953
  %v1955 = vpop.f32.mrf.mxu0
  %v1956 = vadd.f32 %v1913, %v1955
  %v1957 = vpop.f32.mrf.mxu0
  %v1958 = vadd.f32 %v1915, %v1957
  %v1959 = vpop.f32.mrf.mxu0
  %v1960 = vadd.f32 %v1917, %v1959
  %1961 = vdwg.mxu0
  %1962 = vmatprep.subr.bf16.mxu0 %v1478
  %1963 = vmatpush1.bf16.msra.mxu0 %v1477
  %1964 = vmatprep.subr.bf16.mxu0 %v1474
  %1965 = vmatpush1.bf16.msra.mxu0 %v1473
  %1966 = vmatprep.subr.bf16.mxu0 %v1470
  %1967 = vmatpush1.bf16.msra.mxu0 %v1469
  %1968 = vmatprep.subr.bf16.mxu0 %v1466
  %1969 = vmatpush1.bf16.msra.mxu0 %v1465
  %1970 = vmatprep.subr.bf16.mxu0 %v1462
  %1971 = vmatpush1.bf16.msra.mxu0 %v1461
  %1972 = vmatprep.subr.bf16.mxu0 %v1458
  %1973 = vmatpush1.bf16.msra.mxu0 %v1457
  %1974 = vmatprep.subr.bf16.mxu0 %v1454
  %1975 = vmatpush1.bf16.msra.mxu0 %v1453
  %1976 = vmatprep.subr.bf16.mxu0 %v1450
  %1977 = vmatpush1.bf16.msra.mxu0 %v1449
  %1978 = vmatprep.subr.bf16.mxu0 %v1510
  %1979 = vmatpush2.bf16.msra.mxu0 %v1509
  %1980 = vmatprep.subr.bf16.mxu0 %v1506
  %1981 = vmatpush2.bf16.msra.mxu0 %v1505
  %1982 = vmatprep.subr.bf16.mxu0 %v1502
  %1983 = vmatpush2.bf16.msra.mxu0 %v1501
  %1984 = vmatprep.subr.bf16.mxu0 %v1498
  %1985 = vmatpush2.bf16.msra.mxu0 %v1497
  %1986 = vmatprep.subr.bf16.mxu0 %v1494
  %1987 = vmatpush2.bf16.msra.mxu0 %v1493
  %1988 = vmatprep.subr.bf16.mxu0 %v1490
  %1989 = vmatpush2.bf16.msra.mxu0 %v1489
  %1990 = vmatprep.subr.bf16.mxu0 %v1486
  %1991 = vmatpush2.bf16.msra.mxu0 %v1485
  %1992 = vmatprep.subr.bf16.mxu0 %v1482
  %1993 = vmatpush2.bf16.msra.mxu0 %v1481
  %1994 = vmatprep.mubr.bf16.mxu0 %v382
  %1995 = vmatmul.mubr.bf16.gmra.mxu0 %v381
  %v1996 = vpop.f32.mrf.mxu0
  %v1997 = vadd.f32 %v1954, %v1996
  %v1998 = vpop.f32.mrf.mxu0
  %v1999 = vadd.f32 %v1956, %v1998
  %v2000 = vpop.f32.mrf.mxu0
  %v2001 = vadd.f32 %v1958, %v2000
  %v2002 = vpop.f32.mrf.mxu0
  %v2003 = vadd.f32 %v1960, %v2002
  %2004 = vdwg.mxu0
  %2005 = vmatprep.subr.bf16.mxu0 %v1542
  %2006 = vmatpush1.bf16.msra.mxu0 %v1541
  %2007 = vmatprep.subr.bf16.mxu0 %v1538
  %2008 = vmatpush1.bf16.msra.mxu0 %v1537
  %2009 = vmatprep.subr.bf16.mxu0 %v1534
  %2010 = vmatpush1.bf16.msra.mxu0 %v1533
  %2011 = vmatprep.subr.bf16.mxu0 %v1530
  %2012 = vmatpush1.bf16.msra.mxu0 %v1529
  %2013 = vmatprep.subr.bf16.mxu0 %v1526
  %2014 = vmatpush1.bf16.msra.mxu0 %v1525
  %2015 = vmatprep.subr.bf16.mxu0 %v1522
  %2016 = vmatpush1.bf16.msra.mxu0 %v1521
  %2017 = vmatprep.subr.bf16.mxu0 %v1518
  %2018 = vmatpush1.bf16.msra.mxu0 %v1517
  %2019 = vmatprep.subr.bf16.mxu0 %v1514
  %2020 = vmatpush1.bf16.msra.mxu0 %v1513
  %2021 = vmatprep.subr.bf16.mxu0 0
  %2022 = vmatpush2.bf16.msra.mxu0 0
  %2023 = vmatprep.subr.bf16.mxu0 0
  %2024 = vmatpush2.bf16.msra.mxu0 0
  %2025 = vmatprep.subr.bf16.mxu0 0
  %2026 = vmatpush2.bf16.msra.mxu0 0
  %2027 = vmatprep.subr.bf16.mxu0 0
  %2028 = vmatpush2.bf16.msra.mxu0 0
  %2029 = vmatprep.subr.bf16.mxu0 0
  %2030 = vmatpush2.bf16.msra.mxu0 0
  %2031 = vmatprep.subr.bf16.mxu0 0
  %2032 = vmatpush2.bf16.msra.mxu0 0
  %2033 = vmatprep.subr.bf16.mxu0 0
  %2034 = vmatpush2.bf16.msra.mxu0 0
  %2035 = vmatprep.subr.bf16.mxu0 0
  %2036 = vmatpush2.bf16.msra.mxu0 0
  %2037 = vmatprep.mubr.bf16.mxu0 0
  %2038 = vmatmul.mubr.bf16.gmra.mxu0 %v383
  %v2039 = vpop.f32.mrf.mxu0
  %v2040 = vadd.f32 %v1997, %v2039
  %v2041 = vpop.f32.mrf.mxu0
  %v2042 = vadd.f32 %v1999, %v2041
  %v2043 = vpop.f32.mrf.mxu0
  %v2044 = vadd.f32 %v2001, %v2043
  %v2045 = vpop.f32.mrf.mxu0
  %v2046 = vadd.f32 %v2003, %v2045
  %2047 = vdwg.mxu0
  %2048 = vmatprep.subr.bf16.mxu0 %v1288
  %2049 = vmatpush1.bf16.msra.mxu0 %v1287
  %2050 = vmatprep.subr.bf16.mxu0 %v1284
  %2051 = vmatpush1.bf16.msra.mxu0 %v1283
  %2052 = vmatprep.subr.bf16.mxu0 %v1280
  %2053 = vmatpush1.bf16.msra.mxu0 %v1279
  %2054 = vmatprep.subr.bf16.mxu0 %v1276
  %2055 = vmatpush1.bf16.msra.mxu0 %v1275
  %2056 = vmatprep.subr.bf16.mxu0 %v1272
  %2057 = vmatpush1.bf16.msra.mxu0 %v1271
  %2058 = vmatprep.subr.bf16.mxu0 %v1268
  %2059 = vmatpush1.bf16.msra.mxu0 %v1267
  %2060 = vmatprep.subr.bf16.mxu0 %v1264
  %2061 = vmatpush1.bf16.msra.mxu0 %v1263
  %2062 = vmatprep.subr.bf16.mxu0 %v1260
  %2063 = vmatpush1.bf16.msra.mxu0 %v1259
  %2064 = vmatprep.subr.bf16.mxu0 %v1320
  %2065 = vmatpush2.bf16.msra.mxu0 %v1319
  %2066 = vmatprep.subr.bf16.mxu0 %v1316
  %2067 = vmatpush2.bf16.msra.mxu0 %v1315
  %2068 = vmatprep.subr.bf16.mxu0 %v1312
  %2069 = vmatpush2.bf16.msra.mxu0 %v1311
  %2070 = vmatprep.subr.bf16.mxu0 %v1308
  %2071 = vmatpush2.bf16.msra.mxu0 %v1307
  %2072 = vmatprep.subr.bf16.mxu0 %v1304
  %2073 = vmatpush2.bf16.msra.mxu0 %v1303
  %2074 = vmatprep.subr.bf16.mxu0 %v1300
  %2075 = vmatpush2.bf16.msra.mxu0 %v1299
  %2076 = vmatprep.subr.bf16.mxu0 %v1296
  %2077 = vmatpush2.bf16.msra.mxu0 %v1295
  %2078 = vmatprep.subr.bf16.mxu0 %v1292
  %2079 = vmatpush2.bf16.msra.mxu0 %v1291
  %2080 = vmatprep.mubr.bf16.mxu0 %v376
  %2081 = vmatmul.mubr.bf16.gmra.mxu0 %v375
  %v2082 = vpop.f32.mrf.mxu0
  %v2083 = vadd.f32 %v338, %v2082
  %v2084 = vpop.f32.mrf.mxu0
  %v2085 = vadd.f32 %v342, %v2084
  %v2086 = vpop.f32.mrf.mxu0
  %v2087 = vadd.f32 %v338, %v2086
  %v2088 = vpop.f32.mrf.mxu0
  %v2089 = vadd.f32 %v342, %v2088
  %2090 = vdwg.mxu0
  %2091 = vmatprep.subr.bf16.mxu0 %v1352
  %2092 = vmatpush1.bf16.msra.mxu0 %v1351
  %2093 = vmatprep.subr.bf16.mxu0 %v1348
  %2094 = vmatpush1.bf16.msra.mxu0 %v1347
  %2095 = vmatprep.subr.bf16.mxu0 %v1344
  %2096 = vmatpush1.bf16.msra.mxu0 %v1343
  %2097 = vmatprep.subr.bf16.mxu0 %v1340
  %2098 = vmatpush1.bf16.msra.mxu0 %v1339
  %2099 = vmatprep.subr.bf16.mxu0 %v1336
  %2100 = vmatpush1.bf16.msra.mxu0 %v1335
  %2101 = vmatprep.subr.bf16.mxu0 %v1332
  %2102 = vmatpush1.bf16.msra.mxu0 %v1331
  %2103 = vmatprep.subr.bf16.mxu0 %v1328
  %2104 = vmatpush1.bf16.msra.mxu0 %v1327
  %2105 = vmatprep.subr.bf16.mxu0 %v1324
  %2106 = vmatpush1.bf16.msra.mxu0 %v1323
  %2107 = vmatprep.subr.bf16.mxu0 %v1384
  %2108 = vmatpush2.bf16.msra.mxu0 %v1383
  %2109 = vmatprep.subr.bf16.mxu0 %v1380
  %2110 = vmatpush2.bf16.msra.mxu0 %v1379
  %2111 = vmatprep.subr.bf16.mxu0 %v1376
  %2112 = vmatpush2.bf16.msra.mxu0 %v1375
  %2113 = vmatprep.subr.bf16.mxu0 %v1372
  %2114 = vmatpush2.bf16.msra.mxu0 %v1371
  %2115 = vmatprep.subr.bf16.mxu0 %v1368
  %2116 = vmatpush2.bf16.msra.mxu0 %v1367
  %2117 = vmatprep.subr.bf16.mxu0 %v1364
  %2118 = vmatpush2.bf16.msra.mxu0 %v1363
  %2119 = vmatprep.subr.bf16.mxu0 %v1360
  %2120 = vmatpush2.bf16.msra.mxu0 %v1359
  %2121 = vmatprep.subr.bf16.mxu0 %v1356
  %2122 = vmatpush2.bf16.msra.mxu0 %v1355
  %2123 = vmatprep.mubr.bf16.mxu0 %v378
  %2124 = vmatmul.mubr.bf16.gmra.mxu0 %v377
  %v2125 = vpop.f32.mrf.mxu0
  %v2126 = vadd.f32 %v2083, %v2125
  %v2127 = vpop.f32.mrf.mxu0
  %v2128 = vadd.f32 %v2085, %v2127
  %v2129 = vpop.f32.mrf.mxu0
  %v2130 = vadd.f32 %v2087, %v2129
  %v2131 = vpop.f32.mrf.mxu0
  %v2132 = vadd.f32 %v2089, %v2131
  %2133 = vdwg.mxu0
  %2134 = vmatprep.subr.bf16.mxu0 %v1416
  %2135 = vmatpush1.bf16.msra.mxu0 %v1415
  %2136 = vmatprep.subr.bf16.mxu0 %v1412
  %2137 = vmatpush1.bf16.msra.mxu0 %v1411
  %2138 = vmatprep.subr.bf16.mxu0 %v1408
  %2139 = vmatpush1.bf16.msra.mxu0 %v1407
  %2140 = vmatprep.subr.bf16.mxu0 %v1404
  %2141 = vmatpush1.bf16.msra.mxu0 %v1403
  %2142 = vmatprep.subr.bf16.mxu0 %v1400
  %2143 = vmatpush1.bf16.msra.mxu0 %v1399
  %2144 = vmatprep.subr.bf16.mxu0 %v1396
  %2145 = vmatpush1.bf16.msra.mxu0 %v1395
  %2146 = vmatprep.subr.bf16.mxu0 %v1392
  %2147 = vmatpush1.bf16.msra.mxu0 %v1391
  %2148 = vmatprep.subr.bf16.mxu0 %v1388
  %2149 = vmatpush1.bf16.msra.mxu0 %v1387
  %2150 = vmatprep.subr.bf16.mxu0 %v1448
  %2151 = vmatpush2.bf16.msra.mxu0 %v1447
  %2152 = vmatprep.subr.bf16.mxu0 %v1444
  %2153 = vmatpush2.bf16.msra.mxu0 %v1443
  %2154 = vmatprep.subr.bf16.mxu0 %v1440
  %2155 = vmatpush2.bf16.msra.mxu0 %v1439
  %2156 = vmatprep.subr.bf16.mxu0 %v1436
  %2157 = vmatpush2.bf16.msra.mxu0 %v1435
  %2158 = vmatprep.subr.bf16.mxu0 %v1432
  %2159 = vmatpush2.bf16.msra.mxu0 %v1431
  %2160 = vmatprep.subr.bf16.mxu0 %v1428
  %2161 = vmatpush2.bf16.msra.mxu0 %v1427
  %2162 = vmatprep.subr.bf16.mxu0 %v1424
  %2163 = vmatpush2.bf16.msra.mxu0 %v1423
  %2164 = vmatprep.subr.bf16.mxu0 %v1420
  %2165 = vmatpush2.bf16.msra.mxu0 %v1419
  %2166 = vmatprep.mubr.bf16.mxu0 %v380
  %2167 = vmatmul.mubr.bf16.gmra.mxu0 %v379
  %v2168 = vpop.f32.mrf.mxu0
  %v2169 = vadd.f32 %v2126, %v2168
  %v2170 = vpop.f32.mrf.mxu0
  %v2171 = vadd.f32 %v2128, %v2170
  %v2172 = vpop.f32.mrf.mxu0
  %v2173 = vadd.f32 %v2130, %v2172
  %v2174 = vpop.f32.mrf.mxu0
  %v2175 = vadd.f32 %v2132, %v2174
  %2176 = vdwg.mxu0
  %2177 = vmatprep.subr.bf16.mxu0 %v1480
  %2178 = vmatpush1.bf16.msra.mxu0 %v1479
  %2179 = vmatprep.subr.bf16.mxu0 %v1476
  %2180 = vmatpush1.bf16.msra.mxu0 %v1475
  %2181 = vmatprep.subr.bf16.mxu0 %v1472
  %2182 = vmatpush1.bf16.msra.mxu0 %v1471
  %2183 = vmatprep.subr.bf16.mxu0 %v1468
  %2184 = vmatpush1.bf16.msra.mxu0 %v1467
  %2185 = vmatprep.subr.bf16.mxu0 %v1464
  %2186 = vmatpush1.bf16.msra.mxu0 %v1463
  %2187 = vmatprep.subr.bf16.mxu0 %v1460
  %2188 = vmatpush1.bf16.msra.mxu0 %v1459
  %2189 = vmatprep.subr.bf16.mxu0 %v1456
  %2190 = vmatpush1.bf16.msra.mxu0 %v1455
  %2191 = vmatprep.subr.bf16.mxu0 %v1452
  %2192 = vmatpush1.bf16.msra.mxu0 %v1451
  %2193 = vmatprep.subr.bf16.mxu0 %v1512
  %2194 = vmatpush2.bf16.msra.mxu0 %v1511
  %2195 = vmatprep.subr.bf16.mxu0 %v1508
  %2196 = vmatpush2.bf16.msra.mxu0 %v1507
  %2197 = vmatprep.subr.bf16.mxu0 %v1504
  %2198 = vmatpush2.bf16.msra.mxu0 %v1503
  %2199 = vmatprep.subr.bf16.mxu0 %v1500
  %2200 = vmatpush2.bf16.msra.mxu0 %v1499
  %2201 = vmatprep.subr.bf16.mxu0 %v1496
  %2202 = vmatpush2.bf16.msra.mxu0 %v1495
  %2203 = vmatprep.subr.bf16.mxu0 %v1492
  %2204 = vmatpush2.bf16.msra.mxu0 %v1491
  %2205 = vmatprep.subr.bf16.mxu0 %v1488
  %2206 = vmatpush2.bf16.msra.mxu0 %v1487
  %2207 = vmatprep.subr.bf16.mxu0 %v1484
  %2208 = vmatpush2.bf16.msra.mxu0 %v1483
  %2209 = vmatprep.mubr.bf16.mxu0 %v382
  %2210 = vmatmul.mubr.bf16.gmra.mxu0 %v381
  %v2211 = vpop.f32.mrf.mxu0
  %v2212 = vadd.f32 %v2169, %v2211
  %v2213 = vpop.f32.mrf.mxu0
  %v2214 = vadd.f32 %v2171, %v2213
  %v2215 = vpop.f32.mrf.mxu0
  %v2216 = vadd.f32 %v2173, %v2215
  %v2217 = vpop.f32.mrf.mxu0
  %v2218 = vadd.f32 %v2175, %v2217
  %2219 = vdwg.mxu0
  %2220 = vmatprep.subr.bf16.mxu0 %v1544
  %2221 = vmatpush1.bf16.msra.mxu0 %v1543
  %2222 = vmatprep.subr.bf16.mxu0 %v1540
  %2223 = vmatpush1.bf16.msra.mxu0 %v1539
  %2224 = vmatprep.subr.bf16.mxu0 %v1536
  %2225 = vmatpush1.bf16.msra.mxu0 %v1535
  %2226 = vmatprep.subr.bf16.mxu0 %v1532
  %2227 = vmatpush1.bf16.msra.mxu0 %v1531
  %2228 = vmatprep.subr.bf16.mxu0 %v1528
  %2229 = vmatpush1.bf16.msra.mxu0 %v1527
  %2230 = vmatprep.subr.bf16.mxu0 %v1524
  %2231 = vmatpush1.bf16.msra.mxu0 %v1523
  %2232 = vmatprep.subr.bf16.mxu0 %v1520
  %2233 = vmatpush1.bf16.msra.mxu0 %v1519
  %2234 = vmatprep.subr.bf16.mxu0 %v1516
  %2235 = vmatpush1.bf16.msra.mxu0 %v1515
  %2236 = vmatprep.subr.bf16.mxu0 0
  %2237 = vmatpush2.bf16.msra.mxu0 0
  %2238 = vmatprep.subr.bf16.mxu0 0
  %2239 = vmatpush2.bf16.msra.mxu0 0
  %2240 = vmatprep.subr.bf16.mxu0 0
  %2241 = vmatpush2.bf16.msra.mxu0 0
  %2242 = vmatprep.subr.bf16.mxu0 0
  %2243 = vmatpush2.bf16.msra.mxu0 0
  %2244 = vmatprep.subr.bf16.mxu0 0
  %2245 = vmatpush2.bf16.msra.mxu0 0
  %2246 = vmatprep.subr.bf16.mxu0 0
  %2247 = vmatpush2.bf16.msra.mxu0 0
  %2248 = vmatprep.subr.bf16.mxu0 0
  %2249 = vmatpush2.bf16.msra.mxu0 0
  %2250 = vmatprep.subr.bf16.mxu0 0
  %2251 = vmatpush2.bf16.msra.mxu0 0
  %2252 = vmatprep.mubr.bf16.mxu0 0
  %2253 = vmatmul.mubr.bf16.gmra.mxu0 %v383
  %v2254 = vpop.f32.mrf.mxu0
  %v2255 = vadd.f32 %v2212, %v2254
  %v2256 = vpop.f32.mrf.mxu0
  %v2257 = vadd.f32 %v2214, %v2256
  %v2258 = vpop.f32.mrf.mxu0
  %v2259 = vadd.f32 %v2216, %v2258
  %v2260 = vpop.f32.mrf.mxu0
  %v2261 = vadd.f32 %v2218, %v2260
  %2262 = vdwg.mxu0
  %v2263 = vmax.f32 %v2040, 0.0
  %v2264 = vmax.f32 %v2042, 0.0
  %v2265 = vmax.f32 %v2255, 0.0
  %v2266 = vmax.f32 %v2257, 0.0
  %v2267 = vmax.f32 %v2044, 0.0
  %v2268 = vmax.f32 %v2046, 0.0
  %v2269 = vmax.f32 %v2259, 0.0
  %v2270 = vmax.f32 %v2261, 0.0
  %v2271 = vpack.c.bf16 %v2267, %v2263
  %v2272 = vpack.c.bf16 %v2268, %v2264
  %v2273 = vpack.c.bf16 %v2269, %v2265
  %v2274 = vpack.c.bf16 %v2270, %v2266
  %v2275 = vld [vmem:[%s3] sm:$0xff]
  %v2276 = vld [vmem:[%s3 + $0x8] sm:$0xff]
  %v2277 = vld [vmem:[%s3 + $0x10] sm:$0xff]
  %v2278 = vld [vmem:[%s3 + $0x18] sm:$0xff]
  %v2279 = vld [vmem:[%s3 + $0x20] sm:$0xff]
  %v2280 = vld [vmem:[%s3 + $0x28] sm:$0xff]
  %v2281 = vld [vmem:[%s3 + $0x30] sm:$0xff]
  %v2282 = vld [vmem:[%s3 + $0x38] sm:$0xff]
  %v2283 = vld [vmem:[%s3 + $0x40] sm:$0xff]
  %v2284 = vld [vmem:[%s3 + $0x48] sm:$0xff]
  %v2285 = vld [vmem:[%s3 + $0x50] sm:$0xff]
  %v2286 = vld [vmem:[%s3 + $0x58] sm:$0xff]
  %v2287 = vld [vmem:[%s3 + $0x60] sm:$0xff]
  %v2288 = vld [vmem:[%s3 + $0x68] sm:$0xff]
  %v2289 = vld [vmem:[%s3 + $0x70] sm:$0xff]
  %v2290 = vld [vmem:[%s3 + $0x78] sm:$0xff]
  %v2291 = vld [vmem:[%s3 + $0x80] sm:$0xff]
  %v2292 = vld [vmem:[%s3 + $0x88] sm:$0xff]
  %v2293 = vld [vmem:[%s3 + $0x90] sm:$0xff]
  %v2294 = vld [vmem:[%s3 + $0x98] sm:$0xff]
  %v2295 = vld [vmem:[%s3 + $0xa0] sm:$0xff]
  %v2296 = vld [vmem:[%s3 + $0xa8] sm:$0xff]
  %v2297 = vld [vmem:[%s3 + $0xb0] sm:$0xff]
  %v2298 = vld [vmem:[%s3 + $0xb8] sm:$0xff]
  %v2299 = vld [vmem:[%s3 + $0xc0] sm:$0xff]
  %v2300 = vld [vmem:[%s3 + $0xc8] sm:$0xff]
  %v2301 = vld [vmem:[%s3 + $0xd0] sm:$0xff]
  %v2302 = vld [vmem:[%s3 + $0xd8] sm:$0xff]
  %v2303 = vld [vmem:[%s3 + $0xe0] sm:$0xff]
  %v2304 = vld [vmem:[%s3 + $0xe8] sm:$0xff]
  %v2305 = vld [vmem:[%s3 + $0xf0] sm:$0xff]
  %v2306 = vld [vmem:[%s3 + $0xf8] sm:$0xff]
  %v2307 = vld [vmem:[%s3 + $0x100] sm:$0xff]
  %v2308 = vld [vmem:[%s3 + $0x108] sm:$0xff]
  %v2309 = vld [vmem:[%s3 + $0x110] sm:$0xff]
  %v2310 = vld [vmem:[%s3 + $0x118] sm:$0xff]
  %v2311 = vld [vmem:[%s3 + $0x120] sm:$0xff]
  %v2312 = vld [vmem:[%s3 + $0x128] sm:$0xff]
  %v2313 = vld [vmem:[%s3 + $0x130] sm:$0xff]
  %v2314 = vld [vmem:[%s3 + $0x138] sm:$0xff]
  %v2315 = vld [vmem:[%s3 + $0x140] sm:$0xff]
  %v2316 = vld [vmem:[%s3 + $0x148] sm:$0xff]
  %v2317 = vld [vmem:[%s3 + $0x150] sm:$0xff]
  %v2318 = vld [vmem:[%s3 + $0x158] sm:$0xff]
  %v2319 = vld [vmem:[%s3 + $0x160] sm:$0xff]
  %v2320 = vld [vmem:[%s3 + $0x168] sm:$0xff]
  %v2321 = vld [vmem:[%s3 + $0x170] sm:$0xff]
  %v2322 = vld [vmem:[%s3 + $0x178] sm:$0xff]
  %v2323 = vld [vmem:[%s3 + $0x180] sm:$0xff]
  %v2324 = vld [vmem:[%s3 + $0x188] sm:$0xff]
  %v2325 = vld [vmem:[%s3 + $0x190] sm:$0xff]
  %v2326 = vld [vmem:[%s3 + $0x198] sm:$0xff]
  %v2327 = vld [vmem:[%s3 + $0x1a0] sm:$0xff]
  %v2328 = vld [vmem:[%s3 + $0x1a8] sm:$0xff]
  %v2329 = vld [vmem:[%s3 + $0x1b0] sm:$0xff]
  %v2330 = vld [vmem:[%s3 + $0x1b8] sm:$0xff]
  %v2331 = vld [vmem:[%s3 + $0x1c0] sm:$0xff]
  %v2332 = vld [vmem:[%s3 + $0x1c8] sm:$0xff]
  %v2333 = vld [vmem:[%s3 + $0x1d0] sm:$0xff]
  %v2334 = vld [vmem:[%s3 + $0x1d8] sm:$0xff]
  %v2335 = vld [vmem:[%s3 + $0x1e0] sm:$0xff]
  %v2336 = vld [vmem:[%s3 + $0x1e8] sm:$0xff]
  %v2337 = vld [vmem:[%s3 + $0x1f0] sm:$0xff]
  %v2338 = vld [vmem:[%s3 + $0x1f8] sm:$0xff]
  %v2339 = vld [vmem:[%s4] sm:$0x3]
  %v2341 = vlaneseq
  %v2342 = vshrl.u32 %v2341, 7
  %v2343 = vsub.s32 0, %v2342
  %v2344 = vrot.slane %v2339, %v2343
  %v2345 = vlaneseq
  %v2346 = vshrl.u32 %v2345, 7
  %v2347 = vsub.s32 1, %v2346
  %v2348 = vrot.slane %v2339, %v2347
  %v2415 = vunpack.c.l.b16 %v2275
  %v2416 = vunpack.c.h.b16 %v2275
  %v2417 = vunpack.c.l.b16 %v2276
  %v2418 = vunpack.c.h.b16 %v2276
  %v2419 = vunpack.c.l.b16 %v2277
  %v2420 = vunpack.c.h.b16 %v2277
  %v2421 = vunpack.c.l.b16 %v2278
  %v2422 = vunpack.c.h.b16 %v2278
  %v2423 = vunpack.c.l.b16 %v2279
  %v2424 = vunpack.c.h.b16 %v2279
  %v2425 = vunpack.c.l.b16 %v2280
  %v2426 = vunpack.c.h.b16 %v2280
  %v2427 = vunpack.c.l.b16 %v2281
  %v2428 = vunpack.c.h.b16 %v2281
  %v2429 = vunpack.c.l.b16 %v2282
  %v2430 = vunpack.c.h.b16 %v2282
  %v2431 = vunpack.c.l.b16 %v2283
  %v2432 = vunpack.c.h.b16 %v2283
  %v2433 = vunpack.c.l.b16 %v2284
  %v2434 = vunpack.c.h.b16 %v2284
  %v2435 = vunpack.c.l.b16 %v2285
  %v2436 = vunpack.c.h.b16 %v2285
  %v2437 = vunpack.c.l.b16 %v2286
  %v2438 = vunpack.c.h.b16 %v2286
  %v2439 = vunpack.c.l.b16 %v2287
  %v2440 = vunpack.c.h.b16 %v2287
  %v2441 = vunpack.c.l.b16 %v2288
  %v2442 = vunpack.c.h.b16 %v2288
  %v2443 = vunpack.c.l.b16 %v2289
  %v2444 = vunpack.c.h.b16 %v2289
  %v2445 = vunpack.c.l.b16 %v2290
  %v2446 = vunpack.c.h.b16 %v2290
  %v2447 = vunpack.c.l.b16 %v2291
  %v2448 = vunpack.c.h.b16 %v2291
  %v2449 = vunpack.c.l.b16 %v2292
  %v2450 = vunpack.c.h.b16 %v2292
  %v2451 = vunpack.c.l.b16 %v2293
  %v2452 = vunpack.c.h.b16 %v2293
  %v2453 = vunpack.c.l.b16 %v2294
  %v2454 = vunpack.c.h.b16 %v2294
  %v2455 = vunpack.c.l.b16 %v2295
  %v2456 = vunpack.c.h.b16 %v2295
  %v2457 = vunpack.c.l.b16 %v2296
  %v2458 = vunpack.c.h.b16 %v2296
  %v2459 = vunpack.c.l.b16 %v2297
  %v2460 = vunpack.c.h.b16 %v2297
  %v2461 = vunpack.c.l.b16 %v2298
  %v2462 = vunpack.c.h.b16 %v2298
  %v2463 = vunpack.c.l.b16 %v2299
  %v2464 = vunpack.c.h.b16 %v2299
  %v2465 = vunpack.c.l.b16 %v2300
  %v2466 = vunpack.c.h.b16 %v2300
  %v2467 = vunpack.c.l.b16 %v2301
  %v2468 = vunpack.c.h.b16 %v2301
  %v2469 = vunpack.c.l.b16 %v2302
  %v2470 = vunpack.c.h.b16 %v2302
  %v2471 = vunpack.c.l.b16 %v2303
  %v2472 = vunpack.c.h.b16 %v2303
  %v2473 = vunpack.c.l.b16 %v2304
  %v2474 = vunpack.c.h.b16 %v2304
  %v2475 = vunpack.c.l.b16 %v2305
  %v2476 = vunpack.c.h.b16 %v2305
  %v2477 = vunpack.c.l.b16 %v2306
  %v2478 = vunpack.c.h.b16 %v2306
  %v2479 = vunpack.c.l.b16 %v2307
  %v2480 = vunpack.c.h.b16 %v2307
  %v2481 = vunpack.c.l.b16 %v2308
  %v2482 = vunpack.c.h.b16 %v2308
  %v2483 = vunpack.c.l.b16 %v2309
  %v2484 = vunpack.c.h.b16 %v2309
  %v2485 = vunpack.c.l.b16 %v2310
  %v2486 = vunpack.c.h.b16 %v2310
  %v2487 = vunpack.c.l.b16 %v2311
  %v2488 = vunpack.c.h.b16 %v2311
  %v2489 = vunpack.c.l.b16 %v2312
  %v2490 = vunpack.c.h.b16 %v2312
  %v2491 = vunpack.c.l.b16 %v2313
  %v2492 = vunpack.c.h.b16 %v2313
  %v2493 = vunpack.c.l.b16 %v2314
  %v2494 = vunpack.c.h.b16 %v2314
  %v2495 = vunpack.c.l.b16 %v2315
  %v2496 = vunpack.c.h.b16 %v2315
  %v2497 = vunpack.c.l.b16 %v2316
  %v2498 = vunpack.c.h.b16 %v2316
  %v2499 = vunpack.c.l.b16 %v2317
  %v2500 = vunpack.c.h.b16 %v2317
  %v2501 = vunpack.c.l.b16 %v2318
  %v2502 = vunpack.c.h.b16 %v2318
  %v2503 = vunpack.c.l.b16 %v2319
  %v2504 = vunpack.c.h.b16 %v2319
  %v2505 = vunpack.c.l.b16 %v2320
  %v2506 = vunpack.c.h.b16 %v2320
  %v2507 = vunpack.c.l.b16 %v2321
  %v2508 = vunpack.c.h.b16 %v2321
  %v2509 = vunpack.c.l.b16 %v2322
  %v2510 = vunpack.c.h.b16 %v2322
  %v2511 = vunpack.c.l.b16 %v2323
  %v2512 = vunpack.c.h.b16 %v2323
  %v2513 = vunpack.c.l.b16 %v2324
  %v2514 = vunpack.c.h.b16 %v2324
  %v2515 = vunpack.c.l.b16 %v2325
  %v2516 = vunpack.c.h.b16 %v2325
  %v2517 = vunpack.c.l.b16 %v2326
  %v2518 = vunpack.c.h.b16 %v2326
  %v2519 = vunpack.c.l.b16 %v2327
  %v2520 = vunpack.c.h.b16 %v2327
  %v2521 = vunpack.c.l.b16 %v2328
  %v2522 = vunpack.c.h.b16 %v2328
  %v2523 = vunpack.c.l.b16 %v2329
  %v2524 = vunpack.c.h.b16 %v2329
  %v2525 = vunpack.c.l.b16 %v2330
  %v2526 = vunpack.c.h.b16 %v2330
  %v2527 = vunpack.c.l.b16 %v2331
  %v2528 = vunpack.c.h.b16 %v2331
  %v2529 = vunpack.c.l.b16 %v2332
  %v2530 = vunpack.c.h.b16 %v2332
  %v2531 = vunpack.c.l.b16 %v2333
  %v2532 = vunpack.c.h.b16 %v2333
  %v2533 = vunpack.c.l.b16 %v2334
  %v2534 = vunpack.c.h.b16 %v2334
  %v2535 = vunpack.c.l.b16 %v2335
  %v2536 = vunpack.c.h.b16 %v2335
  %v2537 = vunpack.c.l.b16 %v2336
  %v2538 = vunpack.c.h.b16 %v2336
  %v2539 = vunpack.c.l.b16 %v2337
  %v2540 = vunpack.c.h.b16 %v2337
  %v2541 = vunpack.c.l.b16 %v2338
  %v2542 = vunpack.c.h.b16 %v2338
  %v2543 = vpack.c.b16 %v2417, %v2415
  %v2544 = vpack.c.b16 %v2418, %v2416
  %v2545 = vpack.c.b16 %v2421, %v2419
  %v2546 = vpack.c.b16 %v2422, %v2420
  %v2547 = vpack.c.b16 %v2425, %v2423
  %v2548 = vpack.c.b16 %v2426, %v2424
  %v2549 = vpack.c.b16 %v2429, %v2427
  %v2550 = vpack.c.b16 %v2430, %v2428
  %v2551 = vpack.c.b16 %v2433, %v2431
  %v2552 = vpack.c.b16 %v2434, %v2432
  %v2553 = vpack.c.b16 %v2437, %v2435
  %v2554 = vpack.c.b16 %v2438, %v2436
  %v2555 = vpack.c.b16 %v2441, %v2439
  %v2556 = vpack.c.b16 %v2442, %v2440
  %v2557 = vpack.c.b16 %v2445, %v2443
  %v2558 = vpack.c.b16 %v2446, %v2444
  %v2559 = vpack.c.b16 %v2449, %v2447
  %v2560 = vpack.c.b16 %v2450, %v2448
  %v2561 = vpack.c.b16 %v2453, %v2451
  %v2562 = vpack.c.b16 %v2454, %v2452
  %v2563 = vpack.c.b16 %v2457, %v2455
  %v2564 = vpack.c.b16 %v2458, %v2456
  %v2565 = vpack.c.b16 %v2461, %v2459
  %v2566 = vpack.c.b16 %v2462, %v2460
  %v2567 = vpack.c.b16 %v2465, %v2463
  %v2568 = vpack.c.b16 %v2466, %v2464
  %v2569 = vpack.c.b16 %v2469, %v2467
  %v2570 = vpack.c.b16 %v2470, %v2468
  %v2571 = vpack.c.b16 %v2473, %v2471
  %v2572 = vpack.c.b16 %v2474, %v2472
  %v2573 = vpack.c.b16 %v2477, %v2475
  %v2574 = vpack.c.b16 %v2478, %v2476
  %v2575 = vpack.c.b16 %v2481, %v2479
  %v2576 = vpack.c.b16 %v2482, %v2480
  %v2577 = vpack.c.b16 %v2485, %v2483
  %v2578 = vpack.c.b16 %v2486, %v2484
  %v2579 = vpack.c.b16 %v2489, %v2487
  %v2580 = vpack.c.b16 %v2490, %v2488
  %v2581 = vpack.c.b16 %v2493, %v2491
  %v2582 = vpack.c.b16 %v2494, %v2492
  %v2583 = vpack.c.b16 %v2497, %v2495
  %v2584 = vpack.c.b16 %v2498, %v2496
  %v2585 = vpack.c.b16 %v2501, %v2499
  %v2586 = vpack.c.b16 %v2502, %v2500
  %v2587 = vpack.c.b16 %v2505, %v2503
  %v2588 = vpack.c.b16 %v2506, %v2504
  %v2589 = vpack.c.b16 %v2509, %v2507
  %v2590 = vpack.c.b16 %v2510, %v2508
  %v2591 = vpack.c.b16 %v2513, %v2511
  %v2592 = vpack.c.b16 %v2514, %v2512
  %v2593 = vpack.c.b16 %v2517, %v2515
  %v2594 = vpack.c.b16 %v2518, %v2516
  %v2595 = vpack.c.b16 %v2521, %v2519
  %v2596 = vpack.c.b16 %v2522, %v2520
  %v2597 = vpack.c.b16 %v2525, %v2523
  %v2598 = vpack.c.b16 %v2526, %v2524
  %v2599 = vpack.c.b16 %v2529, %v2527
  %v2600 = vpack.c.b16 %v2530, %v2528
  %v2601 = vpack.c.b16 %v2533, %v2531
  %v2602 = vpack.c.b16 %v2534, %v2532
  %v2603 = vpack.c.b16 %v2537, %v2535
  %v2604 = vpack.c.b16 %v2538, %v2536
  %v2605 = vpack.c.b16 %v2541, %v2539
  %v2606 = vpack.c.b16 %v2542, %v2540
  %2671 = vmatprep.subr.bf16.mxu0 %v2558
  %2672 = vmatpush1.bf16.msra.mxu0 %v2557
  %2673 = vmatprep.subr.bf16.mxu0 %v2556
  %2674 = vmatpush1.bf16.msra.mxu0 %v2555
  %2675 = vmatprep.subr.bf16.mxu0 %v2554
  %2676 = vmatpush1.bf16.msra.mxu0 %v2553
  %2677 = vmatprep.subr.bf16.mxu0 %v2552
  %2678 = vmatpush1.bf16.msra.mxu0 %v2551
  %2679 = vmatprep.subr.bf16.mxu0 %v2550
  %2680 = vmatpush1.bf16.msra.mxu0 %v2549
  %2681 = vmatprep.subr.bf16.mxu0 %v2548
  %2682 = vmatpush1.bf16.msra.mxu0 %v2547
  %2683 = vmatprep.subr.bf16.mxu0 %v2546
  %2684 = vmatpush1.bf16.msra.mxu0 %v2545
  %2685 = vmatprep.subr.bf16.mxu0 %v2544
  %2686 = vmatpush1.bf16.msra.mxu0 %v2543
  %2687 = vmatprep.subr.bf16.mxu0 %v2574
  %2688 = vmatpush2.bf16.msra.mxu0 %v2573
  %2689 = vmatprep.subr.bf16.mxu0 %v2572
  %2690 = vmatpush2.bf16.msra.mxu0 %v2571
  %2691 = vmatprep.subr.bf16.mxu0 %v2570
  %2692 = vmatpush2.bf16.msra.mxu0 %v2569
  %2693 = vmatprep.subr.bf16.mxu0 %v2568
  %2694 = vmatpush2.bf16.msra.mxu0 %v2567
  %2695 = vmatprep.subr.bf16.mxu0 %v2566
  %2696 = vmatpush2.bf16.msra.mxu0 %v2565
  %2697 = vmatprep.subr.bf16.mxu0 %v2564
  %2698 = vmatpush2.bf16.msra.mxu0 %v2563
  %2699 = vmatprep.subr.bf16.mxu0 %v2562
  %2700 = vmatpush2.bf16.msra.mxu0 %v2561
  %2701 = vmatprep.subr.bf16.mxu0 %v2560
  %2702 = vmatpush2.bf16.msra.mxu0 %v2559
  %2703 = vmatprep.mubr.bf16.mxu0 %v2272
  %2704 = vmatmul.mubr.bf16.gmra.mxu0 %v2271
  %v2705 = vpop.f32.mrf.mxu0
  %v2706 = vadd.f32 %v2344, %v2705
  %v2707 = vpop.f32.mrf.mxu0
  %v2708 = vadd.f32 %v2348, %v2707
  %v2709 = vpop.f32.mrf.mxu0
  %v2710 = vadd.f32 %v2344, %v2709
  %v2711 = vpop.f32.mrf.mxu0
  %v2712 = vadd.f32 %v2348, %v2711
  %2713 = vdwg.mxu0
  %2714 = vmatprep.subr.bf16.mxu0 %v2590
  %2715 = vmatpush1.bf16.msra.mxu0 %v2589
  %2716 = vmatprep.subr.bf16.mxu0 %v2588
  %2717 = vmatpush1.bf16.msra.mxu0 %v2587
  %2718 = vmatprep.subr.bf16.mxu0 %v2586
  %2719 = vmatpush1.bf16.msra.mxu0 %v2585
  %2720 = vmatprep.subr.bf16.mxu0 %v2584
  %2721 = vmatpush1.bf16.msra.mxu0 %v2583
  %2722 = vmatprep.subr.bf16.mxu0 %v2582
  %2723 = vmatpush1.bf16.msra.mxu0 %v2581
  %2724 = vmatprep.subr.bf16.mxu0 %v2580
  %2725 = vmatpush1.bf16.msra.mxu0 %v2579
  %2726 = vmatprep.subr.bf16.mxu0 %v2578
  %2727 = vmatpush1.bf16.msra.mxu0 %v2577
  %2728 = vmatprep.subr.bf16.mxu0 %v2576
  %2729 = vmatpush1.bf16.msra.mxu0 %v2575
  %2730 = vmatprep.subr.bf16.mxu0 %v2606
  %2731 = vmatpush2.bf16.msra.mxu0 %v2605
  %2732 = vmatprep.subr.bf16.mxu0 %v2604
  %2733 = vmatpush2.bf16.msra.mxu0 %v2603
  %2734 = vmatprep.subr.bf16.mxu0 %v2602
  %2735 = vmatpush2.bf16.msra.mxu0 %v2601
  %2736 = vmatprep.subr.bf16.mxu0 %v2600
  %2737 = vmatpush2.bf16.msra.mxu0 %v2599
  %2738 = vmatprep.subr.bf16.mxu0 %v2598
  %2739 = vmatpush2.bf16.msra.mxu0 %v2597
  %2740 = vmatprep.subr.bf16.mxu0 %v2596
  %2741 = vmatpush2.bf16.msra.mxu0 %v2595
  %2742 = vmatprep.subr.bf16.mxu0 %v2594
  %2743 = vmatpush2.bf16.msra.mxu0 %v2593
  %2744 = vmatprep.subr.bf16.mxu0 %v2592
  %2745 = vmatpush2.bf16.msra.mxu0 %v2591
  %2746 = vmatprep.mubr.bf16.mxu0 %v2274
  %2747 = vmatmul.mubr.bf16.gmra.mxu0 %v2273
  %v2748 = vpop.f32.mrf.mxu0
  %v2749 = vadd.f32 %v2706, %v2748
  %v2750 = vpop.f32.mrf.mxu0
  %v2751 = vadd.f32 %v2708, %v2750
  %v2752 = vpop.f32.mrf.mxu0
  %v2753 = vadd.f32 %v2710, %v2752
  %v2754 = vpop.f32.mrf.mxu0
  %v2755 = vadd.f32 %v2712, %v2754
  %2756 = vdwg.mxu0
  %v2757 = vmax.f32 %v2749, 0.0
  %v2758 = vmax.f32 %v2751, 0.0
  %v2759 = vmax.f32 %v2753, 0.0
  %v2760 = vmax.f32 %v2755, 0.0
  %v2761 = vpack.c.bf16 %v2759, %v2757
  %v2762 = vpack.c.bf16 %v2760, %v2758
  %v2763 = vld [vmem:[%s5] sm:$0xf]
  %v2764 = vld [vmem:[%s5 + $0x4] sm:$0xf]
  %v2765 = vld [vmem:[%s5 + $0x8] sm:$0xf]
  %v2766 = vld [vmem:[%s5 + $0xc] sm:$0xf]
  %v2767 = vld [vmem:[%s5 + $0x10] sm:$0xf]
  %v2768 = vld [vmem:[%s5 + $0x14] sm:$0xf]
  %v2769 = vld [vmem:[%s5 + $0x18] sm:$0xf]
  %v2770 = vld [vmem:[%s5 + $0x1c] sm:$0xf]
  %v2771 = vld [vmem:[%s5 + $0x20] sm:$0xf]
  %v2772 = vld [vmem:[%s5 + $0x24] sm:$0xf]
  %v2773 = vld [vmem:[%s5 + $0x28] sm:$0xf]
  %v2774 = vld [vmem:[%s5 + $0x2c] sm:$0xf]
  %v2775 = vld [vmem:[%s5 + $0x30] sm:$0xf]
  %v2776 = vld [vmem:[%s5 + $0x34] sm:$0xf]
  %v2777 = vld [vmem:[%s5 + $0x38] sm:$0xf]
  %v2778 = vld [vmem:[%s5 + $0x3c] sm:$0xf]
  %v2779 = vld [vmem:[%s5 + $0x40] sm:$0xf]
  %v2780 = vld [vmem:[%s5 + $0x44] sm:$0xf]
  %v2781 = vld [vmem:[%s5 + $0x48] sm:$0xf]
  %v2782 = vld [vmem:[%s5 + $0x4c] sm:$0xf]
  %v2783 = vld [vmem:[%s5 + $0x50] sm:$0xf]
  %v2784 = vld [vmem:[%s5 + $0x54] sm:$0xf]
  %v2785 = vld [vmem:[%s5 + $0x58] sm:$0xf]
  %v2786 = vld [vmem:[%s5 + $0x5c] sm:$0xf]
  %v2787 = vld [vmem:[%s5 + $0x60] sm:$0xf]
  %v2788 = vld [vmem:[%s5 + $0x64] sm:$0xf]
  %v2789 = vld [vmem:[%s5 + $0x68] sm:$0xf]
  %v2790 = vld [vmem:[%s5 + $0x6c] sm:$0xf]
  %v2791 = vld [vmem:[%s5 + $0x70] sm:$0xf]
  %v2792 = vld [vmem:[%s5 + $0x74] sm:$0xf]
  %v2793 = vld [vmem:[%s5 + $0x78] sm:$0xf]
  %v2794 = vld [vmem:[%s5 + $0x7c] sm:$0xf]
  %v2795 = vld [vmem:[%s6] sm:$0x1]
  %v2797 = vlaneseq
  %v2798 = vshrl.u32 %v2797, 7
  %v2799 = vsub.s32 0, %v2798
  %v2800 = vrot.slane %v2795, %v2799
  %v2834 = vunpack.c.l.b16 %v2763
  %v2835 = vunpack.c.l.b16 %v2764
  %v2836 = vunpack.c.l.b16 %v2765
  %v2837 = vunpack.c.l.b16 %v2766
  %v2838 = vunpack.c.l.b16 %v2767
  %v2839 = vunpack.c.l.b16 %v2768
  %v2840 = vunpack.c.l.b16 %v2769
  %v2841 = vunpack.c.l.b16 %v2770
  %v2842 = vunpack.c.l.b16 %v2771
  %v2843 = vunpack.c.l.b16 %v2772
  %v2844 = vunpack.c.l.b16 %v2773
  %v2845 = vunpack.c.l.b16 %v2774
  %v2846 = vunpack.c.l.b16 %v2775
  %v2847 = vunpack.c.l.b16 %v2776
  %v2848 = vunpack.c.l.b16 %v2777
  %v2849 = vunpack.c.l.b16 %v2778
  %v2850 = vunpack.c.l.b16 %v2779
  %v2851 = vunpack.c.l.b16 %v2780
  %v2852 = vunpack.c.l.b16 %v2781
  %v2853 = vunpack.c.l.b16 %v2782
  %v2854 = vunpack.c.l.b16 %v2783
  %v2855 = vunpack.c.l.b16 %v2784
  %v2856 = vunpack.c.l.b16 %v2785
  %v2857 = vunpack.c.l.b16 %v2786
  %v2858 = vunpack.c.l.b16 %v2787
  %v2859 = vunpack.c.l.b16 %v2788
  %v2860 = vunpack.c.l.b16 %v2789
  %v2861 = vunpack.c.l.b16 %v2790
  %v2862 = vunpack.c.l.b16 %v2791
  %v2863 = vunpack.c.l.b16 %v2792
  %v2864 = vunpack.c.l.b16 %v2793
  %v2865 = vunpack.c.l.b16 %v2794
  %v2866 = vpack.c.b16 %v2835, %v2834
  %v2867 = vpack.c.b16 %v2837, %v2836
  %v2868 = vpack.c.b16 %v2839, %v2838
  %v2869 = vpack.c.b16 %v2841, %v2840
  %v2870 = vpack.c.b16 %v2843, %v2842
  %v2871 = vpack.c.b16 %v2845, %v2844
  %v2872 = vpack.c.b16 %v2847, %v2846
  %v2873 = vpack.c.b16 %v2849, %v2848
  %v2874 = vpack.c.b16 %v2851, %v2850
  %v2875 = vpack.c.b16 %v2853, %v2852
  %v2876 = vpack.c.b16 %v2855, %v2854
  %v2877 = vpack.c.b16 %v2857, %v2856
  %v2878 = vpack.c.b16 %v2859, %v2858
  %v2879 = vpack.c.b16 %v2861, %v2860
  %v2880 = vpack.c.b16 %v2863, %v2862
  %v2881 = vpack.c.b16 %v2865, %v2864
  %2898 = vmatprep.subr.bf16.mxu0 0
  %2899 = vmatpush1.bf16.msra.mxu0 %v2873
  %2900 = vmatprep.subr.bf16.mxu0 0
  %2901 = vmatpush1.bf16.msra.mxu0 %v2872
  %2902 = vmatprep.subr.bf16.mxu0 0
  %2903 = vmatpush1.bf16.msra.mxu0 %v2871
  %2904 = vmatprep.subr.bf16.mxu0 0
  %2905 = vmatpush1.bf16.msra.mxu0 %v2870
  %2906 = vmatprep.subr.bf16.mxu0 0
  %2907 = vmatpush1.bf16.msra.mxu0 %v2869
  %2908 = vmatprep.subr.bf16.mxu0 0
  %2909 = vmatpush1.bf16.msra.mxu0 %v2868
  %2910 = vmatprep.subr.bf16.mxu0 0
  %2911 = vmatpush1.bf16.msra.mxu0 %v2867
  %2912 = vmatprep.subr.bf16.mxu0 0
  %2913 = vmatpush1.bf16.msra.mxu0 %v2866
  %2914 = vmatprep.subr.bf16.mxu0 0
  %2915 = vmatpush2.bf16.msra.mxu0 %v2881
  %2916 = vmatprep.subr.bf16.mxu0 0
  %2917 = vmatpush2.bf16.msra.mxu0 %v2880
  %2918 = vmatprep.subr.bf16.mxu0 0
  %2919 = vmatpush2.bf16.msra.mxu0 %v2879
  %2920 = vmatprep.subr.bf16.mxu0 0
  %2921 = vmatpush2.bf16.msra.mxu0 %v2878
  %2922 = vmatprep.subr.bf16.mxu0 0
  %2923 = vmatpush2.bf16.msra.mxu0 %v2877
  %2924 = vmatprep.subr.bf16.mxu0 0
  %2925 = vmatpush2.bf16.msra.mxu0 %v2876
  %2926 = vmatprep.subr.bf16.mxu0 0
  %2927 = vmatpush2.bf16.msra.mxu0 %v2875
  %2928 = vmatprep.subr.bf16.mxu0 0
  %2929 = vmatpush2.bf16.msra.mxu0 %v2874
  %2930 = vmatprep.mubr.bf16.mxu0 %v2762
  %2931 = vmatmul.mubr.bf16.gmra.mxu0 %v2761
  %v2932 = vpop.f32.mrf.mxu0
  %v2933 = vadd.f32 %v2800, %v2932
  %v2934 = vpop.f32.mrf.mxu0
  %v2935 = vpop.f32.mrf.mxu0
  %v2936 = vadd.f32 %v2800, %v2935
  %v2937 = vpop.f32.mrf.mxu0
  %2938 = vdwg.mxu0
  %2939 = vst [vmem:[%s7] sm:$0xff] %v2933
  %2940 = vst [vmem:[%s7 + $0x8] sm:$0xff] %v2936
  // Predicated region
  $region30: #{mnist_cnn_forward.7} parent=0 // pred_check
    _
  $region31: #{mnist_cnn_forward.7} parent=0 // pred_check_branch
    %2942 = sbr.rel (0) target = $region33
  $region32: #{mnist_cnn_forward.7} parent=0 // pred_region
    _
  $region33: #{mnist_cnn_forward.7} parent=0 // pred_fallthru
    _
  // Predicated region
  $region34: #{mnist_cnn_forward.7} parent=0 // pred_check
    _
  $region35: #{mnist_cnn_forward.7} parent=0 // pred_check_branch
    %2944 = sbr.rel (0) target = $region37
  $region36: #{mnist_cnn_forward.7} parent=0 // pred_region
    _
  $region37: #{mnist_cnn_forward.7} parent=0 // pred_fallthru
    _

</llo_original>
